<compile_context>
chip_gen: v7x
topology: tpu7x:2x2x1
jax: 0.10.0
libtpu: 0.0.40
codegen_flags: <defaults>
</compile_context>

<pallas_src>
import math
import numpy as np

import jax
import jax.numpy as jnp
from jax import lax
from jax.experimental import pallas as pl
from jax.experimental.pallas import tpu as pltpu


# Flip to jnp.bfloat16 on v6e/v7x once the block is compute-bound at real
# channel counts: prepare_params() then stores the weights in bf16 and the
# padded scratch is allocated in bf16, so no casts land in the hot loop
# (accumulation stays f32 via preferred_element_type).  Default f32 so the
# numerics match the reference exactly and v5e (no bf16 VPU) stays on its
# native path.
_MATMUL_DTYPE = jnp.float32


# ----------------------------------------------------------------------------
# Fused kernel: affine+ReLU -> conv3x3 -> affine+ReLU -> conv3x3 -> +residual
# ----------------------------------------------------------------------------
def _basic_block_kernel(x_ref, a1_ref, b1_ref, w1_ref, a2_ref, b2_ref, w2_ref,
                        o_ref, pad_ref):
    # x_ref  : (Bt, H*W, C)     Bt images, NHWC flattened over space (C on lanes)
    # a*/b*  : (1, C)           per-channel affine (My_norm2d, eval path)
    # w*     : (9*C, C)         im2col weights, row = (kh*3 + kw)*Cin + cin
    # o_ref  : (Bt, H*W, C)
    # pad_ref: (Bt, H+2, W+2, C) VMEM scratch (matmul dtype), reused by both convs
    Bt, Hp, Wp, C = pad_ref.shape
    H, W = Hp - 2, Wp - 2
    M = Bt * H * W

    # Zero the padded scratch ONCE per grid step.  Both convs only overwrite
    # the interior, so the 1-pixel zero border stays valid for conv2 as well.
    pad_ref[...] = jnp.zeros_like(pad_ref)

    def conv3x3(y, w_ref):
        # y: (M, C) f32 activation.  Single interior store, build the
        # (M, 9*C) im2col slab, and run ONE MXU matmul with K = 9*C.
        pad_ref[:, 1:H + 1, 1:W + 1, :] = (
            y.reshape(Bt, H, W, C).astype(pad_ref.dtype))
        taps = []
        for kh in range(3):
            for kw in range(3):
                taps.append(
                    pad_ref[:, kh:kh + H, kw:kw + W, :].reshape(M, C))
        col = jnp.concatenate(taps, axis=-1)                    # (M, 9*C)
        return jnp.dot(col, w_ref[...],
                       preferred_element_type=jnp.float32)      # (M, C) f32

    x = x_ref[...].reshape(M, C).astype(jnp.float32)

    # ---- norm1 (eval-mode per-channel affine) + ReLU, fused on the VPU ----
    y1 = jnp.maximum(x * a1_ref[...] + b1_ref[...], 0.0)
    h1 = conv3x3(y1, w1_ref)

    # ---- norm2 + ReLU ----
    y2 = jnp.maximum(h1 * a2_ref[...] + b2_ref[...], 0.0)
    h2 = conv3x3(y2, w2_ref)

    # ---- residual: re-read x from its (already resident) VMEM block rather
    # than keeping the activation live across both convs ----
    out = h2 + x_ref[...].reshape(M, C).astype(jnp.float32)
    o_ref[...] = out.reshape(Bt, H * W, C).astype(o_ref.dtype)


# ----------------------------------------------------------------------------
# One-time parameter layout prep (hoisted out of the forward path).
# ----------------------------------------------------------------------------
def prepare_params(params, compute_dtype=_MATMUL_DTYPE):
    def to_im2col(w_oihw):
        cout, cin = w_oihw.shape[0], w_oihw.shape[1]
        # (Cout, Cin, 3, 3) -> (3, 3, Cin, Cout) -> (9*Cin, Cout);
        # row index (kh*3 + kw)*Cin + cin matches the kernel's tap-major slab.
        w = jnp.transpose(w_oihw, (2, 3, 1, 0)).reshape(9 * cin, cout)
        return w.astype(compute_dtype)

    return {
        "a1": params["alpha1"].reshape(1, -1),
        "b1": params["beta1"].reshape(1, -1),
        "w1": to_im2col(params["w1"]),
        "a2": params["alpha2"].reshape(1, -1),
        "b2": params["beta2"].reshape(1, -1),
        "w2": to_im2col(params["w2"]),
    }


# ----------------------------------------------------------------------------
# BasicBlock forward (stride=1, downsample=None): single fused pallas_call.
# Activations are channels-last NHWC; keep them NHWC between blocks and convert
# from PyTorch NCHW once at the model boundary (a per-block transpose pair
# would double the block's HBM traffic).
# ----------------------------------------------------------------------------
def basic_block_forward(x_nhwc, prepped, *, block_batch=None):
    N, H, W, C = x_nhwc.shape
    if block_batch is None:
        block_batch = 1
        for cand in range(min(N, 8), 0, -1):   # largest divisor of N, <= 8
            if N % cand == 0:
                block_batch = cand
                break
    assert N % block_batch == 0
    Bt = block_batch

    x_flat = x_nhwc.reshape(N, H * W, C)       # free reshape, no transpose

    out_flat = pl.pallas_call(
        _basic_block_kernel,
        out_shape=jax.ShapeDtypeStruct((N, H * W, C), x_nhwc.dtype),
        grid=(N // Bt,),
        in_specs=[
            pl.BlockSpec((Bt, H * W, C), lambda n: (n, 0, 0)),   # x (Bt images)
            pl.BlockSpec((1, C), lambda n: (0, 0)),              # alpha1
            pl.BlockSpec((1, C), lambda n: (0, 0)),              # beta1
            pl.BlockSpec((9 * C, C), lambda n: (0, 0)),          # w1 (im2col)
            pl.BlockSpec((1, C), lambda n: (0, 0)),              # alpha2
            pl.BlockSpec((1, C), lambda n: (0, 0)),              # beta2
            pl.BlockSpec((9 * C, C), lambda n: (0, 0)),          # w2 (im2col)
        ],
        out_specs=pl.BlockSpec((Bt, H * W, C), lambda n: (n, 0, 0)),
        scratch_shapes=[pltpu.VMEM((Bt, H + 2, W + 2, C), _MATMUL_DTYPE)],
        compiler_params=pltpu.CompilerParams(
            dimension_semantics=("parallel",),
            vmem_limit_bytes=32 * 1024 * 1024),
    )(x_flat, prepped["a1"], prepped["b1"], prepped["w1"],
      prepped["a2"], prepped["b2"], prepped["w2"])

    return out_flat.reshape(N, H, W, C)


# ----------------------------------------------------------------------------
# Pure-JAX reference (mirrors the PyTorch eval forward, NHWC) for verification.
# ----------------------------------------------------------------------------
def reference_forward(x_nhwc, params):
    def affine(x, a, b):
        return a[None, None, None, :] * x + b[None, None, None, :]

    def conv(x, w_oihw):
        w_hwio = jnp.transpose(w_oihw, (2, 3, 1, 0))
        return lax.conv_general_dilated(
            x, w_hwio, window_strides=(1, 1), padding=((1, 1), (1, 1)),
            dimension_numbers=("NHWC", "HWIO", "NHWC"))

    y = jnp.maximum(affine(x_nhwc, params["alpha1"], params["beta1"]), 0.0)
    y = conv(y, params["w1"])
    y = jnp.maximum(affine(y, params["alpha2"], params["beta2"]), 0.0)
    y = conv(y, params["w2"])
    return y + x_nhwc


# ----------------------------------------------------------------------------
# Deterministic parameter initialization (matches module __init__ shapes).
# ----------------------------------------------------------------------------
def init_params(key, inplanes, planes):
    k1, k2 = jax.random.split(key)
    scale1 = 0.5 - 1.0 / math.sqrt(inplanes)
    scale2 = 0.5 - 1.0 / math.sqrt(planes)
    # kaiming_normal_(mode='fan_out', relu): std = sqrt(2 / (Cout*k*k))
    std1 = math.sqrt(2.0 / (planes * 9))
    std2 = math.sqrt(2.0 / (planes * 9))
    return {
        "alpha1": jnp.full((inplanes,), scale1, jnp.float32),
        "beta1": jnp.zeros((inplanes,), jnp.float32),
        "w1": jax.random.normal(k1, (planes, inplanes, 3, 3), jnp.float32) * std1,
        "alpha2": jnp.full((planes,), scale2, jnp.float32),
        "beta2": jnp.zeros((planes,), jnp.float32),
        "w2": jax.random.normal(k2, (planes, planes, 3, 3), jnp.float32) * std2,
    }


if __name__ == "__main__":
    key = jax.random.PRNGKey(0)
    kx, kp = jax.random.split(key)

    N, C, H, W = 2, 8, 16, 16                  # inplanes = planes = 8, stride=1
    # Channels-last activation (== PyTorch NCHW (2,8,16,16) transposed once at
    # the model boundary).
    x = jax.random.normal(kx, (N, H, W, C), jnp.float32)
    params = init_params(kp, inplanes=C, planes=C)
    prepped = prepare_params(params)           # one-time layout prep (hoisted)

    fwd = jax.jit(basic_block_forward)
    out = jax.block_until_ready(fwd(x, prepped))

    ref = jax.block_until_ready(reference_forward(x, params))
    np.testing.assert_allclose(np.asarray(out), np.asarray(ref),
                               atol=1e-4, rtol=1e-4)

    print("KERNEL_OK")
</pallas_src>

<mosaic_0001>
module attributes {stable_mosaic.version = 11 : i64} {
  func.func @_basic_block_kernel(%arg0: i32, %arg1: memref<2x256x8xf32, #tpu.memory_space<vmem>>, %arg2: memref<1x8xf32, #tpu.memory_space<vmem>>, %arg3: memref<1x8xf32, #tpu.memory_space<vmem>>, %arg4: memref<72x8xf32, #tpu.memory_space<vmem>>, %arg5: memref<1x8xf32, #tpu.memory_space<vmem>>, %arg6: memref<1x8xf32, #tpu.memory_space<vmem>>, %arg7: memref<72x8xf32, #tpu.memory_space<vmem>>, %arg8: memref<2x256x8xf32, #tpu.memory_space<vmem>>, %arg9: memref<2x18x18x8xf32, #tpu.memory_space<vmem>>) attributes {dimension_semantics = [#tpu.dimension_semantics<parallel>], iteration_bounds = array<i64: 1>, scalar_prefetch = 0 : i64, scratch_operands = 1 : i64, tpu.core_type = #tpu.core_type<tc>, window_params = [{transform_indices = @transform_0, window_bounds = array<i64: 2, 256, 8>}, {pipeline_mode = #tpu.pipeline_mode<synchronous>, transform_indices = @transform_1, window_bounds = array<i64: 1, 8>}, {pipeline_mode = #tpu.pipeline_mode<synchronous>, transform_indices = @transform_2, window_bounds = array<i64: 1, 8>}, {pipeline_mode = #tpu.pipeline_mode<synchronous>, transform_indices = @transform_3, window_bounds = array<i64: 72, 8>}, {pipeline_mode = #tpu.pipeline_mode<synchronous>, transform_indices = @transform_4, window_bounds = array<i64: 1, 8>}, {pipeline_mode = #tpu.pipeline_mode<synchronous>, transform_indices = @transform_5, window_bounds = array<i64: 1, 8>}, {pipeline_mode = #tpu.pipeline_mode<synchronous>, transform_indices = @transform_6, window_bounds = array<i64: 72, 8>}, {transform_indices = @transform_7, window_bounds = array<i64: 2, 256, 8>}]} {
    %cst = arith.constant 0.000000e+00 : f32
    %0 = vector.broadcast %cst : f32 to vector<2x18x18x8xf32>
    %c0 = arith.constant 0 : index
    %c0_0 = arith.constant 0 : index
    %c0_1 = arith.constant 0 : index
    %c0_2 = arith.constant 0 : index
    %1 = vector.load %arg9[%c0, %c0_0, %c0_1, %c0_2] : memref<2x18x18x8xf32, #tpu.memory_space<vmem>>, vector<2x18x18x8xf32>
    tpu.vector_store %arg9[%c0, %c0_0, %c0_1, %c0_2], %0 {strides = array<i32>} : memref<2x18x18x8xf32, #tpu.memory_space<vmem>>, vector<2x18x18x8xf32>,
    %c0_3 = arith.constant 0 : index
    %c0_4 = arith.constant 0 : index
    %c0_5 = arith.constant 0 : index
    %2 = vector.load %arg1[%c0_3, %c0_4, %c0_5] : memref<2x256x8xf32, #tpu.memory_space<vmem>>, vector<2x256x8xf32>
    %3 = vector.shape_cast %2 : vector<2x256x8xf32> to vector<512x8xf32>
    %c0_6 = arith.constant 0 : index
    %c0_7 = arith.constant 0 : index
    %4 = vector.load %arg2[%c0_6, %c0_7] : memref<1x8xf32, #tpu.memory_space<vmem>>, vector<1x8xf32>
    %5 = vector.broadcast %4 : vector<1x8xf32> to vector<512x8xf32>
    %6 = arith.mulf %3, %5 : vector<512x8xf32>
    %c0_8 = arith.constant 0 : index
    %c0_9 = arith.constant 0 : index
    %7 = vector.load %arg3[%c0_8, %c0_9] : memref<1x8xf32, #tpu.memory_space<vmem>>, vector<1x8xf32>
    %8 = vector.broadcast %7 : vector<1x8xf32> to vector<512x8xf32>
    %9 = arith.addf %6, %8 : vector<512x8xf32>
    %cst_10 = arith.constant 0.000000e+00 : f32
    %10 = vector.broadcast %cst_10 : f32 to vector<512x8xf32>
    %11 = arith.maximumf %9, %10 : vector<512x8xf32>
    %12 = vector.shape_cast %11 : vector<512x8xf32> to vector<2x16x16x8xf32>
    %c0_11 = arith.constant 0 : index
    %c1 = arith.constant 1 : index
    %c1_12 = arith.constant 1 : index
    %c0_13 = arith.constant 0 : index
    %13 = vector.load %arg9[%c0_11, %c1, %c1_12, %c0_13] : memref<2x18x18x8xf32, #tpu.memory_space<vmem>>, vector<2x16x16x8xf32>
    tpu.vector_store %arg9[%c0_11, %c1, %c1_12, %c0_13], %12 {strides = array<i32>} : memref<2x18x18x8xf32, #tpu.memory_space<vmem>>, vector<2x16x16x8xf32>,
    %c0_14 = arith.constant 0 : index
    %c0_15 = arith.constant 0 : index
    %c0_16 = arith.constant 0 : index
    %c0_17 = arith.constant 0 : index
    %14 = vector.load %arg9[%c0_14, %c0_15, %c0_16, %c0_17] : memref<2x18x18x8xf32, #tpu.memory_space<vmem>>, vector<2x16x16x8xf32>
    %15 = vector.shape_cast %14 : vector<2x16x16x8xf32> to vector<512x8xf32>
    %c0_18 = arith.constant 0 : index
    %c0_19 = arith.constant 0 : index
    %c1_20 = arith.constant 1 : index
    %c0_21 = arith.constant 0 : index
    %16 = vector.load %arg9[%c0_18, %c0_19, %c1_20, %c0_21] : memref<2x18x18x8xf32, #tpu.memory_space<vmem>>, vector<2x16x16x8xf32>
    %17 = vector.shape_cast %16 : vector<2x16x16x8xf32> to vector<512x8xf32>
    %c0_22 = arith.constant 0 : index
    %c0_23 = arith.constant 0 : index
    %c2 = arith.constant 2 : index
    %c0_24 = arith.constant 0 : index
    %18 = vector.load %arg9[%c0_22, %c0_23, %c2, %c0_24] : memref<2x18x18x8xf32, #tpu.memory_space<vmem>>, vector<2x16x16x8xf32>
    %19 = vector.shape_cast %18 : vector<2x16x16x8xf32> to vector<512x8xf32>
    %c0_25 = arith.constant 0 : index
    %c1_26 = arith.constant 1 : index
    %c0_27 = arith.constant 0 : index
    %c0_28 = arith.constant 0 : index
    %20 = vector.load %arg9[%c0_25, %c1_26, %c0_27, %c0_28] : memref<2x18x18x8xf32, #tpu.memory_space<vmem>>, vector<2x16x16x8xf32>
    %21 = vector.shape_cast %20 : vector<2x16x16x8xf32> to vector<512x8xf32>
    %c0_29 = arith.constant 0 : index
    %c1_30 = arith.constant 1 : index
    %c1_31 = arith.constant 1 : index
    %c0_32 = arith.constant 0 : index
    %22 = vector.load %arg9[%c0_29, %c1_30, %c1_31, %c0_32] : memref<2x18x18x8xf32, #tpu.memory_space<vmem>>, vector<2x16x16x8xf32>
    %23 = vector.shape_cast %22 : vector<2x16x16x8xf32> to vector<512x8xf32>
    %c0_33 = arith.constant 0 : index
    %c1_34 = arith.constant 1 : index
    %c2_35 = arith.constant 2 : index
    %c0_36 = arith.constant 0 : index
    %24 = vector.load %arg9[%c0_33, %c1_34, %c2_35, %c0_36] : memref<2x18x18x8xf32, #tpu.memory_space<vmem>>, vector<2x16x16x8xf32>
    %25 = vector.shape_cast %24 : vector<2x16x16x8xf32> to vector<512x8xf32>
    %c0_37 = arith.constant 0 : index
    %c2_38 = arith.constant 2 : index
    %c0_39 = arith.constant 0 : index
    %c0_40 = arith.constant 0 : index
    %26 = vector.load %arg9[%c0_37, %c2_38, %c0_39, %c0_40] : memref<2x18x18x8xf32, #tpu.memory_space<vmem>>, vector<2x16x16x8xf32>
    %27 = vector.shape_cast %26 : vector<2x16x16x8xf32> to vector<512x8xf32>
    %c0_41 = arith.constant 0 : index
    %c2_42 = arith.constant 2 : index
    %c1_43 = arith.constant 1 : index
    %c0_44 = arith.constant 0 : index
    %28 = vector.load %arg9[%c0_41, %c2_42, %c1_43, %c0_44] : memref<2x18x18x8xf32, #tpu.memory_space<vmem>>, vector<2x16x16x8xf32>
    %29 = vector.shape_cast %28 : vector<2x16x16x8xf32> to vector<512x8xf32>
    %c0_45 = arith.constant 0 : index
    %c2_46 = arith.constant 2 : index
    %c2_47 = arith.constant 2 : index
    %c0_48 = arith.constant 0 : index
    %30 = vector.load %arg9[%c0_45, %c2_46, %c2_47, %c0_48] : memref<2x18x18x8xf32, #tpu.memory_space<vmem>>, vector<2x16x16x8xf32>
    %31 = vector.shape_cast %30 : vector<2x16x16x8xf32> to vector<512x8xf32>
    %32 = tpu.concatenate %15, %17, %19, %21, %23, %25, %27, %29, %31 in 1 : vector<512x8xf32>, vector<512x8xf32>, vector<512x8xf32>, vector<512x8xf32>, vector<512x8xf32>, vector<512x8xf32>, vector<512x8xf32>, vector<512x8xf32>, vector<512x8xf32> -> vector<512x72xf32>
    %c0_49 = arith.constant 0 : index
    %c0_50 = arith.constant 0 : index
    %33 = vector.load %arg4[%c0_49, %c0_50] : memref<72x8xf32, #tpu.memory_space<vmem>>, vector<72x8xf32>
    %cst_51 = arith.constant dense<0.000000e+00> : vector<512x8xf32>
    %34 = tpu.matmul %32, %33, %cst_51 {dimension_numbers = #tpu.dot_dimension_numbers<[1], [0], [0], [1], [0, 0, 1, 1], [], []>} : vector<512x72xf32>, vector<72x8xf32>, vector<512x8xf32> -> vector<512x8xf32>
    %c0_52 = arith.constant 0 : index
    %c0_53 = arith.constant 0 : index
    %35 = vector.load %arg5[%c0_52, %c0_53] : memref<1x8xf32, #tpu.memory_space<vmem>>, vector<1x8xf32>
    %36 = vector.broadcast %35 : vector<1x8xf32> to vector<512x8xf32>
    %37 = arith.mulf %34, %36 : vector<512x8xf32>
    %c0_54 = arith.constant 0 : index
    %c0_55 = arith.constant 0 : index
    %38 = vector.load %arg6[%c0_54, %c0_55] : memref<1x8xf32, #tpu.memory_space<vmem>>, vector<1x8xf32>
    %39 = vector.broadcast %38 : vector<1x8xf32> to vector<512x8xf32>
    %40 = arith.addf %37, %39 : vector<512x8xf32>
    %cst_56 = arith.constant 0.000000e+00 : f32
    %41 = vector.broadcast %cst_56 : f32 to vector<512x8xf32>
    %42 = arith.maximumf %40, %41 : vector<512x8xf32>
    %43 = vector.shape_cast %42 : vector<512x8xf32> to vector<2x16x16x8xf32>
    %c0_57 = arith.constant 0 : index
    %c1_58 = arith.constant 1 : index
    %c1_59 = arith.constant 1 : index
    %c0_60 = arith.constant 0 : index
    %44 = vector.load %arg9[%c0_57, %c1_58, %c1_59, %c0_60] : memref<2x18x18x8xf32, #tpu.memory_space<vmem>>, vector<2x16x16x8xf32>
    tpu.vector_store %arg9[%c0_57, %c1_58, %c1_59, %c0_60], %43 {strides = array<i32>} : memref<2x18x18x8xf32, #tpu.memory_space<vmem>>, vector<2x16x16x8xf32>,
    %c0_61 = arith.constant 0 : index
    %c0_62 = arith.constant 0 : index
    %c0_63 = arith.constant 0 : index
    %c0_64 = arith.constant 0 : index
    %45 = vector.load %arg9[%c0_61, %c0_62, %c0_63, %c0_64] : memref<2x18x18x8xf32, #tpu.memory_space<vmem>>, vector<2x16x16x8xf32>
    %46 = vector.shape_cast %45 : vector<2x16x16x8xf32> to vector<512x8xf32>
    %c0_65 = arith.constant 0 : index
    %c0_66 = arith.constant 0 : index
    %c1_67 = arith.constant 1 : index
    %c0_68 = arith.constant 0 : index
    %47 = vector.load %arg9[%c0_65, %c0_66, %c1_67, %c0_68] : memref<2x18x18x8xf32, #tpu.memory_space<vmem>>, vector<2x16x16x8xf32>
    %48 = vector.shape_cast %47 : vector<2x16x16x8xf32> to vector<512x8xf32>
    %c0_69 = arith.constant 0 : index
    %c0_70 = arith.constant 0 : index
    %c2_71 = arith.constant 2 : index
    %c0_72 = arith.constant 0 : index
    %49 = vector.load %arg9[%c0_69, %c0_70, %c2_71, %c0_72] : memref<2x18x18x8xf32, #tpu.memory_space<vmem>>, vector<2x16x16x8xf32>
    %50 = vector.shape_cast %49 : vector<2x16x16x8xf32> to vector<512x8xf32>
    %c0_73 = arith.constant 0 : index
    %c1_74 = arith.constant 1 : index
    %c0_75 = arith.constant 0 : index
    %c0_76 = arith.constant 0 : index
    %51 = vector.load %arg9[%c0_73, %c1_74, %c0_75, %c0_76] : memref<2x18x18x8xf32, #tpu.memory_space<vmem>>, vector<2x16x16x8xf32>
    %52 = vector.shape_cast %51 : vector<2x16x16x8xf32> to vector<512x8xf32>
    %c0_77 = arith.constant 0 : index
    %c1_78 = arith.constant 1 : index
    %c1_79 = arith.constant 1 : index
    %c0_80 = arith.constant 0 : index
    %53 = vector.load %arg9[%c0_77, %c1_78, %c1_79, %c0_80] : memref<2x18x18x8xf32, #tpu.memory_space<vmem>>, vector<2x16x16x8xf32>
    %54 = vector.shape_cast %53 : vector<2x16x16x8xf32> to vector<512x8xf32>
    %c0_81 = arith.constant 0 : index
    %c1_82 = arith.constant 1 : index
    %c2_83 = arith.constant 2 : index
    %c0_84 = arith.constant 0 : index
    %55 = vector.load %arg9[%c0_81, %c1_82, %c2_83, %c0_84] : memref<2x18x18x8xf32, #tpu.memory_space<vmem>>, vector<2x16x16x8xf32>
    %56 = vector.shape_cast %55 : vector<2x16x16x8xf32> to vector<512x8xf32>
    %c0_85 = arith.constant 0 : index
    %c2_86 = arith.constant 2 : index
    %c0_87 = arith.constant 0 : index
    %c0_88 = arith.constant 0 : index
    %57 = vector.load %arg9[%c0_85, %c2_86, %c0_87, %c0_88] : memref<2x18x18x8xf32, #tpu.memory_space<vmem>>, vector<2x16x16x8xf32>
    %58 = vector.shape_cast %57 : vector<2x16x16x8xf32> to vector<512x8xf32>
    %c0_89 = arith.constant 0 : index
    %c2_90 = arith.constant 2 : index
    %c1_91 = arith.constant 1 : index
    %c0_92 = arith.constant 0 : index
    %59 = vector.load %arg9[%c0_89, %c2_90, %c1_91, %c0_92] : memref<2x18x18x8xf32, #tpu.memory_space<vmem>>, vector<2x16x16x8xf32>
    %60 = vector.shape_cast %59 : vector<2x16x16x8xf32> to vector<512x8xf32>
    %c0_93 = arith.constant 0 : index
    %c2_94 = arith.constant 2 : index
    %c2_95 = arith.constant 2 : index
    %c0_96 = arith.constant 0 : index
    %61 = vector.load %arg9[%c0_93, %c2_94, %c2_95, %c0_96] : memref<2x18x18x8xf32, #tpu.memory_space<vmem>>, vector<2x16x16x8xf32>
    %62 = vector.shape_cast %61 : vector<2x16x16x8xf32> to vector<512x8xf32>
    %63 = tpu.concatenate %46, %48, %50, %52, %54, %56, %58, %60, %62 in 1 : vector<512x8xf32>, vector<512x8xf32>, vector<512x8xf32>, vector<512x8xf32>, vector<512x8xf32>, vector<512x8xf32>, vector<512x8xf32>, vector<512x8xf32>, vector<512x8xf32> -> vector<512x72xf32>
    %c0_97 = arith.constant 0 : index
    %c0_98 = arith.constant 0 : index
    %64 = vector.load %arg7[%c0_97, %c0_98] : memref<72x8xf32, #tpu.memory_space<vmem>>, vector<72x8xf32>
    %cst_99 = arith.constant dense<0.000000e+00> : vector<512x8xf32>
    %65 = tpu.matmul %63, %64, %cst_99 {dimension_numbers = #tpu.dot_dimension_numbers<[1], [0], [0], [1], [0, 0, 1, 1], [], []>} : vector<512x72xf32>, vector<72x8xf32>, vector<512x8xf32> -> vector<512x8xf32>
    %c0_100 = arith.constant 0 : index
    %c0_101 = arith.constant 0 : index
    %c0_102 = arith.constant 0 : index
    %66 = vector.load %arg1[%c0_100, %c0_101, %c0_102] : memref<2x256x8xf32, #tpu.memory_space<vmem>>, vector<2x256x8xf32>
    %67 = vector.shape_cast %66 : vector<2x256x8xf32> to vector<512x8xf32>
    %68 = arith.addf %65, %67 : vector<512x8xf32>
    %69 = vector.shape_cast %68 : vector<512x8xf32> to vector<2x256x8xf32>
    %c0_103 = arith.constant 0 : index
    %c0_104 = arith.constant 0 : index
    %c0_105 = arith.constant 0 : index
    %70 = vector.load %arg8[%c0_103, %c0_104, %c0_105] : memref<2x256x8xf32, #tpu.memory_space<vmem>>, vector<2x256x8xf32>
    tpu.vector_store %arg8[%c0_103, %c0_104, %c0_105], %69 {strides = array<i32>} : memref<2x256x8xf32, #tpu.memory_space<vmem>>, vector<2x256x8xf32>,
    return
  }
  func.func @transform_0(%arg0: i32) -> (i32, i32, i32) {
    %c0_i32 = arith.constant 0 : i32
    %c0_i32_0 = arith.constant 0 : i32
    %c0_i32_1 = arith.constant 0 : i32
    return %arg0, %c0_i32, %c0_i32_0 : i32, i32, i32
  }
  func.func @transform_1(%arg0: i32) -> (i32, i32) {
    %c0_i32 = arith.constant 0 : i32
    %c0_i32_0 = arith.constant 0 : i32
    %c0_i32_1 = arith.constant 0 : i32
    return %c0_i32, %c0_i32_0 : i32, i32
  }
  func.func @transform_2(%arg0: i32) -> (i32, i32) {
    %c0_i32 = arith.constant 0 : i32
    %c0_i32_0 = arith.constant 0 : i32
    %c0_i32_1 = arith.constant 0 : i32
    return %c0_i32, %c0_i32_0 : i32, i32
  }
  func.func @transform_3(%arg0: i32) -> (i32, i32) {
    %c0_i32 = arith.constant 0 : i32
    %c0_i32_0 = arith.constant 0 : i32
    %c0_i32_1 = arith.constant 0 : i32
    return %c0_i32, %c0_i32_0 : i32, i32
  }
  func.func @transform_4(%arg0: i32) -> (i32, i32) {
    %c0_i32 = arith.constant 0 : i32
    %c0_i32_0 = arith.constant 0 : i32
    %c0_i32_1 = arith.constant 0 : i32
    return %c0_i32, %c0_i32_0 : i32, i32
  }
  func.func @transform_5(%arg0: i32) -> (i32, i32) {
    %c0_i32 = arith.constant 0 : i32
    %c0_i32_0 = arith.constant 0 : i32
    %c0_i32_1 = arith.constant 0 : i32
    return %c0_i32, %c0_i32_0 : i32, i32
  }
  func.func @transform_6(%arg0: i32) -> (i32, i32) {
    %c0_i32 = arith.constant 0 : i32
    %c0_i32_0 = arith.constant 0 : i32
    %c0_i32_1 = arith.constant 0 : i32
    return %c0_i32, %c0_i32_0 : i32, i32
  }
  func.func @transform_7(%arg0: i32) -> (i32, i32, i32) {
    %c0_i32 = arith.constant 0 : i32
    %c0_i32_0 = arith.constant 0 : i32
    %c0_i32_1 = arith.constant 0 : i32
    return %arg0, %c0_i32, %c0_i32_0 : i32, i32, i32
  }
}

</mosaic_0001>

<llo_original>
// kernel: basic_block_forward.1
$region0: #{basic_block_forward.1}
  #allocation0 [shape = 'u32[]', space=smem, size = 0x4, offset = 0x4, fixed_abs, tag = 'smem constant byte address 0x4 - core index']
  #allocation1 [shape = 'u32[144,128]{1,0:T(1,128)}', space=vmem, size = 0x12000, scoped, tag = 'internal scratch']
  #allocation2 [shape = 'f32[2,18,18,8]{3,2,1,0:T(8,128)}', space=vmem, size = 0x6c000, scoped, tag = 'scratch operand']
  %s0 = inlined_call_operand.vmem [shape: f32[2,256,8], index: 0, kind: input, shape index: {}]
  %s1 = inlined_call_operand.vmem [shape: f32[1,8], index: 1, kind: input, shape index: {}]
  %s2 = inlined_call_operand.vmem [shape: f32[1,8], index: 2, kind: input, shape index: {}]
  %s3 = inlined_call_operand.vmem [shape: f32[72,8], index: 3, kind: input, shape index: {}]
  %s4 = inlined_call_operand.vmem [shape: f32[1,8], index: 4, kind: input, shape index: {}]
  %s5 = inlined_call_operand.vmem [shape: f32[1,8], index: 5, kind: input, shape index: {}]
  %s6 = inlined_call_operand.vmem [shape: f32[72,8], index: 6, kind: input, shape index: {}]
  %s7 = inlined_call_operand.vmem [shape: f32[2,256,8], index: 7, kind: output, shape index: {}]
  %s8 = sld [smem:[#allocation0]]
  $region38: #{basic_block_forward.1} parent=0
    _
  %s10 = ssub.s32 1, %s8
  %s11 = scalar_select 0, %s10, %s8
  // Predicated region
  $region2: #{basic_block_forward.1} parent=0 // pred_check
    _
  $region3: #{basic_block_forward.1} parent=0 // pred_check_branch
    %13 = sbr.rel (0) target = $region5
  $region4: #{basic_block_forward.1} parent=0 // pred_region
    _
  $region5: #{basic_block_forward.1} parent=0 // pred_fallthru
    _
  // Predicated region
  $region6: #{basic_block_forward.1} parent=0 // pred_check
    _
  $region7: #{basic_block_forward.1} parent=0 // pred_check_branch
    %15 = sbr.rel (0) target = $region9
  $region8: #{basic_block_forward.1} parent=0 // pred_region
    _
  $region9: #{basic_block_forward.1} parent=0 // pred_fallthru
    _
  // Predicated region
  $region10: #{basic_block_forward.1} parent=0 // pred_check
    _
  $region11: #{basic_block_forward.1} parent=0 // pred_check_branch
    %17 = sbr.rel (0) target = $region13
  $region12: #{basic_block_forward.1} parent=0 // pred_region
    _
  $region13: #{basic_block_forward.1} parent=0 // pred_fallthru
    _
  // Predicated region
  $region14: #{basic_block_forward.1} parent=0 // pred_check
    _
  $region15: #{basic_block_forward.1} parent=0 // pred_check_branch
    %19 = sbr.rel (0) target = $region17
  $region16: #{basic_block_forward.1} parent=0 // pred_region
    _
  $region17: #{basic_block_forward.1} parent=0 // pred_fallthru
    _
  // Predicated region
  $region18: #{basic_block_forward.1} parent=0 // pred_check
    _
  $region19: #{basic_block_forward.1} parent=0 // pred_check_branch
    %21 = sbr.rel (0) target = $region21
  $region20: #{basic_block_forward.1} parent=0 // pred_region
    _
  $region21: #{basic_block_forward.1} parent=0 // pred_fallthru
    _
  // Predicated region
  $region22: #{basic_block_forward.1} parent=0 // pred_check
    _
  $region23: #{basic_block_forward.1} parent=0 // pred_check_branch
    %23 = sbr.rel (0) target = $region25
  $region24: #{basic_block_forward.1} parent=0 // pred_region
    _
  $region25: #{basic_block_forward.1} parent=0 // pred_fallthru
    _
  // Predicated region
  $region26: #{basic_block_forward.1} parent=0 // pred_check
    _
  $region27: #{basic_block_forward.1} parent=0 // pred_check_branch
    %25 = sbr.rel (0) target = $region29
  $region28: #{basic_block_forward.1} parent=0 // pred_region
    _
  $region29: #{basic_block_forward.1} parent=0 // pred_fallthru
    _
  %vm26 = vcmask 64512
  %27 = vst.msk [vmem:[#allocation2] sm:$0xff] %vm26, 0.0
  %28 = vst.msk [vmem:[#allocation2 + $0x8] sm:$0xff] %vm26, 0.0
  %vm29 = vcmask 58368
  %30 = vst.msk [vmem:[#allocation2 + $0x10] sm:$0x3] %vm29, 0.0
  %31 = vst.msk [vmem:[#allocation2 + $0x18] sm:$0xff] %vm26, 0.0
  %32 = vst.msk [vmem:[#allocation2 + $0x20] sm:$0xff] %vm26, 0.0
  %33 = vst.msk [vmem:[#allocation2 + $0x28] sm:$0x3] %vm29, 0.0
  %34 = vst.msk [vmem:[#allocation2 + $0x30] sm:$0xff] %vm26, 0.0
  %35 = vst.msk [vmem:[#allocation2 + $0x38] sm:$0xff] %vm26, 0.0
  %36 = vst.msk [vmem:[#allocation2 + $0x40] sm:$0x3] %vm29, 0.0
  %37 = vst.msk [vmem:[#allocation2 + $0x48] sm:$0xff] %vm26, 0.0
  %38 = vst.msk [vmem:[#allocation2 + $0x50] sm:$0xff] %vm26, 0.0
  %39 = vst.msk [vmem:[#allocation2 + $0x58] sm:$0x3] %vm29, 0.0
  %40 = vst.msk [vmem:[#allocation2 + $0x60] sm:$0xff] %vm26, 0.0
  %41 = vst.msk [vmem:[#allocation2 + $0x68] sm:$0xff] %vm26, 0.0
  %42 = vst.msk [vmem:[#allocation2 + $0x70] sm:$0x3] %vm29, 0.0
  %43 = vst.msk [vmem:[#allocation2 + $0x78] sm:$0xff] %vm26, 0.0
  %44 = vst.msk [vmem:[#allocation2 + $0x80] sm:$0xff] %vm26, 0.0
  %45 = vst.msk [vmem:[#allocation2 + $0x88] sm:$0x3] %vm29, 0.0
  %46 = vst.msk [vmem:[#allocation2 + $0x90] sm:$0xff] %vm26, 0.0
  %47 = vst.msk [vmem:[#allocation2 + $0x98] sm:$0xff] %vm26, 0.0
  %48 = vst.msk [vmem:[#allocation2 + $0xa0] sm:$0x3] %vm29, 0.0
  %49 = vst.msk [vmem:[#allocation2 + $0xa8] sm:$0xff] %vm26, 0.0
  %50 = vst.msk [vmem:[#allocation2 + $0xb0] sm:$0xff] %vm26, 0.0
  %51 = vst.msk [vmem:[#allocation2 + $0xb8] sm:$0x3] %vm29, 0.0
  %52 = vst.msk [vmem:[#allocation2 + $0xc0] sm:$0xff] %vm26, 0.0
  %53 = vst.msk [vmem:[#allocation2 + $0xc8] sm:$0xff] %vm26, 0.0
  %54 = vst.msk [vmem:[#allocation2 + $0xd0] sm:$0x3] %vm29, 0.0
  %55 = vst.msk [vmem:[#allocation2 + $0xd8] sm:$0xff] %vm26, 0.0
  %56 = vst.msk [vmem:[#allocation2 + $0xe0] sm:$0xff] %vm26, 0.0
  %57 = vst.msk [vmem:[#allocation2 + $0xe8] sm:$0x3] %vm29, 0.0
  %58 = vst.msk [vmem:[#allocation2 + $0xf0] sm:$0xff] %vm26, 0.0
  %59 = vst.msk [vmem:[#allocation2 + $0xf8] sm:$0xff] %vm26, 0.0
  %60 = vst.msk [vmem:[#allocation2 + $0x100] sm:$0x3] %vm29, 0.0
  %61 = vst.msk [vmem:[#allocation2 + $0x108] sm:$0xff] %vm26, 0.0
  %62 = vst.msk [vmem:[#allocation2 + $0x110] sm:$0xff] %vm26, 0.0
  %63 = vst.msk [vmem:[#allocation2 + $0x118] sm:$0x3] %vm29, 0.0
  %64 = vst.msk [vmem:[#allocation2 + $0x120] sm:$0xff] %vm26, 0.0
  %65 = vst.msk [vmem:[#allocation2 + $0x128] sm:$0xff] %vm26, 0.0
  %66 = vst.msk [vmem:[#allocation2 + $0x130] sm:$0x3] %vm29, 0.0
  %67 = vst.msk [vmem:[#allocation2 + $0x138] sm:$0xff] %vm26, 0.0
  %68 = vst.msk [vmem:[#allocation2 + $0x140] sm:$0xff] %vm26, 0.0
  %69 = vst.msk [vmem:[#allocation2 + $0x148] sm:$0x3] %vm29, 0.0
  %70 = vst.msk [vmem:[#allocation2 + $0x150] sm:$0xff] %vm26, 0.0
  %71 = vst.msk [vmem:[#allocation2 + $0x158] sm:$0xff] %vm26, 0.0
  %72 = vst.msk [vmem:[#allocation2 + $0x160] sm:$0x3] %vm29, 0.0
  %73 = vst.msk [vmem:[#allocation2 + $0x168] sm:$0xff] %vm26, 0.0
  %74 = vst.msk [vmem:[#allocation2 + $0x170] sm:$0xff] %vm26, 0.0
  %75 = vst.msk [vmem:[#allocation2 + $0x178] sm:$0x3] %vm29, 0.0
  %76 = vst.msk [vmem:[#allocation2 + $0x180] sm:$0xff] %vm26, 0.0
  %77 = vst.msk [vmem:[#allocation2 + $0x188] sm:$0xff] %vm26, 0.0
  %78 = vst.msk [vmem:[#allocation2 + $0x190] sm:$0x3] %vm29, 0.0
  %79 = vst.msk [vmem:[#allocation2 + $0x198] sm:$0xff] %vm26, 0.0
  %80 = vst.msk [vmem:[#allocation2 + $0x1a0] sm:$0xff] %vm26, 0.0
  %81 = vst.msk [vmem:[#allocation2 + $0x1a8] sm:$0x3] %vm29, 0.0
  %82 = vst.msk [vmem:[#allocation2 + $0x1b0] sm:$0xff] %vm26, 0.0
  %83 = vst.msk [vmem:[#allocation2 + $0x1b8] sm:$0xff] %vm26, 0.0
  %84 = vst.msk [vmem:[#allocation2 + $0x1c0] sm:$0x3] %vm29, 0.0
  %85 = vst.msk [vmem:[#allocation2 + $0x1c8] sm:$0xff] %vm26, 0.0
  %86 = vst.msk [vmem:[#allocation2 + $0x1d0] sm:$0xff] %vm26, 0.0
  %87 = vst.msk [vmem:[#allocation2 + $0x1d8] sm:$0x3] %vm29, 0.0
  %88 = vst.msk [vmem:[#allocation2 + $0x1e0] sm:$0xff] %vm26, 0.0
  %89 = vst.msk [vmem:[#allocation2 + $0x1e8] sm:$0xff] %vm26, 0.0
  %90 = vst.msk [vmem:[#allocation2 + $0x1f0] sm:$0x3] %vm29, 0.0
  %91 = vst.msk [vmem:[#allocation2 + $0x1f8] sm:$0xff] %vm26, 0.0
  %92 = vst.msk [vmem:[#allocation2 + $0x200] sm:$0xff] %vm26, 0.0
  %93 = vst.msk [vmem:[#allocation2 + $0x208] sm:$0x3] %vm29, 0.0
  %94 = vst.msk [vmem:[#allocation2 + $0x210] sm:$0xff] %vm26, 0.0
  %95 = vst.msk [vmem:[#allocation2 + $0x218] sm:$0xff] %vm26, 0.0
  %96 = vst.msk [vmem:[#allocation2 + $0x220] sm:$0x3] %vm29, 0.0
  %97 = vst.msk [vmem:[#allocation2 + $0x228] sm:$0xff] %vm26, 0.0
  %98 = vst.msk [vmem:[#allocation2 + $0x230] sm:$0xff] %vm26, 0.0
  %99 = vst.msk [vmem:[#allocation2 + $0x238] sm:$0x3] %vm29, 0.0
  %100 = vst.msk [vmem:[#allocation2 + $0x240] sm:$0xff] %vm26, 0.0
  %101 = vst.msk [vmem:[#allocation2 + $0x248] sm:$0xff] %vm26, 0.0
  %102 = vst.msk [vmem:[#allocation2 + $0x250] sm:$0x3] %vm29, 0.0
  %103 = vst.msk [vmem:[#allocation2 + $0x258] sm:$0xff] %vm26, 0.0
  %104 = vst.msk [vmem:[#allocation2 + $0x260] sm:$0xff] %vm26, 0.0
  %105 = vst.msk [vmem:[#allocation2 + $0x268] sm:$0x3] %vm29, 0.0
  %106 = vst.msk [vmem:[#allocation2 + $0x270] sm:$0xff] %vm26, 0.0
  %107 = vst.msk [vmem:[#allocation2 + $0x278] sm:$0xff] %vm26, 0.0
  %108 = vst.msk [vmem:[#allocation2 + $0x280] sm:$0x3] %vm29, 0.0
  %109 = vst.msk [vmem:[#allocation2 + $0x288] sm:$0xff] %vm26, 0.0
  %110 = vst.msk [vmem:[#allocation2 + $0x290] sm:$0xff] %vm26, 0.0
  %111 = vst.msk [vmem:[#allocation2 + $0x298] sm:$0x3] %vm29, 0.0
  %112 = vst.msk [vmem:[#allocation2 + $0x2a0] sm:$0xff] %vm26, 0.0
  %113 = vst.msk [vmem:[#allocation2 + $0x2a8] sm:$0xff] %vm26, 0.0
  %114 = vst.msk [vmem:[#allocation2 + $0x2b0] sm:$0x3] %vm29, 0.0
  %115 = vst.msk [vmem:[#allocation2 + $0x2b8] sm:$0xff] %vm26, 0.0
  %116 = vst.msk [vmem:[#allocation2 + $0x2c0] sm:$0xff] %vm26, 0.0
  %117 = vst.msk [vmem:[#allocation2 + $0x2c8] sm:$0x3] %vm29, 0.0
  %118 = vst.msk [vmem:[#allocation2 + $0x2d0] sm:$0xff] %vm26, 0.0
  %119 = vst.msk [vmem:[#allocation2 + $0x2d8] sm:$0xff] %vm26, 0.0
  %120 = vst.msk [vmem:[#allocation2 + $0x2e0] sm:$0x3] %vm29, 0.0
  %121 = vst.msk [vmem:[#allocation2 + $0x2e8] sm:$0xff] %vm26, 0.0
  %122 = vst.msk [vmem:[#allocation2 + $0x2f0] sm:$0xff] %vm26, 0.0
  %123 = vst.msk [vmem:[#allocation2 + $0x2f8] sm:$0x3] %vm29, 0.0
  %124 = vst.msk [vmem:[#allocation2 + $0x300] sm:$0xff] %vm26, 0.0
  %125 = vst.msk [vmem:[#allocation2 + $0x308] sm:$0xff] %vm26, 0.0
  %126 = vst.msk [vmem:[#allocation2 + $0x310] sm:$0x3] %vm29, 0.0
  %127 = vst.msk [vmem:[#allocation2 + $0x318] sm:$0xff] %vm26, 0.0
  %128 = vst.msk [vmem:[#allocation2 + $0x320] sm:$0xff] %vm26, 0.0
  %129 = vst.msk [vmem:[#allocation2 + $0x328] sm:$0x3] %vm29, 0.0
  %130 = vst.msk [vmem:[#allocation2 + $0x330] sm:$0xff] %vm26, 0.0
  %131 = vst.msk [vmem:[#allocation2 + $0x338] sm:$0xff] %vm26, 0.0
  %132 = vst.msk [vmem:[#allocation2 + $0x340] sm:$0x3] %vm29, 0.0
  %133 = vst.msk [vmem:[#allocation2 + $0x348] sm:$0xff] %vm26, 0.0
  %134 = vst.msk [vmem:[#allocation2 + $0x350] sm:$0xff] %vm26, 0.0
  %135 = vst.msk [vmem:[#allocation2 + $0x358] sm:$0x3] %vm29, 0.0
  %v136 = vld [vmem:[%s0] sm:$0xff]
  %v137 = vld [vmem:[%s0 + $0x8] sm:$0xff]
  %v138 = vld [vmem:[%s0 + $0x10] sm:$0xff]
  %v139 = vld [vmem:[%s0 + $0x18] sm:$0xff]
  %v140 = vld [vmem:[%s0 + $0x20] sm:$0xff]
  %v141 = vld [vmem:[%s0 + $0x28] sm:$0xff]
  %v142 = vld [vmem:[%s0 + $0x30] sm:$0xff]
  %v143 = vld [vmem:[%s0 + $0x38] sm:$0xff]
  %v144 = vld [vmem:[%s0 + $0x40] sm:$0xff]
  %v145 = vld [vmem:[%s0 + $0x48] sm:$0xff]
  %v146 = vld [vmem:[%s0 + $0x50] sm:$0xff]
  %v147 = vld [vmem:[%s0 + $0x58] sm:$0xff]
  %v148 = vld [vmem:[%s0 + $0x60] sm:$0xff]
  %v149 = vld [vmem:[%s0 + $0x68] sm:$0xff]
  %v150 = vld [vmem:[%s0 + $0x70] sm:$0xff]
  %v151 = vld [vmem:[%s0 + $0x78] sm:$0xff]
  %v152 = vld [vmem:[%s0 + $0x80] sm:$0xff]
  %v153 = vld [vmem:[%s0 + $0x88] sm:$0xff]
  %v154 = vld [vmem:[%s0 + $0x90] sm:$0xff]
  %v155 = vld [vmem:[%s0 + $0x98] sm:$0xff]
  %v156 = vld [vmem:[%s0 + $0xa0] sm:$0xff]
  %v157 = vld [vmem:[%s0 + $0xa8] sm:$0xff]
  %v158 = vld [vmem:[%s0 + $0xb0] sm:$0xff]
  %v159 = vld [vmem:[%s0 + $0xb8] sm:$0xff]
  %v160 = vld [vmem:[%s0 + $0xc0] sm:$0xff]
  %v161 = vld [vmem:[%s0 + $0xc8] sm:$0xff]
  %v162 = vld [vmem:[%s0 + $0xd0] sm:$0xff]
  %v163 = vld [vmem:[%s0 + $0xd8] sm:$0xff]
  %v164 = vld [vmem:[%s0 + $0xe0] sm:$0xff]
  %v165 = vld [vmem:[%s0 + $0xe8] sm:$0xff]
  %v166 = vld [vmem:[%s0 + $0xf0] sm:$0xff]
  %v167 = vld [vmem:[%s0 + $0xf8] sm:$0xff]
  %v168 = vld [vmem:[%s0 + $0x100] sm:$0xff]
  %v169 = vld [vmem:[%s0 + $0x108] sm:$0xff]
  %v170 = vld [vmem:[%s0 + $0x110] sm:$0xff]
  %v171 = vld [vmem:[%s0 + $0x118] sm:$0xff]
  %v172 = vld [vmem:[%s0 + $0x120] sm:$0xff]
  %v173 = vld [vmem:[%s0 + $0x128] sm:$0xff]
  %v174 = vld [vmem:[%s0 + $0x130] sm:$0xff]
  %v175 = vld [vmem:[%s0 + $0x138] sm:$0xff]
  %v176 = vld [vmem:[%s0 + $0x140] sm:$0xff]
  %v177 = vld [vmem:[%s0 + $0x148] sm:$0xff]
  %v178 = vld [vmem:[%s0 + $0x150] sm:$0xff]
  %v179 = vld [vmem:[%s0 + $0x158] sm:$0xff]
  %v180 = vld [vmem:[%s0 + $0x160] sm:$0xff]
  %v181 = vld [vmem:[%s0 + $0x168] sm:$0xff]
  %v182 = vld [vmem:[%s0 + $0x170] sm:$0xff]
  %v183 = vld [vmem:[%s0 + $0x178] sm:$0xff]
  %v184 = vld [vmem:[%s0 + $0x180] sm:$0xff]
  %v185 = vld [vmem:[%s0 + $0x188] sm:$0xff]
  %v186 = vld [vmem:[%s0 + $0x190] sm:$0xff]
  %v187 = vld [vmem:[%s0 + $0x198] sm:$0xff]
  %v188 = vld [vmem:[%s0 + $0x1a0] sm:$0xff]
  %v189 = vld [vmem:[%s0 + $0x1a8] sm:$0xff]
  %v190 = vld [vmem:[%s0 + $0x1b0] sm:$0xff]
  %v191 = vld [vmem:[%s0 + $0x1b8] sm:$0xff]
  %v192 = vld [vmem:[%s0 + $0x1c0] sm:$0xff]
  %v193 = vld [vmem:[%s0 + $0x1c8] sm:$0xff]
  %v194 = vld [vmem:[%s0 + $0x1d0] sm:$0xff]
  %v195 = vld [vmem:[%s0 + $0x1d8] sm:$0xff]
  %v196 = vld [vmem:[%s0 + $0x1e0] sm:$0xff]
  %v197 = vld [vmem:[%s0 + $0x1e8] sm:$0xff]
  %v198 = vld [vmem:[%s0 + $0x1f0] sm:$0xff]
  %v199 = vld [vmem:[%s0 + $0x1f8] sm:$0xff]
  %v200 = vld [vmem:[%s1] sm:$0x1]
  %v202 = vlaneseq
  %v203 = vshrl.u32 %v202, 7
  %v204 = vsub.s32 0, %v203
  %v205 = vrot.slane %v200, %v204
  %v207 = vmul.f32 %v136, %v205
  %v208 = vmul.f32 %v137, %v205
  %v209 = vmul.f32 %v138, %v205
  %v210 = vmul.f32 %v139, %v205
  %v211 = vmul.f32 %v140, %v205
  %v212 = vmul.f32 %v141, %v205
  %v213 = vmul.f32 %v142, %v205
  %v214 = vmul.f32 %v143, %v205
  %v215 = vmul.f32 %v144, %v205
  %v216 = vmul.f32 %v145, %v205
  %v217 = vmul.f32 %v146, %v205
  %v218 = vmul.f32 %v147, %v205
  %v219 = vmul.f32 %v148, %v205
  %v220 = vmul.f32 %v149, %v205
  %v221 = vmul.f32 %v150, %v205
  %v222 = vmul.f32 %v151, %v205
  %v223 = vmul.f32 %v152, %v205
  %v224 = vmul.f32 %v153, %v205
  %v225 = vmul.f32 %v154, %v205
  %v226 = vmul.f32 %v155, %v205
  %v227 = vmul.f32 %v156, %v205
  %v228 = vmul.f32 %v157, %v205
  %v229 = vmul.f32 %v158, %v205
  %v230 = vmul.f32 %v159, %v205
  %v231 = vmul.f32 %v160, %v205
  %v232 = vmul.f32 %v161, %v205
  %v233 = vmul.f32 %v162, %v205
  %v234 = vmul.f32 %v163, %v205
  %v235 = vmul.f32 %v164, %v205
  %v236 = vmul.f32 %v165, %v205
  %v237 = vmul.f32 %v166, %v205
  %v238 = vmul.f32 %v167, %v205
  %v239 = vmul.f32 %v168, %v205
  %v240 = vmul.f32 %v169, %v205
  %v241 = vmul.f32 %v170, %v205
  %v242 = vmul.f32 %v171, %v205
  %v243 = vmul.f32 %v172, %v205
  %v244 = vmul.f32 %v173, %v205
  %v245 = vmul.f32 %v174, %v205
  %v246 = vmul.f32 %v175, %v205
  %v247 = vmul.f32 %v176, %v205
  %v248 = vmul.f32 %v177, %v205
  %v249 = vmul.f32 %v178, %v205
  %v250 = vmul.f32 %v179, %v205
  %v251 = vmul.f32 %v180, %v205
  %v252 = vmul.f32 %v181, %v205
  %v253 = vmul.f32 %v182, %v205
  %v254 = vmul.f32 %v183, %v205
  %v255 = vmul.f32 %v184, %v205
  %v256 = vmul.f32 %v185, %v205
  %v257 = vmul.f32 %v186, %v205
  %v258 = vmul.f32 %v187, %v205
  %v259 = vmul.f32 %v188, %v205
  %v260 = vmul.f32 %v189, %v205
  %v261 = vmul.f32 %v190, %v205
  %v262 = vmul.f32 %v191, %v205
  %v263 = vmul.f32 %v192, %v205
  %v264 = vmul.f32 %v193, %v205
  %v265 = vmul.f32 %v194, %v205
  %v266 = vmul.f32 %v195, %v205
  %v267 = vmul.f32 %v196, %v205
  %v268 = vmul.f32 %v197, %v205
  %v269 = vmul.f32 %v198, %v205
  %v270 = vmul.f32 %v199, %v205
  %v271 = vld [vmem:[%s2] sm:$0x1]
  %v273 = vlaneseq
  %v274 = vshrl.u32 %v273, 7
  %v275 = vsub.s32 0, %v274
  %v276 = vrot.slane %v271, %v275
  %v278 = vadd.f32 %v207, %v276
  %v279 = vadd.f32 %v208, %v276
  %v280 = vadd.f32 %v209, %v276
  %v281 = vadd.f32 %v210, %v276
  %v282 = vadd.f32 %v211, %v276
  %v283 = vadd.f32 %v212, %v276
  %v284 = vadd.f32 %v213, %v276
  %v285 = vadd.f32 %v214, %v276
  %v286 = vadd.f32 %v215, %v276
  %v287 = vadd.f32 %v216, %v276
  %v288 = vadd.f32 %v217, %v276
  %v289 = vadd.f32 %v218, %v276
  %v290 = vadd.f32 %v219, %v276
  %v291 = vadd.f32 %v220, %v276
  %v292 = vadd.f32 %v221, %v276
  %v293 = vadd.f32 %v222, %v276
  %v294 = vadd.f32 %v223, %v276
  %v295 = vadd.f32 %v224, %v276
  %v296 = vadd.f32 %v225, %v276
  %v297 = vadd.f32 %v226, %v276
  %v298 = vadd.f32 %v227, %v276
  %v299 = vadd.f32 %v228, %v276
  %v300 = vadd.f32 %v229, %v276
  %v301 = vadd.f32 %v230, %v276
  %v302 = vadd.f32 %v231, %v276
  %v303 = vadd.f32 %v232, %v276
  %v304 = vadd.f32 %v233, %v276
  %v305 = vadd.f32 %v234, %v276
  %v306 = vadd.f32 %v235, %v276
  %v307 = vadd.f32 %v236, %v276
  %v308 = vadd.f32 %v237, %v276
  %v309 = vadd.f32 %v238, %v276
  %v310 = vadd.f32 %v239, %v276
  %v311 = vadd.f32 %v240, %v276
  %v312 = vadd.f32 %v241, %v276
  %v313 = vadd.f32 %v242, %v276
  %v314 = vadd.f32 %v243, %v276
  %v315 = vadd.f32 %v244, %v276
  %v316 = vadd.f32 %v245, %v276
  %v317 = vadd.f32 %v246, %v276
  %v318 = vadd.f32 %v247, %v276
  %v319 = vadd.f32 %v248, %v276
  %v320 = vadd.f32 %v249, %v276
  %v321 = vadd.f32 %v250, %v276
  %v322 = vadd.f32 %v251, %v276
  %v323 = vadd.f32 %v252, %v276
  %v324 = vadd.f32 %v253, %v276
  %v325 = vadd.f32 %v254, %v276
  %v326 = vadd.f32 %v255, %v276
  %v327 = vadd.f32 %v256, %v276
  %v328 = vadd.f32 %v257, %v276
  %v329 = vadd.f32 %v258, %v276
  %v330 = vadd.f32 %v259, %v276
  %v331 = vadd.f32 %v260, %v276
  %v332 = vadd.f32 %v261, %v276
  %v333 = vadd.f32 %v262, %v276
  %v334 = vadd.f32 %v263, %v276
  %v335 = vadd.f32 %v264, %v276
  %v336 = vadd.f32 %v265, %v276
  %v337 = vadd.f32 %v266, %v276
  %v338 = vadd.f32 %v267, %v276
  %v339 = vadd.f32 %v268, %v276
  %v340 = vadd.f32 %v269, %v276
  %v341 = vadd.f32 %v270, %v276
  %v342 = vmax.f32 %v278, 0.0
  %v343 = vmax.f32 %v279, 0.0
  %v344 = vmax.f32 %v280, 0.0
  %v345 = vmax.f32 %v281, 0.0
  %v346 = vmax.f32 %v282, 0.0
  %v347 = vmax.f32 %v283, 0.0
  %v348 = vmax.f32 %v284, 0.0
  %v349 = vmax.f32 %v285, 0.0
  %v350 = vmax.f32 %v286, 0.0
  %v351 = vmax.f32 %v287, 0.0
  %v352 = vmax.f32 %v288, 0.0
  %v353 = vmax.f32 %v289, 0.0
  %v354 = vmax.f32 %v290, 0.0
  %v355 = vmax.f32 %v291, 0.0
  %v356 = vmax.f32 %v292, 0.0
  %v357 = vmax.f32 %v293, 0.0
  %v358 = vmax.f32 %v294, 0.0
  %v359 = vmax.f32 %v295, 0.0
  %v360 = vmax.f32 %v296, 0.0
  %v361 = vmax.f32 %v297, 0.0
  %v362 = vmax.f32 %v298, 0.0
  %v363 = vmax.f32 %v299, 0.0
  %v364 = vmax.f32 %v300, 0.0
  %v365 = vmax.f32 %v301, 0.0
  %v366 = vmax.f32 %v302, 0.0
  %v367 = vmax.f32 %v303, 0.0
  %v368 = vmax.f32 %v304, 0.0
  %v369 = vmax.f32 %v305, 0.0
  %v370 = vmax.f32 %v306, 0.0
  %v371 = vmax.f32 %v307, 0.0
  %v372 = vmax.f32 %v308, 0.0
  %v373 = vmax.f32 %v309, 0.0
  %v374 = vmax.f32 %v310, 0.0
  %v375 = vmax.f32 %v311, 0.0
  %v376 = vmax.f32 %v312, 0.0
  %v377 = vmax.f32 %v313, 0.0
  %v378 = vmax.f32 %v314, 0.0
  %v379 = vmax.f32 %v315, 0.0
  %v380 = vmax.f32 %v316, 0.0
  %v381 = vmax.f32 %v317, 0.0
  %v382 = vmax.f32 %v318, 0.0
  %v383 = vmax.f32 %v319, 0.0
  %v384 = vmax.f32 %v320, 0.0
  %v385 = vmax.f32 %v321, 0.0
  %v386 = vmax.f32 %v322, 0.0
  %v387 = vmax.f32 %v323, 0.0
  %v388 = vmax.f32 %v324, 0.0
  %v389 = vmax.f32 %v325, 0.0
  %v390 = vmax.f32 %v326, 0.0
  %v391 = vmax.f32 %v327, 0.0
  %v392 = vmax.f32 %v328, 0.0
  %v393 = vmax.f32 %v329, 0.0
  %v394 = vmax.f32 %v330, 0.0
  %v395 = vmax.f32 %v331, 0.0
  %v396 = vmax.f32 %v332, 0.0
  %v397 = vmax.f32 %v333, 0.0
  %v398 = vmax.f32 %v334, 0.0
  %v399 = vmax.f32 %v335, 0.0
  %v400 = vmax.f32 %v336, 0.0
  %v401 = vmax.f32 %v337, 0.0
  %v402 = vmax.f32 %v338, 0.0
  %v403 = vmax.f32 %v339, 0.0
  %v404 = vmax.f32 %v340, 0.0
  %v405 = vmax.f32 %v341, 0.0
  %s406 = scalar_lea.vmem [#allocation2], 24
  %407 = vst.msk [vmem:[%s406 + $0x1] sm:$0xff] %vm26, %v342
  %408 = vst.msk [vmem:[%s406 + $0x9] sm:$0xff] %vm26, %v343
  %409 = vst.msk [vmem:[%s406 + $0x19] sm:$0xff] %vm26, %v344
  %410 = vst.msk [vmem:[%s406 + $0x21] sm:$0xff] %vm26, %v345
  %411 = vst.msk [vmem:[%s406 + $0x31] sm:$0xff] %vm26, %v346
  %412 = vst.msk [vmem:[%s406 + $0x39] sm:$0xff] %vm26, %v347
  %413 = vst.msk [vmem:[%s406 + $0x49] sm:$0xff] %vm26, %v348
  %414 = vst.msk [vmem:[%s406 + $0x51] sm:$0xff] %vm26, %v349
  %415 = vst.msk [vmem:[%s406 + $0x61] sm:$0xff] %vm26, %v350
  %416 = vst.msk [vmem:[%s406 + $0x69] sm:$0xff] %vm26, %v351
  %417 = vst.msk [vmem:[%s406 + $0x79] sm:$0xff] %vm26, %v352
  %418 = vst.msk [vmem:[%s406 + $0x81] sm:$0xff] %vm26, %v353
  %419 = vst.msk [vmem:[%s406 + $0x91] sm:$0xff] %vm26, %v354
  %420 = vst.msk [vmem:[%s406 + $0x99] sm:$0xff] %vm26, %v355
  %421 = vst.msk [vmem:[%s406 + $0xa9] sm:$0xff] %vm26, %v356
  %422 = vst.msk [vmem:[%s406 + $0xb1] sm:$0xff] %vm26, %v357
  %423 = vst.msk [vmem:[%s406 + $0xc1] sm:$0xff] %vm26, %v358
  %424 = vst.msk [vmem:[%s406 + $0xc9] sm:$0xff] %vm26, %v359
  %425 = vst.msk [vmem:[%s406 + $0xd9] sm:$0xff] %vm26, %v360
  %426 = vst.msk [vmem:[%s406 + $0xe1] sm:$0xff] %vm26, %v361
  %427 = vst.msk [vmem:[%s406 + $0xf1] sm:$0xff] %vm26, %v362
  %428 = vst.msk [vmem:[%s406 + $0xf9] sm:$0xff] %vm26, %v363
  %429 = vst.msk [vmem:[%s406 + $0x109] sm:$0xff] %vm26, %v364
  %430 = vst.msk [vmem:[%s406 + $0x111] sm:$0xff] %vm26, %v365
  %431 = vst.msk [vmem:[%s406 + $0x121] sm:$0xff] %vm26, %v366
  %432 = vst.msk [vmem:[%s406 + $0x129] sm:$0xff] %vm26, %v367
  %433 = vst.msk [vmem:[%s406 + $0x139] sm:$0xff] %vm26, %v368
  %434 = vst.msk [vmem:[%s406 + $0x141] sm:$0xff] %vm26, %v369
  %435 = vst.msk [vmem:[%s406 + $0x151] sm:$0xff] %vm26, %v370
  %436 = vst.msk [vmem:[%s406 + $0x159] sm:$0xff] %vm26, %v371
  %437 = vst.msk [vmem:[%s406 + $0x169] sm:$0xff] %vm26, %v372
  %438 = vst.msk [vmem:[%s406 + $0x171] sm:$0xff] %vm26, %v373
  %439 = vst.msk [vmem:[%s406 + $0x1b1] sm:$0xff] %vm26, %v374
  %440 = vst.msk [vmem:[%s406 + $0x1b9] sm:$0xff] %vm26, %v375
  %441 = vst.msk [vmem:[%s406 + $0x1c9] sm:$0xff] %vm26, %v376
  %442 = vst.msk [vmem:[%s406 + $0x1d1] sm:$0xff] %vm26, %v377
  %443 = vst.msk [vmem:[%s406 + $0x1e1] sm:$0xff] %vm26, %v378
  %444 = vst.msk [vmem:[%s406 + $0x1e9] sm:$0xff] %vm26, %v379
  %445 = vst.msk [vmem:[%s406 + $0x1f9] sm:$0xff] %vm26, %v380
  %446 = vst.msk [vmem:[%s406 + $0x201] sm:$0xff] %vm26, %v381
  %447 = vst.msk [vmem:[%s406 + $0x211] sm:$0xff] %vm26, %v382
  %448 = vst.msk [vmem:[%s406 + $0x219] sm:$0xff] %vm26, %v383
  %449 = vst.msk [vmem:[%s406 + $0x229] sm:$0xff] %vm26, %v384
  %450 = vst.msk [vmem:[%s406 + $0x231] sm:$0xff] %vm26, %v385
  %451 = vst.msk [vmem:[%s406 + $0x241] sm:$0xff] %vm26, %v386
  %452 = vst.msk [vmem:[%s406 + $0x249] sm:$0xff] %vm26, %v387
  %453 = vst.msk [vmem:[%s406 + $0x259] sm:$0xff] %vm26, %v388
  %454 = vst.msk [vmem:[%s406 + $0x261] sm:$0xff] %vm26, %v389
  %455 = vst.msk [vmem:[%s406 + $0x271] sm:$0xff] %vm26, %v390
  %456 = vst.msk [vmem:[%s406 + $0x279] sm:$0xff] %vm26, %v391
  %457 = vst.msk [vmem:[%s406 + $0x289] sm:$0xff] %vm26, %v392
  %458 = vst.msk [vmem:[%s406 + $0x291] sm:$0xff] %vm26, %v393
  %459 = vst.msk [vmem:[%s406 + $0x2a1] sm:$0xff] %vm26, %v394
  %460 = vst.msk [vmem:[%s406 + $0x2a9] sm:$0xff] %vm26, %v395
  %461 = vst.msk [vmem:[%s406 + $0x2b9] sm:$0xff] %vm26, %v396
  %462 = vst.msk [vmem:[%s406 + $0x2c1] sm:$0xff] %vm26, %v397
  %463 = vst.msk [vmem:[%s406 + $0x2d1] sm:$0xff] %vm26, %v398
  %464 = vst.msk [vmem:[%s406 + $0x2d9] sm:$0xff] %vm26, %v399
  %465 = vst.msk [vmem:[%s406 + $0x2e9] sm:$0xff] %vm26, %v400
  %466 = vst.msk [vmem:[%s406 + $0x2f1] sm:$0xff] %vm26, %v401
  %467 = vst.msk [vmem:[%s406 + $0x301] sm:$0xff] %vm26, %v402
  %468 = vst.msk [vmem:[%s406 + $0x309] sm:$0xff] %vm26, %v403
  %469 = vst.msk [vmem:[%s406 + $0x319] sm:$0xff] %vm26, %v404
  %470 = vst.msk [vmem:[%s406 + $0x321] sm:$0xff] %vm26, %v405
  %v471 = vld [vmem:[#allocation2] sm:$0xff]
  %v472 = vld [vmem:[#allocation2 + $0x8] sm:$0xff]
  %v473 = vld [vmem:[#allocation2 + $0x18] sm:$0xff]
  %v474 = vld [vmem:[#allocation2 + $0x20] sm:$0xff]
  %v475 = vld [vmem:[#allocation2 + $0x30] sm:$0xff]
  %v476 = vld [vmem:[#allocation2 + $0x38] sm:$0xff]
  %v477 = vld [vmem:[#allocation2 + $0x48] sm:$0xff]
  %v478 = vld [vmem:[#allocation2 + $0x50] sm:$0xff]
  %v479 = vld [vmem:[#allocation2 + $0x60] sm:$0xff]
  %v480 = vld [vmem:[#allocation2 + $0x68] sm:$0xff]
  %v481 = vld [vmem:[#allocation2 + $0x78] sm:$0xff]
  %v482 = vld [vmem:[#allocation2 + $0x80] sm:$0xff]
  %v483 = vld [vmem:[#allocation2 + $0x90] sm:$0xff]
  %v484 = vld [vmem:[#allocation2 + $0x98] sm:$0xff]
  %v485 = vld [vmem:[#allocation2 + $0xa8] sm:$0xff]
  %v486 = vld [vmem:[#allocation2 + $0xb0] sm:$0xff]
  %v487 = vld [vmem:[#allocation2 + $0xc0] sm:$0xff]
  %v488 = vld [vmem:[#allocation2 + $0xc8] sm:$0xff]
  %v489 = vld [vmem:[#allocation2 + $0xd8] sm:$0xff]
  %v490 = vld [vmem:[#allocation2 + $0xe0] sm:$0xff]
  %v491 = vld [vmem:[#allocation2 + $0xf0] sm:$0xff]
  %v492 = vld [vmem:[#allocation2 + $0xf8] sm:$0xff]
  %v493 = vld [vmem:[#allocation2 + $0x108] sm:$0xff]
  %v494 = vld [vmem:[#allocation2 + $0x110] sm:$0xff]
  %v495 = vld [vmem:[#allocation2 + $0x120] sm:$0xff]
  %v496 = vld [vmem:[#allocation2 + $0x128] sm:$0xff]
  %v497 = vld [vmem:[#allocation2 + $0x138] sm:$0xff]
  %v498 = vld [vmem:[#allocation2 + $0x140] sm:$0xff]
  %v499 = vld [vmem:[#allocation2 + $0x150] sm:$0xff]
  %v500 = vld [vmem:[#allocation2 + $0x158] sm:$0xff]
  %v501 = vld [vmem:[#allocation2 + $0x168] sm:$0xff]
  %v502 = vld [vmem:[#allocation2 + $0x170] sm:$0xff]
  %v503 = vld [vmem:[#allocation2 + $0x1b0] sm:$0xff]
  %v504 = vld [vmem:[#allocation2 + $0x1b8] sm:$0xff]
  %v505 = vld [vmem:[#allocation2 + $0x1c8] sm:$0xff]
  %v506 = vld [vmem:[#allocation2 + $0x1d0] sm:$0xff]
  %v507 = vld [vmem:[#allocation2 + $0x1e0] sm:$0xff]
  %v508 = vld [vmem:[#allocation2 + $0x1e8] sm:$0xff]
  %v509 = vld [vmem:[#allocation2 + $0x1f8] sm:$0xff]
  %v510 = vld [vmem:[#allocation2 + $0x200] sm:$0xff]
  %v511 = vld [vmem:[#allocation2 + $0x210] sm:$0xff]
  %v512 = vld [vmem:[#allocation2 + $0x218] sm:$0xff]
  %v513 = vld [vmem:[#allocation2 + $0x228] sm:$0xff]
  %v514 = vld [vmem:[#allocation2 + $0x230] sm:$0xff]
  %v515 = vld [vmem:[#allocation2 + $0x240] sm:$0xff]
  %v516 = vld [vmem:[#allocation2 + $0x248] sm:$0xff]
  %v517 = vld [vmem:[#allocation2 + $0x258] sm:$0xff]
  %v518 = vld [vmem:[#allocation2 + $0x260] sm:$0xff]
  %v519 = vld [vmem:[#allocation2 + $0x270] sm:$0xff]
  %v520 = vld [vmem:[#allocation2 + $0x278] sm:$0xff]
  %v521 = vld [vmem:[#allocation2 + $0x288] sm:$0xff]
  %v522 = vld [vmem:[#allocation2 + $0x290] sm:$0xff]
  %v523 = vld [vmem:[#allocation2 + $0x2a0] sm:$0xff]
  %v524 = vld [vmem:[#allocation2 + $0x2a8] sm:$0xff]
  %v525 = vld [vmem:[#allocation2 + $0x2b8] sm:$0xff]
  %v526 = vld [vmem:[#allocation2 + $0x2c0] sm:$0xff]
  %v527 = vld [vmem:[#allocation2 + $0x2d0] sm:$0xff]
  %v528 = vld [vmem:[#allocation2 + $0x2d8] sm:$0xff]
  %v529 = vld [vmem:[#allocation2 + $0x2e8] sm:$0xff]
  %v530 = vld [vmem:[#allocation2 + $0x2f0] sm:$0xff]
  %v531 = vld [vmem:[#allocation2 + $0x300] sm:$0xff]
  %v532 = vld [vmem:[#allocation2 + $0x308] sm:$0xff]
  %v533 = vld [vmem:[#allocation2 + $0x318] sm:$0xff]
  %v534 = vld [vmem:[#allocation2 + $0x320] sm:$0xff]
  %v535 = vld [vmem:[#allocation2 + $0x1] sm:$0xff]
  %v536 = vld [vmem:[#allocation2 + $0x9] sm:$0xff]
  %v537 = vld [vmem:[#allocation2 + $0x19] sm:$0xff]
  %v538 = vld [vmem:[#allocation2 + $0x21] sm:$0xff]
  %v539 = vld [vmem:[#allocation2 + $0x31] sm:$0xff]
  %v540 = vld [vmem:[#allocation2 + $0x39] sm:$0xff]
  %v541 = vld [vmem:[#allocation2 + $0x49] sm:$0xff]
  %v542 = vld [vmem:[#allocation2 + $0x51] sm:$0xff]
  %v543 = vld [vmem:[#allocation2 + $0x61] sm:$0xff]
  %v544 = vld [vmem:[#allocation2 + $0x69] sm:$0xff]
  %v545 = vld [vmem:[#allocation2 + $0x79] sm:$0xff]
  %v546 = vld [vmem:[#allocation2 + $0x81] sm:$0xff]
  %v547 = vld [vmem:[#allocation2 + $0x91] sm:$0xff]
  %v548 = vld [vmem:[#allocation2 + $0x99] sm:$0xff]
  %v549 = vld [vmem:[#allocation2 + $0xa9] sm:$0xff]
  %v550 = vld [vmem:[#allocation2 + $0xb1] sm:$0xff]
  %v551 = vld [vmem:[#allocation2 + $0xc1] sm:$0xff]
  %v552 = vld [vmem:[#allocation2 + $0xc9] sm:$0xff]
  %v553 = vld [vmem:[#allocation2 + $0xd9] sm:$0xff]
  %v554 = vld [vmem:[#allocation2 + $0xe1] sm:$0xff]
  %v555 = vld [vmem:[#allocation2 + $0xf1] sm:$0xff]
  %v556 = vld [vmem:[#allocation2 + $0xf9] sm:$0xff]
  %v557 = vld [vmem:[#allocation2 + $0x109] sm:$0xff]
  %v558 = vld [vmem:[#allocation2 + $0x111] sm:$0xff]
  %v559 = vld [vmem:[#allocation2 + $0x121] sm:$0xff]
  %v560 = vld [vmem:[#allocation2 + $0x129] sm:$0xff]
  %v561 = vld [vmem:[#allocation2 + $0x139] sm:$0xff]
  %v562 = vld [vmem:[#allocation2 + $0x141] sm:$0xff]
  %v563 = vld [vmem:[#allocation2 + $0x151] sm:$0xff]
  %v564 = vld [vmem:[#allocation2 + $0x159] sm:$0xff]
  %v565 = vld [vmem:[#allocation2 + $0x169] sm:$0xff]
  %v566 = vld [vmem:[#allocation2 + $0x171] sm:$0xff]
  %v567 = vld [vmem:[#allocation2 + $0x1b1] sm:$0xff]
  %v568 = vld [vmem:[#allocation2 + $0x1b9] sm:$0xff]
  %v569 = vld [vmem:[#allocation2 + $0x1c9] sm:$0xff]
  %v570 = vld [vmem:[#allocation2 + $0x1d1] sm:$0xff]
  %v571 = vld [vmem:[#allocation2 + $0x1e1] sm:$0xff]
  %v572 = vld [vmem:[#allocation2 + $0x1e9] sm:$0xff]
  %v573 = vld [vmem:[#allocation2 + $0x1f9] sm:$0xff]
  %v574 = vld [vmem:[#allocation2 + $0x201] sm:$0xff]
  %v575 = vld [vmem:[#allocation2 + $0x211] sm:$0xff]
  %v576 = vld [vmem:[#allocation2 + $0x219] sm:$0xff]
  %v577 = vld [vmem:[#allocation2 + $0x229] sm:$0xff]
  %v578 = vld [vmem:[#allocation2 + $0x231] sm:$0xff]
  %v579 = vld [vmem:[#allocation2 + $0x241] sm:$0xff]
  %v580 = vld [vmem:[#allocation2 + $0x249] sm:$0xff]
  %v581 = vld [vmem:[#allocation2 + $0x259] sm:$0xff]
  %v582 = vld [vmem:[#allocation2 + $0x261] sm:$0xff]
  %v583 = vld [vmem:[#allocation2 + $0x271] sm:$0xff]
  %v584 = vld [vmem:[#allocation2 + $0x279] sm:$0xff]
  %v585 = vld [vmem:[#allocation2 + $0x289] sm:$0xff]
  %v586 = vld [vmem:[#allocation2 + $0x291] sm:$0xff]
  %v587 = vld [vmem:[#allocation2 + $0x2a1] sm:$0xff]
  %v588 = vld [vmem:[#allocation2 + $0x2a9] sm:$0xff]
  %v589 = vld [vmem:[#allocation2 + $0x2b9] sm:$0xff]
  %v590 = vld [vmem:[#allocation2 + $0x2c1] sm:$0xff]
  %v591 = vld [vmem:[#allocation2 + $0x2d1] sm:$0xff]
  %v592 = vld [vmem:[#allocation2 + $0x2d9] sm:$0xff]
  %v593 = vld [vmem:[#allocation2 + $0x2e9] sm:$0xff]
  %v594 = vld [vmem:[#allocation2 + $0x2f1] sm:$0xff]
  %v595 = vld [vmem:[#allocation2 + $0x301] sm:$0xff]
  %v596 = vld [vmem:[#allocation2 + $0x309] sm:$0xff]
  %v597 = vld [vmem:[#allocation2 + $0x319] sm:$0xff]
  %v598 = vld [vmem:[#allocation2 + $0x321] sm:$0xff]
  %v599 = vld [vmem:[#allocation2 + $0x2] sm:$0xff]
  %v600 = vld [vmem:[#allocation2 + $0xa] sm:$0xff]
  %v601 = vld [vmem:[#allocation2 + $0x1a] sm:$0xff]
  %v602 = vld [vmem:[#allocation2 + $0x22] sm:$0xff]
  %v603 = vld [vmem:[#allocation2 + $0x32] sm:$0xff]
  %v604 = vld [vmem:[#allocation2 + $0x3a] sm:$0xff]
  %v605 = vld [vmem:[#allocation2 + $0x4a] sm:$0xff]
  %v606 = vld [vmem:[#allocation2 + $0x52] sm:$0xff]
  %v607 = vld [vmem:[#allocation2 + $0x62] sm:$0xff]
  %v608 = vld [vmem:[#allocation2 + $0x6a] sm:$0xff]
  %v609 = vld [vmem:[#allocation2 + $0x7a] sm:$0xff]
  %v610 = vld [vmem:[#allocation2 + $0x82] sm:$0xff]
  %v611 = vld [vmem:[#allocation2 + $0x92] sm:$0xff]
  %v612 = vld [vmem:[#allocation2 + $0x9a] sm:$0xff]
  %v613 = vld [vmem:[#allocation2 + $0xaa] sm:$0xff]
  %v614 = vld [vmem:[#allocation2 + $0xb2] sm:$0xff]
  %v615 = vld [vmem:[#allocation2 + $0xc2] sm:$0xff]
  %v616 = vld [vmem:[#allocation2 + $0xca] sm:$0xff]
  %v617 = vld [vmem:[#allocation2 + $0xda] sm:$0xff]
  %v618 = vld [vmem:[#allocation2 + $0xe2] sm:$0xff]
  %v619 = vld [vmem:[#allocation2 + $0xf2] sm:$0xff]
  %v620 = vld [vmem:[#allocation2 + $0xfa] sm:$0xff]
  %v621 = vld [vmem:[#allocation2 + $0x10a] sm:$0xff]
  %v622 = vld [vmem:[#allocation2 + $0x112] sm:$0xff]
  %v623 = vld [vmem:[#allocation2 + $0x122] sm:$0xff]
  %v624 = vld [vmem:[#allocation2 + $0x12a] sm:$0xff]
  %v625 = vld [vmem:[#allocation2 + $0x13a] sm:$0xff]
  %v626 = vld [vmem:[#allocation2 + $0x142] sm:$0xff]
  %v627 = vld [vmem:[#allocation2 + $0x152] sm:$0xff]
  %v628 = vld [vmem:[#allocation2 + $0x15a] sm:$0xff]
  %v629 = vld [vmem:[#allocation2 + $0x16a] sm:$0xff]
  %v630 = vld [vmem:[#allocation2 + $0x172] sm:$0xff]
  %v631 = vld [vmem:[#allocation2 + $0x1b2] sm:$0xff]
  %v632 = vld [vmem:[#allocation2 + $0x1ba] sm:$0xff]
  %v633 = vld [vmem:[#allocation2 + $0x1ca] sm:$0xff]
  %v634 = vld [vmem:[#allocation2 + $0x1d2] sm:$0xff]
  %v635 = vld [vmem:[#allocation2 + $0x1e2] sm:$0xff]
  %v636 = vld [vmem:[#allocation2 + $0x1ea] sm:$0xff]
  %v637 = vld [vmem:[#allocation2 + $0x1fa] sm:$0xff]
  %v638 = vld [vmem:[#allocation2 + $0x202] sm:$0xff]
  %v639 = vld [vmem:[#allocation2 + $0x212] sm:$0xff]
  %v640 = vld [vmem:[#allocation2 + $0x21a] sm:$0xff]
  %v641 = vld [vmem:[#allocation2 + $0x22a] sm:$0xff]
  %v642 = vld [vmem:[#allocation2 + $0x232] sm:$0xff]
  %v643 = vld [vmem:[#allocation2 + $0x242] sm:$0xff]
  %v644 = vld [vmem:[#allocation2 + $0x24a] sm:$0xff]
  %v645 = vld [vmem:[#allocation2 + $0x25a] sm:$0xff]
  %v646 = vld [vmem:[#allocation2 + $0x262] sm:$0xff]
  %v647 = vld [vmem:[#allocation2 + $0x272] sm:$0xff]
  %v648 = vld [vmem:[#allocation2 + $0x27a] sm:$0xff]
  %v649 = vld [vmem:[#allocation2 + $0x28a] sm:$0xff]
  %v650 = vld [vmem:[#allocation2 + $0x292] sm:$0xff]
  %v651 = vld [vmem:[#allocation2 + $0x2a2] sm:$0xff]
  %v652 = vld [vmem:[#allocation2 + $0x2aa] sm:$0xff]
  %v653 = vld [vmem:[#allocation2 + $0x2ba] sm:$0xff]
  %v654 = vld [vmem:[#allocation2 + $0x2c2] sm:$0xff]
  %v655 = vld [vmem:[#allocation2 + $0x2d2] sm:$0xff]
  %v656 = vld [vmem:[#allocation2 + $0x2da] sm:$0xff]
  %v657 = vld [vmem:[#allocation2 + $0x2ea] sm:$0xff]
  %v658 = vld [vmem:[#allocation2 + $0x2f2] sm:$0xff]
  %v659 = vld [vmem:[#allocation2 + $0x302] sm:$0xff]
  %v660 = vld [vmem:[#allocation2 + $0x30a] sm:$0xff]
  %v661 = vld [vmem:[#allocation2 + $0x31a] sm:$0xff]
  %v662 = vld [vmem:[#allocation2 + $0x322] sm:$0xff]
  %v663 = vld [vmem:[%s406] sm:$0xff]
  %v664 = vld [vmem:[%s406 + $0x8] sm:$0xff]
  %v665 = vld [vmem:[%s406 + $0x18] sm:$0xff]
  %v666 = vld [vmem:[%s406 + $0x20] sm:$0xff]
  %v667 = vld [vmem:[%s406 + $0x30] sm:$0xff]
  %v668 = vld [vmem:[%s406 + $0x38] sm:$0xff]
  %v669 = vld [vmem:[%s406 + $0x48] sm:$0xff]
  %v670 = vld [vmem:[%s406 + $0x50] sm:$0xff]
  %v671 = vld [vmem:[%s406 + $0x60] sm:$0xff]
  %v672 = vld [vmem:[%s406 + $0x68] sm:$0xff]
  %v673 = vld [vmem:[%s406 + $0x78] sm:$0xff]
  %v674 = vld [vmem:[%s406 + $0x80] sm:$0xff]
  %v675 = vld [vmem:[%s406 + $0x90] sm:$0xff]
  %v676 = vld [vmem:[%s406 + $0x98] sm:$0xff]
  %v677 = vld [vmem:[%s406 + $0xa8] sm:$0xff]
  %v678 = vld [vmem:[%s406 + $0xb0] sm:$0xff]
  %v679 = vld [vmem:[%s406 + $0xc0] sm:$0xff]
  %v680 = vld [vmem:[%s406 + $0xc8] sm:$0xff]
  %v681 = vld [vmem:[%s406 + $0xd8] sm:$0xff]
  %v682 = vld [vmem:[%s406 + $0xe0] sm:$0xff]
  %v683 = vld [vmem:[%s406 + $0xf0] sm:$0xff]
  %v684 = vld [vmem:[%s406 + $0xf8] sm:$0xff]
  %v685 = vld [vmem:[%s406 + $0x108] sm:$0xff]
  %v686 = vld [vmem:[%s406 + $0x110] sm:$0xff]
  %v687 = vld [vmem:[%s406 + $0x120] sm:$0xff]
  %v688 = vld [vmem:[%s406 + $0x128] sm:$0xff]
  %v689 = vld [vmem:[%s406 + $0x138] sm:$0xff]
  %v690 = vld [vmem:[%s406 + $0x140] sm:$0xff]
  %v691 = vld [vmem:[%s406 + $0x150] sm:$0xff]
  %v692 = vld [vmem:[%s406 + $0x158] sm:$0xff]
  %v693 = vld [vmem:[%s406 + $0x168] sm:$0xff]
  %v694 = vld [vmem:[%s406 + $0x170] sm:$0xff]
  %v695 = vld [vmem:[%s406 + $0x1b0] sm:$0xff]
  %v696 = vld [vmem:[%s406 + $0x1b8] sm:$0xff]
  %v697 = vld [vmem:[%s406 + $0x1c8] sm:$0xff]
  %v698 = vld [vmem:[%s406 + $0x1d0] sm:$0xff]
  %v699 = vld [vmem:[%s406 + $0x1e0] sm:$0xff]
  %v700 = vld [vmem:[%s406 + $0x1e8] sm:$0xff]
  %v701 = vld [vmem:[%s406 + $0x1f8] sm:$0xff]
  %v702 = vld [vmem:[%s406 + $0x200] sm:$0xff]
  %v703 = vld [vmem:[%s406 + $0x210] sm:$0xff]
  %v704 = vld [vmem:[%s406 + $0x218] sm:$0xff]
  %v705 = vld [vmem:[%s406 + $0x228] sm:$0xff]
  %v706 = vld [vmem:[%s406 + $0x230] sm:$0xff]
  %v707 = vld [vmem:[%s406 + $0x240] sm:$0xff]
  %v708 = vld [vmem:[%s406 + $0x248] sm:$0xff]
  %v709 = vld [vmem:[%s406 + $0x258] sm:$0xff]
  %v710 = vld [vmem:[%s406 + $0x260] sm:$0xff]
  %v711 = vld [vmem:[%s406 + $0x270] sm:$0xff]
  %v712 = vld [vmem:[%s406 + $0x278] sm:$0xff]
  %v713 = vld [vmem:[%s406 + $0x288] sm:$0xff]
  %v714 = vld [vmem:[%s406 + $0x290] sm:$0xff]
  %v715 = vld [vmem:[%s406 + $0x2a0] sm:$0xff]
  %v716 = vld [vmem:[%s406 + $0x2a8] sm:$0xff]
  %v717 = vld [vmem:[%s406 + $0x2b8] sm:$0xff]
  %v718 = vld [vmem:[%s406 + $0x2c0] sm:$0xff]
  %v719 = vld [vmem:[%s406 + $0x2d0] sm:$0xff]
  %v720 = vld [vmem:[%s406 + $0x2d8] sm:$0xff]
  %v721 = vld [vmem:[%s406 + $0x2e8] sm:$0xff]
  %v722 = vld [vmem:[%s406 + $0x2f0] sm:$0xff]
  %v723 = vld [vmem:[%s406 + $0x300] sm:$0xff]
  %v724 = vld [vmem:[%s406 + $0x308] sm:$0xff]
  %v725 = vld [vmem:[%s406 + $0x318] sm:$0xff]
  %v726 = vld [vmem:[%s406 + $0x320] sm:$0xff]
  %v727 = vld [vmem:[%s406 + $0x1] sm:$0xff]
  %v728 = vld [vmem:[%s406 + $0x9] sm:$0xff]
  %v729 = vld [vmem:[%s406 + $0x19] sm:$0xff]
  %v730 = vld [vmem:[%s406 + $0x21] sm:$0xff]
  %v731 = vld [vmem:[%s406 + $0x31] sm:$0xff]
  %v732 = vld [vmem:[%s406 + $0x39] sm:$0xff]
  %v733 = vld [vmem:[%s406 + $0x49] sm:$0xff]
  %v734 = vld [vmem:[%s406 + $0x51] sm:$0xff]
  %v735 = vld [vmem:[%s406 + $0x61] sm:$0xff]
  %v736 = vld [vmem:[%s406 + $0x69] sm:$0xff]
  %v737 = vld [vmem:[%s406 + $0x79] sm:$0xff]
  %v738 = vld [vmem:[%s406 + $0x81] sm:$0xff]
  %v739 = vld [vmem:[%s406 + $0x91] sm:$0xff]
  %v740 = vld [vmem:[%s406 + $0x99] sm:$0xff]
  %v741 = vld [vmem:[%s406 + $0xa9] sm:$0xff]
  %v742 = vld [vmem:[%s406 + $0xb1] sm:$0xff]
  %v743 = vld [vmem:[%s406 + $0xc1] sm:$0xff]
  %v744 = vld [vmem:[%s406 + $0xc9] sm:$0xff]
  %v745 = vld [vmem:[%s406 + $0xd9] sm:$0xff]
  %v746 = vld [vmem:[%s406 + $0xe1] sm:$0xff]
  %v747 = vld [vmem:[%s406 + $0xf1] sm:$0xff]
  %v748 = vld [vmem:[%s406 + $0xf9] sm:$0xff]
  %v749 = vld [vmem:[%s406 + $0x109] sm:$0xff]
  %v750 = vld [vmem:[%s406 + $0x111] sm:$0xff]
  %v751 = vld [vmem:[%s406 + $0x121] sm:$0xff]
  %v752 = vld [vmem:[%s406 + $0x129] sm:$0xff]
  %v753 = vld [vmem:[%s406 + $0x139] sm:$0xff]
  %v754 = vld [vmem:[%s406 + $0x141] sm:$0xff]
  %v755 = vld [vmem:[%s406 + $0x151] sm:$0xff]
  %v756 = vld [vmem:[%s406 + $0x159] sm:$0xff]
  %v757 = vld [vmem:[%s406 + $0x169] sm:$0xff]
  %v758 = vld [vmem:[%s406 + $0x171] sm:$0xff]
  %v759 = vld [vmem:[%s406 + $0x1b1] sm:$0xff]
  %v760 = vld [vmem:[%s406 + $0x1b9] sm:$0xff]
  %v761 = vld [vmem:[%s406 + $0x1c9] sm:$0xff]
  %v762 = vld [vmem:[%s406 + $0x1d1] sm:$0xff]
  %v763 = vld [vmem:[%s406 + $0x1e1] sm:$0xff]
  %v764 = vld [vmem:[%s406 + $0x1e9] sm:$0xff]
  %v765 = vld [vmem:[%s406 + $0x1f9] sm:$0xff]
  %v766 = vld [vmem:[%s406 + $0x201] sm:$0xff]
  %v767 = vld [vmem:[%s406 + $0x211] sm:$0xff]
  %v768 = vld [vmem:[%s406 + $0x219] sm:$0xff]
  %v769 = vld [vmem:[%s406 + $0x229] sm:$0xff]
  %v770 = vld [vmem:[%s406 + $0x231] sm:$0xff]
  %v771 = vld [vmem:[%s406 + $0x241] sm:$0xff]
  %v772 = vld [vmem:[%s406 + $0x249] sm:$0xff]
  %v773 = vld [vmem:[%s406 + $0x259] sm:$0xff]
  %v774 = vld [vmem:[%s406 + $0x261] sm:$0xff]
  %v775 = vld [vmem:[%s406 + $0x271] sm:$0xff]
  %v776 = vld [vmem:[%s406 + $0x279] sm:$0xff]
  %v777 = vld [vmem:[%s406 + $0x289] sm:$0xff]
  %v778 = vld [vmem:[%s406 + $0x291] sm:$0xff]
  %v779 = vld [vmem:[%s406 + $0x2a1] sm:$0xff]
  %v780 = vld [vmem:[%s406 + $0x2a9] sm:$0xff]
  %v781 = vld [vmem:[%s406 + $0x2b9] sm:$0xff]
  %v782 = vld [vmem:[%s406 + $0x2c1] sm:$0xff]
  %v783 = vld [vmem:[%s406 + $0x2d1] sm:$0xff]
  %v784 = vld [vmem:[%s406 + $0x2d9] sm:$0xff]
  %v785 = vld [vmem:[%s406 + $0x2e9] sm:$0xff]
  %v786 = vld [vmem:[%s406 + $0x2f1] sm:$0xff]
  %v787 = vld [vmem:[%s406 + $0x301] sm:$0xff]
  %v788 = vld [vmem:[%s406 + $0x309] sm:$0xff]
  %v789 = vld [vmem:[%s406 + $0x319] sm:$0xff]
  %v790 = vld [vmem:[%s406 + $0x321] sm:$0xff]
  %v791 = vld [vmem:[%s406 + $0x2] sm:$0xff]
  %v792 = vld [vmem:[%s406 + $0xa] sm:$0xff]
  %v793 = vld [vmem:[%s406 + $0x1a] sm:$0xff]
  %v794 = vld [vmem:[%s406 + $0x22] sm:$0xff]
  %v795 = vld [vmem:[%s406 + $0x32] sm:$0xff]
  %v796 = vld [vmem:[%s406 + $0x3a] sm:$0xff]
  %v797 = vld [vmem:[%s406 + $0x4a] sm:$0xff]
  %v798 = vld [vmem:[%s406 + $0x52] sm:$0xff]
  %v799 = vld [vmem:[%s406 + $0x62] sm:$0xff]
  %v800 = vld [vmem:[%s406 + $0x6a] sm:$0xff]
  %v801 = vld [vmem:[%s406 + $0x7a] sm:$0xff]
  %v802 = vld [vmem:[%s406 + $0x82] sm:$0xff]
  %v803 = vld [vmem:[%s406 + $0x92] sm:$0xff]
  %v804 = vld [vmem:[%s406 + $0x9a] sm:$0xff]
  %v805 = vld [vmem:[%s406 + $0xaa] sm:$0xff]
  %v806 = vld [vmem:[%s406 + $0xb2] sm:$0xff]
  %v807 = vld [vmem:[%s406 + $0xc2] sm:$0xff]
  %v808 = vld [vmem:[%s406 + $0xca] sm:$0xff]
  %v809 = vld [vmem:[%s406 + $0xda] sm:$0xff]
  %v810 = vld [vmem:[%s406 + $0xe2] sm:$0xff]
  %v811 = vld [vmem:[%s406 + $0xf2] sm:$0xff]
  %v812 = vld [vmem:[%s406 + $0xfa] sm:$0xff]
  %v813 = vld [vmem:[%s406 + $0x10a] sm:$0xff]
  %v814 = vld [vmem:[%s406 + $0x112] sm:$0xff]
  %v815 = vld [vmem:[%s406 + $0x122] sm:$0xff]
  %v816 = vld [vmem:[%s406 + $0x12a] sm:$0xff]
  %v817 = vld [vmem:[%s406 + $0x13a] sm:$0xff]
  %v818 = vld [vmem:[%s406 + $0x142] sm:$0xff]
  %v819 = vld [vmem:[%s406 + $0x152] sm:$0xff]
  %v820 = vld [vmem:[%s406 + $0x15a] sm:$0xff]
  %v821 = vld [vmem:[%s406 + $0x16a] sm:$0xff]
  %v822 = vld [vmem:[%s406 + $0x172] sm:$0xff]
  %v823 = vld [vmem:[%s406 + $0x1b2] sm:$0xff]
  %v824 = vld [vmem:[%s406 + $0x1ba] sm:$0xff]
  %v825 = vld [vmem:[%s406 + $0x1ca] sm:$0xff]
  %v826 = vld [vmem:[%s406 + $0x1d2] sm:$0xff]
  %v827 = vld [vmem:[%s406 + $0x1e2] sm:$0xff]
  %v828 = vld [vmem:[%s406 + $0x1ea] sm:$0xff]
  %v829 = vld [vmem:[%s406 + $0x1fa] sm:$0xff]
  %v830 = vld [vmem:[%s406 + $0x202] sm:$0xff]
  %v831 = vld [vmem:[%s406 + $0x212] sm:$0xff]
  %v832 = vld [vmem:[%s406 + $0x21a] sm:$0xff]
  %v833 = vld [vmem:[%s406 + $0x22a] sm:$0xff]
  %v834 = vld [vmem:[%s406 + $0x232] sm:$0xff]
  %v835 = vld [vmem:[%s406 + $0x242] sm:$0xff]
  %v836 = vld [vmem:[%s406 + $0x24a] sm:$0xff]
  %v837 = vld [vmem:[%s406 + $0x25a] sm:$0xff]
  %v838 = vld [vmem:[%s406 + $0x262] sm:$0xff]
  %v839 = vld [vmem:[%s406 + $0x272] sm:$0xff]
  %v840 = vld [vmem:[%s406 + $0x27a] sm:$0xff]
  %v841 = vld [vmem:[%s406 + $0x28a] sm:$0xff]
  %v842 = vld [vmem:[%s406 + $0x292] sm:$0xff]
  %v843 = vld [vmem:[%s406 + $0x2a2] sm:$0xff]
  %v844 = vld [vmem:[%s406 + $0x2aa] sm:$0xff]
  %v845 = vld [vmem:[%s406 + $0x2ba] sm:$0xff]
  %v846 = vld [vmem:[%s406 + $0x2c2] sm:$0xff]
  %v847 = vld [vmem:[%s406 + $0x2d2] sm:$0xff]
  %v848 = vld [vmem:[%s406 + $0x2da] sm:$0xff]
  %v849 = vld [vmem:[%s406 + $0x2ea] sm:$0xff]
  %v850 = vld [vmem:[%s406 + $0x2f2] sm:$0xff]
  %v851 = vld [vmem:[%s406 + $0x302] sm:$0xff]
  %v852 = vld [vmem:[%s406 + $0x30a] sm:$0xff]
  %v853 = vld [vmem:[%s406 + $0x31a] sm:$0xff]
  %v854 = vld [vmem:[%s406 + $0x322] sm:$0xff]
  %s855 = scalar_lea.vmem [#allocation2], 48
  %v856 = vld [vmem:[%s855] sm:$0xff]
  %v857 = vld [vmem:[%s855 + $0x8] sm:$0xff]
  %v858 = vld [vmem:[%s855 + $0x18] sm:$0xff]
  %v859 = vld [vmem:[%s855 + $0x20] sm:$0xff]
  %v860 = vld [vmem:[%s855 + $0x30] sm:$0xff]
  %v861 = vld [vmem:[%s855 + $0x38] sm:$0xff]
  %v862 = vld [vmem:[%s855 + $0x48] sm:$0xff]
  %v863 = vld [vmem:[%s855 + $0x50] sm:$0xff]
  %v864 = vld [vmem:[%s855 + $0x60] sm:$0xff]
  %v865 = vld [vmem:[%s855 + $0x68] sm:$0xff]
  %v866 = vld [vmem:[%s855 + $0x78] sm:$0xff]
  %v867 = vld [vmem:[%s855 + $0x80] sm:$0xff]
  %v868 = vld [vmem:[%s855 + $0x90] sm:$0xff]
  %v869 = vld [vmem:[%s855 + $0x98] sm:$0xff]
  %v870 = vld [vmem:[%s855 + $0xa8] sm:$0xff]
  %v871 = vld [vmem:[%s855 + $0xb0] sm:$0xff]
  %v872 = vld [vmem:[%s855 + $0xc0] sm:$0xff]
  %v873 = vld [vmem:[%s855 + $0xc8] sm:$0xff]
  %v874 = vld [vmem:[%s855 + $0xd8] sm:$0xff]
  %v875 = vld [vmem:[%s855 + $0xe0] sm:$0xff]
  %v876 = vld [vmem:[%s855 + $0xf0] sm:$0xff]
  %v877 = vld [vmem:[%s855 + $0xf8] sm:$0xff]
  %v878 = vld [vmem:[%s855 + $0x108] sm:$0xff]
  %v879 = vld [vmem:[%s855 + $0x110] sm:$0xff]
  %v880 = vld [vmem:[%s855 + $0x120] sm:$0xff]
  %v881 = vld [vmem:[%s855 + $0x128] sm:$0xff]
  %v882 = vld [vmem:[%s855 + $0x138] sm:$0xff]
  %v883 = vld [vmem:[%s855 + $0x140] sm:$0xff]
  %v884 = vld [vmem:[%s855 + $0x150] sm:$0xff]
  %v885 = vld [vmem:[%s855 + $0x158] sm:$0xff]
  %v886 = vld [vmem:[%s855 + $0x168] sm:$0xff]
  %v887 = vld [vmem:[%s855 + $0x170] sm:$0xff]
  %v888 = vld [vmem:[%s855 + $0x1b0] sm:$0xff]
  %v889 = vld [vmem:[%s855 + $0x1b8] sm:$0xff]
  %v890 = vld [vmem:[%s855 + $0x1c8] sm:$0xff]
  %v891 = vld [vmem:[%s855 + $0x1d0] sm:$0xff]
  %v892 = vld [vmem:[%s855 + $0x1e0] sm:$0xff]
  %v893 = vld [vmem:[%s855 + $0x1e8] sm:$0xff]
  %v894 = vld [vmem:[%s855 + $0x1f8] sm:$0xff]
  %v895 = vld [vmem:[%s855 + $0x200] sm:$0xff]
  %v896 = vld [vmem:[%s855 + $0x210] sm:$0xff]
  %v897 = vld [vmem:[%s855 + $0x218] sm:$0xff]
  %v898 = vld [vmem:[%s855 + $0x228] sm:$0xff]
  %v899 = vld [vmem:[%s855 + $0x230] sm:$0xff]
  %v900 = vld [vmem:[%s855 + $0x240] sm:$0xff]
  %v901 = vld [vmem:[%s855 + $0x248] sm:$0xff]
  %v902 = vld [vmem:[%s855 + $0x258] sm:$0xff]
  %v903 = vld [vmem:[%s855 + $0x260] sm:$0xff]
  %v904 = vld [vmem:[%s855 + $0x270] sm:$0xff]
  %v905 = vld [vmem:[%s855 + $0x278] sm:$0xff]
  %v906 = vld [vmem:[%s855 + $0x288] sm:$0xff]
  %v907 = vld [vmem:[%s855 + $0x290] sm:$0xff]
  %v908 = vld [vmem:[%s855 + $0x2a0] sm:$0xff]
  %v909 = vld [vmem:[%s855 + $0x2a8] sm:$0xff]
  %v910 = vld [vmem:[%s855 + $0x2b8] sm:$0xff]
  %v911 = vld [vmem:[%s855 + $0x2c0] sm:$0xff]
  %v912 = vld [vmem:[%s855 + $0x2d0] sm:$0xff]
  %v913 = vld [vmem:[%s855 + $0x2d8] sm:$0xff]
  %v914 = vld [vmem:[%s855 + $0x2e8] sm:$0xff]
  %v915 = vld [vmem:[%s855 + $0x2f0] sm:$0xff]
  %v916 = vld [vmem:[%s855 + $0x300] sm:$0xff]
  %v917 = vld [vmem:[%s855 + $0x308] sm:$0xff]
  %v918 = vld [vmem:[%s855 + $0x318] sm:$0xff]
  %v919 = vld [vmem:[%s855 + $0x320] sm:$0xff]
  %v920 = vld [vmem:[%s855 + $0x1] sm:$0xff]
  %v921 = vld [vmem:[%s855 + $0x9] sm:$0xff]
  %v922 = vld [vmem:[%s855 + $0x19] sm:$0xff]
  %v923 = vld [vmem:[%s855 + $0x21] sm:$0xff]
  %v924 = vld [vmem:[%s855 + $0x31] sm:$0xff]
  %v925 = vld [vmem:[%s855 + $0x39] sm:$0xff]
  %v926 = vld [vmem:[%s855 + $0x49] sm:$0xff]
  %v927 = vld [vmem:[%s855 + $0x51] sm:$0xff]
  %v928 = vld [vmem:[%s855 + $0x61] sm:$0xff]
  %v929 = vld [vmem:[%s855 + $0x69] sm:$0xff]
  %v930 = vld [vmem:[%s855 + $0x79] sm:$0xff]
  %v931 = vld [vmem:[%s855 + $0x81] sm:$0xff]
  %v932 = vld [vmem:[%s855 + $0x91] sm:$0xff]
  %v933 = vld [vmem:[%s855 + $0x99] sm:$0xff]
  %v934 = vld [vmem:[%s855 + $0xa9] sm:$0xff]
  %v935 = vld [vmem:[%s855 + $0xb1] sm:$0xff]
  %v936 = vld [vmem:[%s855 + $0xc1] sm:$0xff]
  %v937 = vld [vmem:[%s855 + $0xc9] sm:$0xff]
  %v938 = vld [vmem:[%s855 + $0xd9] sm:$0xff]
  %v939 = vld [vmem:[%s855 + $0xe1] sm:$0xff]
  %v940 = vld [vmem:[%s855 + $0xf1] sm:$0xff]
  %v941 = vld [vmem:[%s855 + $0xf9] sm:$0xff]
  %v942 = vld [vmem:[%s855 + $0x109] sm:$0xff]
  %v943 = vld [vmem:[%s855 + $0x111] sm:$0xff]
  %v944 = vld [vmem:[%s855 + $0x121] sm:$0xff]
  %v945 = vld [vmem:[%s855 + $0x129] sm:$0xff]
  %v946 = vld [vmem:[%s855 + $0x139] sm:$0xff]
  %v947 = vld [vmem:[%s855 + $0x141] sm:$0xff]
  %v948 = vld [vmem:[%s855 + $0x151] sm:$0xff]
  %v949 = vld [vmem:[%s855 + $0x159] sm:$0xff]
  %v950 = vld [vmem:[%s855 + $0x169] sm:$0xff]
  %v951 = vld [vmem:[%s855 + $0x171] sm:$0xff]
  %v952 = vld [vmem:[%s855 + $0x1b1] sm:$0xff]
  %v953 = vld [vmem:[%s855 + $0x1b9] sm:$0xff]
  %v954 = vld [vmem:[%s855 + $0x1c9] sm:$0xff]
  %v955 = vld [vmem:[%s855 + $0x1d1] sm:$0xff]
  %v956 = vld [vmem:[%s855 + $0x1e1] sm:$0xff]
  %v957 = vld [vmem:[%s855 + $0x1e9] sm:$0xff]
  %v958 = vld [vmem:[%s855 + $0x1f9] sm:$0xff]
  %v959 = vld [vmem:[%s855 + $0x201] sm:$0xff]
  %v960 = vld [vmem:[%s855 + $0x211] sm:$0xff]
  %v961 = vld [vmem:[%s855 + $0x219] sm:$0xff]
  %v962 = vld [vmem:[%s855 + $0x229] sm:$0xff]
  %v963 = vld [vmem:[%s855 + $0x231] sm:$0xff]
  %v964 = vld [vmem:[%s855 + $0x241] sm:$0xff]
  %v965 = vld [vmem:[%s855 + $0x249] sm:$0xff]
  %v966 = vld [vmem:[%s855 + $0x259] sm:$0xff]
  %v967 = vld [vmem:[%s855 + $0x261] sm:$0xff]
  %v968 = vld [vmem:[%s855 + $0x271] sm:$0xff]
  %v969 = vld [vmem:[%s855 + $0x279] sm:$0xff]
  %v970 = vld [vmem:[%s855 + $0x289] sm:$0xff]
  %v971 = vld [vmem:[%s855 + $0x291] sm:$0xff]
  %v972 = vld [vmem:[%s855 + $0x2a1] sm:$0xff]
  %v973 = vld [vmem:[%s855 + $0x2a9] sm:$0xff]
  %v974 = vld [vmem:[%s855 + $0x2b9] sm:$0xff]
  %v975 = vld [vmem:[%s855 + $0x2c1] sm:$0xff]
  %v976 = vld [vmem:[%s855 + $0x2d1] sm:$0xff]
  %v977 = vld [vmem:[%s855 + $0x2d9] sm:$0xff]
  %v978 = vld [vmem:[%s855 + $0x2e9] sm:$0xff]
  %v979 = vld [vmem:[%s855 + $0x2f1] sm:$0xff]
  %v980 = vld [vmem:[%s855 + $0x301] sm:$0xff]
  %v981 = vld [vmem:[%s855 + $0x309] sm:$0xff]
  %v982 = vld [vmem:[%s855 + $0x319] sm:$0xff]
  %v983 = vld [vmem:[%s855 + $0x321] sm:$0xff]
  %v984 = vld [vmem:[%s855 + $0x2] sm:$0xff]
  %v985 = vld [vmem:[%s855 + $0xa] sm:$0xff]
  %v986 = vld [vmem:[%s855 + $0x1a] sm:$0xff]
  %v987 = vld [vmem:[%s855 + $0x22] sm:$0xff]
  %v988 = vld [vmem:[%s855 + $0x32] sm:$0xff]
  %v989 = vld [vmem:[%s855 + $0x3a] sm:$0xff]
  %v990 = vld [vmem:[%s855 + $0x4a] sm:$0xff]
  %v991 = vld [vmem:[%s855 + $0x52] sm:$0xff]
  %v992 = vld [vmem:[%s855 + $0x62] sm:$0xff]
  %v993 = vld [vmem:[%s855 + $0x6a] sm:$0xff]
  %v994 = vld [vmem:[%s855 + $0x7a] sm:$0xff]
  %v995 = vld [vmem:[%s855 + $0x82] sm:$0xff]
  %v996 = vld [vmem:[%s855 + $0x92] sm:$0xff]
  %v997 = vld [vmem:[%s855 + $0x9a] sm:$0xff]
  %v998 = vld [vmem:[%s855 + $0xaa] sm:$0xff]
  %v999 = vld [vmem:[%s855 + $0xb2] sm:$0xff]
  %v1000 = vld [vmem:[%s855 + $0xc2] sm:$0xff]
  %v1001 = vld [vmem:[%s855 + $0xca] sm:$0xff]
  %v1002 = vld [vmem:[%s855 + $0xda] sm:$0xff]
  %v1003 = vld [vmem:[%s855 + $0xe2] sm:$0xff]
  %v1004 = vld [vmem:[%s855 + $0xf2] sm:$0xff]
  %v1005 = vld [vmem:[%s855 + $0xfa] sm:$0xff]
  %v1006 = vld [vmem:[%s855 + $0x10a] sm:$0xff]
  %v1007 = vld [vmem:[%s855 + $0x112] sm:$0xff]
  %v1008 = vld [vmem:[%s855 + $0x122] sm:$0xff]
  %v1009 = vld [vmem:[%s855 + $0x12a] sm:$0xff]
  %v1010 = vld [vmem:[%s855 + $0x13a] sm:$0xff]
  %v1011 = vld [vmem:[%s855 + $0x142] sm:$0xff]
  %v1012 = vld [vmem:[%s855 + $0x152] sm:$0xff]
  %v1013 = vld [vmem:[%s855 + $0x15a] sm:$0xff]
  %v1014 = vld [vmem:[%s855 + $0x16a] sm:$0xff]
  %v1015 = vld [vmem:[%s855 + $0x172] sm:$0xff]
  %v1016 = vld [vmem:[%s855 + $0x1b2] sm:$0xff]
  %v1017 = vld [vmem:[%s855 + $0x1ba] sm:$0xff]
  %v1018 = vld [vmem:[%s855 + $0x1ca] sm:$0xff]
  %v1019 = vld [vmem:[%s855 + $0x1d2] sm:$0xff]
  %v1020 = vld [vmem:[%s855 + $0x1e2] sm:$0xff]
  %v1021 = vld [vmem:[%s855 + $0x1ea] sm:$0xff]
  %v1022 = vld [vmem:[%s855 + $0x1fa] sm:$0xff]
  %v1023 = vld [vmem:[%s855 + $0x202] sm:$0xff]
  %v1024 = vld [vmem:[%s855 + $0x212] sm:$0xff]
  %v1025 = vld [vmem:[%s855 + $0x21a] sm:$0xff]
  %v1026 = vld [vmem:[%s855 + $0x22a] sm:$0xff]
  %v1027 = vld [vmem:[%s855 + $0x232] sm:$0xff]
  %v1028 = vld [vmem:[%s855 + $0x242] sm:$0xff]
  %v1029 = vld [vmem:[%s855 + $0x24a] sm:$0xff]
  %v1030 = vld [vmem:[%s855 + $0x25a] sm:$0xff]
  %v1031 = vld [vmem:[%s855 + $0x262] sm:$0xff]
  %v1032 = vld [vmem:[%s855 + $0x272] sm:$0xff]
  %v1033 = vld [vmem:[%s855 + $0x27a] sm:$0xff]
  %v1034 = vld [vmem:[%s855 + $0x28a] sm:$0xff]
  %v1035 = vld [vmem:[%s855 + $0x292] sm:$0xff]
  %v1036 = vld [vmem:[%s855 + $0x2a2] sm:$0xff]
  %v1037 = vld [vmem:[%s855 + $0x2aa] sm:$0xff]
  %v1038 = vld [vmem:[%s855 + $0x2ba] sm:$0xff]
  %v1039 = vld [vmem:[%s855 + $0x2c2] sm:$0xff]
  %v1040 = vld [vmem:[%s855 + $0x2d2] sm:$0xff]
  %v1041 = vld [vmem:[%s855 + $0x2da] sm:$0xff]
  %v1042 = vld [vmem:[%s855 + $0x2ea] sm:$0xff]
  %v1043 = vld [vmem:[%s855 + $0x2f2] sm:$0xff]
  %v1044 = vld [vmem:[%s855 + $0x302] sm:$0xff]
  %v1045 = vld [vmem:[%s855 + $0x30a] sm:$0xff]
  %v1046 = vld [vmem:[%s855 + $0x31a] sm:$0xff]
  %v1047 = vld [vmem:[%s855 + $0x322] sm:$0xff]
  %1112 = vrot.lane.b32.xlu0 %v535, 8
  %v1113 = vpop.permute.xlu0 %1112
  %1114 = vrot.lane.b32.xlu0 %v536, 8
  %v1115 = vpop.permute.xlu0 %1114
  %1116 = vrot.lane.b32.xlu0 %v537, 8
  %v1117 = vpop.permute.xlu0 %1116
  %1118 = vrot.lane.b32.xlu0 %v538, 8
  %v1119 = vpop.permute.xlu0 %1118
  %1120 = vrot.lane.b32.xlu0 %v539, 8
  %v1121 = vpop.permute.xlu0 %1120
  %1122 = vrot.lane.b32.xlu0 %v540, 8
  %v1123 = vpop.permute.xlu0 %1122
  %1124 = vrot.lane.b32.xlu0 %v541, 8
  %v1125 = vpop.permute.xlu0 %1124
  %1126 = vrot.lane.b32.xlu0 %v542, 8
  %v1127 = vpop.permute.xlu0 %1126
  %1128 = vrot.lane.b32.xlu0 %v543, 8
  %v1129 = vpop.permute.xlu0 %1128
  %1130 = vrot.lane.b32.xlu0 %v544, 8
  %v1131 = vpop.permute.xlu0 %1130
  %1132 = vrot.lane.b32.xlu0 %v545, 8
  %v1133 = vpop.permute.xlu0 %1132
  %1134 = vrot.lane.b32.xlu0 %v546, 8
  %v1135 = vpop.permute.xlu0 %1134
  %1136 = vrot.lane.b32.xlu0 %v547, 8
  %v1137 = vpop.permute.xlu0 %1136
  %1138 = vrot.lane.b32.xlu0 %v548, 8
  %v1139 = vpop.permute.xlu0 %1138
  %1140 = vrot.lane.b32.xlu0 %v549, 8
  %v1141 = vpop.permute.xlu0 %1140
  %1142 = vrot.lane.b32.xlu0 %v550, 8
  %v1143 = vpop.permute.xlu0 %1142
  %1144 = vrot.lane.b32.xlu0 %v551, 8
  %v1145 = vpop.permute.xlu0 %1144
  %1146 = vrot.lane.b32.xlu0 %v552, 8
  %v1147 = vpop.permute.xlu0 %1146
  %1148 = vrot.lane.b32.xlu0 %v553, 8
  %v1149 = vpop.permute.xlu0 %1148
  %1150 = vrot.lane.b32.xlu0 %v554, 8
  %v1151 = vpop.permute.xlu0 %1150
  %1152 = vrot.lane.b32.xlu0 %v555, 8
  %v1153 = vpop.permute.xlu0 %1152
  %1154 = vrot.lane.b32.xlu0 %v556, 8
  %v1155 = vpop.permute.xlu0 %1154
  %1156 = vrot.lane.b32.xlu0 %v557, 8
  %v1157 = vpop.permute.xlu0 %1156
  %1158 = vrot.lane.b32.xlu0 %v558, 8
  %v1159 = vpop.permute.xlu0 %1158
  %1160 = vrot.lane.b32.xlu0 %v559, 8
  %v1161 = vpop.permute.xlu0 %1160
  %1162 = vrot.lane.b32.xlu0 %v560, 8
  %v1163 = vpop.permute.xlu0 %1162
  %1164 = vrot.lane.b32.xlu0 %v561, 8
  %v1165 = vpop.permute.xlu0 %1164
  %1166 = vrot.lane.b32.xlu0 %v562, 8
  %v1167 = vpop.permute.xlu0 %1166
  %1168 = vrot.lane.b32.xlu0 %v563, 8
  %v1169 = vpop.permute.xlu0 %1168
  %1170 = vrot.lane.b32.xlu0 %v564, 8
  %v1171 = vpop.permute.xlu0 %1170
  %1172 = vrot.lane.b32.xlu0 %v565, 8
  %v1173 = vpop.permute.xlu0 %1172
  %1174 = vrot.lane.b32.xlu0 %v566, 8
  %v1175 = vpop.permute.xlu0 %1174
  %1176 = vrot.lane.b32.xlu0 %v567, 8
  %v1177 = vpop.permute.xlu0 %1176
  %1178 = vrot.lane.b32.xlu0 %v568, 8
  %v1179 = vpop.permute.xlu0 %1178
  %1180 = vrot.lane.b32.xlu0 %v569, 8
  %v1181 = vpop.permute.xlu0 %1180
  %1182 = vrot.lane.b32.xlu0 %v570, 8
  %v1183 = vpop.permute.xlu0 %1182
  %1184 = vrot.lane.b32.xlu0 %v571, 8
  %v1185 = vpop.permute.xlu0 %1184
  %1186 = vrot.lane.b32.xlu0 %v572, 8
  %v1187 = vpop.permute.xlu0 %1186
  %1188 = vrot.lane.b32.xlu0 %v573, 8
  %v1189 = vpop.permute.xlu0 %1188
  %1190 = vrot.lane.b32.xlu0 %v574, 8
  %v1191 = vpop.permute.xlu0 %1190
  %1192 = vrot.lane.b32.xlu0 %v575, 8
  %v1193 = vpop.permute.xlu0 %1192
  %1194 = vrot.lane.b32.xlu0 %v576, 8
  %v1195 = vpop.permute.xlu0 %1194
  %1196 = vrot.lane.b32.xlu0 %v577, 8
  %v1197 = vpop.permute.xlu0 %1196
  %1198 = vrot.lane.b32.xlu0 %v578, 8
  %v1199 = vpop.permute.xlu0 %1198
  %1200 = vrot.lane.b32.xlu0 %v579, 8
  %v1201 = vpop.permute.xlu0 %1200
  %1202 = vrot.lane.b32.xlu0 %v580, 8
  %v1203 = vpop.permute.xlu0 %1202
  %1204 = vrot.lane.b32.xlu0 %v581, 8
  %v1205 = vpop.permute.xlu0 %1204
  %1206 = vrot.lane.b32.xlu0 %v582, 8
  %v1207 = vpop.permute.xlu0 %1206
  %1208 = vrot.lane.b32.xlu0 %v583, 8
  %v1209 = vpop.permute.xlu0 %1208
  %1210 = vrot.lane.b32.xlu0 %v584, 8
  %v1211 = vpop.permute.xlu0 %1210
  %1212 = vrot.lane.b32.xlu0 %v585, 8
  %v1213 = vpop.permute.xlu0 %1212
  %1214 = vrot.lane.b32.xlu0 %v586, 8
  %v1215 = vpop.permute.xlu0 %1214
  %1216 = vrot.lane.b32.xlu0 %v587, 8
  %v1217 = vpop.permute.xlu0 %1216
  %1218 = vrot.lane.b32.xlu0 %v588, 8
  %v1219 = vpop.permute.xlu0 %1218
  %1220 = vrot.lane.b32.xlu0 %v589, 8
  %v1221 = vpop.permute.xlu0 %1220
  %1222 = vrot.lane.b32.xlu0 %v590, 8
  %v1223 = vpop.permute.xlu0 %1222
  %1224 = vrot.lane.b32.xlu0 %v591, 8
  %v1225 = vpop.permute.xlu0 %1224
  %1226 = vrot.lane.b32.xlu0 %v592, 8
  %v1227 = vpop.permute.xlu0 %1226
  %1228 = vrot.lane.b32.xlu0 %v593, 8
  %v1229 = vpop.permute.xlu0 %1228
  %1230 = vrot.lane.b32.xlu0 %v594, 8
  %v1231 = vpop.permute.xlu0 %1230
  %1232 = vrot.lane.b32.xlu0 %v595, 8
  %v1233 = vpop.permute.xlu0 %1232
  %1234 = vrot.lane.b32.xlu0 %v596, 8
  %v1235 = vpop.permute.xlu0 %1234
  %1236 = vrot.lane.b32.xlu0 %v597, 8
  %v1237 = vpop.permute.xlu0 %1236
  %1238 = vrot.lane.b32.xlu0 %v598, 8
  %v1239 = vpop.permute.xlu0 %1238
  %1368 = vrot.lane.b32.xlu0 %v599, 16
  %v1369 = vpop.permute.xlu0 %1368
  %1370 = vrot.lane.b32.xlu0 %v600, 16
  %v1371 = vpop.permute.xlu0 %1370
  %1372 = vrot.lane.b32.xlu0 %v601, 16
  %v1373 = vpop.permute.xlu0 %1372
  %1374 = vrot.lane.b32.xlu0 %v602, 16
  %v1375 = vpop.permute.xlu0 %1374
  %1376 = vrot.lane.b32.xlu0 %v603, 16
  %v1377 = vpop.permute.xlu0 %1376
  %1378 = vrot.lane.b32.xlu0 %v604, 16
  %v1379 = vpop.permute.xlu0 %1378
  %1380 = vrot.lane.b32.xlu0 %v605, 16
  %v1381 = vpop.permute.xlu0 %1380
  %1382 = vrot.lane.b32.xlu0 %v606, 16
  %v1383 = vpop.permute.xlu0 %1382
  %1384 = vrot.lane.b32.xlu0 %v607, 16
  %v1385 = vpop.permute.xlu0 %1384
  %1386 = vrot.lane.b32.xlu0 %v608, 16
  %v1387 = vpop.permute.xlu0 %1386
  %1388 = vrot.lane.b32.xlu0 %v609, 16
  %v1389 = vpop.permute.xlu0 %1388
  %1390 = vrot.lane.b32.xlu0 %v610, 16
  %v1391 = vpop.permute.xlu0 %1390
  %1392 = vrot.lane.b32.xlu0 %v611, 16
  %v1393 = vpop.permute.xlu0 %1392
  %1394 = vrot.lane.b32.xlu0 %v612, 16
  %v1395 = vpop.permute.xlu0 %1394
  %1396 = vrot.lane.b32.xlu0 %v613, 16
  %v1397 = vpop.permute.xlu0 %1396
  %1398 = vrot.lane.b32.xlu0 %v614, 16
  %v1399 = vpop.permute.xlu0 %1398
  %1400 = vrot.lane.b32.xlu0 %v615, 16
  %v1401 = vpop.permute.xlu0 %1400
  %1402 = vrot.lane.b32.xlu0 %v616, 16
  %v1403 = vpop.permute.xlu0 %1402
  %1404 = vrot.lane.b32.xlu0 %v617, 16
  %v1405 = vpop.permute.xlu0 %1404
  %1406 = vrot.lane.b32.xlu0 %v618, 16
  %v1407 = vpop.permute.xlu0 %1406
  %1408 = vrot.lane.b32.xlu0 %v619, 16
  %v1409 = vpop.permute.xlu0 %1408
  %1410 = vrot.lane.b32.xlu0 %v620, 16
  %v1411 = vpop.permute.xlu0 %1410
  %1412 = vrot.lane.b32.xlu0 %v621, 16
  %v1413 = vpop.permute.xlu0 %1412
  %1414 = vrot.lane.b32.xlu0 %v622, 16
  %v1415 = vpop.permute.xlu0 %1414
  %1416 = vrot.lane.b32.xlu0 %v623, 16
  %v1417 = vpop.permute.xlu0 %1416
  %1418 = vrot.lane.b32.xlu0 %v624, 16
  %v1419 = vpop.permute.xlu0 %1418
  %1420 = vrot.lane.b32.xlu0 %v625, 16
  %v1421 = vpop.permute.xlu0 %1420
  %1422 = vrot.lane.b32.xlu0 %v626, 16
  %v1423 = vpop.permute.xlu0 %1422
  %1424 = vrot.lane.b32.xlu0 %v627, 16
  %v1425 = vpop.permute.xlu0 %1424
  %1426 = vrot.lane.b32.xlu0 %v628, 16
  %v1427 = vpop.permute.xlu0 %1426
  %1428 = vrot.lane.b32.xlu0 %v629, 16
  %v1429 = vpop.permute.xlu0 %1428
  %1430 = vrot.lane.b32.xlu0 %v630, 16
  %v1431 = vpop.permute.xlu0 %1430
  %1432 = vrot.lane.b32.xlu0 %v631, 16
  %v1433 = vpop.permute.xlu0 %1432
  %1434 = vrot.lane.b32.xlu0 %v632, 16
  %v1435 = vpop.permute.xlu0 %1434
  %1436 = vrot.lane.b32.xlu0 %v633, 16
  %v1437 = vpop.permute.xlu0 %1436
  %1438 = vrot.lane.b32.xlu0 %v634, 16
  %v1439 = vpop.permute.xlu0 %1438
  %1440 = vrot.lane.b32.xlu0 %v635, 16
  %v1441 = vpop.permute.xlu0 %1440
  %1442 = vrot.lane.b32.xlu0 %v636, 16
  %v1443 = vpop.permute.xlu0 %1442
  %1444 = vrot.lane.b32.xlu0 %v637, 16
  %v1445 = vpop.permute.xlu0 %1444
  %1446 = vrot.lane.b32.xlu0 %v638, 16
  %v1447 = vpop.permute.xlu0 %1446
  %1448 = vrot.lane.b32.xlu0 %v639, 16
  %v1449 = vpop.permute.xlu0 %1448
  %1450 = vrot.lane.b32.xlu0 %v640, 16
  %v1451 = vpop.permute.xlu0 %1450
  %1452 = vrot.lane.b32.xlu0 %v641, 16
  %v1453 = vpop.permute.xlu0 %1452
  %1454 = vrot.lane.b32.xlu0 %v642, 16
  %v1455 = vpop.permute.xlu0 %1454
  %1456 = vrot.lane.b32.xlu0 %v643, 16
  %v1457 = vpop.permute.xlu0 %1456
  %1458 = vrot.lane.b32.xlu0 %v644, 16
  %v1459 = vpop.permute.xlu0 %1458
  %1460 = vrot.lane.b32.xlu0 %v645, 16
  %v1461 = vpop.permute.xlu0 %1460
  %1462 = vrot.lane.b32.xlu0 %v646, 16
  %v1463 = vpop.permute.xlu0 %1462
  %1464 = vrot.lane.b32.xlu0 %v647, 16
  %v1465 = vpop.permute.xlu0 %1464
  %1466 = vrot.lane.b32.xlu0 %v648, 16
  %v1467 = vpop.permute.xlu0 %1466
  %1468 = vrot.lane.b32.xlu0 %v649, 16
  %v1469 = vpop.permute.xlu0 %1468
  %1470 = vrot.lane.b32.xlu0 %v650, 16
  %v1471 = vpop.permute.xlu0 %1470
  %1472 = vrot.lane.b32.xlu0 %v651, 16
  %v1473 = vpop.permute.xlu0 %1472
  %1474 = vrot.lane.b32.xlu0 %v652, 16
  %v1475 = vpop.permute.xlu0 %1474
  %1476 = vrot.lane.b32.xlu0 %v653, 16
  %v1477 = vpop.permute.xlu0 %1476
  %1478 = vrot.lane.b32.xlu0 %v654, 16
  %v1479 = vpop.permute.xlu0 %1478
  %1480 = vrot.lane.b32.xlu0 %v655, 16
  %v1481 = vpop.permute.xlu0 %1480
  %1482 = vrot.lane.b32.xlu0 %v656, 16
  %v1483 = vpop.permute.xlu0 %1482
  %1484 = vrot.lane.b32.xlu0 %v657, 16
  %v1485 = vpop.permute.xlu0 %1484
  %1486 = vrot.lane.b32.xlu0 %v658, 16
  %v1487 = vpop.permute.xlu0 %1486
  %1488 = vrot.lane.b32.xlu0 %v659, 16
  %v1489 = vpop.permute.xlu0 %1488
  %1490 = vrot.lane.b32.xlu0 %v660, 16
  %v1491 = vpop.permute.xlu0 %1490
  %1492 = vrot.lane.b32.xlu0 %v661, 16
  %v1493 = vpop.permute.xlu0 %1492
  %1494 = vrot.lane.b32.xlu0 %v662, 16
  %v1495 = vpop.permute.xlu0 %1494
  %1624 = vrot.lane.b32.xlu0 %v663, 24
  %v1625 = vpop.permute.xlu0 %1624
  %1626 = vrot.lane.b32.xlu0 %v664, 24
  %v1627 = vpop.permute.xlu0 %1626
  %1628 = vrot.lane.b32.xlu0 %v665, 24
  %v1629 = vpop.permute.xlu0 %1628
  %1630 = vrot.lane.b32.xlu0 %v666, 24
  %v1631 = vpop.permute.xlu0 %1630
  %1632 = vrot.lane.b32.xlu0 %v667, 24
  %v1633 = vpop.permute.xlu0 %1632
  %1634 = vrot.lane.b32.xlu0 %v668, 24
  %v1635 = vpop.permute.xlu0 %1634
  %1636 = vrot.lane.b32.xlu0 %v669, 24
  %v1637 = vpop.permute.xlu0 %1636
  %1638 = vrot.lane.b32.xlu0 %v670, 24
  %v1639 = vpop.permute.xlu0 %1638
  %1640 = vrot.lane.b32.xlu0 %v671, 24
  %v1641 = vpop.permute.xlu0 %1640
  %1642 = vrot.lane.b32.xlu0 %v672, 24
  %v1643 = vpop.permute.xlu0 %1642
  %1644 = vrot.lane.b32.xlu0 %v673, 24
  %v1645 = vpop.permute.xlu0 %1644
  %1646 = vrot.lane.b32.xlu0 %v674, 24
  %v1647 = vpop.permute.xlu0 %1646
  %1648 = vrot.lane.b32.xlu0 %v675, 24
  %v1649 = vpop.permute.xlu0 %1648
  %1650 = vrot.lane.b32.xlu0 %v676, 24
  %v1651 = vpop.permute.xlu0 %1650
  %1652 = vrot.lane.b32.xlu0 %v677, 24
  %v1653 = vpop.permute.xlu0 %1652
  %1654 = vrot.lane.b32.xlu0 %v678, 24
  %v1655 = vpop.permute.xlu0 %1654
  %1656 = vrot.lane.b32.xlu0 %v679, 24
  %v1657 = vpop.permute.xlu0 %1656
  %1658 = vrot.lane.b32.xlu0 %v680, 24
  %v1659 = vpop.permute.xlu0 %1658
  %1660 = vrot.lane.b32.xlu0 %v681, 24
  %v1661 = vpop.permute.xlu0 %1660
  %1662 = vrot.lane.b32.xlu0 %v682, 24
  %v1663 = vpop.permute.xlu0 %1662
  %1664 = vrot.lane.b32.xlu0 %v683, 24
  %v1665 = vpop.permute.xlu0 %1664
  %1666 = vrot.lane.b32.xlu0 %v684, 24
  %v1667 = vpop.permute.xlu0 %1666
  %1668 = vrot.lane.b32.xlu0 %v685, 24
  %v1669 = vpop.permute.xlu0 %1668
  %1670 = vrot.lane.b32.xlu0 %v686, 24
  %v1671 = vpop.permute.xlu0 %1670
  %1672 = vrot.lane.b32.xlu0 %v687, 24
  %v1673 = vpop.permute.xlu0 %1672
  %1674 = vrot.lane.b32.xlu0 %v688, 24
  %v1675 = vpop.permute.xlu0 %1674
  %1676 = vrot.lane.b32.xlu0 %v689, 24
  %v1677 = vpop.permute.xlu0 %1676
  %1678 = vrot.lane.b32.xlu0 %v690, 24
  %v1679 = vpop.permute.xlu0 %1678
  %1680 = vrot.lane.b32.xlu0 %v691, 24
  %v1681 = vpop.permute.xlu0 %1680
  %1682 = vrot.lane.b32.xlu0 %v692, 24
  %v1683 = vpop.permute.xlu0 %1682
  %1684 = vrot.lane.b32.xlu0 %v693, 24
  %v1685 = vpop.permute.xlu0 %1684
  %1686 = vrot.lane.b32.xlu0 %v694, 24
  %v1687 = vpop.permute.xlu0 %1686
  %1688 = vrot.lane.b32.xlu0 %v695, 24
  %v1689 = vpop.permute.xlu0 %1688
  %1690 = vrot.lane.b32.xlu0 %v696, 24
  %v1691 = vpop.permute.xlu0 %1690
  %1692 = vrot.lane.b32.xlu0 %v697, 24
  %v1693 = vpop.permute.xlu0 %1692
  %1694 = vrot.lane.b32.xlu0 %v698, 24
  %v1695 = vpop.permute.xlu0 %1694
  %1696 = vrot.lane.b32.xlu0 %v699, 24
  %v1697 = vpop.permute.xlu0 %1696
  %1698 = vrot.lane.b32.xlu0 %v700, 24
  %v1699 = vpop.permute.xlu0 %1698
  %1700 = vrot.lane.b32.xlu0 %v701, 24
  %v1701 = vpop.permute.xlu0 %1700
  %1702 = vrot.lane.b32.xlu0 %v702, 24
  %v1703 = vpop.permute.xlu0 %1702
  %1704 = vrot.lane.b32.xlu0 %v703, 24
  %v1705 = vpop.permute.xlu0 %1704
  %1706 = vrot.lane.b32.xlu0 %v704, 24
  %v1707 = vpop.permute.xlu0 %1706
  %1708 = vrot.lane.b32.xlu0 %v705, 24
  %v1709 = vpop.permute.xlu0 %1708
  %1710 = vrot.lane.b32.xlu0 %v706, 24
  %v1711 = vpop.permute.xlu0 %1710
  %1712 = vrot.lane.b32.xlu0 %v707, 24
  %v1713 = vpop.permute.xlu0 %1712
  %1714 = vrot.lane.b32.xlu0 %v708, 24
  %v1715 = vpop.permute.xlu0 %1714
  %1716 = vrot.lane.b32.xlu0 %v709, 24
  %v1717 = vpop.permute.xlu0 %1716
  %1718 = vrot.lane.b32.xlu0 %v710, 24
  %v1719 = vpop.permute.xlu0 %1718
  %1720 = vrot.lane.b32.xlu0 %v711, 24
  %v1721 = vpop.permute.xlu0 %1720
  %1722 = vrot.lane.b32.xlu0 %v712, 24
  %v1723 = vpop.permute.xlu0 %1722
  %1724 = vrot.lane.b32.xlu0 %v713, 24
  %v1725 = vpop.permute.xlu0 %1724
  %1726 = vrot.lane.b32.xlu0 %v714, 24
  %v1727 = vpop.permute.xlu0 %1726
  %1728 = vrot.lane.b32.xlu0 %v715, 24
  %v1729 = vpop.permute.xlu0 %1728
  %1730 = vrot.lane.b32.xlu0 %v716, 24
  %v1731 = vpop.permute.xlu0 %1730
  %1732 = vrot.lane.b32.xlu0 %v717, 24
  %v1733 = vpop.permute.xlu0 %1732
  %1734 = vrot.lane.b32.xlu0 %v718, 24
  %v1735 = vpop.permute.xlu0 %1734
  %1736 = vrot.lane.b32.xlu0 %v719, 24
  %v1737 = vpop.permute.xlu0 %1736
  %1738 = vrot.lane.b32.xlu0 %v720, 24
  %v1739 = vpop.permute.xlu0 %1738
  %1740 = vrot.lane.b32.xlu0 %v721, 24
  %v1741 = vpop.permute.xlu0 %1740
  %1742 = vrot.lane.b32.xlu0 %v722, 24
  %v1743 = vpop.permute.xlu0 %1742
  %1744 = vrot.lane.b32.xlu0 %v723, 24
  %v1745 = vpop.permute.xlu0 %1744
  %1746 = vrot.lane.b32.xlu0 %v724, 24
  %v1747 = vpop.permute.xlu0 %1746
  %1748 = vrot.lane.b32.xlu0 %v725, 24
  %v1749 = vpop.permute.xlu0 %1748
  %1750 = vrot.lane.b32.xlu0 %v726, 24
  %v1751 = vpop.permute.xlu0 %1750
  %1880 = vrot.lane.b32.xlu0 %v727, 32
  %v1881 = vpop.permute.xlu0 %1880
  %1882 = vrot.lane.b32.xlu0 %v728, 32
  %v1883 = vpop.permute.xlu0 %1882
  %1884 = vrot.lane.b32.xlu0 %v729, 32
  %v1885 = vpop.permute.xlu0 %1884
  %1886 = vrot.lane.b32.xlu0 %v730, 32
  %v1887 = vpop.permute.xlu0 %1886
  %1888 = vrot.lane.b32.xlu0 %v731, 32
  %v1889 = vpop.permute.xlu0 %1888
  %1890 = vrot.lane.b32.xlu0 %v732, 32
  %v1891 = vpop.permute.xlu0 %1890
  %1892 = vrot.lane.b32.xlu0 %v733, 32
  %v1893 = vpop.permute.xlu0 %1892
  %1894 = vrot.lane.b32.xlu0 %v734, 32
  %v1895 = vpop.permute.xlu0 %1894
  %1896 = vrot.lane.b32.xlu0 %v735, 32
  %v1897 = vpop.permute.xlu0 %1896
  %1898 = vrot.lane.b32.xlu0 %v736, 32
  %v1899 = vpop.permute.xlu0 %1898
  %1900 = vrot.lane.b32.xlu0 %v737, 32
  %v1901 = vpop.permute.xlu0 %1900
  %1902 = vrot.lane.b32.xlu0 %v738, 32
  %v1903 = vpop.permute.xlu0 %1902
  %1904 = vrot.lane.b32.xlu0 %v739, 32
  %v1905 = vpop.permute.xlu0 %1904
  %1906 = vrot.lane.b32.xlu0 %v740, 32
  %v1907 = vpop.permute.xlu0 %1906
  %1908 = vrot.lane.b32.xlu0 %v741, 32
  %v1909 = vpop.permute.xlu0 %1908
  %1910 = vrot.lane.b32.xlu0 %v742, 32
  %v1911 = vpop.permute.xlu0 %1910
  %1912 = vrot.lane.b32.xlu0 %v743, 32
  %v1913 = vpop.permute.xlu0 %1912
  %1914 = vrot.lane.b32.xlu0 %v744, 32
  %v1915 = vpop.permute.xlu0 %1914
  %1916 = vrot.lane.b32.xlu0 %v745, 32
  %v1917 = vpop.permute.xlu0 %1916
  %1918 = vrot.lane.b32.xlu0 %v746, 32
  %v1919 = vpop.permute.xlu0 %1918
  %1920 = vrot.lane.b32.xlu0 %v747, 32
  %v1921 = vpop.permute.xlu0 %1920
  %1922 = vrot.lane.b32.xlu0 %v748, 32
  %v1923 = vpop.permute.xlu0 %1922
  %1924 = vrot.lane.b32.xlu0 %v749, 32
  %v1925 = vpop.permute.xlu0 %1924
  %1926 = vrot.lane.b32.xlu0 %v750, 32
  %v1927 = vpop.permute.xlu0 %1926
  %1928 = vrot.lane.b32.xlu0 %v751, 32
  %v1929 = vpop.permute.xlu0 %1928
  %1930 = vrot.lane.b32.xlu0 %v752, 32
  %v1931 = vpop.permute.xlu0 %1930
  %1932 = vrot.lane.b32.xlu0 %v753, 32
  %v1933 = vpop.permute.xlu0 %1932
  %1934 = vrot.lane.b32.xlu0 %v754, 32
  %v1935 = vpop.permute.xlu0 %1934
  %1936 = vrot.lane.b32.xlu0 %v755, 32
  %v1937 = vpop.permute.xlu0 %1936
  %1938 = vrot.lane.b32.xlu0 %v756, 32
  %v1939 = vpop.permute.xlu0 %1938
  %1940 = vrot.lane.b32.xlu0 %v757, 32
  %v1941 = vpop.permute.xlu0 %1940
  %1942 = vrot.lane.b32.xlu0 %v758, 32
  %v1943 = vpop.permute.xlu0 %1942
  %1944 = vrot.lane.b32.xlu0 %v759, 32
  %v1945 = vpop.permute.xlu0 %1944
  %1946 = vrot.lane.b32.xlu0 %v760, 32
  %v1947 = vpop.permute.xlu0 %1946
  %1948 = vrot.lane.b32.xlu0 %v761, 32
  %v1949 = vpop.permute.xlu0 %1948
  %1950 = vrot.lane.b32.xlu0 %v762, 32
  %v1951 = vpop.permute.xlu0 %1950
  %1952 = vrot.lane.b32.xlu0 %v763, 32
  %v1953 = vpop.permute.xlu0 %1952
  %1954 = vrot.lane.b32.xlu0 %v764, 32
  %v1955 = vpop.permute.xlu0 %1954
  %1956 = vrot.lane.b32.xlu0 %v765, 32
  %v1957 = vpop.permute.xlu0 %1956
  %1958 = vrot.lane.b32.xlu0 %v766, 32
  %v1959 = vpop.permute.xlu0 %1958
  %1960 = vrot.lane.b32.xlu0 %v767, 32
  %v1961 = vpop.permute.xlu0 %1960
  %1962 = vrot.lane.b32.xlu0 %v768, 32
  %v1963 = vpop.permute.xlu0 %1962
  %1964 = vrot.lane.b32.xlu0 %v769, 32
  %v1965 = vpop.permute.xlu0 %1964
  %1966 = vrot.lane.b32.xlu0 %v770, 32
  %v1967 = vpop.permute.xlu0 %1966
  %1968 = vrot.lane.b32.xlu0 %v771, 32
  %v1969 = vpop.permute.xlu0 %1968
  %1970 = vrot.lane.b32.xlu0 %v772, 32
  %v1971 = vpop.permute.xlu0 %1970
  %1972 = vrot.lane.b32.xlu0 %v773, 32
  %v1973 = vpop.permute.xlu0 %1972
  %1974 = vrot.lane.b32.xlu0 %v774, 32
  %v1975 = vpop.permute.xlu0 %1974
  %1976 = vrot.lane.b32.xlu0 %v775, 32
  %v1977 = vpop.permute.xlu0 %1976
  %1978 = vrot.lane.b32.xlu0 %v776, 32
  %v1979 = vpop.permute.xlu0 %1978
  %1980 = vrot.lane.b32.xlu0 %v777, 32
  %v1981 = vpop.permute.xlu0 %1980
  %1982 = vrot.lane.b32.xlu0 %v778, 32
  %v1983 = vpop.permute.xlu0 %1982
  %1984 = vrot.lane.b32.xlu0 %v779, 32
  %v1985 = vpop.permute.xlu0 %1984
  %1986 = vrot.lane.b32.xlu0 %v780, 32
  %v1987 = vpop.permute.xlu0 %1986
  %1988 = vrot.lane.b32.xlu0 %v781, 32
  %v1989 = vpop.permute.xlu0 %1988
  %1990 = vrot.lane.b32.xlu0 %v782, 32
  %v1991 = vpop.permute.xlu0 %1990
  %1992 = vrot.lane.b32.xlu0 %v783, 32
  %v1993 = vpop.permute.xlu0 %1992
  %1994 = vrot.lane.b32.xlu0 %v784, 32
  %v1995 = vpop.permute.xlu0 %1994
  %1996 = vrot.lane.b32.xlu0 %v785, 32
  %v1997 = vpop.permute.xlu0 %1996
  %1998 = vrot.lane.b32.xlu0 %v786, 32
  %v1999 = vpop.permute.xlu0 %1998
  %2000 = vrot.lane.b32.xlu0 %v787, 32
  %v2001 = vpop.permute.xlu0 %2000
  %2002 = vrot.lane.b32.xlu0 %v788, 32
  %v2003 = vpop.permute.xlu0 %2002
  %2004 = vrot.lane.b32.xlu0 %v789, 32
  %v2005 = vpop.permute.xlu0 %2004
  %2006 = vrot.lane.b32.xlu0 %v790, 32
  %v2007 = vpop.permute.xlu0 %2006
  %2136 = vrot.lane.b32.xlu0 %v791, 40
  %v2137 = vpop.permute.xlu0 %2136
  %2138 = vrot.lane.b32.xlu0 %v792, 40
  %v2139 = vpop.permute.xlu0 %2138
  %2140 = vrot.lane.b32.xlu0 %v793, 40
  %v2141 = vpop.permute.xlu0 %2140
  %2142 = vrot.lane.b32.xlu0 %v794, 40
  %v2143 = vpop.permute.xlu0 %2142
  %2144 = vrot.lane.b32.xlu0 %v795, 40
  %v2145 = vpop.permute.xlu0 %2144
  %2146 = vrot.lane.b32.xlu0 %v796, 40
  %v2147 = vpop.permute.xlu0 %2146
  %2148 = vrot.lane.b32.xlu0 %v797, 40
  %v2149 = vpop.permute.xlu0 %2148
  %2150 = vrot.lane.b32.xlu0 %v798, 40
  %v2151 = vpop.permute.xlu0 %2150
  %2152 = vrot.lane.b32.xlu0 %v799, 40
  %v2153 = vpop.permute.xlu0 %2152
  %2154 = vrot.lane.b32.xlu0 %v800, 40
  %v2155 = vpop.permute.xlu0 %2154
  %2156 = vrot.lane.b32.xlu0 %v801, 40
  %v2157 = vpop.permute.xlu0 %2156
  %2158 = vrot.lane.b32.xlu0 %v802, 40
  %v2159 = vpop.permute.xlu0 %2158
  %2160 = vrot.lane.b32.xlu0 %v803, 40
  %v2161 = vpop.permute.xlu0 %2160
  %2162 = vrot.lane.b32.xlu0 %v804, 40
  %v2163 = vpop.permute.xlu0 %2162
  %2164 = vrot.lane.b32.xlu0 %v805, 40
  %v2165 = vpop.permute.xlu0 %2164
  %2166 = vrot.lane.b32.xlu0 %v806, 40
  %v2167 = vpop.permute.xlu0 %2166
  %2168 = vrot.lane.b32.xlu0 %v807, 40
  %v2169 = vpop.permute.xlu0 %2168
  %2170 = vrot.lane.b32.xlu0 %v808, 40
  %v2171 = vpop.permute.xlu0 %2170
  %2172 = vrot.lane.b32.xlu0 %v809, 40
  %v2173 = vpop.permute.xlu0 %2172
  %2174 = vrot.lane.b32.xlu0 %v810, 40
  %v2175 = vpop.permute.xlu0 %2174
  %2176 = vrot.lane.b32.xlu0 %v811, 40
  %v2177 = vpop.permute.xlu0 %2176
  %2178 = vrot.lane.b32.xlu0 %v812, 40
  %v2179 = vpop.permute.xlu0 %2178
  %2180 = vrot.lane.b32.xlu0 %v813, 40
  %v2181 = vpop.permute.xlu0 %2180
  %2182 = vrot.lane.b32.xlu0 %v814, 40
  %v2183 = vpop.permute.xlu0 %2182
  %2184 = vrot.lane.b32.xlu0 %v815, 40
  %v2185 = vpop.permute.xlu0 %2184
  %2186 = vrot.lane.b32.xlu0 %v816, 40
  %v2187 = vpop.permute.xlu0 %2186
  %2188 = vrot.lane.b32.xlu0 %v817, 40
  %v2189 = vpop.permute.xlu0 %2188
  %2190 = vrot.lane.b32.xlu0 %v818, 40
  %v2191 = vpop.permute.xlu0 %2190
  %2192 = vrot.lane.b32.xlu0 %v819, 40
  %v2193 = vpop.permute.xlu0 %2192
  %2194 = vrot.lane.b32.xlu0 %v820, 40
  %v2195 = vpop.permute.xlu0 %2194
  %2196 = vrot.lane.b32.xlu0 %v821, 40
  %v2197 = vpop.permute.xlu0 %2196
  %2198 = vrot.lane.b32.xlu0 %v822, 40
  %v2199 = vpop.permute.xlu0 %2198
  %2200 = vrot.lane.b32.xlu0 %v823, 40
  %v2201 = vpop.permute.xlu0 %2200
  %2202 = vrot.lane.b32.xlu0 %v824, 40
  %v2203 = vpop.permute.xlu0 %2202
  %2204 = vrot.lane.b32.xlu0 %v825, 40
  %v2205 = vpop.permute.xlu0 %2204
  %2206 = vrot.lane.b32.xlu0 %v826, 40
  %v2207 = vpop.permute.xlu0 %2206
  %2208 = vrot.lane.b32.xlu0 %v827, 40
  %v2209 = vpop.permute.xlu0 %2208
  %2210 = vrot.lane.b32.xlu0 %v828, 40
  %v2211 = vpop.permute.xlu0 %2210
  %2212 = vrot.lane.b32.xlu0 %v829, 40
  %v2213 = vpop.permute.xlu0 %2212
  %2214 = vrot.lane.b32.xlu0 %v830, 40
  %v2215 = vpop.permute.xlu0 %2214
  %2216 = vrot.lane.b32.xlu0 %v831, 40
  %v2217 = vpop.permute.xlu0 %2216
  %2218 = vrot.lane.b32.xlu0 %v832, 40
  %v2219 = vpop.permute.xlu0 %2218
  %2220 = vrot.lane.b32.xlu0 %v833, 40
  %v2221 = vpop.permute.xlu0 %2220
  %2222 = vrot.lane.b32.xlu0 %v834, 40
  %v2223 = vpop.permute.xlu0 %2222
  %2224 = vrot.lane.b32.xlu0 %v835, 40
  %v2225 = vpop.permute.xlu0 %2224
  %2226 = vrot.lane.b32.xlu0 %v836, 40
  %v2227 = vpop.permute.xlu0 %2226
  %2228 = vrot.lane.b32.xlu0 %v837, 40
  %v2229 = vpop.permute.xlu0 %2228
  %2230 = vrot.lane.b32.xlu0 %v838, 40
  %v2231 = vpop.permute.xlu0 %2230
  %2232 = vrot.lane.b32.xlu0 %v839, 40
  %v2233 = vpop.permute.xlu0 %2232
  %2234 = vrot.lane.b32.xlu0 %v840, 40
  %v2235 = vpop.permute.xlu0 %2234
  %2236 = vrot.lane.b32.xlu0 %v841, 40
  %v2237 = vpop.permute.xlu0 %2236
  %2238 = vrot.lane.b32.xlu0 %v842, 40
  %v2239 = vpop.permute.xlu0 %2238
  %2240 = vrot.lane.b32.xlu0 %v843, 40
  %v2241 = vpop.permute.xlu0 %2240
  %2242 = vrot.lane.b32.xlu0 %v844, 40
  %v2243 = vpop.permute.xlu0 %2242
  %2244 = vrot.lane.b32.xlu0 %v845, 40
  %v2245 = vpop.permute.xlu0 %2244
  %2246 = vrot.lane.b32.xlu0 %v846, 40
  %v2247 = vpop.permute.xlu0 %2246
  %2248 = vrot.lane.b32.xlu0 %v847, 40
  %v2249 = vpop.permute.xlu0 %2248
  %2250 = vrot.lane.b32.xlu0 %v848, 40
  %v2251 = vpop.permute.xlu0 %2250
  %2252 = vrot.lane.b32.xlu0 %v849, 40
  %v2253 = vpop.permute.xlu0 %2252
  %2254 = vrot.lane.b32.xlu0 %v850, 40
  %v2255 = vpop.permute.xlu0 %2254
  %2256 = vrot.lane.b32.xlu0 %v851, 40
  %v2257 = vpop.permute.xlu0 %2256
  %2258 = vrot.lane.b32.xlu0 %v852, 40
  %v2259 = vpop.permute.xlu0 %2258
  %2260 = vrot.lane.b32.xlu0 %v853, 40
  %v2261 = vpop.permute.xlu0 %2260
  %2262 = vrot.lane.b32.xlu0 %v854, 40
  %v2263 = vpop.permute.xlu0 %2262
  %2392 = vrot.lane.b32.xlu0 %v856, 48
  %v2393 = vpop.permute.xlu0 %2392
  %2394 = vrot.lane.b32.xlu0 %v857, 48
  %v2395 = vpop.permute.xlu0 %2394
  %2396 = vrot.lane.b32.xlu0 %v858, 48
  %v2397 = vpop.permute.xlu0 %2396
  %2398 = vrot.lane.b32.xlu0 %v859, 48
  %v2399 = vpop.permute.xlu0 %2398
  %2400 = vrot.lane.b32.xlu0 %v860, 48
  %v2401 = vpop.permute.xlu0 %2400
  %2402 = vrot.lane.b32.xlu0 %v861, 48
  %v2403 = vpop.permute.xlu0 %2402
  %2404 = vrot.lane.b32.xlu0 %v862, 48
  %v2405 = vpop.permute.xlu0 %2404
  %2406 = vrot.lane.b32.xlu0 %v863, 48
  %v2407 = vpop.permute.xlu0 %2406
  %2408 = vrot.lane.b32.xlu0 %v864, 48
  %v2409 = vpop.permute.xlu0 %2408
  %2410 = vrot.lane.b32.xlu0 %v865, 48
  %v2411 = vpop.permute.xlu0 %2410
  %2412 = vrot.lane.b32.xlu0 %v866, 48
  %v2413 = vpop.permute.xlu0 %2412
  %2414 = vrot.lane.b32.xlu0 %v867, 48
  %v2415 = vpop.permute.xlu0 %2414
  %2416 = vrot.lane.b32.xlu0 %v868, 48
  %v2417 = vpop.permute.xlu0 %2416
  %2418 = vrot.lane.b32.xlu0 %v869, 48
  %v2419 = vpop.permute.xlu0 %2418
  %2420 = vrot.lane.b32.xlu0 %v870, 48
  %v2421 = vpop.permute.xlu0 %2420
  %2422 = vrot.lane.b32.xlu0 %v871, 48
  %v2423 = vpop.permute.xlu0 %2422
  %2424 = vrot.lane.b32.xlu0 %v872, 48
  %v2425 = vpop.permute.xlu0 %2424
  %2426 = vrot.lane.b32.xlu0 %v873, 48
  %v2427 = vpop.permute.xlu0 %2426
  %2428 = vrot.lane.b32.xlu0 %v874, 48
  %v2429 = vpop.permute.xlu0 %2428
  %2430 = vrot.lane.b32.xlu0 %v875, 48
  %v2431 = vpop.permute.xlu0 %2430
  %2432 = vrot.lane.b32.xlu0 %v876, 48
  %v2433 = vpop.permute.xlu0 %2432
  %2434 = vrot.lane.b32.xlu0 %v877, 48
  %v2435 = vpop.permute.xlu0 %2434
  %2436 = vrot.lane.b32.xlu0 %v878, 48
  %v2437 = vpop.permute.xlu0 %2436
  %2438 = vrot.lane.b32.xlu0 %v879, 48
  %v2439 = vpop.permute.xlu0 %2438
  %2440 = vrot.lane.b32.xlu0 %v880, 48
  %v2441 = vpop.permute.xlu0 %2440
  %2442 = vrot.lane.b32.xlu0 %v881, 48
  %v2443 = vpop.permute.xlu0 %2442
  %2444 = vrot.lane.b32.xlu0 %v882, 48
  %v2445 = vpop.permute.xlu0 %2444
  %2446 = vrot.lane.b32.xlu0 %v883, 48
  %v2447 = vpop.permute.xlu0 %2446
  %2448 = vrot.lane.b32.xlu0 %v884, 48
  %v2449 = vpop.permute.xlu0 %2448
  %2450 = vrot.lane.b32.xlu0 %v885, 48
  %v2451 = vpop.permute.xlu0 %2450
  %2452 = vrot.lane.b32.xlu0 %v886, 48
  %v2453 = vpop.permute.xlu0 %2452
  %2454 = vrot.lane.b32.xlu0 %v887, 48
  %v2455 = vpop.permute.xlu0 %2454
  %2456 = vrot.lane.b32.xlu0 %v888, 48
  %v2457 = vpop.permute.xlu0 %2456
  %2458 = vrot.lane.b32.xlu0 %v889, 48
  %v2459 = vpop.permute.xlu0 %2458
  %2460 = vrot.lane.b32.xlu0 %v890, 48
  %v2461 = vpop.permute.xlu0 %2460
  %2462 = vrot.lane.b32.xlu0 %v891, 48
  %v2463 = vpop.permute.xlu0 %2462
  %2464 = vrot.lane.b32.xlu0 %v892, 48
  %v2465 = vpop.permute.xlu0 %2464
  %2466 = vrot.lane.b32.xlu0 %v893, 48
  %v2467 = vpop.permute.xlu0 %2466
  %2468 = vrot.lane.b32.xlu0 %v894, 48
  %v2469 = vpop.permute.xlu0 %2468
  %2470 = vrot.lane.b32.xlu0 %v895, 48
  %v2471 = vpop.permute.xlu0 %2470
  %2472 = vrot.lane.b32.xlu0 %v896, 48
  %v2473 = vpop.permute.xlu0 %2472
  %2474 = vrot.lane.b32.xlu0 %v897, 48
  %v2475 = vpop.permute.xlu0 %2474
  %2476 = vrot.lane.b32.xlu0 %v898, 48
  %v2477 = vpop.permute.xlu0 %2476
  %2478 = vrot.lane.b32.xlu0 %v899, 48
  %v2479 = vpop.permute.xlu0 %2478
  %2480 = vrot.lane.b32.xlu0 %v900, 48
  %v2481 = vpop.permute.xlu0 %2480
  %2482 = vrot.lane.b32.xlu0 %v901, 48
  %v2483 = vpop.permute.xlu0 %2482
  %2484 = vrot.lane.b32.xlu0 %v902, 48
  %v2485 = vpop.permute.xlu0 %2484
  %2486 = vrot.lane.b32.xlu0 %v903, 48
  %v2487 = vpop.permute.xlu0 %2486
  %2488 = vrot.lane.b32.xlu0 %v904, 48
  %v2489 = vpop.permute.xlu0 %2488
  %2490 = vrot.lane.b32.xlu0 %v905, 48
  %v2491 = vpop.permute.xlu0 %2490
  %2492 = vrot.lane.b32.xlu0 %v906, 48
  %v2493 = vpop.permute.xlu0 %2492
  %2494 = vrot.lane.b32.xlu0 %v907, 48
  %v2495 = vpop.permute.xlu0 %2494
  %2496 = vrot.lane.b32.xlu0 %v908, 48
  %v2497 = vpop.permute.xlu0 %2496
  %2498 = vrot.lane.b32.xlu0 %v909, 48
  %v2499 = vpop.permute.xlu0 %2498
  %2500 = vrot.lane.b32.xlu0 %v910, 48
  %v2501 = vpop.permute.xlu0 %2500
  %2502 = vrot.lane.b32.xlu0 %v911, 48
  %v2503 = vpop.permute.xlu0 %2502
  %2504 = vrot.lane.b32.xlu0 %v912, 48
  %v2505 = vpop.permute.xlu0 %2504
  %2506 = vrot.lane.b32.xlu0 %v913, 48
  %v2507 = vpop.permute.xlu0 %2506
  %2508 = vrot.lane.b32.xlu0 %v914, 48
  %v2509 = vpop.permute.xlu0 %2508
  %2510 = vrot.lane.b32.xlu0 %v915, 48
  %v2511 = vpop.permute.xlu0 %2510
  %2512 = vrot.lane.b32.xlu0 %v916, 48
  %v2513 = vpop.permute.xlu0 %2512
  %2514 = vrot.lane.b32.xlu0 %v917, 48
  %v2515 = vpop.permute.xlu0 %2514
  %2516 = vrot.lane.b32.xlu0 %v918, 48
  %v2517 = vpop.permute.xlu0 %2516
  %2518 = vrot.lane.b32.xlu0 %v919, 48
  %v2519 = vpop.permute.xlu0 %2518
  %2648 = vrot.lane.b32.xlu0 %v920, 56
  %v2649 = vpop.permute.xlu0 %2648
  %2650 = vrot.lane.b32.xlu0 %v921, 56
  %v2651 = vpop.permute.xlu0 %2650
  %2652 = vrot.lane.b32.xlu0 %v922, 56
  %v2653 = vpop.permute.xlu0 %2652
  %2654 = vrot.lane.b32.xlu0 %v923, 56
  %v2655 = vpop.permute.xlu0 %2654
  %2656 = vrot.lane.b32.xlu0 %v924, 56
  %v2657 = vpop.permute.xlu0 %2656
  %2658 = vrot.lane.b32.xlu0 %v925, 56
  %v2659 = vpop.permute.xlu0 %2658
  %2660 = vrot.lane.b32.xlu0 %v926, 56
  %v2661 = vpop.permute.xlu0 %2660
  %2662 = vrot.lane.b32.xlu0 %v927, 56
  %v2663 = vpop.permute.xlu0 %2662
  %2664 = vrot.lane.b32.xlu0 %v928, 56
  %v2665 = vpop.permute.xlu0 %2664
  %2666 = vrot.lane.b32.xlu0 %v929, 56
  %v2667 = vpop.permute.xlu0 %2666
  %2668 = vrot.lane.b32.xlu0 %v930, 56
  %v2669 = vpop.permute.xlu0 %2668
  %2670 = vrot.lane.b32.xlu0 %v931, 56
  %v2671 = vpop.permute.xlu0 %2670
  %2672 = vrot.lane.b32.xlu0 %v932, 56
  %v2673 = vpop.permute.xlu0 %2672
  %2674 = vrot.lane.b32.xlu0 %v933, 56
  %v2675 = vpop.permute.xlu0 %2674
  %2676 = vrot.lane.b32.xlu0 %v934, 56
  %v2677 = vpop.permute.xlu0 %2676
  %2678 = vrot.lane.b32.xlu0 %v935, 56
  %v2679 = vpop.permute.xlu0 %2678
  %2680 = vrot.lane.b32.xlu0 %v936, 56
  %v2681 = vpop.permute.xlu0 %2680
  %2682 = vrot.lane.b32.xlu0 %v937, 56
  %v2683 = vpop.permute.xlu0 %2682
  %2684 = vrot.lane.b32.xlu0 %v938, 56
  %v2685 = vpop.permute.xlu0 %2684
  %2686 = vrot.lane.b32.xlu0 %v939, 56
  %v2687 = vpop.permute.xlu0 %2686
  %2688 = vrot.lane.b32.xlu0 %v940, 56
  %v2689 = vpop.permute.xlu0 %2688
  %2690 = vrot.lane.b32.xlu0 %v941, 56
  %v2691 = vpop.permute.xlu0 %2690
  %2692 = vrot.lane.b32.xlu0 %v942, 56
  %v2693 = vpop.permute.xlu0 %2692
  %2694 = vrot.lane.b32.xlu0 %v943, 56
  %v2695 = vpop.permute.xlu0 %2694
  %2696 = vrot.lane.b32.xlu0 %v944, 56
  %v2697 = vpop.permute.xlu0 %2696
  %2698 = vrot.lane.b32.xlu0 %v945, 56
  %v2699 = vpop.permute.xlu0 %2698
  %2700 = vrot.lane.b32.xlu0 %v946, 56
  %v2701 = vpop.permute.xlu0 %2700
  %2702 = vrot.lane.b32.xlu0 %v947, 56
  %v2703 = vpop.permute.xlu0 %2702
  %2704 = vrot.lane.b32.xlu0 %v948, 56
  %v2705 = vpop.permute.xlu0 %2704
  %2706 = vrot.lane.b32.xlu0 %v949, 56
  %v2707 = vpop.permute.xlu0 %2706
  %2708 = vrot.lane.b32.xlu0 %v950, 56
  %v2709 = vpop.permute.xlu0 %2708
  %2710 = vrot.lane.b32.xlu0 %v951, 56
  %v2711 = vpop.permute.xlu0 %2710
  %2712 = vrot.lane.b32.xlu0 %v952, 56
  %v2713 = vpop.permute.xlu0 %2712
  %2714 = vrot.lane.b32.xlu0 %v953, 56
  %v2715 = vpop.permute.xlu0 %2714
  %2716 = vrot.lane.b32.xlu0 %v954, 56
  %v2717 = vpop.permute.xlu0 %2716
  %2718 = vrot.lane.b32.xlu0 %v955, 56
  %v2719 = vpop.permute.xlu0 %2718
  %2720 = vrot.lane.b32.xlu0 %v956, 56
  %v2721 = vpop.permute.xlu0 %2720
  %2722 = vrot.lane.b32.xlu0 %v957, 56
  %v2723 = vpop.permute.xlu0 %2722
  %2724 = vrot.lane.b32.xlu0 %v958, 56
  %v2725 = vpop.permute.xlu0 %2724
  %2726 = vrot.lane.b32.xlu0 %v959, 56
  %v2727 = vpop.permute.xlu0 %2726
  %2728 = vrot.lane.b32.xlu0 %v960, 56
  %v2729 = vpop.permute.xlu0 %2728
  %2730 = vrot.lane.b32.xlu0 %v961, 56
  %v2731 = vpop.permute.xlu0 %2730
  %2732 = vrot.lane.b32.xlu0 %v962, 56
  %v2733 = vpop.permute.xlu0 %2732
  %2734 = vrot.lane.b32.xlu0 %v963, 56
  %v2735 = vpop.permute.xlu0 %2734
  %2736 = vrot.lane.b32.xlu0 %v964, 56
  %v2737 = vpop.permute.xlu0 %2736
  %2738 = vrot.lane.b32.xlu0 %v965, 56
  %v2739 = vpop.permute.xlu0 %2738
  %2740 = vrot.lane.b32.xlu0 %v966, 56
  %v2741 = vpop.permute.xlu0 %2740
  %2742 = vrot.lane.b32.xlu0 %v967, 56
  %v2743 = vpop.permute.xlu0 %2742
  %2744 = vrot.lane.b32.xlu0 %v968, 56
  %v2745 = vpop.permute.xlu0 %2744
  %2746 = vrot.lane.b32.xlu0 %v969, 56
  %v2747 = vpop.permute.xlu0 %2746
  %2748 = vrot.lane.b32.xlu0 %v970, 56
  %v2749 = vpop.permute.xlu0 %2748
  %2750 = vrot.lane.b32.xlu0 %v971, 56
  %v2751 = vpop.permute.xlu0 %2750
  %2752 = vrot.lane.b32.xlu0 %v972, 56
  %v2753 = vpop.permute.xlu0 %2752
  %2754 = vrot.lane.b32.xlu0 %v973, 56
  %v2755 = vpop.permute.xlu0 %2754
  %2756 = vrot.lane.b32.xlu0 %v974, 56
  %v2757 = vpop.permute.xlu0 %2756
  %2758 = vrot.lane.b32.xlu0 %v975, 56
  %v2759 = vpop.permute.xlu0 %2758
  %2760 = vrot.lane.b32.xlu0 %v976, 56
  %v2761 = vpop.permute.xlu0 %2760
  %2762 = vrot.lane.b32.xlu0 %v977, 56
  %v2763 = vpop.permute.xlu0 %2762
  %2764 = vrot.lane.b32.xlu0 %v978, 56
  %v2765 = vpop.permute.xlu0 %2764
  %2766 = vrot.lane.b32.xlu0 %v979, 56
  %v2767 = vpop.permute.xlu0 %2766
  %2768 = vrot.lane.b32.xlu0 %v980, 56
  %v2769 = vpop.permute.xlu0 %2768
  %2770 = vrot.lane.b32.xlu0 %v981, 56
  %v2771 = vpop.permute.xlu0 %2770
  %2772 = vrot.lane.b32.xlu0 %v982, 56
  %v2773 = vpop.permute.xlu0 %2772
  %2774 = vrot.lane.b32.xlu0 %v983, 56
  %v2775 = vpop.permute.xlu0 %2774
  %2904 = vrot.lane.b32.xlu0 %v984, 64
  %v2905 = vpop.permute.xlu0 %2904
  %2906 = vrot.lane.b32.xlu0 %v985, 64
  %v2907 = vpop.permute.xlu0 %2906
  %2908 = vrot.lane.b32.xlu0 %v986, 64
  %v2909 = vpop.permute.xlu0 %2908
  %2910 = vrot.lane.b32.xlu0 %v987, 64
  %v2911 = vpop.permute.xlu0 %2910
  %2912 = vrot.lane.b32.xlu0 %v988, 64
  %v2913 = vpop.permute.xlu0 %2912
  %2914 = vrot.lane.b32.xlu0 %v989, 64
  %v2915 = vpop.permute.xlu0 %2914
  %2916 = vrot.lane.b32.xlu0 %v990, 64
  %v2917 = vpop.permute.xlu0 %2916
  %2918 = vrot.lane.b32.xlu0 %v991, 64
  %v2919 = vpop.permute.xlu0 %2918
  %2920 = vrot.lane.b32.xlu0 %v992, 64
  %v2921 = vpop.permute.xlu0 %2920
  %2922 = vrot.lane.b32.xlu0 %v993, 64
  %v2923 = vpop.permute.xlu0 %2922
  %2924 = vrot.lane.b32.xlu0 %v994, 64
  %v2925 = vpop.permute.xlu0 %2924
  %2926 = vrot.lane.b32.xlu0 %v995, 64
  %v2927 = vpop.permute.xlu0 %2926
  %2928 = vrot.lane.b32.xlu0 %v996, 64
  %v2929 = vpop.permute.xlu0 %2928
  %2930 = vrot.lane.b32.xlu0 %v997, 64
  %v2931 = vpop.permute.xlu0 %2930
  %2932 = vrot.lane.b32.xlu0 %v998, 64
  %v2933 = vpop.permute.xlu0 %2932
  %2934 = vrot.lane.b32.xlu0 %v999, 64
  %v2935 = vpop.permute.xlu0 %2934
  %2936 = vrot.lane.b32.xlu0 %v1000, 64
  %v2937 = vpop.permute.xlu0 %2936
  %2938 = vrot.lane.b32.xlu0 %v1001, 64
  %v2939 = vpop.permute.xlu0 %2938
  %2940 = vrot.lane.b32.xlu0 %v1002, 64
  %v2941 = vpop.permute.xlu0 %2940
  %2942 = vrot.lane.b32.xlu0 %v1003, 64
  %v2943 = vpop.permute.xlu0 %2942
  %2944 = vrot.lane.b32.xlu0 %v1004, 64
  %v2945 = vpop.permute.xlu0 %2944
  %2946 = vrot.lane.b32.xlu0 %v1005, 64
  %v2947 = vpop.permute.xlu0 %2946
  %2948 = vrot.lane.b32.xlu0 %v1006, 64
  %v2949 = vpop.permute.xlu0 %2948
  %2950 = vrot.lane.b32.xlu0 %v1007, 64
  %v2951 = vpop.permute.xlu0 %2950
  %2952 = vrot.lane.b32.xlu0 %v1008, 64
  %v2953 = vpop.permute.xlu0 %2952
  %2954 = vrot.lane.b32.xlu0 %v1009, 64
  %v2955 = vpop.permute.xlu0 %2954
  %2956 = vrot.lane.b32.xlu0 %v1010, 64
  %v2957 = vpop.permute.xlu0 %2956
  %2958 = vrot.lane.b32.xlu0 %v1011, 64
  %v2959 = vpop.permute.xlu0 %2958
  %2960 = vrot.lane.b32.xlu0 %v1012, 64
  %v2961 = vpop.permute.xlu0 %2960
  %2962 = vrot.lane.b32.xlu0 %v1013, 64
  %v2963 = vpop.permute.xlu0 %2962
  %2964 = vrot.lane.b32.xlu0 %v1014, 64
  %v2965 = vpop.permute.xlu0 %2964
  %2966 = vrot.lane.b32.xlu0 %v1015, 64
  %v2967 = vpop.permute.xlu0 %2966
  %2968 = vrot.lane.b32.xlu0 %v1016, 64
  %v2969 = vpop.permute.xlu0 %2968
  %2970 = vrot.lane.b32.xlu0 %v1017, 64
  %v2971 = vpop.permute.xlu0 %2970
  %2972 = vrot.lane.b32.xlu0 %v1018, 64
  %v2973 = vpop.permute.xlu0 %2972
  %2974 = vrot.lane.b32.xlu0 %v1019, 64
  %v2975 = vpop.permute.xlu0 %2974
  %2976 = vrot.lane.b32.xlu0 %v1020, 64
  %v2977 = vpop.permute.xlu0 %2976
  %2978 = vrot.lane.b32.xlu0 %v1021, 64
  %v2979 = vpop.permute.xlu0 %2978
  %2980 = vrot.lane.b32.xlu0 %v1022, 64
  %v2981 = vpop.permute.xlu0 %2980
  %2982 = vrot.lane.b32.xlu0 %v1023, 64
  %v2983 = vpop.permute.xlu0 %2982
  %2984 = vrot.lane.b32.xlu0 %v1024, 64
  %v2985 = vpop.permute.xlu0 %2984
  %2986 = vrot.lane.b32.xlu0 %v1025, 64
  %v2987 = vpop.permute.xlu0 %2986
  %2988 = vrot.lane.b32.xlu0 %v1026, 64
  %v2989 = vpop.permute.xlu0 %2988
  %2990 = vrot.lane.b32.xlu0 %v1027, 64
  %v2991 = vpop.permute.xlu0 %2990
  %2992 = vrot.lane.b32.xlu0 %v1028, 64
  %v2993 = vpop.permute.xlu0 %2992
  %2994 = vrot.lane.b32.xlu0 %v1029, 64
  %v2995 = vpop.permute.xlu0 %2994
  %2996 = vrot.lane.b32.xlu0 %v1030, 64
  %v2997 = vpop.permute.xlu0 %2996
  %2998 = vrot.lane.b32.xlu0 %v1031, 64
  %v2999 = vpop.permute.xlu0 %2998
  %3000 = vrot.lane.b32.xlu0 %v1032, 64
  %v3001 = vpop.permute.xlu0 %3000
  %3002 = vrot.lane.b32.xlu0 %v1033, 64
  %v3003 = vpop.permute.xlu0 %3002
  %3004 = vrot.lane.b32.xlu0 %v1034, 64
  %v3005 = vpop.permute.xlu0 %3004
  %3006 = vrot.lane.b32.xlu0 %v1035, 64
  %v3007 = vpop.permute.xlu0 %3006
  %3008 = vrot.lane.b32.xlu0 %v1036, 64
  %v3009 = vpop.permute.xlu0 %3008
  %3010 = vrot.lane.b32.xlu0 %v1037, 64
  %v3011 = vpop.permute.xlu0 %3010
  %3012 = vrot.lane.b32.xlu0 %v1038, 64
  %v3013 = vpop.permute.xlu0 %3012
  %3014 = vrot.lane.b32.xlu0 %v1039, 64
  %v3015 = vpop.permute.xlu0 %3014
  %3016 = vrot.lane.b32.xlu0 %v1040, 64
  %v3017 = vpop.permute.xlu0 %3016
  %3018 = vrot.lane.b32.xlu0 %v1041, 64
  %v3019 = vpop.permute.xlu0 %3018
  %3020 = vrot.lane.b32.xlu0 %v1042, 64
  %v3021 = vpop.permute.xlu0 %3020
  %3022 = vrot.lane.b32.xlu0 %v1043, 64
  %v3023 = vpop.permute.xlu0 %3022
  %3024 = vrot.lane.b32.xlu0 %v1044, 64
  %v3025 = vpop.permute.xlu0 %3024
  %3026 = vrot.lane.b32.xlu0 %v1045, 64
  %v3027 = vpop.permute.xlu0 %3026
  %3028 = vrot.lane.b32.xlu0 %v1046, 64
  %v3029 = vpop.permute.xlu0 %3028
  %3030 = vrot.lane.b32.xlu0 %v1047, 64
  %v3031 = vpop.permute.xlu0 %3030
  %v3096 = vsel %vm26, %v471, %v1113
  %v3097 = vsel %vm26, %v472, %v1115
  %v3098 = vsel %vm26, %v473, %v1117
  %v3099 = vsel %vm26, %v474, %v1119
  %v3100 = vsel %vm26, %v475, %v1121
  %v3101 = vsel %vm26, %v476, %v1123
  %v3102 = vsel %vm26, %v477, %v1125
  %v3103 = vsel %vm26, %v478, %v1127
  %v3104 = vsel %vm26, %v479, %v1129
  %v3105 = vsel %vm26, %v480, %v1131
  %v3106 = vsel %vm26, %v481, %v1133
  %v3107 = vsel %vm26, %v482, %v1135
  %v3108 = vsel %vm26, %v483, %v1137
  %v3109 = vsel %vm26, %v484, %v1139
  %v3110 = vsel %vm26, %v485, %v1141
  %v3111 = vsel %vm26, %v486, %v1143
  %v3112 = vsel %vm26, %v487, %v1145
  %v3113 = vsel %vm26, %v488, %v1147
  %v3114 = vsel %vm26, %v489, %v1149
  %v3115 = vsel %vm26, %v490, %v1151
  %v3116 = vsel %vm26, %v491, %v1153
  %v3117 = vsel %vm26, %v492, %v1155
  %v3118 = vsel %vm26, %v493, %v1157
  %v3119 = vsel %vm26, %v494, %v1159
  %v3120 = vsel %vm26, %v495, %v1161
  %v3121 = vsel %vm26, %v496, %v1163
  %v3122 = vsel %vm26, %v497, %v1165
  %v3123 = vsel %vm26, %v498, %v1167
  %v3124 = vsel %vm26, %v499, %v1169
  %v3125 = vsel %vm26, %v500, %v1171
  %v3126 = vsel %vm26, %v501, %v1173
  %v3127 = vsel %vm26, %v502, %v1175
  %v3128 = vsel %vm26, %v503, %v1177
  %v3129 = vsel %vm26, %v504, %v1179
  %v3130 = vsel %vm26, %v505, %v1181
  %v3131 = vsel %vm26, %v506, %v1183
  %v3132 = vsel %vm26, %v507, %v1185
  %v3133 = vsel %vm26, %v508, %v1187
  %v3134 = vsel %vm26, %v509, %v1189
  %v3135 = vsel %vm26, %v510, %v1191
  %v3136 = vsel %vm26, %v511, %v1193
  %v3137 = vsel %vm26, %v512, %v1195
  %v3138 = vsel %vm26, %v513, %v1197
  %v3139 = vsel %vm26, %v514, %v1199
  %v3140 = vsel %vm26, %v515, %v1201
  %v3141 = vsel %vm26, %v516, %v1203
  %v3142 = vsel %vm26, %v517, %v1205
  %v3143 = vsel %vm26, %v518, %v1207
  %v3144 = vsel %vm26, %v519, %v1209
  %v3145 = vsel %vm26, %v520, %v1211
  %v3146 = vsel %vm26, %v521, %v1213
  %v3147 = vsel %vm26, %v522, %v1215
  %v3148 = vsel %vm26, %v523, %v1217
  %v3149 = vsel %vm26, %v524, %v1219
  %v3150 = vsel %vm26, %v525, %v1221
  %v3151 = vsel %vm26, %v526, %v1223
  %v3152 = vsel %vm26, %v527, %v1225
  %v3153 = vsel %vm26, %v528, %v1227
  %v3154 = vsel %vm26, %v529, %v1229
  %v3155 = vsel %vm26, %v530, %v1231
  %v3156 = vsel %vm26, %v531, %v1233
  %v3157 = vsel %vm26, %v532, %v1235
  %v3158 = vsel %vm26, %v533, %v1237
  %v3159 = vsel %vm26, %v534, %v1239
  %vm3160 = vcmask 130048
  %v3161 = vsel %vm3160, %v3096, %v1369
  %v3162 = vsel %vm3160, %v3097, %v1371
  %v3163 = vsel %vm3160, %v3098, %v1373
  %v3164 = vsel %vm3160, %v3099, %v1375
  %v3165 = vsel %vm3160, %v3100, %v1377
  %v3166 = vsel %vm3160, %v3101, %v1379
  %v3167 = vsel %vm3160, %v3102, %v1381
  %v3168 = vsel %vm3160, %v3103, %v1383
  %v3169 = vsel %vm3160, %v3104, %v1385
  %v3170 = vsel %vm3160, %v3105, %v1387
  %v3171 = vsel %vm3160, %v3106, %v1389
  %v3172 = vsel %vm3160, %v3107, %v1391
  %v3173 = vsel %vm3160, %v3108, %v1393
  %v3174 = vsel %vm3160, %v3109, %v1395
  %v3175 = vsel %vm3160, %v3110, %v1397
  %v3176 = vsel %vm3160, %v3111, %v1399
  %v3177 = vsel %vm3160, %v3112, %v1401
  %v3178 = vsel %vm3160, %v3113, %v1403
  %v3179 = vsel %vm3160, %v3114, %v1405
  %v3180 = vsel %vm3160, %v3115, %v1407
  %v3181 = vsel %vm3160, %v3116, %v1409
  %v3182 = vsel %vm3160, %v3117, %v1411
  %v3183 = vsel %vm3160, %v3118, %v1413
  %v3184 = vsel %vm3160, %v3119, %v1415
  %v3185 = vsel %vm3160, %v3120, %v1417
  %v3186 = vsel %vm3160, %v3121, %v1419
  %v3187 = vsel %vm3160, %v3122, %v1421
  %v3188 = vsel %vm3160, %v3123, %v1423
  %v3189 = vsel %vm3160, %v3124, %v1425
  %v3190 = vsel %vm3160, %v3125, %v1427
  %v3191 = vsel %vm3160, %v3126, %v1429
  %v3192 = vsel %vm3160, %v3127, %v1431
  %v3193 = vsel %vm3160, %v3128, %v1433
  %v3194 = vsel %vm3160, %v3129, %v1435
  %v3195 = vsel %vm3160, %v3130, %v1437
  %v3196 = vsel %vm3160, %v3131, %v1439
  %v3197 = vsel %vm3160, %v3132, %v1441
  %v3198 = vsel %vm3160, %v3133, %v1443
  %v3199 = vsel %vm3160, %v3134, %v1445
  %v3200 = vsel %vm3160, %v3135, %v1447
  %v3201 = vsel %vm3160, %v3136, %v1449
  %v3202 = vsel %vm3160, %v3137, %v1451
  %v3203 = vsel %vm3160, %v3138, %v1453
  %v3204 = vsel %vm3160, %v3139, %v1455
  %v3205 = vsel %vm3160, %v3140, %v1457
  %v3206 = vsel %vm3160, %v3141, %v1459
  %v3207 = vsel %vm3160, %v3142, %v1461
  %v3208 = vsel %vm3160, %v3143, %v1463
  %v3209 = vsel %vm3160, %v3144, %v1465
  %v3210 = vsel %vm3160, %v3145, %v1467
  %v3211 = vsel %vm3160, %v3146, %v1469
  %v3212 = vsel %vm3160, %v3147, %v1471
  %v3213 = vsel %vm3160, %v3148, %v1473
  %v3214 = vsel %vm3160, %v3149, %v1475
  %v3215 = vsel %vm3160, %v3150, %v1477
  %v3216 = vsel %vm3160, %v3151, %v1479
  %v3217 = vsel %vm3160, %v3152, %v1481
  %v3218 = vsel %vm3160, %v3153, %v1483
  %v3219 = vsel %vm3160, %v3154, %v1485
  %v3220 = vsel %vm3160, %v3155, %v1487
  %v3221 = vsel %vm3160, %v3156, %v1489
  %v3222 = vsel %vm3160, %v3157, %v1491
  %v3223 = vsel %vm3160, %v3158, %v1493
  %v3224 = vsel %vm3160, %v3159, %v1495
  %vm3225 = vcmask 195584
  %v3226 = vsel %vm3225, %v3161, %v1625
  %v3227 = vsel %vm3225, %v3162, %v1627
  %v3228 = vsel %vm3225, %v3163, %v1629
  %v3229 = vsel %vm3225, %v3164, %v1631
  %v3230 = vsel %vm3225, %v3165, %v1633
  %v3231 = vsel %vm3225, %v3166, %v1635
  %v3232 = vsel %vm3225, %v3167, %v1637
  %v3233 = vsel %vm3225, %v3168, %v1639
  %v3234 = vsel %vm3225, %v3169, %v1641
  %v3235 = vsel %vm3225, %v3170, %v1643
  %v3236 = vsel %vm3225, %v3171, %v1645
  %v3237 = vsel %vm3225, %v3172, %v1647
  %v3238 = vsel %vm3225, %v3173, %v1649
  %v3239 = vsel %vm3225, %v3174, %v1651
  %v3240 = vsel %vm3225, %v3175, %v1653
  %v3241 = vsel %vm3225, %v3176, %v1655
  %v3242 = vsel %vm3225, %v3177, %v1657
  %v3243 = vsel %vm3225, %v3178, %v1659
  %v3244 = vsel %vm3225, %v3179, %v1661
  %v3245 = vsel %vm3225, %v3180, %v1663
  %v3246 = vsel %vm3225, %v3181, %v1665
  %v3247 = vsel %vm3225, %v3182, %v1667
  %v3248 = vsel %vm3225, %v3183, %v1669
  %v3249 = vsel %vm3225, %v3184, %v1671
  %v3250 = vsel %vm3225, %v3185, %v1673
  %v3251 = vsel %vm3225, %v3186, %v1675
  %v3252 = vsel %vm3225, %v3187, %v1677
  %v3253 = vsel %vm3225, %v3188, %v1679
  %v3254 = vsel %vm3225, %v3189, %v1681
  %v3255 = vsel %vm3225, %v3190, %v1683
  %v3256 = vsel %vm3225, %v3191, %v1685
  %v3257 = vsel %vm3225, %v3192, %v1687
  %v3258 = vsel %vm3225, %v3193, %v1689
  %v3259 = vsel %vm3225, %v3194, %v1691
  %v3260 = vsel %vm3225, %v3195, %v1693
  %v3261 = vsel %vm3225, %v3196, %v1695
  %v3262 = vsel %vm3225, %v3197, %v1697
  %v3263 = vsel %vm3225, %v3198, %v1699
  %v3264 = vsel %vm3225, %v3199, %v1701
  %v3265 = vsel %vm3225, %v3200, %v1703
  %v3266 = vsel %vm3225, %v3201, %v1705
  %v3267 = vsel %vm3225, %v3202, %v1707
  %v3268 = vsel %vm3225, %v3203, %v1709
  %v3269 = vsel %vm3225, %v3204, %v1711
  %v3270 = vsel %vm3225, %v3205, %v1713
  %v3271 = vsel %vm3225, %v3206, %v1715
  %v3272 = vsel %vm3225, %v3207, %v1717
  %v3273 = vsel %vm3225, %v3208, %v1719
  %v3274 = vsel %vm3225, %v3209, %v1721
  %v3275 = vsel %vm3225, %v3210, %v1723
  %v3276 = vsel %vm3225, %v3211, %v1725
  %v3277 = vsel %vm3225, %v3212, %v1727
  %v3278 = vsel %vm3225, %v3213, %v1729
  %v3279 = vsel %vm3225, %v3214, %v1731
  %v3280 = vsel %vm3225, %v3215, %v1733
  %v3281 = vsel %vm3225, %v3216, %v1735
  %v3282 = vsel %vm3225, %v3217, %v1737
  %v3283 = vsel %vm3225, %v3218, %v1739
  %v3284 = vsel %vm3225, %v3219, %v1741
  %v3285 = vsel %vm3225, %v3220, %v1743
  %v3286 = vsel %vm3225, %v3221, %v1745
  %v3287 = vsel %vm3225, %v3222, %v1747
  %v3288 = vsel %vm3225, %v3223, %v1749
  %v3289 = vsel %vm3225, %v3224, %v1751
  %vm3290 = vcmask 261120
  %v3291 = vsel %vm3290, %v3226, %v1881
  %v3292 = vsel %vm3290, %v3227, %v1883
  %v3293 = vsel %vm3290, %v3228, %v1885
  %v3294 = vsel %vm3290, %v3229, %v1887
  %v3295 = vsel %vm3290, %v3230, %v1889
  %v3296 = vsel %vm3290, %v3231, %v1891
  %v3297 = vsel %vm3290, %v3232, %v1893
  %v3298 = vsel %vm3290, %v3233, %v1895
  %v3299 = vsel %vm3290, %v3234, %v1897
  %v3300 = vsel %vm3290, %v3235, %v1899
  %v3301 = vsel %vm3290, %v3236, %v1901
  %v3302 = vsel %vm3290, %v3237, %v1903
  %v3303 = vsel %vm3290, %v3238, %v1905
  %v3304 = vsel %vm3290, %v3239, %v1907
  %v3305 = vsel %vm3290, %v3240, %v1909
  %v3306 = vsel %vm3290, %v3241, %v1911
  %v3307 = vsel %vm3290, %v3242, %v1913
  %v3308 = vsel %vm3290, %v3243, %v1915
  %v3309 = vsel %vm3290, %v3244, %v1917
  %v3310 = vsel %vm3290, %v3245, %v1919
  %v3311 = vsel %vm3290, %v3246, %v1921
  %v3312 = vsel %vm3290, %v3247, %v1923
  %v3313 = vsel %vm3290, %v3248, %v1925
  %v3314 = vsel %vm3290, %v3249, %v1927
  %v3315 = vsel %vm3290, %v3250, %v1929
  %v3316 = vsel %vm3290, %v3251, %v1931
  %v3317 = vsel %vm3290, %v3252, %v1933
  %v3318 = vsel %vm3290, %v3253, %v1935
  %v3319 = vsel %vm3290, %v3254, %v1937
  %v3320 = vsel %vm3290, %v3255, %v1939
  %v3321 = vsel %vm3290, %v3256, %v1941
  %v3322 = vsel %vm3290, %v3257, %v1943
  %v3323 = vsel %vm3290, %v3258, %v1945
  %v3324 = vsel %vm3290, %v3259, %v1947
  %v3325 = vsel %vm3290, %v3260, %v1949
  %v3326 = vsel %vm3290, %v3261, %v1951
  %v3327 = vsel %vm3290, %v3262, %v1953
  %v3328 = vsel %vm3290, %v3263, %v1955
  %v3329 = vsel %vm3290, %v3264, %v1957
  %v3330 = vsel %vm3290, %v3265, %v1959
  %v3331 = vsel %vm3290, %v3266, %v1961
  %v3332 = vsel %vm3290, %v3267, %v1963
  %v3333 = vsel %vm3290, %v3268, %v1965
  %v3334 = vsel %vm3290, %v3269, %v1967
  %v3335 = vsel %vm3290, %v3270, %v1969
  %v3336 = vsel %vm3290, %v3271, %v1971
  %v3337 = vsel %vm3290, %v3272, %v1973
  %v3338 = vsel %vm3290, %v3273, %v1975
  %v3339 = vsel %vm3290, %v3274, %v1977
  %v3340 = vsel %vm3290, %v3275, %v1979
  %v3341 = vsel %vm3290, %v3276, %v1981
  %v3342 = vsel %vm3290, %v3277, %v1983
  %v3343 = vsel %vm3290, %v3278, %v1985
  %v3344 = vsel %vm3290, %v3279, %v1987
  %v3345 = vsel %vm3290, %v3280, %v1989
  %v3346 = vsel %vm3290, %v3281, %v1991
  %v3347 = vsel %vm3290, %v3282, %v1993
  %v3348 = vsel %vm3290, %v3283, %v1995
  %v3349 = vsel %vm3290, %v3284, %v1997
  %v3350 = vsel %vm3290, %v3285, %v1999
  %v3351 = vsel %vm3290, %v3286, %v2001
  %v3352 = vsel %vm3290, %v3287, %v2003
  %v3353 = vsel %vm3290, %v3288, %v2005
  %v3354 = vsel %vm3290, %v3289, %v2007
  %vm3355 = vcmask 326656
  %v3356 = vsel %vm3355, %v3291, %v2137
  %v3357 = vsel %vm3355, %v3292, %v2139
  %v3358 = vsel %vm3355, %v3293, %v2141
  %v3359 = vsel %vm3355, %v3294, %v2143
  %v3360 = vsel %vm3355, %v3295, %v2145
  %v3361 = vsel %vm3355, %v3296, %v2147
  %v3362 = vsel %vm3355, %v3297, %v2149
  %v3363 = vsel %vm3355, %v3298, %v2151
  %v3364 = vsel %vm3355, %v3299, %v2153
  %v3365 = vsel %vm3355, %v3300, %v2155
  %v3366 = vsel %vm3355, %v3301, %v2157
  %v3367 = vsel %vm3355, %v3302, %v2159
  %v3368 = vsel %vm3355, %v3303, %v2161
  %v3369 = vsel %vm3355, %v3304, %v2163
  %v3370 = vsel %vm3355, %v3305, %v2165
  %v3371 = vsel %vm3355, %v3306, %v2167
  %v3372 = vsel %vm3355, %v3307, %v2169
  %v3373 = vsel %vm3355, %v3308, %v2171
  %v3374 = vsel %vm3355, %v3309, %v2173
  %v3375 = vsel %vm3355, %v3310, %v2175
  %v3376 = vsel %vm3355, %v3311, %v2177
  %v3377 = vsel %vm3355, %v3312, %v2179
  %v3378 = vsel %vm3355, %v3313, %v2181
  %v3379 = vsel %vm3355, %v3314, %v2183
  %v3380 = vsel %vm3355, %v3315, %v2185
  %v3381 = vsel %vm3355, %v3316, %v2187
  %v3382 = vsel %vm3355, %v3317, %v2189
  %v3383 = vsel %vm3355, %v3318, %v2191
  %v3384 = vsel %vm3355, %v3319, %v2193
  %v3385 = vsel %vm3355, %v3320, %v2195
  %v3386 = vsel %vm3355, %v3321, %v2197
  %v3387 = vsel %vm3355, %v3322, %v2199
  %v3388 = vsel %vm3355, %v3323, %v2201
  %v3389 = vsel %vm3355, %v3324, %v2203
  %v3390 = vsel %vm3355, %v3325, %v2205
  %v3391 = vsel %vm3355, %v3326, %v2207
  %v3392 = vsel %vm3355, %v3327, %v2209
  %v3393 = vsel %vm3355, %v3328, %v2211
  %v3394 = vsel %vm3355, %v3329, %v2213
  %v3395 = vsel %vm3355, %v3330, %v2215
  %v3396 = vsel %vm3355, %v3331, %v2217
  %v3397 = vsel %vm3355, %v3332, %v2219
  %v3398 = vsel %vm3355, %v3333, %v2221
  %v3399 = vsel %vm3355, %v3334, %v2223
  %v3400 = vsel %vm3355, %v3335, %v2225
  %v3401 = vsel %vm3355, %v3336, %v2227
  %v3402 = vsel %vm3355, %v3337, %v2229
  %v3403 = vsel %vm3355, %v3338, %v2231
  %v3404 = vsel %vm3355, %v3339, %v2233
  %v3405 = vsel %vm3355, %v3340, %v2235
  %v3406 = vsel %vm3355, %v3341, %v2237
  %v3407 = vsel %vm3355, %v3342, %v2239
  %v3408 = vsel %vm3355, %v3343, %v2241
  %v3409 = vsel %vm3355, %v3344, %v2243
  %v3410 = vsel %vm3355, %v3345, %v2245
  %v3411 = vsel %vm3355, %v3346, %v2247
  %v3412 = vsel %vm3355, %v3347, %v2249
  %v3413 = vsel %vm3355, %v3348, %v2251
  %v3414 = vsel %vm3355, %v3349, %v2253
  %v3415 = vsel %vm3355, %v3350, %v2255
  %v3416 = vsel %vm3355, %v3351, %v2257
  %v3417 = vsel %vm3355, %v3352, %v2259
  %v3418 = vsel %vm3355, %v3353, %v2261
  %v3419 = vsel %vm3355, %v3354, %v2263
  %vm3420 = vcmask 392192
  %v3421 = vsel %vm3420, %v3356, %v2393
  %v3422 = vsel %vm3420, %v3357, %v2395
  %v3423 = vsel %vm3420, %v3358, %v2397
  %v3424 = vsel %vm3420, %v3359, %v2399
  %v3425 = vsel %vm3420, %v3360, %v2401
  %v3426 = vsel %vm3420, %v3361, %v2403
  %v3427 = vsel %vm3420, %v3362, %v2405
  %v3428 = vsel %vm3420, %v3363, %v2407
  %v3429 = vsel %vm3420, %v3364, %v2409
  %v3430 = vsel %vm3420, %v3365, %v2411
  %v3431 = vsel %vm3420, %v3366, %v2413
  %v3432 = vsel %vm3420, %v3367, %v2415
  %v3433 = vsel %vm3420, %v3368, %v2417
  %v3434 = vsel %vm3420, %v3369, %v2419
  %v3435 = vsel %vm3420, %v3370, %v2421
  %v3436 = vsel %vm3420, %v3371, %v2423
  %v3437 = vsel %vm3420, %v3372, %v2425
  %v3438 = vsel %vm3420, %v3373, %v2427
  %v3439 = vsel %vm3420, %v3374, %v2429
  %v3440 = vsel %vm3420, %v3375, %v2431
  %v3441 = vsel %vm3420, %v3376, %v2433
  %v3442 = vsel %vm3420, %v3377, %v2435
  %v3443 = vsel %vm3420, %v3378, %v2437
  %v3444 = vsel %vm3420, %v3379, %v2439
  %v3445 = vsel %vm3420, %v3380, %v2441
  %v3446 = vsel %vm3420, %v3381, %v2443
  %v3447 = vsel %vm3420, %v3382, %v2445
  %v3448 = vsel %vm3420, %v3383, %v2447
  %v3449 = vsel %vm3420, %v3384, %v2449
  %v3450 = vsel %vm3420, %v3385, %v2451
  %v3451 = vsel %vm3420, %v3386, %v2453
  %v3452 = vsel %vm3420, %v3387, %v2455
  %v3453 = vsel %vm3420, %v3388, %v2457
  %v3454 = vsel %vm3420, %v3389, %v2459
  %v3455 = vsel %vm3420, %v3390, %v2461
  %v3456 = vsel %vm3420, %v3391, %v2463
  %v3457 = vsel %vm3420, %v3392, %v2465
  %v3458 = vsel %vm3420, %v3393, %v2467
  %v3459 = vsel %vm3420, %v3394, %v2469
  %v3460 = vsel %vm3420, %v3395, %v2471
  %v3461 = vsel %vm3420, %v3396, %v2473
  %v3462 = vsel %vm3420, %v3397, %v2475
  %v3463 = vsel %vm3420, %v3398, %v2477
  %v3464 = vsel %vm3420, %v3399, %v2479
  %v3465 = vsel %vm3420, %v3400, %v2481
  %v3466 = vsel %vm3420, %v3401, %v2483
  %v3467 = vsel %vm3420, %v3402, %v2485
  %v3468 = vsel %vm3420, %v3403, %v2487
  %v3469 = vsel %vm3420, %v3404, %v2489
  %v3470 = vsel %vm3420, %v3405, %v2491
  %v3471 = vsel %vm3420, %v3406, %v2493
  %v3472 = vsel %vm3420, %v3407, %v2495
  %v3473 = vsel %vm3420, %v3408, %v2497
  %v3474 = vsel %vm3420, %v3409, %v2499
  %v3475 = vsel %vm3420, %v3410, %v2501
  %v3476 = vsel %vm3420, %v3411, %v2503
  %v3477 = vsel %vm3420, %v3412, %v2505
  %v3478 = vsel %vm3420, %v3413, %v2507
  %v3479 = vsel %vm3420, %v3414, %v2509
  %v3480 = vsel %vm3420, %v3415, %v2511
  %v3481 = vsel %vm3420, %v3416, %v2513
  %v3482 = vsel %vm3420, %v3417, %v2515
  %v3483 = vsel %vm3420, %v3418, %v2517
  %v3484 = vsel %vm3420, %v3419, %v2519
  %vm3485 = vcmask 457728
  %v3486 = vsel %vm3485, %v3421, %v2649
  %v3487 = vsel %vm3485, %v3422, %v2651
  %v3488 = vsel %vm3485, %v3423, %v2653
  %v3489 = vsel %vm3485, %v3424, %v2655
  %v3490 = vsel %vm3485, %v3425, %v2657
  %v3491 = vsel %vm3485, %v3426, %v2659
  %v3492 = vsel %vm3485, %v3427, %v2661
  %v3493 = vsel %vm3485, %v3428, %v2663
  %v3494 = vsel %vm3485, %v3429, %v2665
  %v3495 = vsel %vm3485, %v3430, %v2667
  %v3496 = vsel %vm3485, %v3431, %v2669
  %v3497 = vsel %vm3485, %v3432, %v2671
  %v3498 = vsel %vm3485, %v3433, %v2673
  %v3499 = vsel %vm3485, %v3434, %v2675
  %v3500 = vsel %vm3485, %v3435, %v2677
  %v3501 = vsel %vm3485, %v3436, %v2679
  %v3502 = vsel %vm3485, %v3437, %v2681
  %v3503 = vsel %vm3485, %v3438, %v2683
  %v3504 = vsel %vm3485, %v3439, %v2685
  %v3505 = vsel %vm3485, %v3440, %v2687
  %v3506 = vsel %vm3485, %v3441, %v2689
  %v3507 = vsel %vm3485, %v3442, %v2691
  %v3508 = vsel %vm3485, %v3443, %v2693
  %v3509 = vsel %vm3485, %v3444, %v2695
  %v3510 = vsel %vm3485, %v3445, %v2697
  %v3511 = vsel %vm3485, %v3446, %v2699
  %v3512 = vsel %vm3485, %v3447, %v2701
  %v3513 = vsel %vm3485, %v3448, %v2703
  %v3514 = vsel %vm3485, %v3449, %v2705
  %v3515 = vsel %vm3485, %v3450, %v2707
  %v3516 = vsel %vm3485, %v3451, %v2709
  %v3517 = vsel %vm3485, %v3452, %v2711
  %v3518 = vsel %vm3485, %v3453, %v2713
  %v3519 = vsel %vm3485, %v3454, %v2715
  %v3520 = vsel %vm3485, %v3455, %v2717
  %v3521 = vsel %vm3485, %v3456, %v2719
  %v3522 = vsel %vm3485, %v3457, %v2721
  %v3523 = vsel %vm3485, %v3458, %v2723
  %v3524 = vsel %vm3485, %v3459, %v2725
  %v3525 = vsel %vm3485, %v3460, %v2727
  %v3526 = vsel %vm3485, %v3461, %v2729
  %v3527 = vsel %vm3485, %v3462, %v2731
  %v3528 = vsel %vm3485, %v3463, %v2733
  %v3529 = vsel %vm3485, %v3464, %v2735
  %v3530 = vsel %vm3485, %v3465, %v2737
  %v3531 = vsel %vm3485, %v3466, %v2739
  %v3532 = vsel %vm3485, %v3467, %v2741
  %v3533 = vsel %vm3485, %v3468, %v2743
  %v3534 = vsel %vm3485, %v3469, %v2745
  %v3535 = vsel %vm3485, %v3470, %v2747
  %v3536 = vsel %vm3485, %v3471, %v2749
  %v3537 = vsel %vm3485, %v3472, %v2751
  %v3538 = vsel %vm3485, %v3473, %v2753
  %v3539 = vsel %vm3485, %v3474, %v2755
  %v3540 = vsel %vm3485, %v3475, %v2757
  %v3541 = vsel %vm3485, %v3476, %v2759
  %v3542 = vsel %vm3485, %v3477, %v2761
  %v3543 = vsel %vm3485, %v3478, %v2763
  %v3544 = vsel %vm3485, %v3479, %v2765
  %v3545 = vsel %vm3485, %v3480, %v2767
  %v3546 = vsel %vm3485, %v3481, %v2769
  %v3547 = vsel %vm3485, %v3482, %v2771
  %v3548 = vsel %vm3485, %v3483, %v2773
  %v3549 = vsel %vm3485, %v3484, %v2775
  %vm3550 = vcmask 523264
  %v3551 = vsel %vm3550, %v3486, %v2905
  %v3552 = vsel %vm3550, %v3487, %v2907
  %v3553 = vsel %vm3550, %v3488, %v2909
  %v3554 = vsel %vm3550, %v3489, %v2911
  %v3555 = vsel %vm3550, %v3490, %v2913
  %v3556 = vsel %vm3550, %v3491, %v2915
  %v3557 = vsel %vm3550, %v3492, %v2917
  %v3558 = vsel %vm3550, %v3493, %v2919
  %v3559 = vsel %vm3550, %v3494, %v2921
  %v3560 = vsel %vm3550, %v3495, %v2923
  %v3561 = vsel %vm3550, %v3496, %v2925
  %v3562 = vsel %vm3550, %v3497, %v2927
  %v3563 = vsel %vm3550, %v3498, %v2929
  %v3564 = vsel %vm3550, %v3499, %v2931
  %v3565 = vsel %vm3550, %v3500, %v2933
  %v3566 = vsel %vm3550, %v3501, %v2935
  %v3567 = vsel %vm3550, %v3502, %v2937
  %v3568 = vsel %vm3550, %v3503, %v2939
  %v3569 = vsel %vm3550, %v3504, %v2941
  %v3570 = vsel %vm3550, %v3505, %v2943
  %v3571 = vsel %vm3550, %v3506, %v2945
  %v3572 = vsel %vm3550, %v3507, %v2947
  %v3573 = vsel %vm3550, %v3508, %v2949
  %v3574 = vsel %vm3550, %v3509, %v2951
  %v3575 = vsel %vm3550, %v3510, %v2953
  %v3576 = vsel %vm3550, %v3511, %v2955
  %v3577 = vsel %vm3550, %v3512, %v2957
  %v3578 = vsel %vm3550, %v3513, %v2959
  %v3579 = vsel %vm3550, %v3514, %v2961
  %v3580 = vsel %vm3550, %v3515, %v2963
  %v3581 = vsel %vm3550, %v3516, %v2965
  %v3582 = vsel %vm3550, %v3517, %v2967
  %v3583 = vsel %vm3550, %v3518, %v2969
  %v3584 = vsel %vm3550, %v3519, %v2971
  %v3585 = vsel %vm3550, %v3520, %v2973
  %v3586 = vsel %vm3550, %v3521, %v2975
  %v3587 = vsel %vm3550, %v3522, %v2977
  %v3588 = vsel %vm3550, %v3523, %v2979
  %v3589 = vsel %vm3550, %v3524, %v2981
  %v3590 = vsel %vm3550, %v3525, %v2983
  %v3591 = vsel %vm3550, %v3526, %v2985
  %v3592 = vsel %vm3550, %v3527, %v2987
  %v3593 = vsel %vm3550, %v3528, %v2989
  %v3594 = vsel %vm3550, %v3529, %v2991
  %v3595 = vsel %vm3550, %v3530, %v2993
  %v3596 = vsel %vm3550, %v3531, %v2995
  %v3597 = vsel %vm3550, %v3532, %v2997
  %v3598 = vsel %vm3550, %v3533, %v2999
  %v3599 = vsel %vm3550, %v3534, %v3001
  %v3600 = vsel %vm3550, %v3535, %v3003
  %v3601 = vsel %vm3550, %v3536, %v3005
  %v3602 = vsel %vm3550, %v3537, %v3007
  %v3603 = vsel %vm3550, %v3538, %v3009
  %v3604 = vsel %vm3550, %v3539, %v3011
  %v3605 = vsel %vm3550, %v3540, %v3013
  %v3606 = vsel %vm3550, %v3541, %v3015
  %v3607 = vsel %vm3550, %v3542, %v3017
  %v3608 = vsel %vm3550, %v3543, %v3019
  %v3609 = vsel %vm3550, %v3544, %v3021
  %v3610 = vsel %vm3550, %v3545, %v3023
  %v3611 = vsel %vm3550, %v3546, %v3025
  %v3612 = vsel %vm3550, %v3547, %v3027
  %v3613 = vsel %vm3550, %v3548, %v3029
  %v3614 = vsel %vm3550, %v3549, %v3031
  %v3615 = vld [vmem:[%s3] sm:$0xff]
  %v3616 = vld [vmem:[%s3 + $0x8] sm:$0xff]
  %v3617 = vld [vmem:[%s3 + $0x10] sm:$0xff]
  %v3618 = vld [vmem:[%s3 + $0x18] sm:$0xff]
  %v3619 = vld [vmem:[%s3 + $0x20] sm:$0xff]
  %v3620 = vld [vmem:[%s3 + $0x28] sm:$0xff]
  %v3621 = vld [vmem:[%s3 + $0x30] sm:$0xff]
  %v3622 = vld [vmem:[%s3 + $0x38] sm:$0xff]
  %v3623 = vld [vmem:[%s3 + $0x40] sm:$0xff]
  %vm3624 = vcmask 588800
  %v3626 = vsel %vm3624, %v3551, 0
  %v3629 = vsel %vm3624, %v3552, 0
  %v3632 = vsel %vm3624, %v3553, 0
  %v3635 = vsel %vm3624, %v3554, 0
  %v3638 = vsel %vm3624, %v3555, 0
  %v3641 = vsel %vm3624, %v3556, 0
  %v3644 = vsel %vm3624, %v3557, 0
  %v3647 = vsel %vm3624, %v3558, 0
  %v3650 = vsel %vm3624, %v3559, 0
  %v3653 = vsel %vm3624, %v3560, 0
  %v3656 = vsel %vm3624, %v3561, 0
  %v3659 = vsel %vm3624, %v3562, 0
  %v3662 = vsel %vm3624, %v3563, 0
  %v3665 = vsel %vm3624, %v3564, 0
  %v3668 = vsel %vm3624, %v3565, 0
  %v3671 = vsel %vm3624, %v3566, 0
  %v3674 = vsel %vm3624, %v3567, 0
  %v3677 = vsel %vm3624, %v3568, 0
  %v3680 = vsel %vm3624, %v3569, 0
  %v3683 = vsel %vm3624, %v3570, 0
  %v3686 = vsel %vm3624, %v3571, 0
  %v3689 = vsel %vm3624, %v3572, 0
  %v3692 = vsel %vm3624, %v3573, 0
  %v3695 = vsel %vm3624, %v3574, 0
  %v3698 = vsel %vm3624, %v3575, 0
  %v3701 = vsel %vm3624, %v3576, 0
  %v3704 = vsel %vm3624, %v3577, 0
  %v3707 = vsel %vm3624, %v3578, 0
  %v3710 = vsel %vm3624, %v3579, 0
  %v3713 = vsel %vm3624, %v3580, 0
  %v3716 = vsel %vm3624, %v3581, 0
  %v3719 = vsel %vm3624, %v3582, 0
  %v3722 = vsel %vm3624, %v3583, 0
  %v3725 = vsel %vm3624, %v3584, 0
  %v3728 = vsel %vm3624, %v3585, 0
  %v3731 = vsel %vm3624, %v3586, 0
  %v3734 = vsel %vm3624, %v3587, 0
  %v3737 = vsel %vm3624, %v3588, 0
  %v3740 = vsel %vm3624, %v3589, 0
  %v3743 = vsel %vm3624, %v3590, 0
  %v3746 = vsel %vm3624, %v3591, 0
  %v3749 = vsel %vm3624, %v3592, 0
  %v3752 = vsel %vm3624, %v3593, 0
  %v3755 = vsel %vm3624, %v3594, 0
  %v3758 = vsel %vm3624, %v3595, 0
  %v3761 = vsel %vm3624, %v3596, 0
  %v3764 = vsel %vm3624, %v3597, 0
  %v3767 = vsel %vm3624, %v3598, 0
  %v3770 = vsel %vm3624, %v3599, 0
  %v3773 = vsel %vm3624, %v3600, 0
  %v3776 = vsel %vm3624, %v3601, 0
  %v3779 = vsel %vm3624, %v3602, 0
  %v3782 = vsel %vm3624, %v3603, 0
  %v3785 = vsel %vm3624, %v3604, 0
  %v3788 = vsel %vm3624, %v3605, 0
  %v3791 = vsel %vm3624, %v3606, 0
  %v3794 = vsel %vm3624, %v3607, 0
  %v3797 = vsel %vm3624, %v3608, 0
  %v3800 = vsel %vm3624, %v3609, 0
  %v3803 = vsel %vm3624, %v3610, 0
  %v3806 = vsel %vm3624, %v3611, 0
  %v3809 = vsel %vm3624, %v3612, 0
  %v3812 = vsel %vm3624, %v3613, 0
  %v3815 = vsel %vm3624, %v3614, 0
  %3817 = vmatprep.subr.mxu0 0.0
  %3818 = vmatpush1.msra.mxu0 %v3615
  %3819 = vmatprep.subr.mxu0 0.0
  %3820 = vmatpush1.msra.mxu0 %v3616
  %3821 = vmatprep.subr.mxu0 0.0
  %3822 = vmatpush1.msra.mxu0 %v3617
  %3823 = vmatprep.subr.mxu0 0.0
  %3824 = vmatpush1.msra.mxu0 %v3618
  %3825 = vmatprep.subr.mxu0 0.0
  %3826 = vmatpush1.msra.mxu0 %v3619
  %3827 = vmatprep.subr.mxu0 0.0
  %3828 = vmatpush1.msra.mxu0 %v3620
  %3829 = vmatprep.subr.mxu0 0.0
  %3830 = vmatpush1.msra.mxu0 %v3621
  %3831 = vmatprep.subr.mxu0 0.0
  %3832 = vmatpush1.msra.mxu0 %v3622
  %3833 = vmatprep.subr.mxu0 0.0
  %3834 = vmatpush1.msra.mxu0 %v3623
  %3835 = vmatprep.subr.mxu0 0.0
  %3836 = vmatpush1.msra.mxu0 0.0
  %3837 = vmatprep.subr.mxu0 0.0
  %3838 = vmatpush1.msra.mxu0 0.0
  %3839 = vmatprep.subr.mxu0 0.0
  %3840 = vmatpush1.msra.mxu0 0.0
  %3841 = vmatprep.subr.mxu0 0.0
  %3842 = vmatpush1.msra.mxu0 0.0
  %3843 = vmatprep.subr.mxu0 0.0
  %3844 = vmatpush1.msra.mxu0 0.0
  %3845 = vmatprep.subr.mxu0 0.0
  %3846 = vmatpush1.msra.mxu0 0.0
  %3847 = vmatprep.subr.mxu0 0.0
  %3848 = vmatpush1.msra.mxu0 0.0
  %3849 = vmatprep.subr.mxu0 0.0
  %3850 = vmatpush1.msra.mxu0 0.0
  %3851 = vmatprep.subr.mxu0 0.0
  %3852 = vmatpush1.msra.mxu0 0.0
  %3853 = vmatprep.subr.mxu0 0.0
  %3854 = vmatpush1.msra.mxu0 0.0
  %3855 = vmatprep.subr.mxu0 0.0
  %3856 = vmatpush1.msra.mxu0 0.0
  %3857 = vmatprep.subr.mxu0 0.0
  %3858 = vmatpush1.msra.mxu0 0.0
  %3859 = vmatprep.subr.mxu0 0.0
  %3860 = vmatpush1.msra.mxu0 0.0
  %3861 = vmatprep.subr.mxu0 0.0
  %3862 = vmatpush1.msra.mxu0 0.0
  %3863 = vmatprep.subr.mxu0 0.0
  %3864 = vmatpush1.msra.mxu0 0.0
  %3865 = vmatprep.subr.mxu0 0.0
  %3866 = vmatpush1.msra.mxu0 0.0
  %3867 = vmatprep.subr.mxu0 0.0
  %3868 = vmatpush1.msra.mxu0 0.0
  %3869 = vmatprep.subr.mxu0 0.0
  %3870 = vmatpush1.msra.mxu0 0.0
  %3871 = vmatprep.subr.mxu0 0.0
  %3872 = vmatpush1.msra.mxu0 0.0
  %3873 = vmatprep.subr.mxu0 0.0
  %3874 = vmatpush1.msra.mxu0 0.0
  %3875 = vmatprep.subr.mxu0 0.0
  %3876 = vmatpush1.msra.mxu0 0.0
  %3877 = vmatprep.subr.mxu0 0.0
  %3878 = vmatpush1.msra.mxu0 0.0
  %3879 = vmatprep.subr.mxu0 0.0
  %3880 = vmatpush1.msra.mxu0 0.0
  %3881 = vmatprep.mubr.f32.mxu0 0.0
  %3882 = vmatmul.mubr.f32.gmra.mrb[0].mxu0 %v3626
  %v3883 = vpop.f32.mrb[0].mxu0
  %v3884 = vadd.f32 0.0, %v3883
  %v3885 = vpop.f32.mrb[0].mxu0
  %3886 = vmatprep.mubr.f32.mxu0 0.0
  %3887 = vmatmul.mubr.f32.gmra.mrb[0].mxu0 %v3629
  %v3888 = vpop.f32.mrb[0].mxu0
  %v3889 = vadd.f32 0.0, %v3888
  %v3890 = vpop.f32.mrb[0].mxu0
  %3891 = vmatprep.mubr.f32.mxu0 0.0
  %3892 = vmatmul.mubr.f32.gmra.mrb[0].mxu0 %v3632
  %v3893 = vpop.f32.mrb[0].mxu0
  %v3894 = vadd.f32 0.0, %v3893
  %v3895 = vpop.f32.mrb[0].mxu0
  %3896 = vmatprep.mubr.f32.mxu0 0.0
  %3897 = vmatmul.mubr.f32.gmra.mrb[0].mxu0 %v3635
  %v3898 = vpop.f32.mrb[0].mxu0
  %v3899 = vadd.f32 0.0, %v3898
  %v3900 = vpop.f32.mrb[0].mxu0
  %3901 = vmatprep.mubr.f32.mxu0 0.0
  %3902 = vmatmul.mubr.f32.gmra.mrb[0].mxu0 %v3638
  %v3903 = vpop.f32.mrb[0].mxu0
  %v3904 = vadd.f32 0.0, %v3903
  %v3905 = vpop.f32.mrb[0].mxu0
  %3906 = vmatprep.mubr.f32.mxu0 0.0
  %3907 = vmatmul.mubr.f32.gmra.mrb[0].mxu0 %v3641
  %v3908 = vpop.f32.mrb[0].mxu0
  %v3909 = vadd.f32 0.0, %v3908
  %v3910 = vpop.f32.mrb[0].mxu0
  %3911 = vmatprep.mubr.f32.mxu0 0.0
  %3912 = vmatmul.mubr.f32.gmra.mrb[0].mxu0 %v3644
  %v3913 = vpop.f32.mrb[0].mxu0
  %v3914 = vadd.f32 0.0, %v3913
  %v3915 = vpop.f32.mrb[0].mxu0
  %3916 = vmatprep.mubr.f32.mxu0 0.0
  %3917 = vmatmul.mubr.f32.gmra.mrb[0].mxu0 %v3647
  %v3918 = vpop.f32.mrb[0].mxu0
  %v3919 = vadd.f32 0.0, %v3918
  %v3920 = vpop.f32.mrb[0].mxu0
  %3921 = vmatprep.mubr.f32.mxu0 0.0
  %3922 = vmatmul.mubr.f32.gmra.mrb[0].mxu0 %v3650
  %v3923 = vpop.f32.mrb[0].mxu0
  %v3924 = vadd.f32 0.0, %v3923
  %v3925 = vpop.f32.mrb[0].mxu0
  %3926 = vmatprep.mubr.f32.mxu0 0.0
  %3927 = vmatmul.mubr.f32.gmra.mrb[0].mxu0 %v3653
  %v3928 = vpop.f32.mrb[0].mxu0
  %v3929 = vadd.f32 0.0, %v3928
  %v3930 = vpop.f32.mrb[0].mxu0
  %3931 = vmatprep.mubr.f32.mxu0 0.0
  %3932 = vmatmul.mubr.f32.gmra.mrb[0].mxu0 %v3656
  %v3933 = vpop.f32.mrb[0].mxu0
  %v3934 = vadd.f32 0.0, %v3933
  %v3935 = vpop.f32.mrb[0].mxu0
  %3936 = vmatprep.mubr.f32.mxu0 0.0
  %3937 = vmatmul.mubr.f32.gmra.mrb[0].mxu0 %v3659
  %v3938 = vpop.f32.mrb[0].mxu0
  %v3939 = vadd.f32 0.0, %v3938
  %v3940 = vpop.f32.mrb[0].mxu0
  %3941 = vmatprep.mubr.f32.mxu0 0.0
  %3942 = vmatmul.mubr.f32.gmra.mrb[0].mxu0 %v3662
  %v3943 = vpop.f32.mrb[0].mxu0
  %v3944 = vadd.f32 0.0, %v3943
  %v3945 = vpop.f32.mrb[0].mxu0
  %3946 = vmatprep.mubr.f32.mxu0 0.0
  %3947 = vmatmul.mubr.f32.gmra.mrb[0].mxu0 %v3665
  %v3948 = vpop.f32.mrb[0].mxu0
  %v3949 = vadd.f32 0.0, %v3948
  %v3950 = vpop.f32.mrb[0].mxu0
  %3951 = vmatprep.mubr.f32.mxu0 0.0
  %3952 = vmatmul.mubr.f32.gmra.mrb[0].mxu0 %v3668
  %v3953 = vpop.f32.mrb[0].mxu0
  %v3954 = vadd.f32 0.0, %v3953
  %v3955 = vpop.f32.mrb[0].mxu0
  %3956 = vmatprep.mubr.f32.mxu0 0.0
  %3957 = vmatmul.mubr.f32.gmra.mrb[0].mxu0 %v3671
  %v3958 = vpop.f32.mrb[0].mxu0
  %v3959 = vadd.f32 0.0, %v3958
  %v3960 = vpop.f32.mrb[0].mxu0
  %3961 = vmatprep.mubr.f32.mxu0 0.0
  %3962 = vmatmul.mubr.f32.gmra.mrb[0].mxu0 %v3674
  %v3963 = vpop.f32.mrb[0].mxu0
  %v3964 = vadd.f32 0.0, %v3963
  %v3965 = vpop.f32.mrb[0].mxu0
  %3966 = vmatprep.mubr.f32.mxu0 0.0
  %3967 = vmatmul.mubr.f32.gmra.mrb[0].mxu0 %v3677
  %v3968 = vpop.f32.mrb[0].mxu0
  %v3969 = vadd.f32 0.0, %v3968
  %v3970 = vpop.f32.mrb[0].mxu0
  %3971 = vmatprep.mubr.f32.mxu0 0.0
  %3972 = vmatmul.mubr.f32.gmra.mrb[0].mxu0 %v3680
  %v3973 = vpop.f32.mrb[0].mxu0
  %v3974 = vadd.f32 0.0, %v3973
  %v3975 = vpop.f32.mrb[0].mxu0
  %3976 = vmatprep.mubr.f32.mxu0 0.0
  %3977 = vmatmul.mubr.f32.gmra.mrb[0].mxu0 %v3683
  %v3978 = vpop.f32.mrb[0].mxu0
  %v3979 = vadd.f32 0.0, %v3978
  %v3980 = vpop.f32.mrb[0].mxu0
  %3981 = vmatprep.mubr.f32.mxu0 0.0
  %3982 = vmatmul.mubr.f32.gmra.mrb[0].mxu0 %v3686
  %v3983 = vpop.f32.mrb[0].mxu0
  %v3984 = vadd.f32 0.0, %v3983
  %v3985 = vpop.f32.mrb[0].mxu0
  %3986 = vmatprep.mubr.f32.mxu0 0.0
  %3987 = vmatmul.mubr.f32.gmra.mrb[0].mxu0 %v3689
  %v3988 = vpop.f32.mrb[0].mxu0
  %v3989 = vadd.f32 0.0, %v3988
  %v3990 = vpop.f32.mrb[0].mxu0
  %3991 = vmatprep.mubr.f32.mxu0 0.0
  %3992 = vmatmul.mubr.f32.gmra.mrb[0].mxu0 %v3692
  %v3993 = vpop.f32.mrb[0].mxu0
  %v3994 = vadd.f32 0.0, %v3993
  %v3995 = vpop.f32.mrb[0].mxu0
  %3996 = vmatprep.mubr.f32.mxu0 0.0
  %3997 = vmatmul.mubr.f32.gmra.mrb[0].mxu0 %v3695
  %v3998 = vpop.f32.mrb[0].mxu0
  %v3999 = vadd.f32 0.0, %v3998
  %v4000 = vpop.f32.mrb[0].mxu0
  %4001 = vmatprep.mubr.f32.mxu0 0.0
  %4002 = vmatmul.mubr.f32.gmra.mrb[0].mxu0 %v3698
  %v4003 = vpop.f32.mrb[0].mxu0
  %v4004 = vadd.f32 0.0, %v4003
  %v4005 = vpop.f32.mrb[0].mxu0
  %4006 = vmatprep.mubr.f32.mxu0 0.0
  %4007 = vmatmul.mubr.f32.gmra.mrb[0].mxu0 %v3701
  %v4008 = vpop.f32.mrb[0].mxu0
  %v4009 = vadd.f32 0.0, %v4008
  %v4010 = vpop.f32.mrb[0].mxu0
  %4011 = vmatprep.mubr.f32.mxu0 0.0
  %4012 = vmatmul.mubr.f32.gmra.mrb[0].mxu0 %v3704
  %v4013 = vpop.f32.mrb[0].mxu0
  %v4014 = vadd.f32 0.0, %v4013
  %v4015 = vpop.f32.mrb[0].mxu0
  %4016 = vmatprep.mubr.f32.mxu0 0.0
  %4017 = vmatmul.mubr.f32.gmra.mrb[0].mxu0 %v3707
  %v4018 = vpop.f32.mrb[0].mxu0
  %v4019 = vadd.f32 0.0, %v4018
  %v4020 = vpop.f32.mrb[0].mxu0
  %4021 = vmatprep.mubr.f32.mxu0 0.0
  %4022 = vmatmul.mubr.f32.gmra.mrb[0].mxu0 %v3710
  %v4023 = vpop.f32.mrb[0].mxu0
  %v4024 = vadd.f32 0.0, %v4023
  %v4025 = vpop.f32.mrb[0].mxu0
  %4026 = vmatprep.mubr.f32.mxu0 0.0
  %4027 = vmatmul.mubr.f32.gmra.mrb[0].mxu0 %v3713
  %v4028 = vpop.f32.mrb[0].mxu0
  %v4029 = vadd.f32 0.0, %v4028
  %v4030 = vpop.f32.mrb[0].mxu0
  %4031 = vmatprep.mubr.f32.mxu0 0.0
  %4032 = vmatmul.mubr.f32.gmra.mrb[0].mxu0 %v3716
  %v4033 = vpop.f32.mrb[0].mxu0
  %v4034 = vadd.f32 0.0, %v4033
  %v4035 = vpop.f32.mrb[0].mxu0
  %4036 = vmatprep.mubr.f32.mxu0 0.0
  %4037 = vmatmul.mubr.f32.gmra.mrb[0].mxu0 %v3719
  %v4038 = vpop.f32.mrb[0].mxu0
  %v4039 = vadd.f32 0.0, %v4038
  %v4040 = vpop.f32.mrb[0].mxu0
  %4041 = vmatprep.mubr.f32.mxu0 0.0
  %4042 = vmatmul.mubr.f32.gmra.mrb[0].mxu0 %v3722
  %v4043 = vpop.f32.mrb[0].mxu0
  %v4044 = vadd.f32 0.0, %v4043
  %v4045 = vpop.f32.mrb[0].mxu0
  %4046 = vmatprep.mubr.f32.mxu0 0.0
  %4047 = vmatmul.mubr.f32.gmra.mrb[0].mxu0 %v3725
  %v4048 = vpop.f32.mrb[0].mxu0
  %v4049 = vadd.f32 0.0, %v4048
  %v4050 = vpop.f32.mrb[0].mxu0
  %4051 = vmatprep.mubr.f32.mxu0 0.0
  %4052 = vmatmul.mubr.f32.gmra.mrb[0].mxu0 %v3728
  %v4053 = vpop.f32.mrb[0].mxu0
  %v4054 = vadd.f32 0.0, %v4053
  %v4055 = vpop.f32.mrb[0].mxu0
  %4056 = vmatprep.mubr.f32.mxu0 0.0
  %4057 = vmatmul.mubr.f32.gmra.mrb[0].mxu0 %v3731
  %v4058 = vpop.f32.mrb[0].mxu0
  %v4059 = vadd.f32 0.0, %v4058
  %v4060 = vpop.f32.mrb[0].mxu0
  %4061 = vmatprep.mubr.f32.mxu0 0.0
  %4062 = vmatmul.mubr.f32.gmra.mrb[0].mxu0 %v3734
  %v4063 = vpop.f32.mrb[0].mxu0
  %v4064 = vadd.f32 0.0, %v4063
  %v4065 = vpop.f32.mrb[0].mxu0
  %4066 = vmatprep.mubr.f32.mxu0 0.0
  %4067 = vmatmul.mubr.f32.gmra.mrb[0].mxu0 %v3737
  %v4068 = vpop.f32.mrb[0].mxu0
  %v4069 = vadd.f32 0.0, %v4068
  %v4070 = vpop.f32.mrb[0].mxu0
  %4071 = vmatprep.mubr.f32.mxu0 0.0
  %4072 = vmatmul.mubr.f32.gmra.mrb[0].mxu0 %v3740
  %v4073 = vpop.f32.mrb[0].mxu0
  %v4074 = vadd.f32 0.0, %v4073
  %v4075 = vpop.f32.mrb[0].mxu0
  %4076 = vmatprep.mubr.f32.mxu0 0.0
  %4077 = vmatmul.mubr.f32.gmra.mrb[0].mxu0 %v3743
  %v4078 = vpop.f32.mrb[0].mxu0
  %v4079 = vadd.f32 0.0, %v4078
  %v4080 = vpop.f32.mrb[0].mxu0
  %4081 = vmatprep.mubr.f32.mxu0 0.0
  %4082 = vmatmul.mubr.f32.gmra.mrb[0].mxu0 %v3746
  %v4083 = vpop.f32.mrb[0].mxu0
  %v4084 = vadd.f32 0.0, %v4083
  %v4085 = vpop.f32.mrb[0].mxu0
  %4086 = vmatprep.mubr.f32.mxu0 0.0
  %4087 = vmatmul.mubr.f32.gmra.mrb[0].mxu0 %v3749
  %v4088 = vpop.f32.mrb[0].mxu0
  %v4089 = vadd.f32 0.0, %v4088
  %v4090 = vpop.f32.mrb[0].mxu0
  %4091 = vmatprep.mubr.f32.mxu0 0.0
  %4092 = vmatmul.mubr.f32.gmra.mrb[0].mxu0 %v3752
  %v4093 = vpop.f32.mrb[0].mxu0
  %v4094 = vadd.f32 0.0, %v4093
  %v4095 = vpop.f32.mrb[0].mxu0
  %4096 = vmatprep.mubr.f32.mxu0 0.0
  %4097 = vmatmul.mubr.f32.gmra.mrb[0].mxu0 %v3755
  %v4098 = vpop.f32.mrb[0].mxu0
  %v4099 = vadd.f32 0.0, %v4098
  %v4100 = vpop.f32.mrb[0].mxu0
  %4101 = vmatprep.mubr.f32.mxu0 0.0
  %4102 = vmatmul.mubr.f32.gmra.mrb[0].mxu0 %v3758
  %v4103 = vpop.f32.mrb[0].mxu0
  %v4104 = vadd.f32 0.0, %v4103
  %v4105 = vpop.f32.mrb[0].mxu0
  %4106 = vmatprep.mubr.f32.mxu0 0.0
  %4107 = vmatmul.mubr.f32.gmra.mrb[0].mxu0 %v3761
  %v4108 = vpop.f32.mrb[0].mxu0
  %v4109 = vadd.f32 0.0, %v4108
  %v4110 = vpop.f32.mrb[0].mxu0
  %4111 = vmatprep.mubr.f32.mxu0 0.0
  %4112 = vmatmul.mubr.f32.gmra.mrb[0].mxu0 %v3764
  %v4113 = vpop.f32.mrb[0].mxu0
  %v4114 = vadd.f32 0.0, %v4113
  %v4115 = vpop.f32.mrb[0].mxu0
  %4116 = vmatprep.mubr.f32.mxu0 0.0
  %4117 = vmatmul.mubr.f32.gmra.mrb[0].mxu0 %v3767
  %v4118 = vpop.f32.mrb[0].mxu0
  %v4119 = vadd.f32 0.0, %v4118
  %v4120 = vpop.f32.mrb[0].mxu0
  %4121 = vmatprep.mubr.f32.mxu0 0.0
  %4122 = vmatmul.mubr.f32.gmra.mrb[0].mxu0 %v3770
  %v4123 = vpop.f32.mrb[0].mxu0
  %v4124 = vadd.f32 0.0, %v4123
  %v4125 = vpop.f32.mrb[0].mxu0
  %4126 = vmatprep.mubr.f32.mxu0 0.0
  %4127 = vmatmul.mubr.f32.gmra.mrb[0].mxu0 %v3773
  %v4128 = vpop.f32.mrb[0].mxu0
  %v4129 = vadd.f32 0.0, %v4128
  %v4130 = vpop.f32.mrb[0].mxu0
  %4131 = vmatprep.mubr.f32.mxu0 0.0
  %4132 = vmatmul.mubr.f32.gmra.mrb[0].mxu0 %v3776
  %v4133 = vpop.f32.mrb[0].mxu0
  %v4134 = vadd.f32 0.0, %v4133
  %v4135 = vpop.f32.mrb[0].mxu0
  %4136 = vmatprep.mubr.f32.mxu0 0.0
  %4137 = vmatmul.mubr.f32.gmra.mrb[0].mxu0 %v3779
  %v4138 = vpop.f32.mrb[0].mxu0
  %v4139 = vadd.f32 0.0, %v4138
  %v4140 = vpop.f32.mrb[0].mxu0
  %4141 = vmatprep.mubr.f32.mxu0 0.0
  %4142 = vmatmul.mubr.f32.gmra.mrb[0].mxu0 %v3782
  %v4143 = vpop.f32.mrb[0].mxu0
  %v4144 = vadd.f32 0.0, %v4143
  %v4145 = vpop.f32.mrb[0].mxu0
  %4146 = vmatprep.mubr.f32.mxu0 0.0
  %4147 = vmatmul.mubr.f32.gmra.mrb[0].mxu0 %v3785
  %v4148 = vpop.f32.mrb[0].mxu0
  %v4149 = vadd.f32 0.0, %v4148
  %v4150 = vpop.f32.mrb[0].mxu0
  %4151 = vmatprep.mubr.f32.mxu0 0.0
  %4152 = vmatmul.mubr.f32.gmra.mrb[0].mxu0 %v3788
  %v4153 = vpop.f32.mrb[0].mxu0
  %v4154 = vadd.f32 0.0, %v4153
  %v4155 = vpop.f32.mrb[0].mxu0
  %4156 = vmatprep.mubr.f32.mxu0 0.0
  %4157 = vmatmul.mubr.f32.gmra.mrb[0].mxu0 %v3791
  %v4158 = vpop.f32.mrb[0].mxu0
  %v4159 = vadd.f32 0.0, %v4158
  %v4160 = vpop.f32.mrb[0].mxu0
  %4161 = vmatprep.mubr.f32.mxu0 0.0
  %4162 = vmatmul.mubr.f32.gmra.mrb[0].mxu0 %v3794
  %v4163 = vpop.f32.mrb[0].mxu0
  %v4164 = vadd.f32 0.0, %v4163
  %v4165 = vpop.f32.mrb[0].mxu0
  %4166 = vmatprep.mubr.f32.mxu0 0.0
  %4167 = vmatmul.mubr.f32.gmra.mrb[0].mxu0 %v3797
  %v4168 = vpop.f32.mrb[0].mxu0
  %v4169 = vadd.f32 0.0, %v4168
  %v4170 = vpop.f32.mrb[0].mxu0
  %4171 = vmatprep.mubr.f32.mxu0 0.0
  %4172 = vmatmul.mubr.f32.gmra.mrb[0].mxu0 %v3800
  %v4173 = vpop.f32.mrb[0].mxu0
  %v4174 = vadd.f32 0.0, %v4173
  %v4175 = vpop.f32.mrb[0].mxu0
  %4176 = vmatprep.mubr.f32.mxu0 0.0
  %4177 = vmatmul.mubr.f32.gmra.mrb[0].mxu0 %v3803
  %v4178 = vpop.f32.mrb[0].mxu0
  %v4179 = vadd.f32 0.0, %v4178
  %v4180 = vpop.f32.mrb[0].mxu0
  %4181 = vmatprep.mubr.f32.mxu0 0.0
  %4182 = vmatmul.mubr.f32.gmra.mrb[0].mxu0 %v3806
  %v4183 = vpop.f32.mrb[0].mxu0
  %v4184 = vadd.f32 0.0, %v4183
  %v4185 = vpop.f32.mrb[0].mxu0
  %4186 = vmatprep.mubr.f32.mxu0 0.0
  %4187 = vmatmul.mubr.f32.gmra.mrb[0].mxu0 %v3809
  %v4188 = vpop.f32.mrb[0].mxu0
  %v4189 = vadd.f32 0.0, %v4188
  %v4190 = vpop.f32.mrb[0].mxu0
  %4191 = vmatprep.mubr.f32.mxu0 0.0
  %4192 = vmatmul.mubr.f32.gmra.mrb[0].mxu0 %v3812
  %v4193 = vpop.f32.mrb[0].mxu0
  %v4194 = vadd.f32 0.0, %v4193
  %v4195 = vpop.f32.mrb[0].mxu0
  %4196 = vmatprep.mubr.f32.mxu0 0.0
  %4197 = vmatmul.mubr.f32.gmra.mrb[0].mxu0 %v3815
  %v4198 = vpop.f32.mrb[0].mxu0
  %v4199 = vadd.f32 0.0, %v4198
  %v4200 = vpop.f32.mrb[0].mxu0
  %4201 = vdwg.mxu0
  %v4202 = vld [vmem:[%s4] sm:$0x1]
  %v4204 = vlaneseq
  %v4205 = vshrl.u32 %v4204, 7
  %v4206 = vsub.s32 0, %v4205
  %v4207 = vrot.slane %v4202, %v4206
  %v4209 = vmul.f32 %v3884, %v4207
  %v4210 = vmul.f32 %v3889, %v4207
  %v4211 = vmul.f32 %v3894, %v4207
  %v4212 = vmul.f32 %v3899, %v4207
  %v4213 = vmul.f32 %v3904, %v4207
  %v4214 = vmul.f32 %v3909, %v4207
  %v4215 = vmul.f32 %v3914, %v4207
  %v4216 = vmul.f32 %v3919, %v4207
  %v4217 = vmul.f32 %v3924, %v4207
  %v4218 = vmul.f32 %v3929, %v4207
  %v4219 = vmul.f32 %v3934, %v4207
  %v4220 = vmul.f32 %v3939, %v4207
  %v4221 = vmul.f32 %v3944, %v4207
  %v4222 = vmul.f32 %v3949, %v4207
  %v4223 = vmul.f32 %v3954, %v4207
  %v4224 = vmul.f32 %v3959, %v4207
  %v4225 = vmul.f32 %v3964, %v4207
  %v4226 = vmul.f32 %v3969, %v4207
  %v4227 = vmul.f32 %v3974, %v4207
  %v4228 = vmul.f32 %v3979, %v4207
  %v4229 = vmul.f32 %v3984, %v4207
  %v4230 = vmul.f32 %v3989, %v4207
  %v4231 = vmul.f32 %v3994, %v4207
  %v4232 = vmul.f32 %v3999, %v4207
  %v4233 = vmul.f32 %v4004, %v4207
  %v4234 = vmul.f32 %v4009, %v4207
  %v4235 = vmul.f32 %v4014, %v4207
  %v4236 = vmul.f32 %v4019, %v4207
  %v4237 = vmul.f32 %v4024, %v4207
  %v4238 = vmul.f32 %v4029, %v4207
  %v4239 = vmul.f32 %v4034, %v4207
  %v4240 = vmul.f32 %v4039, %v4207
  %v4241 = vmul.f32 %v4044, %v4207
  %v4242 = vmul.f32 %v4049, %v4207
  %v4243 = vmul.f32 %v4054, %v4207
  %v4244 = vmul.f32 %v4059, %v4207
  %v4245 = vmul.f32 %v4064, %v4207
  %v4246 = vmul.f32 %v4069, %v4207
  %v4247 = vmul.f32 %v4074, %v4207
  %v4248 = vmul.f32 %v4079, %v4207
  %v4249 = vmul.f32 %v4084, %v4207
  %v4250 = vmul.f32 %v4089, %v4207
  %v4251 = vmul.f32 %v4094, %v4207
  %v4252 = vmul.f32 %v4099, %v4207
  %v4253 = vmul.f32 %v4104, %v4207
  %v4254 = vmul.f32 %v4109, %v4207
  %v4255 = vmul.f32 %v4114, %v4207
  %v4256 = vmul.f32 %v4119, %v4207
  %v4257 = vmul.f32 %v4124, %v4207
  %v4258 = vmul.f32 %v4129, %v4207
  %v4259 = vmul.f32 %v4134, %v4207
  %v4260 = vmul.f32 %v4139, %v4207
  %v4261 = vmul.f32 %v4144, %v4207
  %v4262 = vmul.f32 %v4149, %v4207
  %v4263 = vmul.f32 %v4154, %v4207
  %v4264 = vmul.f32 %v4159, %v4207
  %v4265 = vmul.f32 %v4164, %v4207
  %v4266 = vmul.f32 %v4169, %v4207
  %v4267 = vmul.f32 %v4174, %v4207
  %v4268 = vmul.f32 %v4179, %v4207
  %v4269 = vmul.f32 %v4184, %v4207
  %v4270 = vmul.f32 %v4189, %v4207
  %v4271 = vmul.f32 %v4194, %v4207
  %v4272 = vmul.f32 %v4199, %v4207
  %v4273 = vld [vmem:[%s5] sm:$0x1]
  %v4275 = vlaneseq
  %v4276 = vshrl.u32 %v4275, 7
  %v4277 = vsub.s32 0, %v4276
  %v4278 = vrot.slane %v4273, %v4277
  %v4280 = vadd.f32 %v4209, %v4278
  %v4281 = vadd.f32 %v4210, %v4278
  %v4282 = vadd.f32 %v4211, %v4278
  %v4283 = vadd.f32 %v4212, %v4278
  %v4284 = vadd.f32 %v4213, %v4278
  %v4285 = vadd.f32 %v4214, %v4278
  %v4286 = vadd.f32 %v4215, %v4278
  %v4287 = vadd.f32 %v4216, %v4278
  %v4288 = vadd.f32 %v4217, %v4278
  %v4289 = vadd.f32 %v4218, %v4278
  %v4290 = vadd.f32 %v4219, %v4278
  %v4291 = vadd.f32 %v4220, %v4278
  %v4292 = vadd.f32 %v4221, %v4278
  %v4293 = vadd.f32 %v4222, %v4278
  %v4294 = vadd.f32 %v4223, %v4278
  %v4295 = vadd.f32 %v4224, %v4278
  %v4296 = vadd.f32 %v4225, %v4278
  %v4297 = vadd.f32 %v4226, %v4278
  %v4298 = vadd.f32 %v4227, %v4278
  %v4299 = vadd.f32 %v4228, %v4278
  %v4300 = vadd.f32 %v4229, %v4278
  %v4301 = vadd.f32 %v4230, %v4278
  %v4302 = vadd.f32 %v4231, %v4278
  %v4303 = vadd.f32 %v4232, %v4278
  %v4304 = vadd.f32 %v4233, %v4278
  %v4305 = vadd.f32 %v4234, %v4278
  %v4306 = vadd.f32 %v4235, %v4278
  %v4307 = vadd.f32 %v4236, %v4278
  %v4308 = vadd.f32 %v4237, %v4278
  %v4309 = vadd.f32 %v4238, %v4278
  %v4310 = vadd.f32 %v4239, %v4278
  %v4311 = vadd.f32 %v4240, %v4278
  %v4312 = vadd.f32 %v4241, %v4278
  %v4313 = vadd.f32 %v4242, %v4278
  %v4314 = vadd.f32 %v4243, %v4278
  %v4315 = vadd.f32 %v4244, %v4278
  %v4316 = vadd.f32 %v4245, %v4278
  %v4317 = vadd.f32 %v4246, %v4278
  %v4318 = vadd.f32 %v4247, %v4278
  %v4319 = vadd.f32 %v4248, %v4278
  %v4320 = vadd.f32 %v4249, %v4278
  %v4321 = vadd.f32 %v4250, %v4278
  %v4322 = vadd.f32 %v4251, %v4278
  %v4323 = vadd.f32 %v4252, %v4278
  %v4324 = vadd.f32 %v4253, %v4278
  %v4325 = vadd.f32 %v4254, %v4278
  %v4326 = vadd.f32 %v4255, %v4278
  %v4327 = vadd.f32 %v4256, %v4278
  %v4328 = vadd.f32 %v4257, %v4278
  %v4329 = vadd.f32 %v4258, %v4278
  %v4330 = vadd.f32 %v4259, %v4278
  %v4331 = vadd.f32 %v4260, %v4278
  %v4332 = vadd.f32 %v4261, %v4278
  %v4333 = vadd.f32 %v4262, %v4278
  %v4334 = vadd.f32 %v4263, %v4278
  %v4335 = vadd.f32 %v4264, %v4278
  %v4336 = vadd.f32 %v4265, %v4278
  %v4337 = vadd.f32 %v4266, %v4278
  %v4338 = vadd.f32 %v4267, %v4278
  %v4339 = vadd.f32 %v4268, %v4278
  %v4340 = vadd.f32 %v4269, %v4278
  %v4341 = vadd.f32 %v4270, %v4278
  %v4342 = vadd.f32 %v4271, %v4278
  %v4343 = vadd.f32 %v4272, %v4278
  %v4344 = vmax.f32 %v4280, 0.0
  %v4345 = vmax.f32 %v4281, 0.0
  %v4346 = vmax.f32 %v4282, 0.0
  %v4347 = vmax.f32 %v4283, 0.0
  %v4348 = vmax.f32 %v4284, 0.0
  %v4349 = vmax.f32 %v4285, 0.0
  %v4350 = vmax.f32 %v4286, 0.0
  %v4351 = vmax.f32 %v4287, 0.0
  %v4352 = vmax.f32 %v4288, 0.0
  %v4353 = vmax.f32 %v4289, 0.0
  %v4354 = vmax.f32 %v4290, 0.0
  %v4355 = vmax.f32 %v4291, 0.0
  %v4356 = vmax.f32 %v4292, 0.0
  %v4357 = vmax.f32 %v4293, 0.0
  %v4358 = vmax.f32 %v4294, 0.0
  %v4359 = vmax.f32 %v4295, 0.0
  %v4360 = vmax.f32 %v4296, 0.0
  %v4361 = vmax.f32 %v4297, 0.0
  %v4362 = vmax.f32 %v4298, 0.0
  %v4363 = vmax.f32 %v4299, 0.0
  %v4364 = vmax.f32 %v4300, 0.0
  %v4365 = vmax.f32 %v4301, 0.0
  %v4366 = vmax.f32 %v4302, 0.0
  %v4367 = vmax.f32 %v4303, 0.0
  %v4368 = vmax.f32 %v4304, 0.0
  %v4369 = vmax.f32 %v4305, 0.0
  %v4370 = vmax.f32 %v4306, 0.0
  %v4371 = vmax.f32 %v4307, 0.0
  %v4372 = vmax.f32 %v4308, 0.0
  %v4373 = vmax.f32 %v4309, 0.0
  %v4374 = vmax.f32 %v4310, 0.0
  %v4375 = vmax.f32 %v4311, 0.0
  %v4376 = vmax.f32 %v4312, 0.0
  %v4377 = vmax.f32 %v4313, 0.0
  %v4378 = vmax.f32 %v4314, 0.0
  %v4379 = vmax.f32 %v4315, 0.0
  %v4380 = vmax.f32 %v4316, 0.0
  %v4381 = vmax.f32 %v4317, 0.0
  %v4382 = vmax.f32 %v4318, 0.0
  %v4383 = vmax.f32 %v4319, 0.0
  %v4384 = vmax.f32 %v4320, 0.0
  %v4385 = vmax.f32 %v4321, 0.0
  %v4386 = vmax.f32 %v4322, 0.0
  %v4387 = vmax.f32 %v4323, 0.0
  %v4388 = vmax.f32 %v4324, 0.0
  %v4389 = vmax.f32 %v4325, 0.0
  %v4390 = vmax.f32 %v4326, 0.0
  %v4391 = vmax.f32 %v4327, 0.0
  %v4392 = vmax.f32 %v4328, 0.0
  %v4393 = vmax.f32 %v4329, 0.0
  %v4394 = vmax.f32 %v4330, 0.0
  %v4395 = vmax.f32 %v4331, 0.0
  %v4396 = vmax.f32 %v4332, 0.0
  %v4397 = vmax.f32 %v4333, 0.0
  %v4398 = vmax.f32 %v4334, 0.0
  %v4399 = vmax.f32 %v4335, 0.0
  %v4400 = vmax.f32 %v4336, 0.0
  %v4401 = vmax.f32 %v4337, 0.0
  %v4402 = vmax.f32 %v4338, 0.0
  %v4403 = vmax.f32 %v4339, 0.0
  %v4404 = vmax.f32 %v4340, 0.0
  %v4405 = vmax.f32 %v4341, 0.0
  %v4406 = vmax.f32 %v4342, 0.0
  %v4407 = vmax.f32 %v4343, 0.0
  %4408 = vst.msk [vmem:[%s406 + $0x1] sm:$0xff] %vm26, %v4344
  %4409 = vst.msk [vmem:[%s406 + $0x9] sm:$0xff] %vm26, %v4345
  %4410 = vst.msk [vmem:[%s406 + $0x19] sm:$0xff] %vm26, %v4346
  %4411 = vst.msk [vmem:[%s406 + $0x21] sm:$0xff] %vm26, %v4347
  %4412 = vst.msk [vmem:[%s406 + $0x31] sm:$0xff] %vm26, %v4348
  %4413 = vst.msk [vmem:[%s406 + $0x39] sm:$0xff] %vm26, %v4349
  %4414 = vst.msk [vmem:[%s406 + $0x49] sm:$0xff] %vm26, %v4350
  %4415 = vst.msk [vmem:[%s406 + $0x51] sm:$0xff] %vm26, %v4351
  %4416 = vst.msk [vmem:[%s406 + $0x61] sm:$0xff] %vm26, %v4352
  %4417 = vst.msk [vmem:[%s406 + $0x69] sm:$0xff] %vm26, %v4353
  %4418 = vst.msk [vmem:[%s406 + $0x79] sm:$0xff] %vm26, %v4354
  %4419 = vst.msk [vmem:[%s406 + $0x81] sm:$0xff] %vm26, %v4355
  %4420 = vst.msk [vmem:[%s406 + $0x91] sm:$0xff] %vm26, %v4356
  %4421 = vst.msk [vmem:[%s406 + $0x99] sm:$0xff] %vm26, %v4357
  %4422 = vst.msk [vmem:[%s406 + $0xa9] sm:$0xff] %vm26, %v4358
  %4423 = vst.msk [vmem:[%s406 + $0xb1] sm:$0xff] %vm26, %v4359
  %4424 = vst.msk [vmem:[%s406 + $0xc1] sm:$0xff] %vm26, %v4360
  %4425 = vst.msk [vmem:[%s406 + $0xc9] sm:$0xff] %vm26, %v4361
  %4426 = vst.msk [vmem:[%s406 + $0xd9] sm:$0xff] %vm26, %v4362
  %4427 = vst.msk [vmem:[%s406 + $0xe1] sm:$0xff] %vm26, %v4363
  %4428 = vst.msk [vmem:[%s406 + $0xf1] sm:$0xff] %vm26, %v4364
  %4429 = vst.msk [vmem:[%s406 + $0xf9] sm:$0xff] %vm26, %v4365
  %4430 = vst.msk [vmem:[%s406 + $0x109] sm:$0xff] %vm26, %v4366
  %4431 = vst.msk [vmem:[%s406 + $0x111] sm:$0xff] %vm26, %v4367
  %4432 = vst.msk [vmem:[%s406 + $0x121] sm:$0xff] %vm26, %v4368
  %4433 = vst.msk [vmem:[%s406 + $0x129] sm:$0xff] %vm26, %v4369
  %4434 = vst.msk [vmem:[%s406 + $0x139] sm:$0xff] %vm26, %v4370
  %4435 = vst.msk [vmem:[%s406 + $0x141] sm:$0xff] %vm26, %v4371
  %4436 = vst.msk [vmem:[%s406 + $0x151] sm:$0xff] %vm26, %v4372
  %4437 = vst.msk [vmem:[%s406 + $0x159] sm:$0xff] %vm26, %v4373
  %4438 = vst.msk [vmem:[%s406 + $0x169] sm:$0xff] %vm26, %v4374
  %4439 = vst.msk [vmem:[%s406 + $0x171] sm:$0xff] %vm26, %v4375
  %4440 = vst.msk [vmem:[%s406 + $0x1b1] sm:$0xff] %vm26, %v4376
  %4441 = vst.msk [vmem:[%s406 + $0x1b9] sm:$0xff] %vm26, %v4377
  %4442 = vst.msk [vmem:[%s406 + $0x1c9] sm:$0xff] %vm26, %v4378
  %4443 = vst.msk [vmem:[%s406 + $0x1d1] sm:$0xff] %vm26, %v4379
  %4444 = vst.msk [vmem:[%s406 + $0x1e1] sm:$0xff] %vm26, %v4380
  %4445 = vst.msk [vmem:[%s406 + $0x1e9] sm:$0xff] %vm26, %v4381
  %4446 = vst.msk [vmem:[%s406 + $0x1f9] sm:$0xff] %vm26, %v4382
  %4447 = vst.msk [vmem:[%s406 + $0x201] sm:$0xff] %vm26, %v4383
  %4448 = vst.msk [vmem:[%s406 + $0x211] sm:$0xff] %vm26, %v4384
  %4449 = vst.msk [vmem:[%s406 + $0x219] sm:$0xff] %vm26, %v4385
  %4450 = vst.msk [vmem:[%s406 + $0x229] sm:$0xff] %vm26, %v4386
  %4451 = vst.msk [vmem:[%s406 + $0x231] sm:$0xff] %vm26, %v4387
  %4452 = vst.msk [vmem:[%s406 + $0x241] sm:$0xff] %vm26, %v4388
  %4453 = vst.msk [vmem:[%s406 + $0x249] sm:$0xff] %vm26, %v4389
  %4454 = vst.msk [vmem:[%s406 + $0x259] sm:$0xff] %vm26, %v4390
  %4455 = vst.msk [vmem:[%s406 + $0x261] sm:$0xff] %vm26, %v4391
  %4456 = vst.msk [vmem:[%s406 + $0x271] sm:$0xff] %vm26, %v4392
  %4457 = vst.msk [vmem:[%s406 + $0x279] sm:$0xff] %vm26, %v4393
  %4458 = vst.msk [vmem:[%s406 + $0x289] sm:$0xff] %vm26, %v4394
  %4459 = vst.msk [vmem:[%s406 + $0x291] sm:$0xff] %vm26, %v4395
  %4460 = vst.msk [vmem:[%s406 + $0x2a1] sm:$0xff] %vm26, %v4396
  %4461 = vst.msk [vmem:[%s406 + $0x2a9] sm:$0xff] %vm26, %v4397
  %4462 = vst.msk [vmem:[%s406 + $0x2b9] sm:$0xff] %vm26, %v4398
  %4463 = vst.msk [vmem:[%s406 + $0x2c1] sm:$0xff] %vm26, %v4399
  %4464 = vst.msk [vmem:[%s406 + $0x2d1] sm:$0xff] %vm26, %v4400
  %4465 = vst.msk [vmem:[%s406 + $0x2d9] sm:$0xff] %vm26, %v4401
  %4466 = vst.msk [vmem:[%s406 + $0x2e9] sm:$0xff] %vm26, %v4402
  %4467 = vst.msk [vmem:[%s406 + $0x2f1] sm:$0xff] %vm26, %v4403
  %4468 = vst.msk [vmem:[%s406 + $0x301] sm:$0xff] %vm26, %v4404
  %4469 = vst.msk [vmem:[%s406 + $0x309] sm:$0xff] %vm26, %v4405
  %4470 = vst.msk [vmem:[%s406 + $0x319] sm:$0xff] %vm26, %v4406
  %4471 = vst.msk [vmem:[%s406 + $0x321] sm:$0xff] %vm26, %v4407
  %v4472 = vld [vmem:[#allocation2] sm:$0xff]
  %v4473 = vld [vmem:[#allocation2 + $0x8] sm:$0xff]
  %v4474 = vld [vmem:[#allocation2 + $0x18] sm:$0xff]
  %v4475 = vld [vmem:[#allocation2 + $0x20] sm:$0xff]
  %v4476 = vld [vmem:[#allocation2 + $0x30] sm:$0xff]
  %v4477 = vld [vmem:[#allocation2 + $0x38] sm:$0xff]
  %v4478 = vld [vmem:[#allocation2 + $0x48] sm:$0xff]
  %v4479 = vld [vmem:[#allocation2 + $0x50] sm:$0xff]
  %v4480 = vld [vmem:[#allocation2 + $0x60] sm:$0xff]
  %v4481 = vld [vmem:[#allocation2 + $0x68] sm:$0xff]
  %v4482 = vld [vmem:[#allocation2 + $0x78] sm:$0xff]
  %v4483 = vld [vmem:[#allocation2 + $0x80] sm:$0xff]
  %v4484 = vld [vmem:[#allocation2 + $0x90] sm:$0xff]
  %v4485 = vld [vmem:[#allocation2 + $0x98] sm:$0xff]
  %v4486 = vld [vmem:[#allocation2 + $0xa8] sm:$0xff]
  %v4487 = vld [vmem:[#allocation2 + $0xb0] sm:$0xff]
  %v4488 = vld [vmem:[#allocation2 + $0xc0] sm:$0xff]
  %v4489 = vld [vmem:[#allocation2 + $0xc8] sm:$0xff]
  %v4490 = vld [vmem:[#allocation2 + $0xd8] sm:$0xff]
  %v4491 = vld [vmem:[#allocation2 + $0xe0] sm:$0xff]
  %v4492 = vld [vmem:[#allocation2 + $0xf0] sm:$0xff]
  %v4493 = vld [vmem:[#allocation2 + $0xf8] sm:$0xff]
  %v4494 = vld [vmem:[#allocation2 + $0x108] sm:$0xff]
  %v4495 = vld [vmem:[#allocation2 + $0x110] sm:$0xff]
  %v4496 = vld [vmem:[#allocation2 + $0x120] sm:$0xff]
  %v4497 = vld [vmem:[#allocation2 + $0x128] sm:$0xff]
  %v4498 = vld [vmem:[#allocation2 + $0x138] sm:$0xff]
  %v4499 = vld [vmem:[#allocation2 + $0x140] sm:$0xff]
  %v4500 = vld [vmem:[#allocation2 + $0x150] sm:$0xff]
  %v4501 = vld [vmem:[#allocation2 + $0x158] sm:$0xff]
  %v4502 = vld [vmem:[#allocation2 + $0x168] sm:$0xff]
  %v4503 = vld [vmem:[#allocation2 + $0x170] sm:$0xff]
  %v4504 = vld [vmem:[#allocation2 + $0x1b0] sm:$0xff]
  %v4505 = vld [vmem:[#allocation2 + $0x1b8] sm:$0xff]
  %v4506 = vld [vmem:[#allocation2 + $0x1c8] sm:$0xff]
  %v4507 = vld [vmem:[#allocation2 + $0x1d0] sm:$0xff]
  %v4508 = vld [vmem:[#allocation2 + $0x1e0] sm:$0xff]
  %v4509 = vld [vmem:[#allocation2 + $0x1e8] sm:$0xff]
  %v4510 = vld [vmem:[#allocation2 + $0x1f8] sm:$0xff]
  %v4511 = vld [vmem:[#allocation2 + $0x200] sm:$0xff]
  %v4512 = vld [vmem:[#allocation2 + $0x210] sm:$0xff]
  %v4513 = vld [vmem:[#allocation2 + $0x218] sm:$0xff]
  %v4514 = vld [vmem:[#allocation2 + $0x228] sm:$0xff]
  %v4515 = vld [vmem:[#allocation2 + $0x230] sm:$0xff]
  %v4516 = vld [vmem:[#allocation2 + $0x240] sm:$0xff]
  %v4517 = vld [vmem:[#allocation2 + $0x248] sm:$0xff]
  %v4518 = vld [vmem:[#allocation2 + $0x258] sm:$0xff]
  %v4519 = vld [vmem:[#allocation2 + $0x260] sm:$0xff]
  %v4520 = vld [vmem:[#allocation2 + $0x270] sm:$0xff]
  %v4521 = vld [vmem:[#allocation2 + $0x278] sm:$0xff]
  %v4522 = vld [vmem:[#allocation2 + $0x288] sm:$0xff]
  %v4523 = vld [vmem:[#allocation2 + $0x290] sm:$0xff]
  %v4524 = vld [vmem:[#allocation2 + $0x2a0] sm:$0xff]
  %v4525 = vld [vmem:[#allocation2 + $0x2a8] sm:$0xff]
  %v4526 = vld [vmem:[#allocation2 + $0x2b8] sm:$0xff]
  %v4527 = vld [vmem:[#allocation2 + $0x2c0] sm:$0xff]
  %v4528 = vld [vmem:[#allocation2 + $0x2d0] sm:$0xff]
  %v4529 = vld [vmem:[#allocation2 + $0x2d8] sm:$0xff]
  %v4530 = vld [vmem:[#allocation2 + $0x2e8] sm:$0xff]
  %v4531 = vld [vmem:[#allocation2 + $0x2f0] sm:$0xff]
  %v4532 = vld [vmem:[#allocation2 + $0x300] sm:$0xff]
  %v4533 = vld [vmem:[#allocation2 + $0x308] sm:$0xff]
  %v4534 = vld [vmem:[#allocation2 + $0x318] sm:$0xff]
  %v4535 = vld [vmem:[#allocation2 + $0x320] sm:$0xff]
  %v4536 = vld [vmem:[#allocation2 + $0x1] sm:$0xff]
  %v4537 = vld [vmem:[#allocation2 + $0x9] sm:$0xff]
  %v4538 = vld [vmem:[#allocation2 + $0x19] sm:$0xff]
  %v4539 = vld [vmem:[#allocation2 + $0x21] sm:$0xff]
  %v4540 = vld [vmem:[#allocation2 + $0x31] sm:$0xff]
  %v4541 = vld [vmem:[#allocation2 + $0x39] sm:$0xff]
  %v4542 = vld [vmem:[#allocation2 + $0x49] sm:$0xff]
  %v4543 = vld [vmem:[#allocation2 + $0x51] sm:$0xff]
  %v4544 = vld [vmem:[#allocation2 + $0x61] sm:$0xff]
  %v4545 = vld [vmem:[#allocation2 + $0x69] sm:$0xff]
  %v4546 = vld [vmem:[#allocation2 + $0x79] sm:$0xff]
  %v4547 = vld [vmem:[#allocation2 + $0x81] sm:$0xff]
  %v4548 = vld [vmem:[#allocation2 + $0x91] sm:$0xff]
  %v4549 = vld [vmem:[#allocation2 + $0x99] sm:$0xff]
  %v4550 = vld [vmem:[#allocation2 + $0xa9] sm:$0xff]
  %v4551 = vld [vmem:[#allocation2 + $0xb1] sm:$0xff]
  %v4552 = vld [vmem:[#allocation2 + $0xc1] sm:$0xff]
  %v4553 = vld [vmem:[#allocation2 + $0xc9] sm:$0xff]
  %v4554 = vld [vmem:[#allocation2 + $0xd9] sm:$0xff]
  %v4555 = vld [vmem:[#allocation2 + $0xe1] sm:$0xff]
  %v4556 = vld [vmem:[#allocation2 + $0xf1] sm:$0xff]
  %v4557 = vld [vmem:[#allocation2 + $0xf9] sm:$0xff]
  %v4558 = vld [vmem:[#allocation2 + $0x109] sm:$0xff]
  %v4559 = vld [vmem:[#allocation2 + $0x111] sm:$0xff]
  %v4560 = vld [vmem:[#allocation2 + $0x121] sm:$0xff]
  %v4561 = vld [vmem:[#allocation2 + $0x129] sm:$0xff]
  %v4562 = vld [vmem:[#allocation2 + $0x139] sm:$0xff]
  %v4563 = vld [vmem:[#allocation2 + $0x141] sm:$0xff]
  %v4564 = vld [vmem:[#allocation2 + $0x151] sm:$0xff]
  %v4565 = vld [vmem:[#allocation2 + $0x159] sm:$0xff]
  %v4566 = vld [vmem:[#allocation2 + $0x169] sm:$0xff]
  %v4567 = vld [vmem:[#allocation2 + $0x171] sm:$0xff]
  %v4568 = vld [vmem:[#allocation2 + $0x1b1] sm:$0xff]
  %v4569 = vld [vmem:[#allocation2 + $0x1b9] sm:$0xff]
  %v4570 = vld [vmem:[#allocation2 + $0x1c9] sm:$0xff]
  %v4571 = vld [vmem:[#allocation2 + $0x1d1] sm:$0xff]
  %v4572 = vld [vmem:[#allocation2 + $0x1e1] sm:$0xff]
  %v4573 = vld [vmem:[#allocation2 + $0x1e9] sm:$0xff]
  %v4574 = vld [vmem:[#allocation2 + $0x1f9] sm:$0xff]
  %v4575 = vld [vmem:[#allocation2 + $0x201] sm:$0xff]
  %v4576 = vld [vmem:[#allocation2 + $0x211] sm:$0xff]
  %v4577 = vld [vmem:[#allocation2 + $0x219] sm:$0xff]
  %v4578 = vld [vmem:[#allocation2 + $0x229] sm:$0xff]
  %v4579 = vld [vmem:[#allocation2 + $0x231] sm:$0xff]
  %v4580 = vld [vmem:[#allocation2 + $0x241] sm:$0xff]
  %v4581 = vld [vmem:[#allocation2 + $0x249] sm:$0xff]
  %v4582 = vld [vmem:[#allocation2 + $0x259] sm:$0xff]
  %v4583 = vld [vmem:[#allocation2 + $0x261] sm:$0xff]
  %v4584 = vld [vmem:[#allocation2 + $0x271] sm:$0xff]
  %v4585 = vld [vmem:[#allocation2 + $0x279] sm:$0xff]
  %v4586 = vld [vmem:[#allocation2 + $0x289] sm:$0xff]
  %v4587 = vld [vmem:[#allocation2 + $0x291] sm:$0xff]
  %v4588 = vld [vmem:[#allocation2 + $0x2a1] sm:$0xff]
  %v4589 = vld [vmem:[#allocation2 + $0x2a9] sm:$0xff]
  %v4590 = vld [vmem:[#allocation2 + $0x2b9] sm:$0xff]
  %v4591 = vld [vmem:[#allocation2 + $0x2c1] sm:$0xff]
  %v4592 = vld [vmem:[#allocation2 + $0x2d1] sm:$0xff]
  %v4593 = vld [vmem:[#allocation2 + $0x2d9] sm:$0xff]
  %v4594 = vld [vmem:[#allocation2 + $0x2e9] sm:$0xff]
  %v4595 = vld [vmem:[#allocation2 + $0x2f1] sm:$0xff]
  %v4596 = vld [vmem:[#allocation2 + $0x301] sm:$0xff]
  %v4597 = vld [vmem:[#allocation2 + $0x309] sm:$0xff]
  %v4598 = vld [vmem:[#allocation2 + $0x319] sm:$0xff]
  %v4599 = vld [vmem:[#allocation2 + $0x321] sm:$0xff]
  %v4600 = vld [vmem:[#allocation2 + $0x2] sm:$0xff]
  %v4601 = vld [vmem:[#allocation2 + $0xa] sm:$0xff]
  %v4602 = vld [vmem:[#allocation2 + $0x1a] sm:$0xff]
  %v4603 = vld [vmem:[#allocation2 + $0x22] sm:$0xff]
  %v4604 = vld [vmem:[#allocation2 + $0x32] sm:$0xff]
  %v4605 = vld [vmem:[#allocation2 + $0x3a] sm:$0xff]
  %v4606 = vld [vmem:[#allocation2 + $0x4a] sm:$0xff]
  %v4607 = vld [vmem:[#allocation2 + $0x52] sm:$0xff]
  %v4608 = vld [vmem:[#allocation2 + $0x62] sm:$0xff]
  %v4609 = vld [vmem:[#allocation2 + $0x6a] sm:$0xff]
  %v4610 = vld [vmem:[#allocation2 + $0x7a] sm:$0xff]
  %v4611 = vld [vmem:[#allocation2 + $0x82] sm:$0xff]
  %v4612 = vld [vmem:[#allocation2 + $0x92] sm:$0xff]
  %v4613 = vld [vmem:[#allocation2 + $0x9a] sm:$0xff]
  %v4614 = vld [vmem:[#allocation2 + $0xaa] sm:$0xff]
  %v4615 = vld [vmem:[#allocation2 + $0xb2] sm:$0xff]
  %v4616 = vld [vmem:[#allocation2 + $0xc2] sm:$0xff]
  %v4617 = vld [vmem:[#allocation2 + $0xca] sm:$0xff]
  %v4618 = vld [vmem:[#allocation2 + $0xda] sm:$0xff]
  %v4619 = vld [vmem:[#allocation2 + $0xe2] sm:$0xff]
  %v4620 = vld [vmem:[#allocation2 + $0xf2] sm:$0xff]
  %v4621 = vld [vmem:[#allocation2 + $0xfa] sm:$0xff]
  %v4622 = vld [vmem:[#allocation2 + $0x10a] sm:$0xff]
  %v4623 = vld [vmem:[#allocation2 + $0x112] sm:$0xff]
  %v4624 = vld [vmem:[#allocation2 + $0x122] sm:$0xff]
  %v4625 = vld [vmem:[#allocation2 + $0x12a] sm:$0xff]
  %v4626 = vld [vmem:[#allocation2 + $0x13a] sm:$0xff]
  %v4627 = vld [vmem:[#allocation2 + $0x142] sm:$0xff]
  %v4628 = vld [vmem:[#allocation2 + $0x152] sm:$0xff]
  %v4629 = vld [vmem:[#allocation2 + $0x15a] sm:$0xff]
  %v4630 = vld [vmem:[#allocation2 + $0x16a] sm:$0xff]
  %v4631 = vld [vmem:[#allocation2 + $0x172] sm:$0xff]
  %v4632 = vld [vmem:[#allocation2 + $0x1b2] sm:$0xff]
  %v4633 = vld [vmem:[#allocation2 + $0x1ba] sm:$0xff]
  %v4634 = vld [vmem:[#allocation2 + $0x1ca] sm:$0xff]
  %v4635 = vld [vmem:[#allocation2 + $0x1d2] sm:$0xff]
  %v4636 = vld [vmem:[#allocation2 + $0x1e2] sm:$0xff]
  %v4637 = vld [vmem:[#allocation2 + $0x1ea] sm:$0xff]
  %v4638 = vld [vmem:[#allocation2 + $0x1fa] sm:$0xff]
  %v4639 = vld [vmem:[#allocation2 + $0x202] sm:$0xff]
  %v4640 = vld [vmem:[#allocation2 + $0x212] sm:$0xff]
  %v4641 = vld [vmem:[#allocation2 + $0x21a] sm:$0xff]
  %v4642 = vld [vmem:[#allocation2 + $0x22a] sm:$0xff]
  %v4643 = vld [vmem:[#allocation2 + $0x232] sm:$0xff]
  %v4644 = vld [vmem:[#allocation2 + $0x242] sm:$0xff]
  %v4645 = vld [vmem:[#allocation2 + $0x24a] sm:$0xff]
  %v4646 = vld [vmem:[#allocation2 + $0x25a] sm:$0xff]
  %v4647 = vld [vmem:[#allocation2 + $0x262] sm:$0xff]
  %v4648 = vld [vmem:[#allocation2 + $0x272] sm:$0xff]
  %v4649 = vld [vmem:[#allocation2 + $0x27a] sm:$0xff]
  %v4650 = vld [vmem:[#allocation2 + $0x28a] sm:$0xff]
  %v4651 = vld [vmem:[#allocation2 + $0x292] sm:$0xff]
  %v4652 = vld [vmem:[#allocation2 + $0x2a2] sm:$0xff]
  %v4653 = vld [vmem:[#allocation2 + $0x2aa] sm:$0xff]
  %v4654 = vld [vmem:[#allocation2 + $0x2ba] sm:$0xff]
  %v4655 = vld [vmem:[#allocation2 + $0x2c2] sm:$0xff]
  %v4656 = vld [vmem:[#allocation2 + $0x2d2] sm:$0xff]
  %v4657 = vld [vmem:[#allocation2 + $0x2da] sm:$0xff]
  %v4658 = vld [vmem:[#allocation2 + $0x2ea] sm:$0xff]
  %v4659 = vld [vmem:[#allocation2 + $0x2f2] sm:$0xff]
  %v4660 = vld [vmem:[#allocation2 + $0x302] sm:$0xff]
  %v4661 = vld [vmem:[#allocation2 + $0x30a] sm:$0xff]
  %v4662 = vld [vmem:[#allocation2 + $0x31a] sm:$0xff]
  %v4663 = vld [vmem:[#allocation2 + $0x322] sm:$0xff]
  %v4664 = vld [vmem:[%s406] sm:$0xff]
  %v4665 = vld [vmem:[%s406 + $0x8] sm:$0xff]
  %v4666 = vld [vmem:[%s406 + $0x18] sm:$0xff]
  %v4667 = vld [vmem:[%s406 + $0x20] sm:$0xff]
  %v4668 = vld [vmem:[%s406 + $0x30] sm:$0xff]
  %v4669 = vld [vmem:[%s406 + $0x38] sm:$0xff]
  %v4670 = vld [vmem:[%s406 + $0x48] sm:$0xff]
  %v4671 = vld [vmem:[%s406 + $0x50] sm:$0xff]
  %v4672 = vld [vmem:[%s406 + $0x60] sm:$0xff]
  %v4673 = vld [vmem:[%s406 + $0x68] sm:$0xff]
  %v4674 = vld [vmem:[%s406 + $0x78] sm:$0xff]
  %v4675 = vld [vmem:[%s406 + $0x80] sm:$0xff]
  %v4676 = vld [vmem:[%s406 + $0x90] sm:$0xff]
  %v4677 = vld [vmem:[%s406 + $0x98] sm:$0xff]
  %v4678 = vld [vmem:[%s406 + $0xa8] sm:$0xff]
  %v4679 = vld [vmem:[%s406 + $0xb0] sm:$0xff]
  %v4680 = vld [vmem:[%s406 + $0xc0] sm:$0xff]
  %v4681 = vld [vmem:[%s406 + $0xc8] sm:$0xff]
  %v4682 = vld [vmem:[%s406 + $0xd8] sm:$0xff]
  %v4683 = vld [vmem:[%s406 + $0xe0] sm:$0xff]
  %v4684 = vld [vmem:[%s406 + $0xf0] sm:$0xff]
  %v4685 = vld [vmem:[%s406 + $0xf8] sm:$0xff]
  %v4686 = vld [vmem:[%s406 + $0x108] sm:$0xff]
  %v4687 = vld [vmem:[%s406 + $0x110] sm:$0xff]
  %v4688 = vld [vmem:[%s406 + $0x120] sm:$0xff]
  %v4689 = vld [vmem:[%s406 + $0x128] sm:$0xff]
  %v4690 = vld [vmem:[%s406 + $0x138] sm:$0xff]
  %v4691 = vld [vmem:[%s406 + $0x140] sm:$0xff]
  %v4692 = vld [vmem:[%s406 + $0x150] sm:$0xff]
  %v4693 = vld [vmem:[%s406 + $0x158] sm:$0xff]
  %v4694 = vld [vmem:[%s406 + $0x168] sm:$0xff]
  %v4695 = vld [vmem:[%s406 + $0x170] sm:$0xff]
  %v4696 = vld [vmem:[%s406 + $0x1b0] sm:$0xff]
  %v4697 = vld [vmem:[%s406 + $0x1b8] sm:$0xff]
  %v4698 = vld [vmem:[%s406 + $0x1c8] sm:$0xff]
  %v4699 = vld [vmem:[%s406 + $0x1d0] sm:$0xff]
  %v4700 = vld [vmem:[%s406 + $0x1e0] sm:$0xff]
  %v4701 = vld [vmem:[%s406 + $0x1e8] sm:$0xff]
  %v4702 = vld [vmem:[%s406 + $0x1f8] sm:$0xff]
  %v4703 = vld [vmem:[%s406 + $0x200] sm:$0xff]
  %v4704 = vld [vmem:[%s406 + $0x210] sm:$0xff]
  %v4705 = vld [vmem:[%s406 + $0x218] sm:$0xff]
  %v4706 = vld [vmem:[%s406 + $0x228] sm:$0xff]
  %v4707 = vld [vmem:[%s406 + $0x230] sm:$0xff]
  %v4708 = vld [vmem:[%s406 + $0x240] sm:$0xff]
  %v4709 = vld [vmem:[%s406 + $0x248] sm:$0xff]
  %v4710 = vld [vmem:[%s406 + $0x258] sm:$0xff]
  %v4711 = vld [vmem:[%s406 + $0x260] sm:$0xff]
  %v4712 = vld [vmem:[%s406 + $0x270] sm:$0xff]
  %v4713 = vld [vmem:[%s406 + $0x278] sm:$0xff]
  %v4714 = vld [vmem:[%s406 + $0x288] sm:$0xff]
  %v4715 = vld [vmem:[%s406 + $0x290] sm:$0xff]
  %v4716 = vld [vmem:[%s406 + $0x2a0] sm:$0xff]
  %v4717 = vld [vmem:[%s406 + $0x2a8] sm:$0xff]
  %v4718 = vld [vmem:[%s406 + $0x2b8] sm:$0xff]
  %v4719 = vld [vmem:[%s406 + $0x2c0] sm:$0xff]
  %v4720 = vld [vmem:[%s406 + $0x2d0] sm:$0xff]
  %v4721 = vld [vmem:[%s406 + $0x2d8] sm:$0xff]
  %v4722 = vld [vmem:[%s406 + $0x2e8] sm:$0xff]
  %v4723 = vld [vmem:[%s406 + $0x2f0] sm:$0xff]
  %v4724 = vld [vmem:[%s406 + $0x300] sm:$0xff]
  %v4725 = vld [vmem:[%s406 + $0x308] sm:$0xff]
  %v4726 = vld [vmem:[%s406 + $0x318] sm:$0xff]
  %v4727 = vld [vmem:[%s406 + $0x320] sm:$0xff]
  %v4728 = vld [vmem:[%s406 + $0x1] sm:$0xff]
  %v4729 = vld [vmem:[%s406 + $0x9] sm:$0xff]
  %v4730 = vld [vmem:[%s406 + $0x19] sm:$0xff]
  %v4731 = vld [vmem:[%s406 + $0x21] sm:$0xff]
  %v4732 = vld [vmem:[%s406 + $0x31] sm:$0xff]
  %v4733 = vld [vmem:[%s406 + $0x39] sm:$0xff]
  %v4734 = vld [vmem:[%s406 + $0x49] sm:$0xff]
  %v4735 = vld [vmem:[%s406 + $0x51] sm:$0xff]
  %v4736 = vld [vmem:[%s406 + $0x61] sm:$0xff]
  %v4737 = vld [vmem:[%s406 + $0x69] sm:$0xff]
  %v4738 = vld [vmem:[%s406 + $0x79] sm:$0xff]
  %v4739 = vld [vmem:[%s406 + $0x81] sm:$0xff]
  %v4740 = vld [vmem:[%s406 + $0x91] sm:$0xff]
  %v4741 = vld [vmem:[%s406 + $0x99] sm:$0xff]
  %v4742 = vld [vmem:[%s406 + $0xa9] sm:$0xff]
  %v4743 = vld [vmem:[%s406 + $0xb1] sm:$0xff]
  %v4744 = vld [vmem:[%s406 + $0xc1] sm:$0xff]
  %v4745 = vld [vmem:[%s406 + $0xc9] sm:$0xff]
  %v4746 = vld [vmem:[%s406 + $0xd9] sm:$0xff]
  %v4747 = vld [vmem:[%s406 + $0xe1] sm:$0xff]
  %v4748 = vld [vmem:[%s406 + $0xf1] sm:$0xff]
  %v4749 = vld [vmem:[%s406 + $0xf9] sm:$0xff]
  %v4750 = vld [vmem:[%s406 + $0x109] sm:$0xff]
  %v4751 = vld [vmem:[%s406 + $0x111] sm:$0xff]
  %v4752 = vld [vmem:[%s406 + $0x121] sm:$0xff]
  %v4753 = vld [vmem:[%s406 + $0x129] sm:$0xff]
  %v4754 = vld [vmem:[%s406 + $0x139] sm:$0xff]
  %v4755 = vld [vmem:[%s406 + $0x141] sm:$0xff]
  %v4756 = vld [vmem:[%s406 + $0x151] sm:$0xff]
  %v4757 = vld [vmem:[%s406 + $0x159] sm:$0xff]
  %v4758 = vld [vmem:[%s406 + $0x169] sm:$0xff]
  %v4759 = vld [vmem:[%s406 + $0x171] sm:$0xff]
  %v4760 = vld [vmem:[%s406 + $0x1b1] sm:$0xff]
  %v4761 = vld [vmem:[%s406 + $0x1b9] sm:$0xff]
  %v4762 = vld [vmem:[%s406 + $0x1c9] sm:$0xff]
  %v4763 = vld [vmem:[%s406 + $0x1d1] sm:$0xff]
  %v4764 = vld [vmem:[%s406 + $0x1e1] sm:$0xff]
  %v4765 = vld [vmem:[%s406 + $0x1e9] sm:$0xff]
  %v4766 = vld [vmem:[%s406 + $0x1f9] sm:$0xff]
  %v4767 = vld [vmem:[%s406 + $0x201] sm:$0xff]
  %v4768 = vld [vmem:[%s406 + $0x211] sm:$0xff]
  %v4769 = vld [vmem:[%s406 + $0x219] sm:$0xff]
  %v4770 = vld [vmem:[%s406 + $0x229] sm:$0xff]
  %v4771 = vld [vmem:[%s406 + $0x231] sm:$0xff]
  %v4772 = vld [vmem:[%s406 + $0x241] sm:$0xff]
  %v4773 = vld [vmem:[%s406 + $0x249] sm:$0xff]
  %v4774 = vld [vmem:[%s406 + $0x259] sm:$0xff]
  %v4775 = vld [vmem:[%s406 + $0x261] sm:$0xff]
  %v4776 = vld [vmem:[%s406 + $0x271] sm:$0xff]
  %v4777 = vld [vmem:[%s406 + $0x279] sm:$0xff]
  %v4778 = vld [vmem:[%s406 + $0x289] sm:$0xff]
  %v4779 = vld [vmem:[%s406 + $0x291] sm:$0xff]
  %v4780 = vld [vmem:[%s406 + $0x2a1] sm:$0xff]
  %v4781 = vld [vmem:[%s406 + $0x2a9] sm:$0xff]
  %v4782 = vld [vmem:[%s406 + $0x2b9] sm:$0xff]
  %v4783 = vld [vmem:[%s406 + $0x2c1] sm:$0xff]
  %v4784 = vld [vmem:[%s406 + $0x2d1] sm:$0xff]
  %v4785 = vld [vmem:[%s406 + $0x2d9] sm:$0xff]
  %v4786 = vld [vmem:[%s406 + $0x2e9] sm:$0xff]
  %v4787 = vld [vmem:[%s406 + $0x2f1] sm:$0xff]
  %v4788 = vld [vmem:[%s406 + $0x301] sm:$0xff]
  %v4789 = vld [vmem:[%s406 + $0x309] sm:$0xff]
  %v4790 = vld [vmem:[%s406 + $0x319] sm:$0xff]
  %v4791 = vld [vmem:[%s406 + $0x321] sm:$0xff]
  %v4792 = vld [vmem:[%s406 + $0x2] sm:$0xff]
  %v4793 = vld [vmem:[%s406 + $0xa] sm:$0xff]
  %v4794 = vld [vmem:[%s406 + $0x1a] sm:$0xff]
  %v4795 = vld [vmem:[%s406 + $0x22] sm:$0xff]
  %v4796 = vld [vmem:[%s406 + $0x32] sm:$0xff]
  %v4797 = vld [vmem:[%s406 + $0x3a] sm:$0xff]
  %v4798 = vld [vmem:[%s406 + $0x4a] sm:$0xff]
  %v4799 = vld [vmem:[%s406 + $0x52] sm:$0xff]
  %v4800 = vld [vmem:[%s406 + $0x62] sm:$0xff]
  %v4801 = vld [vmem:[%s406 + $0x6a] sm:$0xff]
  %v4802 = vld [vmem:[%s406 + $0x7a] sm:$0xff]
  %v4803 = vld [vmem:[%s406 + $0x82] sm:$0xff]
  %v4804 = vld [vmem:[%s406 + $0x92] sm:$0xff]
  %v4805 = vld [vmem:[%s406 + $0x9a] sm:$0xff]
  %v4806 = vld [vmem:[%s406 + $0xaa] sm:$0xff]
  %v4807 = vld [vmem:[%s406 + $0xb2] sm:$0xff]
  %v4808 = vld [vmem:[%s406 + $0xc2] sm:$0xff]
  %v4809 = vld [vmem:[%s406 + $0xca] sm:$0xff]
  %v4810 = vld [vmem:[%s406 + $0xda] sm:$0xff]
  %v4811 = vld [vmem:[%s406 + $0xe2] sm:$0xff]
  %v4812 = vld [vmem:[%s406 + $0xf2] sm:$0xff]
  %v4813 = vld [vmem:[%s406 + $0xfa] sm:$0xff]
  %v4814 = vld [vmem:[%s406 + $0x10a] sm:$0xff]
  %v4815 = vld [vmem:[%s406 + $0x112] sm:$0xff]
  %v4816 = vld [vmem:[%s406 + $0x122] sm:$0xff]
  %v4817 = vld [vmem:[%s406 + $0x12a] sm:$0xff]
  %v4818 = vld [vmem:[%s406 + $0x13a] sm:$0xff]
  %v4819 = vld [vmem:[%s406 + $0x142] sm:$0xff]
  %v4820 = vld [vmem:[%s406 + $0x152] sm:$0xff]
  %v4821 = vld [vmem:[%s406 + $0x15a] sm:$0xff]
  %v4822 = vld [vmem:[%s406 + $0x16a] sm:$0xff]
  %v4823 = vld [vmem:[%s406 + $0x172] sm:$0xff]
  %v4824 = vld [vmem:[%s406 + $0x1b2] sm:$0xff]
  %v4825 = vld [vmem:[%s406 + $0x1ba] sm:$0xff]
  %v4826 = vld [vmem:[%s406 + $0x1ca] sm:$0xff]
  %v4827 = vld [vmem:[%s406 + $0x1d2] sm:$0xff]
  %v4828 = vld [vmem:[%s406 + $0x1e2] sm:$0xff]
  %v4829 = vld [vmem:[%s406 + $0x1ea] sm:$0xff]
  %v4830 = vld [vmem:[%s406 + $0x1fa] sm:$0xff]
  %v4831 = vld [vmem:[%s406 + $0x202] sm:$0xff]
  %v4832 = vld [vmem:[%s406 + $0x212] sm:$0xff]
  %v4833 = vld [vmem:[%s406 + $0x21a] sm:$0xff]
  %v4834 = vld [vmem:[%s406 + $0x22a] sm:$0xff]
  %v4835 = vld [vmem:[%s406 + $0x232] sm:$0xff]
  %v4836 = vld [vmem:[%s406 + $0x242] sm:$0xff]
  %v4837 = vld [vmem:[%s406 + $0x24a] sm:$0xff]
  %v4838 = vld [vmem:[%s406 + $0x25a] sm:$0xff]
  %v4839 = vld [vmem:[%s406 + $0x262] sm:$0xff]
  %v4840 = vld [vmem:[%s406 + $0x272] sm:$0xff]
  %v4841 = vld [vmem:[%s406 + $0x27a] sm:$0xff]
  %v4842 = vld [vmem:[%s406 + $0x28a] sm:$0xff]
  %v4843 = vld [vmem:[%s406 + $0x292] sm:$0xff]
  %v4844 = vld [vmem:[%s406 + $0x2a2] sm:$0xff]
  %v4845 = vld [vmem:[%s406 + $0x2aa] sm:$0xff]
  %v4846 = vld [vmem:[%s406 + $0x2ba] sm:$0xff]
  %v4847 = vld [vmem:[%s406 + $0x2c2] sm:$0xff]
  %v4848 = vld [vmem:[%s406 + $0x2d2] sm:$0xff]
  %v4849 = vld [vmem:[%s406 + $0x2da] sm:$0xff]
  %v4850 = vld [vmem:[%s406 + $0x2ea] sm:$0xff]
  %v4851 = vld [vmem:[%s406 + $0x2f2] sm:$0xff]
  %v4852 = vld [vmem:[%s406 + $0x302] sm:$0xff]
  %v4853 = vld [vmem:[%s406 + $0x30a] sm:$0xff]
  %v4854 = vld [vmem:[%s406 + $0x31a] sm:$0xff]
  %v4855 = vld [vmem:[%s406 + $0x322] sm:$0xff]
  %v4856 = vld [vmem:[%s855] sm:$0xff]
  %v4857 = vld [vmem:[%s855 + $0x8] sm:$0xff]
  %v4858 = vld [vmem:[%s855 + $0x18] sm:$0xff]
  %v4859 = vld [vmem:[%s855 + $0x20] sm:$0xff]
  %v4860 = vld [vmem:[%s855 + $0x30] sm:$0xff]
  %v4861 = vld [vmem:[%s855 + $0x38] sm:$0xff]
  %v4862 = vld [vmem:[%s855 + $0x48] sm:$0xff]
  %v4863 = vld [vmem:[%s855 + $0x50] sm:$0xff]
  %v4864 = vld [vmem:[%s855 + $0x60] sm:$0xff]
  %v4865 = vld [vmem:[%s855 + $0x68] sm:$0xff]
  %v4866 = vld [vmem:[%s855 + $0x78] sm:$0xff]
  %v4867 = vld [vmem:[%s855 + $0x80] sm:$0xff]
  %v4868 = vld [vmem:[%s855 + $0x90] sm:$0xff]
  %v4869 = vld [vmem:[%s855 + $0x98] sm:$0xff]
  %v4870 = vld [vmem:[%s855 + $0xa8] sm:$0xff]
  %v4871 = vld [vmem:[%s855 + $0xb0] sm:$0xff]
  %v4872 = vld [vmem:[%s855 + $0xc0] sm:$0xff]
  %v4873 = vld [vmem:[%s855 + $0xc8] sm:$0xff]
  %v4874 = vld [vmem:[%s855 + $0xd8] sm:$0xff]
  %v4875 = vld [vmem:[%s855 + $0xe0] sm:$0xff]
  %v4876 = vld [vmem:[%s855 + $0xf0] sm:$0xff]
  %v4877 = vld [vmem:[%s855 + $0xf8] sm:$0xff]
  %v4878 = vld [vmem:[%s855 + $0x108] sm:$0xff]
  %v4879 = vld [vmem:[%s855 + $0x110] sm:$0xff]
  %v4880 = vld [vmem:[%s855 + $0x120] sm:$0xff]
  %v4881 = vld [vmem:[%s855 + $0x128] sm:$0xff]
  %v4882 = vld [vmem:[%s855 + $0x138] sm:$0xff]
  %v4883 = vld [vmem:[%s855 + $0x140] sm:$0xff]
  %v4884 = vld [vmem:[%s855 + $0x150] sm:$0xff]
  %v4885 = vld [vmem:[%s855 + $0x158] sm:$0xff]
  %v4886 = vld [vmem:[%s855 + $0x168] sm:$0xff]
  %v4887 = vld [vmem:[%s855 + $0x170] sm:$0xff]
  %v4888 = vld [vmem:[%s855 + $0x1b0] sm:$0xff]
  %v4889 = vld [vmem:[%s855 + $0x1b8] sm:$0xff]
  %v4890 = vld [vmem:[%s855 + $0x1c8] sm:$0xff]
  %v4891 = vld [vmem:[%s855 + $0x1d0] sm:$0xff]
  %v4892 = vld [vmem:[%s855 + $0x1e0] sm:$0xff]
  %v4893 = vld [vmem:[%s855 + $0x1e8] sm:$0xff]
  %v4894 = vld [vmem:[%s855 + $0x1f8] sm:$0xff]
  %v4895 = vld [vmem:[%s855 + $0x200] sm:$0xff]
  %v4896 = vld [vmem:[%s855 + $0x210] sm:$0xff]
  %v4897 = vld [vmem:[%s855 + $0x218] sm:$0xff]
  %v4898 = vld [vmem:[%s855 + $0x228] sm:$0xff]
  %v4899 = vld [vmem:[%s855 + $0x230] sm:$0xff]
  %v4900 = vld [vmem:[%s855 + $0x240] sm:$0xff]
  %v4901 = vld [vmem:[%s855 + $0x248] sm:$0xff]
  %v4902 = vld [vmem:[%s855 + $0x258] sm:$0xff]
  %v4903 = vld [vmem:[%s855 + $0x260] sm:$0xff]
  %v4904 = vld [vmem:[%s855 + $0x270] sm:$0xff]
  %v4905 = vld [vmem:[%s855 + $0x278] sm:$0xff]
  %v4906 = vld [vmem:[%s855 + $0x288] sm:$0xff]
  %v4907 = vld [vmem:[%s855 + $0x290] sm:$0xff]
  %v4908 = vld [vmem:[%s855 + $0x2a0] sm:$0xff]
  %v4909 = vld [vmem:[%s855 + $0x2a8] sm:$0xff]
  %v4910 = vld [vmem:[%s855 + $0x2b8] sm:$0xff]
  %v4911 = vld [vmem:[%s855 + $0x2c0] sm:$0xff]
  %v4912 = vld [vmem:[%s855 + $0x2d0] sm:$0xff]
  %v4913 = vld [vmem:[%s855 + $0x2d8] sm:$0xff]
  %v4914 = vld [vmem:[%s855 + $0x2e8] sm:$0xff]
  %v4915 = vld [vmem:[%s855 + $0x2f0] sm:$0xff]
  %v4916 = vld [vmem:[%s855 + $0x300] sm:$0xff]
  %v4917 = vld [vmem:[%s855 + $0x308] sm:$0xff]
  %v4918 = vld [vmem:[%s855 + $0x318] sm:$0xff]
  %v4919 = vld [vmem:[%s855 + $0x320] sm:$0xff]
  %v4920 = vld [vmem:[%s855 + $0x1] sm:$0xff]
  %v4921 = vld [vmem:[%s855 + $0x9] sm:$0xff]
  %v4922 = vld [vmem:[%s855 + $0x19] sm:$0xff]
  %v4923 = vld [vmem:[%s855 + $0x21] sm:$0xff]
  %v4924 = vld [vmem:[%s855 + $0x31] sm:$0xff]
  %v4925 = vld [vmem:[%s855 + $0x39] sm:$0xff]
  %v4926 = vld [vmem:[%s855 + $0x49] sm:$0xff]
  %v4927 = vld [vmem:[%s855 + $0x51] sm:$0xff]
  %v4928 = vld [vmem:[%s855 + $0x61] sm:$0xff]
  %v4929 = vld [vmem:[%s855 + $0x69] sm:$0xff]
  %v4930 = vld [vmem:[%s855 + $0x79] sm:$0xff]
  %v4931 = vld [vmem:[%s855 + $0x81] sm:$0xff]
  %v4932 = vld [vmem:[%s855 + $0x91] sm:$0xff]
  %v4933 = vld [vmem:[%s855 + $0x99] sm:$0xff]
  %v4934 = vld [vmem:[%s855 + $0xa9] sm:$0xff]
  %v4935 = vld [vmem:[%s855 + $0xb1] sm:$0xff]
  %v4936 = vld [vmem:[%s855 + $0xc1] sm:$0xff]
  %v4937 = vld [vmem:[%s855 + $0xc9] sm:$0xff]
  %v4938 = vld [vmem:[%s855 + $0xd9] sm:$0xff]
  %v4939 = vld [vmem:[%s855 + $0xe1] sm:$0xff]
  %v4940 = vld [vmem:[%s855 + $0xf1] sm:$0xff]
  %v4941 = vld [vmem:[%s855 + $0xf9] sm:$0xff]
  %v4942 = vld [vmem:[%s855 + $0x109] sm:$0xff]
  %v4943 = vld [vmem:[%s855 + $0x111] sm:$0xff]
  %v4944 = vld [vmem:[%s855 + $0x121] sm:$0xff]
  %v4945 = vld [vmem:[%s855 + $0x129] sm:$0xff]
  %v4946 = vld [vmem:[%s855 + $0x139] sm:$0xff]
  %v4947 = vld [vmem:[%s855 + $0x141] sm:$0xff]
  %v4948 = vld [vmem:[%s855 + $0x151] sm:$0xff]
  %v4949 = vld [vmem:[%s855 + $0x159] sm:$0xff]
  %v4950 = vld [vmem:[%s855 + $0x169] sm:$0xff]
  %v4951 = vld [vmem:[%s855 + $0x171] sm:$0xff]
  %v4952 = vld [vmem:[%s855 + $0x1b1] sm:$0xff]
  %v4953 = vld [vmem:[%s855 + $0x1b9] sm:$0xff]
  %v4954 = vld [vmem:[%s855 + $0x1c9] sm:$0xff]
  %v4955 = vld [vmem:[%s855 + $0x1d1] sm:$0xff]
  %v4956 = vld [vmem:[%s855 + $0x1e1] sm:$0xff]
  %v4957 = vld [vmem:[%s855 + $0x1e9] sm:$0xff]
  %v4958 = vld [vmem:[%s855 + $0x1f9] sm:$0xff]
  %v4959 = vld [vmem:[%s855 + $0x201] sm:$0xff]
  %v4960 = vld [vmem:[%s855 + $0x211] sm:$0xff]
  %v4961 = vld [vmem:[%s855 + $0x219] sm:$0xff]
  %v4962 = vld [vmem:[%s855 + $0x229] sm:$0xff]
  %v4963 = vld [vmem:[%s855 + $0x231] sm:$0xff]
  %v4964 = vld [vmem:[%s855 + $0x241] sm:$0xff]
  %v4965 = vld [vmem:[%s855 + $0x249] sm:$0xff]
  %v4966 = vld [vmem:[%s855 + $0x259] sm:$0xff]
  %v4967 = vld [vmem:[%s855 + $0x261] sm:$0xff]
  %v4968 = vld [vmem:[%s855 + $0x271] sm:$0xff]
  %v4969 = vld [vmem:[%s855 + $0x279] sm:$0xff]
  %v4970 = vld [vmem:[%s855 + $0x289] sm:$0xff]
  %v4971 = vld [vmem:[%s855 + $0x291] sm:$0xff]
  %v4972 = vld [vmem:[%s855 + $0x2a1] sm:$0xff]
  %v4973 = vld [vmem:[%s855 + $0x2a9] sm:$0xff]
  %v4974 = vld [vmem:[%s855 + $0x2b9] sm:$0xff]
  %v4975 = vld [vmem:[%s855 + $0x2c1] sm:$0xff]
  %v4976 = vld [vmem:[%s855 + $0x2d1] sm:$0xff]
  %v4977 = vld [vmem:[%s855 + $0x2d9] sm:$0xff]
  %v4978 = vld [vmem:[%s855 + $0x2e9] sm:$0xff]
  %v4979 = vld [vmem:[%s855 + $0x2f1] sm:$0xff]
  %v4980 = vld [vmem:[%s855 + $0x301] sm:$0xff]
  %v4981 = vld [vmem:[%s855 + $0x309] sm:$0xff]
  %v4982 = vld [vmem:[%s855 + $0x319] sm:$0xff]
  %v4983 = vld [vmem:[%s855 + $0x321] sm:$0xff]
  %v4984 = vld [vmem:[%s855 + $0x2] sm:$0xff]
  %v4985 = vld [vmem:[%s855 + $0xa] sm:$0xff]
  %v4986 = vld [vmem:[%s855 + $0x1a] sm:$0xff]
  %v4987 = vld [vmem:[%s855 + $0x22] sm:$0xff]
  %v4988 = vld [vmem:[%s855 + $0x32] sm:$0xff]
  %v4989 = vld [vmem:[%s855 + $0x3a] sm:$0xff]
  %v4990 = vld [vmem:[%s855 + $0x4a] sm:$0xff]
  %v4991 = vld [vmem:[%s855 + $0x52] sm:$0xff]
  %v4992 = vld [vmem:[%s855 + $0x62] sm:$0xff]
  %v4993 = vld [vmem:[%s855 + $0x6a] sm:$0xff]
  %v4994 = vld [vmem:[%s855 + $0x7a] sm:$0xff]
  %v4995 = vld [vmem:[%s855 + $0x82] sm:$0xff]
  %v4996 = vld [vmem:[%s855 + $0x92] sm:$0xff]
  %v4997 = vld [vmem:[%s855 + $0x9a] sm:$0xff]
  %v4998 = vld [vmem:[%s855 + $0xaa] sm:$0xff]
  %v4999 = vld [vmem:[%s855 + $0xb2] sm:$0xff]
  %v5000 = vld [vmem:[%s855 + $0xc2] sm:$0xff]
  %v5001 = vld [vmem:[%s855 + $0xca] sm:$0xff]
  %v5002 = vld [vmem:[%s855 + $0xda] sm:$0xff]
  %v5003 = vld [vmem:[%s855 + $0xe2] sm:$0xff]
  %v5004 = vld [vmem:[%s855 + $0xf2] sm:$0xff]
  %v5005 = vld [vmem:[%s855 + $0xfa] sm:$0xff]
  %v5006 = vld [vmem:[%s855 + $0x10a] sm:$0xff]
  %v5007 = vld [vmem:[%s855 + $0x112] sm:$0xff]
  %v5008 = vld [vmem:[%s855 + $0x122] sm:$0xff]
  %v5009 = vld [vmem:[%s855 + $0x12a] sm:$0xff]
  %v5010 = vld [vmem:[%s855 + $0x13a] sm:$0xff]
  %v5011 = vld [vmem:[%s855 + $0x142] sm:$0xff]
  %v5012 = vld [vmem:[%s855 + $0x152] sm:$0xff]
  %v5013 = vld [vmem:[%s855 + $0x15a] sm:$0xff]
  %v5014 = vld [vmem:[%s855 + $0x16a] sm:$0xff]
  %v5015 = vld [vmem:[%s855 + $0x172] sm:$0xff]
  %v5016 = vld [vmem:[%s855 + $0x1b2] sm:$0xff]
  %v5017 = vld [vmem:[%s855 + $0x1ba] sm:$0xff]
  %v5018 = vld [vmem:[%s855 + $0x1ca] sm:$0xff]
  %v5019 = vld [vmem:[%s855 + $0x1d2] sm:$0xff]
  %v5020 = vld [vmem:[%s855 + $0x1e2] sm:$0xff]
  %v5021 = vld [vmem:[%s855 + $0x1ea] sm:$0xff]
  %v5022 = vld [vmem:[%s855 + $0x1fa] sm:$0xff]
  %v5023 = vld [vmem:[%s855 + $0x202] sm:$0xff]
  %v5024 = vld [vmem:[%s855 + $0x212] sm:$0xff]
  %v5025 = vld [vmem:[%s855 + $0x21a] sm:$0xff]
  %v5026 = vld [vmem:[%s855 + $0x22a] sm:$0xff]
  %v5027 = vld [vmem:[%s855 + $0x232] sm:$0xff]
  %v5028 = vld [vmem:[%s855 + $0x242] sm:$0xff]
  %v5029 = vld [vmem:[%s855 + $0x24a] sm:$0xff]
  %v5030 = vld [vmem:[%s855 + $0x25a] sm:$0xff]
  %v5031 = vld [vmem:[%s855 + $0x262] sm:$0xff]
  %v5032 = vld [vmem:[%s855 + $0x272] sm:$0xff]
  %v5033 = vld [vmem:[%s855 + $0x27a] sm:$0xff]
  %v5034 = vld [vmem:[%s855 + $0x28a] sm:$0xff]
  %v5035 = vld [vmem:[%s855 + $0x292] sm:$0xff]
  %v5036 = vld [vmem:[%s855 + $0x2a2] sm:$0xff]
  %v5037 = vld [vmem:[%s855 + $0x2aa] sm:$0xff]
  %v5038 = vld [vmem:[%s855 + $0x2ba] sm:$0xff]
  %v5039 = vld [vmem:[%s855 + $0x2c2] sm:$0xff]
  %v5040 = vld [vmem:[%s855 + $0x2d2] sm:$0xff]
  %v5041 = vld [vmem:[%s855 + $0x2da] sm:$0xff]
  %v5042 = vld [vmem:[%s855 + $0x2ea] sm:$0xff]
  %v5043 = vld [vmem:[%s855 + $0x2f2] sm:$0xff]
  %v5044 = vld [vmem:[%s855 + $0x302] sm:$0xff]
  %v5045 = vld [vmem:[%s855 + $0x30a] sm:$0xff]
  %v5046 = vld [vmem:[%s855 + $0x31a] sm:$0xff]
  %v5047 = vld [vmem:[%s855 + $0x322] sm:$0xff]
  %5112 = vrot.lane.b32.xlu0 %v4536, 8
  %v5113 = vpop.permute.xlu0 %5112
  %5114 = vrot.lane.b32.xlu0 %v4537, 8
  %v5115 = vpop.permute.xlu0 %5114
  %5116 = vrot.lane.b32.xlu0 %v4538, 8
  %v5117 = vpop.permute.xlu0 %5116
  %5118 = vrot.lane.b32.xlu0 %v4539, 8
  %v5119 = vpop.permute.xlu0 %5118
  %5120 = vrot.lane.b32.xlu0 %v4540, 8
  %v5121 = vpop.permute.xlu0 %5120
  %5122 = vrot.lane.b32.xlu0 %v4541, 8
  %v5123 = vpop.permute.xlu0 %5122
  %5124 = vrot.lane.b32.xlu0 %v4542, 8
  %v5125 = vpop.permute.xlu0 %5124
  %5126 = vrot.lane.b32.xlu0 %v4543, 8
  %v5127 = vpop.permute.xlu0 %5126
  %5128 = vrot.lane.b32.xlu0 %v4544, 8
  %v5129 = vpop.permute.xlu0 %5128
  %5130 = vrot.lane.b32.xlu0 %v4545, 8
  %v5131 = vpop.permute.xlu0 %5130
  %5132 = vrot.lane.b32.xlu0 %v4546, 8
  %v5133 = vpop.permute.xlu0 %5132
  %5134 = vrot.lane.b32.xlu0 %v4547, 8
  %v5135 = vpop.permute.xlu0 %5134
  %5136 = vrot.lane.b32.xlu0 %v4548, 8
  %v5137 = vpop.permute.xlu0 %5136
  %5138 = vrot.lane.b32.xlu0 %v4549, 8
  %v5139 = vpop.permute.xlu0 %5138
  %5140 = vrot.lane.b32.xlu0 %v4550, 8
  %v5141 = vpop.permute.xlu0 %5140
  %5142 = vrot.lane.b32.xlu0 %v4551, 8
  %v5143 = vpop.permute.xlu0 %5142
  %5144 = vrot.lane.b32.xlu0 %v4552, 8
  %v5145 = vpop.permute.xlu0 %5144
  %5146 = vrot.lane.b32.xlu0 %v4553, 8
  %v5147 = vpop.permute.xlu0 %5146
  %5148 = vrot.lane.b32.xlu0 %v4554, 8
  %v5149 = vpop.permute.xlu0 %5148
  %5150 = vrot.lane.b32.xlu0 %v4555, 8
  %v5151 = vpop.permute.xlu0 %5150
  %5152 = vrot.lane.b32.xlu0 %v4556, 8
  %v5153 = vpop.permute.xlu0 %5152
  %5154 = vrot.lane.b32.xlu0 %v4557, 8
  %v5155 = vpop.permute.xlu0 %5154
  %5156 = vrot.lane.b32.xlu0 %v4558, 8
  %v5157 = vpop.permute.xlu0 %5156
  %5158 = vrot.lane.b32.xlu0 %v4559, 8
  %v5159 = vpop.permute.xlu0 %5158
  %5160 = vrot.lane.b32.xlu0 %v4560, 8
  %v5161 = vpop.permute.xlu0 %5160
  %5162 = vrot.lane.b32.xlu0 %v4561, 8
  %v5163 = vpop.permute.xlu0 %5162
  %5164 = vrot.lane.b32.xlu0 %v4562, 8
  %v5165 = vpop.permute.xlu0 %5164
  %5166 = vrot.lane.b32.xlu0 %v4563, 8
  %v5167 = vpop.permute.xlu0 %5166
  %5168 = vrot.lane.b32.xlu0 %v4564, 8
  %v5169 = vpop.permute.xlu0 %5168
  %5170 = vrot.lane.b32.xlu0 %v4565, 8
  %v5171 = vpop.permute.xlu0 %5170
  %5172 = vrot.lane.b32.xlu0 %v4566, 8
  %v5173 = vpop.permute.xlu0 %5172
  %5174 = vrot.lane.b32.xlu0 %v4567, 8
  %v5175 = vpop.permute.xlu0 %5174
  %5176 = vrot.lane.b32.xlu0 %v4568, 8
  %v5177 = vpop.permute.xlu0 %5176
  %5178 = vrot.lane.b32.xlu0 %v4569, 8
  %v5179 = vpop.permute.xlu0 %5178
  %5180 = vrot.lane.b32.xlu0 %v4570, 8
  %v5181 = vpop.permute.xlu0 %5180
  %5182 = vrot.lane.b32.xlu0 %v4571, 8
  %v5183 = vpop.permute.xlu0 %5182
  %5184 = vrot.lane.b32.xlu0 %v4572, 8
  %v5185 = vpop.permute.xlu0 %5184
  %5186 = vrot.lane.b32.xlu0 %v4573, 8
  %v5187 = vpop.permute.xlu0 %5186
  %5188 = vrot.lane.b32.xlu0 %v4574, 8
  %v5189 = vpop.permute.xlu0 %5188
  %5190 = vrot.lane.b32.xlu0 %v4575, 8
  %v5191 = vpop.permute.xlu0 %5190
  %5192 = vrot.lane.b32.xlu0 %v4576, 8
  %v5193 = vpop.permute.xlu0 %5192
  %5194 = vrot.lane.b32.xlu0 %v4577, 8
  %v5195 = vpop.permute.xlu0 %5194
  %5196 = vrot.lane.b32.xlu0 %v4578, 8
  %v5197 = vpop.permute.xlu0 %5196
  %5198 = vrot.lane.b32.xlu0 %v4579, 8
  %v5199 = vpop.permute.xlu0 %5198
  %5200 = vrot.lane.b32.xlu0 %v4580, 8
  %v5201 = vpop.permute.xlu0 %5200
  %5202 = vrot.lane.b32.xlu0 %v4581, 8
  %v5203 = vpop.permute.xlu0 %5202
  %5204 = vrot.lane.b32.xlu0 %v4582, 8
  %v5205 = vpop.permute.xlu0 %5204
  %5206 = vrot.lane.b32.xlu0 %v4583, 8
  %v5207 = vpop.permute.xlu0 %5206
  %5208 = vrot.lane.b32.xlu0 %v4584, 8
  %v5209 = vpop.permute.xlu0 %5208
  %5210 = vrot.lane.b32.xlu0 %v4585, 8
  %v5211 = vpop.permute.xlu0 %5210
  %5212 = vrot.lane.b32.xlu0 %v4586, 8
  %v5213 = vpop.permute.xlu0 %5212
  %5214 = vrot.lane.b32.xlu0 %v4587, 8
  %v5215 = vpop.permute.xlu0 %5214
  %5216 = vrot.lane.b32.xlu0 %v4588, 8
  %v5217 = vpop.permute.xlu0 %5216
  %5218 = vrot.lane.b32.xlu0 %v4589, 8
  %v5219 = vpop.permute.xlu0 %5218
  %5220 = vrot.lane.b32.xlu0 %v4590, 8
  %v5221 = vpop.permute.xlu0 %5220
  %5222 = vrot.lane.b32.xlu0 %v4591, 8
  %v5223 = vpop.permute.xlu0 %5222
  %5224 = vrot.lane.b32.xlu0 %v4592, 8
  %v5225 = vpop.permute.xlu0 %5224
  %5226 = vrot.lane.b32.xlu0 %v4593, 8
  %v5227 = vpop.permute.xlu0 %5226
  %5228 = vrot.lane.b32.xlu0 %v4594, 8
  %v5229 = vpop.permute.xlu0 %5228
  %5230 = vrot.lane.b32.xlu0 %v4595, 8
  %v5231 = vpop.permute.xlu0 %5230
  %5232 = vrot.lane.b32.xlu0 %v4596, 8
  %v5233 = vpop.permute.xlu0 %5232
  %5234 = vrot.lane.b32.xlu0 %v4597, 8
  %v5235 = vpop.permute.xlu0 %5234
  %5236 = vrot.lane.b32.xlu0 %v4598, 8
  %v5237 = vpop.permute.xlu0 %5236
  %5238 = vrot.lane.b32.xlu0 %v4599, 8
  %v5239 = vpop.permute.xlu0 %5238
  %5368 = vrot.lane.b32.xlu0 %v4600, 16
  %v5369 = vpop.permute.xlu0 %5368
  %5370 = vrot.lane.b32.xlu0 %v4601, 16
  %v5371 = vpop.permute.xlu0 %5370
  %5372 = vrot.lane.b32.xlu0 %v4602, 16
  %v5373 = vpop.permute.xlu0 %5372
  %5374 = vrot.lane.b32.xlu0 %v4603, 16
  %v5375 = vpop.permute.xlu0 %5374
  %5376 = vrot.lane.b32.xlu0 %v4604, 16
  %v5377 = vpop.permute.xlu0 %5376
  %5378 = vrot.lane.b32.xlu0 %v4605, 16
  %v5379 = vpop.permute.xlu0 %5378
  %5380 = vrot.lane.b32.xlu0 %v4606, 16
  %v5381 = vpop.permute.xlu0 %5380
  %5382 = vrot.lane.b32.xlu0 %v4607, 16
  %v5383 = vpop.permute.xlu0 %5382
  %5384 = vrot.lane.b32.xlu0 %v4608, 16
  %v5385 = vpop.permute.xlu0 %5384
  %5386 = vrot.lane.b32.xlu0 %v4609, 16
  %v5387 = vpop.permute.xlu0 %5386
  %5388 = vrot.lane.b32.xlu0 %v4610, 16
  %v5389 = vpop.permute.xlu0 %5388
  %5390 = vrot.lane.b32.xlu0 %v4611, 16
  %v5391 = vpop.permute.xlu0 %5390
  %5392 = vrot.lane.b32.xlu0 %v4612, 16
  %v5393 = vpop.permute.xlu0 %5392
  %5394 = vrot.lane.b32.xlu0 %v4613, 16
  %v5395 = vpop.permute.xlu0 %5394
  %5396 = vrot.lane.b32.xlu0 %v4614, 16
  %v5397 = vpop.permute.xlu0 %5396
  %5398 = vrot.lane.b32.xlu0 %v4615, 16
  %v5399 = vpop.permute.xlu0 %5398
  %5400 = vrot.lane.b32.xlu0 %v4616, 16
  %v5401 = vpop.permute.xlu0 %5400
  %5402 = vrot.lane.b32.xlu0 %v4617, 16
  %v5403 = vpop.permute.xlu0 %5402
  %5404 = vrot.lane.b32.xlu0 %v4618, 16
  %v5405 = vpop.permute.xlu0 %5404
  %5406 = vrot.lane.b32.xlu0 %v4619, 16
  %v5407 = vpop.permute.xlu0 %5406
  %5408 = vrot.lane.b32.xlu0 %v4620, 16
  %v5409 = vpop.permute.xlu0 %5408
  %5410 = vrot.lane.b32.xlu0 %v4621, 16
  %v5411 = vpop.permute.xlu0 %5410
  %5412 = vrot.lane.b32.xlu0 %v4622, 16
  %v5413 = vpop.permute.xlu0 %5412
  %5414 = vrot.lane.b32.xlu0 %v4623, 16
  %v5415 = vpop.permute.xlu0 %5414
  %5416 = vrot.lane.b32.xlu0 %v4624, 16
  %v5417 = vpop.permute.xlu0 %5416
  %5418 = vrot.lane.b32.xlu0 %v4625, 16
  %v5419 = vpop.permute.xlu0 %5418
  %5420 = vrot.lane.b32.xlu0 %v4626, 16
  %v5421 = vpop.permute.xlu0 %5420
  %5422 = vrot.lane.b32.xlu0 %v4627, 16
  %v5423 = vpop.permute.xlu0 %5422
  %5424 = vrot.lane.b32.xlu0 %v4628, 16
  %v5425 = vpop.permute.xlu0 %5424
  %5426 = vrot.lane.b32.xlu0 %v4629, 16
  %v5427 = vpop.permute.xlu0 %5426
  %5428 = vrot.lane.b32.xlu0 %v4630, 16
  %v5429 = vpop.permute.xlu0 %5428
  %5430 = vrot.lane.b32.xlu0 %v4631, 16
  %v5431 = vpop.permute.xlu0 %5430
  %5432 = vrot.lane.b32.xlu0 %v4632, 16
  %v5433 = vpop.permute.xlu0 %5432
  %5434 = vrot.lane.b32.xlu0 %v4633, 16
  %v5435 = vpop.permute.xlu0 %5434
  %5436 = vrot.lane.b32.xlu0 %v4634, 16
  %v5437 = vpop.permute.xlu0 %5436
  %5438 = vrot.lane.b32.xlu0 %v4635, 16
  %v5439 = vpop.permute.xlu0 %5438
  %5440 = vrot.lane.b32.xlu0 %v4636, 16
  %v5441 = vpop.permute.xlu0 %5440
  %5442 = vrot.lane.b32.xlu0 %v4637, 16
  %v5443 = vpop.permute.xlu0 %5442
  %5444 = vrot.lane.b32.xlu0 %v4638, 16
  %v5445 = vpop.permute.xlu0 %5444
  %5446 = vrot.lane.b32.xlu0 %v4639, 16
  %v5447 = vpop.permute.xlu0 %5446
  %5448 = vrot.lane.b32.xlu0 %v4640, 16
  %v5449 = vpop.permute.xlu0 %5448
  %5450 = vrot.lane.b32.xlu0 %v4641, 16
  %v5451 = vpop.permute.xlu0 %5450
  %5452 = vrot.lane.b32.xlu0 %v4642, 16
  %v5453 = vpop.permute.xlu0 %5452
  %5454 = vrot.lane.b32.xlu0 %v4643, 16
  %v5455 = vpop.permute.xlu0 %5454
  %5456 = vrot.lane.b32.xlu0 %v4644, 16
  %v5457 = vpop.permute.xlu0 %5456
  %5458 = vrot.lane.b32.xlu0 %v4645, 16
  %v5459 = vpop.permute.xlu0 %5458
  %5460 = vrot.lane.b32.xlu0 %v4646, 16
  %v5461 = vpop.permute.xlu0 %5460
  %5462 = vrot.lane.b32.xlu0 %v4647, 16
  %v5463 = vpop.permute.xlu0 %5462
  %5464 = vrot.lane.b32.xlu0 %v4648, 16
  %v5465 = vpop.permute.xlu0 %5464
  %5466 = vrot.lane.b32.xlu0 %v4649, 16
  %v5467 = vpop.permute.xlu0 %5466
  %5468 = vrot.lane.b32.xlu0 %v4650, 16
  %v5469 = vpop.permute.xlu0 %5468
  %5470 = vrot.lane.b32.xlu0 %v4651, 16
  %v5471 = vpop.permute.xlu0 %5470
  %5472 = vrot.lane.b32.xlu0 %v4652, 16
  %v5473 = vpop.permute.xlu0 %5472
  %5474 = vrot.lane.b32.xlu0 %v4653, 16
  %v5475 = vpop.permute.xlu0 %5474
  %5476 = vrot.lane.b32.xlu0 %v4654, 16
  %v5477 = vpop.permute.xlu0 %5476
  %5478 = vrot.lane.b32.xlu0 %v4655, 16
  %v5479 = vpop.permute.xlu0 %5478
  %5480 = vrot.lane.b32.xlu0 %v4656, 16
  %v5481 = vpop.permute.xlu0 %5480
  %5482 = vrot.lane.b32.xlu0 %v4657, 16
  %v5483 = vpop.permute.xlu0 %5482
  %5484 = vrot.lane.b32.xlu0 %v4658, 16
  %v5485 = vpop.permute.xlu0 %5484
  %5486 = vrot.lane.b32.xlu0 %v4659, 16
  %v5487 = vpop.permute.xlu0 %5486
  %5488 = vrot.lane.b32.xlu0 %v4660, 16
  %v5489 = vpop.permute.xlu0 %5488
  %5490 = vrot.lane.b32.xlu0 %v4661, 16
  %v5491 = vpop.permute.xlu0 %5490
  %5492 = vrot.lane.b32.xlu0 %v4662, 16
  %v5493 = vpop.permute.xlu0 %5492
  %5494 = vrot.lane.b32.xlu0 %v4663, 16
  %v5495 = vpop.permute.xlu0 %5494
  %5624 = vrot.lane.b32.xlu0 %v4664, 24
  %v5625 = vpop.permute.xlu0 %5624
  %5626 = vrot.lane.b32.xlu0 %v4665, 24
  %v5627 = vpop.permute.xlu0 %5626
  %5628 = vrot.lane.b32.xlu0 %v4666, 24
  %v5629 = vpop.permute.xlu0 %5628
  %5630 = vrot.lane.b32.xlu0 %v4667, 24
  %v5631 = vpop.permute.xlu0 %5630
  %5632 = vrot.lane.b32.xlu0 %v4668, 24
  %v5633 = vpop.permute.xlu0 %5632
  %5634 = vrot.lane.b32.xlu0 %v4669, 24
  %v5635 = vpop.permute.xlu0 %5634
  %5636 = vrot.lane.b32.xlu0 %v4670, 24
  %v5637 = vpop.permute.xlu0 %5636
  %5638 = vrot.lane.b32.xlu0 %v4671, 24
  %v5639 = vpop.permute.xlu0 %5638
  %5640 = vrot.lane.b32.xlu0 %v4672, 24
  %v5641 = vpop.permute.xlu0 %5640
  %5642 = vrot.lane.b32.xlu0 %v4673, 24
  %v5643 = vpop.permute.xlu0 %5642
  %5644 = vrot.lane.b32.xlu0 %v4674, 24
  %v5645 = vpop.permute.xlu0 %5644
  %5646 = vrot.lane.b32.xlu0 %v4675, 24
  %v5647 = vpop.permute.xlu0 %5646
  %5648 = vrot.lane.b32.xlu0 %v4676, 24
  %v5649 = vpop.permute.xlu0 %5648
  %5650 = vrot.lane.b32.xlu0 %v4677, 24
  %v5651 = vpop.permute.xlu0 %5650
  %5652 = vrot.lane.b32.xlu0 %v4678, 24
  %v5653 = vpop.permute.xlu0 %5652
  %5654 = vrot.lane.b32.xlu0 %v4679, 24
  %v5655 = vpop.permute.xlu0 %5654
  %5656 = vrot.lane.b32.xlu0 %v4680, 24
  %v5657 = vpop.permute.xlu0 %5656
  %5658 = vrot.lane.b32.xlu0 %v4681, 24
  %v5659 = vpop.permute.xlu0 %5658
  %5660 = vrot.lane.b32.xlu0 %v4682, 24
  %v5661 = vpop.permute.xlu0 %5660
  %5662 = vrot.lane.b32.xlu0 %v4683, 24
  %v5663 = vpop.permute.xlu0 %5662
  %5664 = vrot.lane.b32.xlu0 %v4684, 24
  %v5665 = vpop.permute.xlu0 %5664
  %5666 = vrot.lane.b32.xlu0 %v4685, 24
  %v5667 = vpop.permute.xlu0 %5666
  %5668 = vrot.lane.b32.xlu0 %v4686, 24
  %v5669 = vpop.permute.xlu0 %5668
  %5670 = vrot.lane.b32.xlu0 %v4687, 24
  %v5671 = vpop.permute.xlu0 %5670
  %5672 = vrot.lane.b32.xlu0 %v4688, 24
  %v5673 = vpop.permute.xlu0 %5672
  %5674 = vrot.lane.b32.xlu0 %v4689, 24
  %v5675 = vpop.permute.xlu0 %5674
  %5676 = vrot.lane.b32.xlu0 %v4690, 24
  %v5677 = vpop.permute.xlu0 %5676
  %5678 = vrot.lane.b32.xlu0 %v4691, 24
  %v5679 = vpop.permute.xlu0 %5678
  %5680 = vrot.lane.b32.xlu0 %v4692, 24
  %v5681 = vpop.permute.xlu0 %5680
  %5682 = vrot.lane.b32.xlu0 %v4693, 24
  %v5683 = vpop.permute.xlu0 %5682
  %5684 = vrot.lane.b32.xlu0 %v4694, 24
  %v5685 = vpop.permute.xlu0 %5684
  %5686 = vrot.lane.b32.xlu0 %v4695, 24
  %v5687 = vpop.permute.xlu0 %5686
  %5688 = vrot.lane.b32.xlu0 %v4696, 24
  %v5689 = vpop.permute.xlu0 %5688
  %5690 = vrot.lane.b32.xlu0 %v4697, 24
  %v5691 = vpop.permute.xlu0 %5690
  %5692 = vrot.lane.b32.xlu0 %v4698, 24
  %v5693 = vpop.permute.xlu0 %5692
  %5694 = vrot.lane.b32.xlu0 %v4699, 24
  %v5695 = vpop.permute.xlu0 %5694
  %5696 = vrot.lane.b32.xlu0 %v4700, 24
  %v5697 = vpop.permute.xlu0 %5696
  %5698 = vrot.lane.b32.xlu0 %v4701, 24
  %v5699 = vpop.permute.xlu0 %5698
  %5700 = vrot.lane.b32.xlu0 %v4702, 24
  %v5701 = vpop.permute.xlu0 %5700
  %5702 = vrot.lane.b32.xlu0 %v4703, 24
  %v5703 = vpop.permute.xlu0 %5702
  %5704 = vrot.lane.b32.xlu0 %v4704, 24
  %v5705 = vpop.permute.xlu0 %5704
  %5706 = vrot.lane.b32.xlu0 %v4705, 24
  %v5707 = vpop.permute.xlu0 %5706
  %5708 = vrot.lane.b32.xlu0 %v4706, 24
  %v5709 = vpop.permute.xlu0 %5708
  %5710 = vrot.lane.b32.xlu0 %v4707, 24
  %v5711 = vpop.permute.xlu0 %5710
  %5712 = vrot.lane.b32.xlu0 %v4708, 24
  %v5713 = vpop.permute.xlu0 %5712
  %5714 = vrot.lane.b32.xlu0 %v4709, 24
  %v5715 = vpop.permute.xlu0 %5714
  %5716 = vrot.lane.b32.xlu0 %v4710, 24
  %v5717 = vpop.permute.xlu0 %5716
  %5718 = vrot.lane.b32.xlu0 %v4711, 24
  %v5719 = vpop.permute.xlu0 %5718
  %5720 = vrot.lane.b32.xlu0 %v4712, 24
  %v5721 = vpop.permute.xlu0 %5720
  %5722 = vrot.lane.b32.xlu0 %v4713, 24
  %v5723 = vpop.permute.xlu0 %5722
  %5724 = vrot.lane.b32.xlu0 %v4714, 24
  %v5725 = vpop.permute.xlu0 %5724
  %5726 = vrot.lane.b32.xlu0 %v4715, 24
  %v5727 = vpop.permute.xlu0 %5726
  %5728 = vrot.lane.b32.xlu0 %v4716, 24
  %v5729 = vpop.permute.xlu0 %5728
  %5730 = vrot.lane.b32.xlu0 %v4717, 24
  %v5731 = vpop.permute.xlu0 %5730
  %5732 = vrot.lane.b32.xlu0 %v4718, 24
  %v5733 = vpop.permute.xlu0 %5732
  %5734 = vrot.lane.b32.xlu0 %v4719, 24
  %v5735 = vpop.permute.xlu0 %5734
  %5736 = vrot.lane.b32.xlu0 %v4720, 24
  %v5737 = vpop.permute.xlu0 %5736
  %5738 = vrot.lane.b32.xlu0 %v4721, 24
  %v5739 = vpop.permute.xlu0 %5738
  %5740 = vrot.lane.b32.xlu0 %v4722, 24
  %v5741 = vpop.permute.xlu0 %5740
  %5742 = vrot.lane.b32.xlu0 %v4723, 24
  %v5743 = vpop.permute.xlu0 %5742
  %5744 = vrot.lane.b32.xlu0 %v4724, 24
  %v5745 = vpop.permute.xlu0 %5744
  %5746 = vrot.lane.b32.xlu0 %v4725, 24
  %v5747 = vpop.permute.xlu0 %5746
  %5748 = vrot.lane.b32.xlu0 %v4726, 24
  %v5749 = vpop.permute.xlu0 %5748
  %5750 = vrot.lane.b32.xlu0 %v4727, 24
  %v5751 = vpop.permute.xlu0 %5750
  %5880 = vrot.lane.b32.xlu0 %v4728, 32
  %v5881 = vpop.permute.xlu0 %5880
  %5882 = vrot.lane.b32.xlu0 %v4729, 32
  %v5883 = vpop.permute.xlu0 %5882
  %5884 = vrot.lane.b32.xlu0 %v4730, 32
  %v5885 = vpop.permute.xlu0 %5884
  %5886 = vrot.lane.b32.xlu0 %v4731, 32
  %v5887 = vpop.permute.xlu0 %5886
  %5888 = vrot.lane.b32.xlu0 %v4732, 32
  %v5889 = vpop.permute.xlu0 %5888
  %5890 = vrot.lane.b32.xlu0 %v4733, 32
  %v5891 = vpop.permute.xlu0 %5890
  %5892 = vrot.lane.b32.xlu0 %v4734, 32
  %v5893 = vpop.permute.xlu0 %5892
  %5894 = vrot.lane.b32.xlu0 %v4735, 32
  %v5895 = vpop.permute.xlu0 %5894
  %5896 = vrot.lane.b32.xlu0 %v4736, 32
  %v5897 = vpop.permute.xlu0 %5896
  %5898 = vrot.lane.b32.xlu0 %v4737, 32
  %v5899 = vpop.permute.xlu0 %5898
  %5900 = vrot.lane.b32.xlu0 %v4738, 32
  %v5901 = vpop.permute.xlu0 %5900
  %5902 = vrot.lane.b32.xlu0 %v4739, 32
  %v5903 = vpop.permute.xlu0 %5902
  %5904 = vrot.lane.b32.xlu0 %v4740, 32
  %v5905 = vpop.permute.xlu0 %5904
  %5906 = vrot.lane.b32.xlu0 %v4741, 32
  %v5907 = vpop.permute.xlu0 %5906
  %5908 = vrot.lane.b32.xlu0 %v4742, 32
  %v5909 = vpop.permute.xlu0 %5908
  %5910 = vrot.lane.b32.xlu0 %v4743, 32
  %v5911 = vpop.permute.xlu0 %5910
  %5912 = vrot.lane.b32.xlu0 %v4744, 32
  %v5913 = vpop.permute.xlu0 %5912
  %5914 = vrot.lane.b32.xlu0 %v4745, 32
  %v5915 = vpop.permute.xlu0 %5914
  %5916 = vrot.lane.b32.xlu0 %v4746, 32
  %v5917 = vpop.permute.xlu0 %5916
  %5918 = vrot.lane.b32.xlu0 %v4747, 32
  %v5919 = vpop.permute.xlu0 %5918
  %5920 = vrot.lane.b32.xlu0 %v4748, 32
  %v5921 = vpop.permute.xlu0 %5920
  %5922 = vrot.lane.b32.xlu0 %v4749, 32
  %v5923 = vpop.permute.xlu0 %5922
  %5924 = vrot.lane.b32.xlu0 %v4750, 32
  %v5925 = vpop.permute.xlu0 %5924
  %5926 = vrot.lane.b32.xlu0 %v4751, 32
  %v5927 = vpop.permute.xlu0 %5926
  %5928 = vrot.lane.b32.xlu0 %v4752, 32
  %v5929 = vpop.permute.xlu0 %5928
  %5930 = vrot.lane.b32.xlu0 %v4753, 32
  %v5931 = vpop.permute.xlu0 %5930
  %5932 = vrot.lane.b32.xlu0 %v4754, 32
  %v5933 = vpop.permute.xlu0 %5932
  %5934 = vrot.lane.b32.xlu0 %v4755, 32
  %v5935 = vpop.permute.xlu0 %5934
  %5936 = vrot.lane.b32.xlu0 %v4756, 32
  %v5937 = vpop.permute.xlu0 %5936
  %5938 = vrot.lane.b32.xlu0 %v4757, 32
  %v5939 = vpop.permute.xlu0 %5938
  %5940 = vrot.lane.b32.xlu0 %v4758, 32
  %v5941 = vpop.permute.xlu0 %5940
  %5942 = vrot.lane.b32.xlu0 %v4759, 32
  %v5943 = vpop.permute.xlu0 %5942
  %5944 = vrot.lane.b32.xlu0 %v4760, 32
  %v5945 = vpop.permute.xlu0 %5944
  %5946 = vrot.lane.b32.xlu0 %v4761, 32
  %v5947 = vpop.permute.xlu0 %5946
  %5948 = vrot.lane.b32.xlu0 %v4762, 32
  %v5949 = vpop.permute.xlu0 %5948
  %5950 = vrot.lane.b32.xlu0 %v4763, 32
  %v5951 = vpop.permute.xlu0 %5950
  %5952 = vrot.lane.b32.xlu0 %v4764, 32
  %v5953 = vpop.permute.xlu0 %5952
  %5954 = vrot.lane.b32.xlu0 %v4765, 32
  %v5955 = vpop.permute.xlu0 %5954
  %5956 = vrot.lane.b32.xlu0 %v4766, 32
  %v5957 = vpop.permute.xlu0 %5956
  %5958 = vrot.lane.b32.xlu0 %v4767, 32
  %v5959 = vpop.permute.xlu0 %5958
  %5960 = vrot.lane.b32.xlu0 %v4768, 32
  %v5961 = vpop.permute.xlu0 %5960
  %5962 = vrot.lane.b32.xlu0 %v4769, 32
  %v5963 = vpop.permute.xlu0 %5962
  %5964 = vrot.lane.b32.xlu0 %v4770, 32
  %v5965 = vpop.permute.xlu0 %5964
  %5966 = vrot.lane.b32.xlu0 %v4771, 32
  %v5967 = vpop.permute.xlu0 %5966
  %5968 = vrot.lane.b32.xlu0 %v4772, 32
  %v5969 = vpop.permute.xlu0 %5968
  %5970 = vrot.lane.b32.xlu0 %v4773, 32
  %v5971 = vpop.permute.xlu0 %5970
  %5972 = vrot.lane.b32.xlu0 %v4774, 32
  %v5973 = vpop.permute.xlu0 %5972
  %5974 = vrot.lane.b32.xlu0 %v4775, 32
  %v5975 = vpop.permute.xlu0 %5974
  %5976 = vrot.lane.b32.xlu0 %v4776, 32
  %v5977 = vpop.permute.xlu0 %5976
  %5978 = vrot.lane.b32.xlu0 %v4777, 32
  %v5979 = vpop.permute.xlu0 %5978
  %5980 = vrot.lane.b32.xlu0 %v4778, 32
  %v5981 = vpop.permute.xlu0 %5980
  %5982 = vrot.lane.b32.xlu0 %v4779, 32
  %v5983 = vpop.permute.xlu0 %5982
  %5984 = vrot.lane.b32.xlu0 %v4780, 32
  %v5985 = vpop.permute.xlu0 %5984
  %5986 = vrot.lane.b32.xlu0 %v4781, 32
  %v5987 = vpop.permute.xlu0 %5986
  %5988 = vrot.lane.b32.xlu0 %v4782, 32
  %v5989 = vpop.permute.xlu0 %5988
  %5990 = vrot.lane.b32.xlu0 %v4783, 32
  %v5991 = vpop.permute.xlu0 %5990
  %5992 = vrot.lane.b32.xlu0 %v4784, 32
  %v5993 = vpop.permute.xlu0 %5992
  %5994 = vrot.lane.b32.xlu0 %v4785, 32
  %v5995 = vpop.permute.xlu0 %5994
  %5996 = vrot.lane.b32.xlu0 %v4786, 32
  %v5997 = vpop.permute.xlu0 %5996
  %5998 = vrot.lane.b32.xlu0 %v4787, 32
  %v5999 = vpop.permute.xlu0 %5998
  %6000 = vrot.lane.b32.xlu0 %v4788, 32
  %v6001 = vpop.permute.xlu0 %6000
  %6002 = vrot.lane.b32.xlu0 %v4789, 32
  %v6003 = vpop.permute.xlu0 %6002
  %6004 = vrot.lane.b32.xlu0 %v4790, 32
  %v6005 = vpop.permute.xlu0 %6004
  %6006 = vrot.lane.b32.xlu0 %v4791, 32
  %v6007 = vpop.permute.xlu0 %6006
  %6136 = vrot.lane.b32.xlu0 %v4792, 40
  %v6137 = vpop.permute.xlu0 %6136
  %6138 = vrot.lane.b32.xlu0 %v4793, 40
  %v6139 = vpop.permute.xlu0 %6138
  %6140 = vrot.lane.b32.xlu0 %v4794, 40
  %v6141 = vpop.permute.xlu0 %6140
  %6142 = vrot.lane.b32.xlu0 %v4795, 40
  %v6143 = vpop.permute.xlu0 %6142
  %6144 = vrot.lane.b32.xlu0 %v4796, 40
  %v6145 = vpop.permute.xlu0 %6144
  %6146 = vrot.lane.b32.xlu0 %v4797, 40
  %v6147 = vpop.permute.xlu0 %6146
  %6148 = vrot.lane.b32.xlu0 %v4798, 40
  %v6149 = vpop.permute.xlu0 %6148
  %6150 = vrot.lane.b32.xlu0 %v4799, 40
  %v6151 = vpop.permute.xlu0 %6150
  %6152 = vrot.lane.b32.xlu0 %v4800, 40
  %v6153 = vpop.permute.xlu0 %6152
  %6154 = vrot.lane.b32.xlu0 %v4801, 40
  %v6155 = vpop.permute.xlu0 %6154
  %6156 = vrot.lane.b32.xlu0 %v4802, 40
  %v6157 = vpop.permute.xlu0 %6156
  %6158 = vrot.lane.b32.xlu0 %v4803, 40
  %v6159 = vpop.permute.xlu0 %6158
  %6160 = vrot.lane.b32.xlu0 %v4804, 40
  %v6161 = vpop.permute.xlu0 %6160
  %6162 = vrot.lane.b32.xlu0 %v4805, 40
  %v6163 = vpop.permute.xlu0 %6162
  %6164 = vrot.lane.b32.xlu0 %v4806, 40
  %v6165 = vpop.permute.xlu0 %6164
  %6166 = vrot.lane.b32.xlu0 %v4807, 40
  %v6167 = vpop.permute.xlu0 %6166
  %6168 = vrot.lane.b32.xlu0 %v4808, 40
  %v6169 = vpop.permute.xlu0 %6168
  %6170 = vrot.lane.b32.xlu0 %v4809, 40
  %v6171 = vpop.permute.xlu0 %6170
  %6172 = vrot.lane.b32.xlu0 %v4810, 40
  %v6173 = vpop.permute.xlu0 %6172
  %6174 = vrot.lane.b32.xlu0 %v4811, 40
  %v6175 = vpop.permute.xlu0 %6174
  %6176 = vrot.lane.b32.xlu0 %v4812, 40
  %v6177 = vpop.permute.xlu0 %6176
  %6178 = vrot.lane.b32.xlu0 %v4813, 40
  %v6179 = vpop.permute.xlu0 %6178
  %6180 = vrot.lane.b32.xlu0 %v4814, 40
  %v6181 = vpop.permute.xlu0 %6180
  %6182 = vrot.lane.b32.xlu0 %v4815, 40
  %v6183 = vpop.permute.xlu0 %6182
  %6184 = vrot.lane.b32.xlu0 %v4816, 40
  %v6185 = vpop.permute.xlu0 %6184
  %6186 = vrot.lane.b32.xlu0 %v4817, 40
  %v6187 = vpop.permute.xlu0 %6186
  %6188 = vrot.lane.b32.xlu0 %v4818, 40
  %v6189 = vpop.permute.xlu0 %6188
  %6190 = vrot.lane.b32.xlu0 %v4819, 40
  %v6191 = vpop.permute.xlu0 %6190
  %6192 = vrot.lane.b32.xlu0 %v4820, 40
  %v6193 = vpop.permute.xlu0 %6192
  %6194 = vrot.lane.b32.xlu0 %v4821, 40
  %v6195 = vpop.permute.xlu0 %6194
  %6196 = vrot.lane.b32.xlu0 %v4822, 40
  %v6197 = vpop.permute.xlu0 %6196
  %6198 = vrot.lane.b32.xlu0 %v4823, 40
  %v6199 = vpop.permute.xlu0 %6198
  %6200 = vrot.lane.b32.xlu0 %v4824, 40
  %v6201 = vpop.permute.xlu0 %6200
  %6202 = vrot.lane.b32.xlu0 %v4825, 40
  %v6203 = vpop.permute.xlu0 %6202
  %6204 = vrot.lane.b32.xlu0 %v4826, 40
  %v6205 = vpop.permute.xlu0 %6204
  %6206 = vrot.lane.b32.xlu0 %v4827, 40
  %v6207 = vpop.permute.xlu0 %6206
  %6208 = vrot.lane.b32.xlu0 %v4828, 40
  %v6209 = vpop.permute.xlu0 %6208
  %6210 = vrot.lane.b32.xlu0 %v4829, 40
  %v6211 = vpop.permute.xlu0 %6210
  %6212 = vrot.lane.b32.xlu0 %v4830, 40
  %v6213 = vpop.permute.xlu0 %6212
  %6214 = vrot.lane.b32.xlu0 %v4831, 40
  %v6215 = vpop.permute.xlu0 %6214
  %6216 = vrot.lane.b32.xlu0 %v4832, 40
  %v6217 = vpop.permute.xlu0 %6216
  %6218 = vrot.lane.b32.xlu0 %v4833, 40
  %v6219 = vpop.permute.xlu0 %6218
  %6220 = vrot.lane.b32.xlu0 %v4834, 40
  %v6221 = vpop.permute.xlu0 %6220
  %6222 = vrot.lane.b32.xlu0 %v4835, 40
  %v6223 = vpop.permute.xlu0 %6222
  %6224 = vrot.lane.b32.xlu0 %v4836, 40
  %v6225 = vpop.permute.xlu0 %6224
  %6226 = vrot.lane.b32.xlu0 %v4837, 40
  %v6227 = vpop.permute.xlu0 %6226
  %6228 = vrot.lane.b32.xlu0 %v4838, 40
  %v6229 = vpop.permute.xlu0 %6228
  %6230 = vrot.lane.b32.xlu0 %v4839, 40
  %v6231 = vpop.permute.xlu0 %6230
  %6232 = vrot.lane.b32.xlu0 %v4840, 40
  %v6233 = vpop.permute.xlu0 %6232
  %6234 = vrot.lane.b32.xlu0 %v4841, 40
  %v6235 = vpop.permute.xlu0 %6234
  %6236 = vrot.lane.b32.xlu0 %v4842, 40
  %v6237 = vpop.permute.xlu0 %6236
  %6238 = vrot.lane.b32.xlu0 %v4843, 40
  %v6239 = vpop.permute.xlu0 %6238
  %6240 = vrot.lane.b32.xlu0 %v4844, 40
  %v6241 = vpop.permute.xlu0 %6240
  %6242 = vrot.lane.b32.xlu0 %v4845, 40
  %v6243 = vpop.permute.xlu0 %6242
  %6244 = vrot.lane.b32.xlu0 %v4846, 40
  %v6245 = vpop.permute.xlu0 %6244
  %6246 = vrot.lane.b32.xlu0 %v4847, 40
  %v6247 = vpop.permute.xlu0 %6246
  %6248 = vrot.lane.b32.xlu0 %v4848, 40
  %v6249 = vpop.permute.xlu0 %6248
  %6250 = vrot.lane.b32.xlu0 %v4849, 40
  %v6251 = vpop.permute.xlu0 %6250
  %6252 = vrot.lane.b32.xlu0 %v4850, 40
  %v6253 = vpop.permute.xlu0 %6252
  %6254 = vrot.lane.b32.xlu0 %v4851, 40
  %v6255 = vpop.permute.xlu0 %6254
  %6256 = vrot.lane.b32.xlu0 %v4852, 40
  %v6257 = vpop.permute.xlu0 %6256
  %6258 = vrot.lane.b32.xlu0 %v4853, 40
  %v6259 = vpop.permute.xlu0 %6258
  %6260 = vrot.lane.b32.xlu0 %v4854, 40
  %v6261 = vpop.permute.xlu0 %6260
  %6262 = vrot.lane.b32.xlu0 %v4855, 40
  %v6263 = vpop.permute.xlu0 %6262
  %6392 = vrot.lane.b32.xlu0 %v4856, 48
  %v6393 = vpop.permute.xlu0 %6392
  %6394 = vrot.lane.b32.xlu0 %v4857, 48
  %v6395 = vpop.permute.xlu0 %6394
  %6396 = vrot.lane.b32.xlu0 %v4858, 48
  %v6397 = vpop.permute.xlu0 %6396
  %6398 = vrot.lane.b32.xlu0 %v4859, 48
  %v6399 = vpop.permute.xlu0 %6398
  %6400 = vrot.lane.b32.xlu0 %v4860, 48
  %v6401 = vpop.permute.xlu0 %6400
  %6402 = vrot.lane.b32.xlu0 %v4861, 48
  %v6403 = vpop.permute.xlu0 %6402
  %6404 = vrot.lane.b32.xlu0 %v4862, 48
  %v6405 = vpop.permute.xlu0 %6404
  %6406 = vrot.lane.b32.xlu0 %v4863, 48
  %v6407 = vpop.permute.xlu0 %6406
  %6408 = vrot.lane.b32.xlu0 %v4864, 48
  %v6409 = vpop.permute.xlu0 %6408
  %6410 = vrot.lane.b32.xlu0 %v4865, 48
  %v6411 = vpop.permute.xlu0 %6410
  %6412 = vrot.lane.b32.xlu0 %v4866, 48
  %v6413 = vpop.permute.xlu0 %6412
  %6414 = vrot.lane.b32.xlu0 %v4867, 48
  %v6415 = vpop.permute.xlu0 %6414
  %6416 = vrot.lane.b32.xlu0 %v4868, 48
  %v6417 = vpop.permute.xlu0 %6416
  %6418 = vrot.lane.b32.xlu0 %v4869, 48
  %v6419 = vpop.permute.xlu0 %6418
  %6420 = vrot.lane.b32.xlu0 %v4870, 48
  %v6421 = vpop.permute.xlu0 %6420
  %6422 = vrot.lane.b32.xlu0 %v4871, 48
  %v6423 = vpop.permute.xlu0 %6422
  %6424 = vrot.lane.b32.xlu0 %v4872, 48
  %v6425 = vpop.permute.xlu0 %6424
  %6426 = vrot.lane.b32.xlu0 %v4873, 48
  %v6427 = vpop.permute.xlu0 %6426
  %6428 = vrot.lane.b32.xlu0 %v4874, 48
  %v6429 = vpop.permute.xlu0 %6428
  %6430 = vrot.lane.b32.xlu0 %v4875, 48
  %v6431 = vpop.permute.xlu0 %6430
  %6432 = vrot.lane.b32.xlu0 %v4876, 48
  %v6433 = vpop.permute.xlu0 %6432
  %6434 = vrot.lane.b32.xlu0 %v4877, 48
  %v6435 = vpop.permute.xlu0 %6434
  %6436 = vrot.lane.b32.xlu0 %v4878, 48
  %v6437 = vpop.permute.xlu0 %6436
  %6438 = vrot.lane.b32.xlu0 %v4879, 48
  %v6439 = vpop.permute.xlu0 %6438
  %6440 = vrot.lane.b32.xlu0 %v4880, 48
  %v6441 = vpop.permute.xlu0 %6440
  %6442 = vrot.lane.b32.xlu0 %v4881, 48
  %v6443 = vpop.permute.xlu0 %6442
  %6444 = vrot.lane.b32.xlu0 %v4882, 48
  %v6445 = vpop.permute.xlu0 %6444
  %6446 = vrot.lane.b32.xlu0 %v4883, 48
  %v6447 = vpop.permute.xlu0 %6446
  %6448 = vrot.lane.b32.xlu0 %v4884, 48
  %v6449 = vpop.permute.xlu0 %6448
  %6450 = vrot.lane.b32.xlu0 %v4885, 48
  %v6451 = vpop.permute.xlu0 %6450
  %6452 = vrot.lane.b32.xlu0 %v4886, 48
  %v6453 = vpop.permute.xlu0 %6452
  %6454 = vrot.lane.b32.xlu0 %v4887, 48
  %v6455 = vpop.permute.xlu0 %6454
  %6456 = vrot.lane.b32.xlu0 %v4888, 48
  %v6457 = vpop.permute.xlu0 %6456
  %6458 = vrot.lane.b32.xlu0 %v4889, 48
  %v6459 = vpop.permute.xlu0 %6458
  %6460 = vrot.lane.b32.xlu0 %v4890, 48
  %v6461 = vpop.permute.xlu0 %6460
  %6462 = vrot.lane.b32.xlu0 %v4891, 48
  %v6463 = vpop.permute.xlu0 %6462
  %6464 = vrot.lane.b32.xlu0 %v4892, 48
  %v6465 = vpop.permute.xlu0 %6464
  %6466 = vrot.lane.b32.xlu0 %v4893, 48
  %v6467 = vpop.permute.xlu0 %6466
  %6468 = vrot.lane.b32.xlu0 %v4894, 48
  %v6469 = vpop.permute.xlu0 %6468
  %6470 = vrot.lane.b32.xlu0 %v4895, 48
  %v6471 = vpop.permute.xlu0 %6470
  %6472 = vrot.lane.b32.xlu0 %v4896, 48
  %v6473 = vpop.permute.xlu0 %6472
  %6474 = vrot.lane.b32.xlu0 %v4897, 48
  %v6475 = vpop.permute.xlu0 %6474
  %6476 = vrot.lane.b32.xlu0 %v4898, 48
  %v6477 = vpop.permute.xlu0 %6476
  %6478 = vrot.lane.b32.xlu0 %v4899, 48
  %v6479 = vpop.permute.xlu0 %6478
  %6480 = vrot.lane.b32.xlu0 %v4900, 48
  %v6481 = vpop.permute.xlu0 %6480
  %6482 = vrot.lane.b32.xlu0 %v4901, 48
  %v6483 = vpop.permute.xlu0 %6482
  %6484 = vrot.lane.b32.xlu0 %v4902, 48
  %v6485 = vpop.permute.xlu0 %6484
  %6486 = vrot.lane.b32.xlu0 %v4903, 48
  %v6487 = vpop.permute.xlu0 %6486
  %6488 = vrot.lane.b32.xlu0 %v4904, 48
  %v6489 = vpop.permute.xlu0 %6488
  %6490 = vrot.lane.b32.xlu0 %v4905, 48
  %v6491 = vpop.permute.xlu0 %6490
  %6492 = vrot.lane.b32.xlu0 %v4906, 48
  %v6493 = vpop.permute.xlu0 %6492
  %6494 = vrot.lane.b32.xlu0 %v4907, 48
  %v6495 = vpop.permute.xlu0 %6494
  %6496 = vrot.lane.b32.xlu0 %v4908, 48
  %v6497 = vpop.permute.xlu0 %6496
  %6498 = vrot.lane.b32.xlu0 %v4909, 48
  %v6499 = vpop.permute.xlu0 %6498
  %6500 = vrot.lane.b32.xlu0 %v4910, 48
  %v6501 = vpop.permute.xlu0 %6500
  %6502 = vrot.lane.b32.xlu0 %v4911, 48
  %v6503 = vpop.permute.xlu0 %6502
  %6504 = vrot.lane.b32.xlu0 %v4912, 48
  %v6505 = vpop.permute.xlu0 %6504
  %6506 = vrot.lane.b32.xlu0 %v4913, 48
  %v6507 = vpop.permute.xlu0 %6506
  %6508 = vrot.lane.b32.xlu0 %v4914, 48
  %v6509 = vpop.permute.xlu0 %6508
  %6510 = vrot.lane.b32.xlu0 %v4915, 48
  %v6511 = vpop.permute.xlu0 %6510
  %6512 = vrot.lane.b32.xlu0 %v4916, 48
  %v6513 = vpop.permute.xlu0 %6512
  %6514 = vrot.lane.b32.xlu0 %v4917, 48
  %v6515 = vpop.permute.xlu0 %6514
  %6516 = vrot.lane.b32.xlu0 %v4918, 48
  %v6517 = vpop.permute.xlu0 %6516
  %6518 = vrot.lane.b32.xlu0 %v4919, 48
  %v6519 = vpop.permute.xlu0 %6518
  %6648 = vrot.lane.b32.xlu0 %v4920, 56
  %v6649 = vpop.permute.xlu0 %6648
  %6650 = vrot.lane.b32.xlu0 %v4921, 56
  %v6651 = vpop.permute.xlu0 %6650
  %6652 = vrot.lane.b32.xlu0 %v4922, 56
  %v6653 = vpop.permute.xlu0 %6652
  %6654 = vrot.lane.b32.xlu0 %v4923, 56
  %v6655 = vpop.permute.xlu0 %6654
  %6656 = vrot.lane.b32.xlu0 %v4924, 56
  %v6657 = vpop.permute.xlu0 %6656
  %6658 = vrot.lane.b32.xlu0 %v4925, 56
  %v6659 = vpop.permute.xlu0 %6658
  %6660 = vrot.lane.b32.xlu0 %v4926, 56
  %v6661 = vpop.permute.xlu0 %6660
  %6662 = vrot.lane.b32.xlu0 %v4927, 56
  %v6663 = vpop.permute.xlu0 %6662
  %6664 = vrot.lane.b32.xlu0 %v4928, 56
  %v6665 = vpop.permute.xlu0 %6664
  %6666 = vrot.lane.b32.xlu0 %v4929, 56
  %v6667 = vpop.permute.xlu0 %6666
  %6668 = vrot.lane.b32.xlu0 %v4930, 56
  %v6669 = vpop.permute.xlu0 %6668
  %6670 = vrot.lane.b32.xlu0 %v4931, 56
  %v6671 = vpop.permute.xlu0 %6670
  %6672 = vrot.lane.b32.xlu0 %v4932, 56
  %v6673 = vpop.permute.xlu0 %6672
  %6674 = vrot.lane.b32.xlu0 %v4933, 56
  %v6675 = vpop.permute.xlu0 %6674
  %6676 = vrot.lane.b32.xlu0 %v4934, 56
  %v6677 = vpop.permute.xlu0 %6676
  %6678 = vrot.lane.b32.xlu0 %v4935, 56
  %v6679 = vpop.permute.xlu0 %6678
  %6680 = vrot.lane.b32.xlu0 %v4936, 56
  %v6681 = vpop.permute.xlu0 %6680
  %6682 = vrot.lane.b32.xlu0 %v4937, 56
  %v6683 = vpop.permute.xlu0 %6682
  %6684 = vrot.lane.b32.xlu0 %v4938, 56
  %v6685 = vpop.permute.xlu0 %6684
  %6686 = vrot.lane.b32.xlu0 %v4939, 56
  %v6687 = vpop.permute.xlu0 %6686
  %6688 = vrot.lane.b32.xlu0 %v4940, 56
  %v6689 = vpop.permute.xlu0 %6688
  %6690 = vrot.lane.b32.xlu0 %v4941, 56
  %v6691 = vpop.permute.xlu0 %6690
  %6692 = vrot.lane.b32.xlu0 %v4942, 56
  %v6693 = vpop.permute.xlu0 %6692
  %6694 = vrot.lane.b32.xlu0 %v4943, 56
  %v6695 = vpop.permute.xlu0 %6694
  %6696 = vrot.lane.b32.xlu0 %v4944, 56
  %v6697 = vpop.permute.xlu0 %6696
  %6698 = vrot.lane.b32.xlu0 %v4945, 56
  %v6699 = vpop.permute.xlu0 %6698
  %6700 = vrot.lane.b32.xlu0 %v4946, 56
  %v6701 = vpop.permute.xlu0 %6700
  %6702 = vrot.lane.b32.xlu0 %v4947, 56
  %v6703 = vpop.permute.xlu0 %6702
  %6704 = vrot.lane.b32.xlu0 %v4948, 56
  %v6705 = vpop.permute.xlu0 %6704
  %6706 = vrot.lane.b32.xlu0 %v4949, 56
  %v6707 = vpop.permute.xlu0 %6706
  %6708 = vrot.lane.b32.xlu0 %v4950, 56
  %v6709 = vpop.permute.xlu0 %6708
  %6710 = vrot.lane.b32.xlu0 %v4951, 56
  %v6711 = vpop.permute.xlu0 %6710
  %6712 = vrot.lane.b32.xlu0 %v4952, 56
  %v6713 = vpop.permute.xlu0 %6712
  %6714 = vrot.lane.b32.xlu0 %v4953, 56
  %v6715 = vpop.permute.xlu0 %6714
  %6716 = vrot.lane.b32.xlu0 %v4954, 56
  %v6717 = vpop.permute.xlu0 %6716
  %6718 = vrot.lane.b32.xlu0 %v4955, 56
  %v6719 = vpop.permute.xlu0 %6718
  %6720 = vrot.lane.b32.xlu0 %v4956, 56
  %v6721 = vpop.permute.xlu0 %6720
  %6722 = vrot.lane.b32.xlu0 %v4957, 56
  %v6723 = vpop.permute.xlu0 %6722
  %6724 = vrot.lane.b32.xlu0 %v4958, 56
  %v6725 = vpop.permute.xlu0 %6724
  %6726 = vrot.lane.b32.xlu0 %v4959, 56
  %v6727 = vpop.permute.xlu0 %6726
  %6728 = vrot.lane.b32.xlu0 %v4960, 56
  %v6729 = vpop.permute.xlu0 %6728
  %6730 = vrot.lane.b32.xlu0 %v4961, 56
  %v6731 = vpop.permute.xlu0 %6730
  %6732 = vrot.lane.b32.xlu0 %v4962, 56
  %v6733 = vpop.permute.xlu0 %6732
  %6734 = vrot.lane.b32.xlu0 %v4963, 56
  %v6735 = vpop.permute.xlu0 %6734
  %6736 = vrot.lane.b32.xlu0 %v4964, 56
  %v6737 = vpop.permute.xlu0 %6736
  %6738 = vrot.lane.b32.xlu0 %v4965, 56
  %v6739 = vpop.permute.xlu0 %6738
  %6740 = vrot.lane.b32.xlu0 %v4966, 56
  %v6741 = vpop.permute.xlu0 %6740
  %6742 = vrot.lane.b32.xlu0 %v4967, 56
  %v6743 = vpop.permute.xlu0 %6742
  %6744 = vrot.lane.b32.xlu0 %v4968, 56
  %v6745 = vpop.permute.xlu0 %6744
  %6746 = vrot.lane.b32.xlu0 %v4969, 56
  %v6747 = vpop.permute.xlu0 %6746
  %6748 = vrot.lane.b32.xlu0 %v4970, 56
  %v6749 = vpop.permute.xlu0 %6748
  %6750 = vrot.lane.b32.xlu0 %v4971, 56
  %v6751 = vpop.permute.xlu0 %6750
  %6752 = vrot.lane.b32.xlu0 %v4972, 56
  %v6753 = vpop.permute.xlu0 %6752
  %6754 = vrot.lane.b32.xlu0 %v4973, 56
  %v6755 = vpop.permute.xlu0 %6754
  %6756 = vrot.lane.b32.xlu0 %v4974, 56
  %v6757 = vpop.permute.xlu0 %6756
  %6758 = vrot.lane.b32.xlu0 %v4975, 56
  %v6759 = vpop.permute.xlu0 %6758
  %6760 = vrot.lane.b32.xlu0 %v4976, 56
  %v6761 = vpop.permute.xlu0 %6760
  %6762 = vrot.lane.b32.xlu0 %v4977, 56
  %v6763 = vpop.permute.xlu0 %6762
  %6764 = vrot.lane.b32.xlu0 %v4978, 56
  %v6765 = vpop.permute.xlu0 %6764
  %6766 = vrot.lane.b32.xlu0 %v4979, 56
  %v6767 = vpop.permute.xlu0 %6766
  %6768 = vrot.lane.b32.xlu0 %v4980, 56
  %v6769 = vpop.permute.xlu0 %6768
  %6770 = vrot.lane.b32.xlu0 %v4981, 56
  %v6771 = vpop.permute.xlu0 %6770
  %6772 = vrot.lane.b32.xlu0 %v4982, 56
  %v6773 = vpop.permute.xlu0 %6772
  %6774 = vrot.lane.b32.xlu0 %v4983, 56
  %v6775 = vpop.permute.xlu0 %6774
  %6904 = vrot.lane.b32.xlu0 %v4984, 64
  %v6905 = vpop.permute.xlu0 %6904
  %6906 = vrot.lane.b32.xlu0 %v4985, 64
  %v6907 = vpop.permute.xlu0 %6906
  %6908 = vrot.lane.b32.xlu0 %v4986, 64
  %v6909 = vpop.permute.xlu0 %6908
  %6910 = vrot.lane.b32.xlu0 %v4987, 64
  %v6911 = vpop.permute.xlu0 %6910
  %6912 = vrot.lane.b32.xlu0 %v4988, 64
  %v6913 = vpop.permute.xlu0 %6912
  %6914 = vrot.lane.b32.xlu0 %v4989, 64
  %v6915 = vpop.permute.xlu0 %6914
  %6916 = vrot.lane.b32.xlu0 %v4990, 64
  %v6917 = vpop.permute.xlu0 %6916
  %6918 = vrot.lane.b32.xlu0 %v4991, 64
  %v6919 = vpop.permute.xlu0 %6918
  %6920 = vrot.lane.b32.xlu0 %v4992, 64
  %v6921 = vpop.permute.xlu0 %6920
  %6922 = vrot.lane.b32.xlu0 %v4993, 64
  %v6923 = vpop.permute.xlu0 %6922
  %6924 = vrot.lane.b32.xlu0 %v4994, 64
  %v6925 = vpop.permute.xlu0 %6924
  %6926 = vrot.lane.b32.xlu0 %v4995, 64
  %v6927 = vpop.permute.xlu0 %6926
  %6928 = vrot.lane.b32.xlu0 %v4996, 64
  %v6929 = vpop.permute.xlu0 %6928
  %6930 = vrot.lane.b32.xlu0 %v4997, 64
  %v6931 = vpop.permute.xlu0 %6930
  %6932 = vrot.lane.b32.xlu0 %v4998, 64
  %v6933 = vpop.permute.xlu0 %6932
  %6934 = vrot.lane.b32.xlu0 %v4999, 64
  %v6935 = vpop.permute.xlu0 %6934
  %6936 = vrot.lane.b32.xlu0 %v5000, 64
  %v6937 = vpop.permute.xlu0 %6936
  %6938 = vrot.lane.b32.xlu0 %v5001, 64
  %v6939 = vpop.permute.xlu0 %6938
  %6940 = vrot.lane.b32.xlu0 %v5002, 64
  %v6941 = vpop.permute.xlu0 %6940
  %6942 = vrot.lane.b32.xlu0 %v5003, 64
  %v6943 = vpop.permute.xlu0 %6942
  %6944 = vrot.lane.b32.xlu0 %v5004, 64
  %v6945 = vpop.permute.xlu0 %6944
  %6946 = vrot.lane.b32.xlu0 %v5005, 64
  %v6947 = vpop.permute.xlu0 %6946
  %6948 = vrot.lane.b32.xlu0 %v5006, 64
  %v6949 = vpop.permute.xlu0 %6948
  %6950 = vrot.lane.b32.xlu0 %v5007, 64
  %v6951 = vpop.permute.xlu0 %6950
  %6952 = vrot.lane.b32.xlu0 %v5008, 64
  %v6953 = vpop.permute.xlu0 %6952
  %6954 = vrot.lane.b32.xlu0 %v5009, 64
  %v6955 = vpop.permute.xlu0 %6954
  %6956 = vrot.lane.b32.xlu0 %v5010, 64
  %v6957 = vpop.permute.xlu0 %6956
  %6958 = vrot.lane.b32.xlu0 %v5011, 64
  %v6959 = vpop.permute.xlu0 %6958
  %6960 = vrot.lane.b32.xlu0 %v5012, 64
  %v6961 = vpop.permute.xlu0 %6960
  %6962 = vrot.lane.b32.xlu0 %v5013, 64
  %v6963 = vpop.permute.xlu0 %6962
  %6964 = vrot.lane.b32.xlu0 %v5014, 64
  %v6965 = vpop.permute.xlu0 %6964
  %6966 = vrot.lane.b32.xlu0 %v5015, 64
  %v6967 = vpop.permute.xlu0 %6966
  %6968 = vrot.lane.b32.xlu0 %v5016, 64
  %v6969 = vpop.permute.xlu0 %6968
  %6970 = vrot.lane.b32.xlu0 %v5017, 64
  %v6971 = vpop.permute.xlu0 %6970
  %6972 = vrot.lane.b32.xlu0 %v5018, 64
  %v6973 = vpop.permute.xlu0 %6972
  %6974 = vrot.lane.b32.xlu0 %v5019, 64
  %v6975 = vpop.permute.xlu0 %6974
  %6976 = vrot.lane.b32.xlu0 %v5020, 64
  %v6977 = vpop.permute.xlu0 %6976
  %6978 = vrot.lane.b32.xlu0 %v5021, 64
  %v6979 = vpop.permute.xlu0 %6978
  %6980 = vrot.lane.b32.xlu0 %v5022, 64
  %v6981 = vpop.permute.xlu0 %6980
  %6982 = vrot.lane.b32.xlu0 %v5023, 64
  %v6983 = vpop.permute.xlu0 %6982
  %6984 = vrot.lane.b32.xlu0 %v5024, 64
  %v6985 = vpop.permute.xlu0 %6984
  %6986 = vrot.lane.b32.xlu0 %v5025, 64
  %v6987 = vpop.permute.xlu0 %6986
  %6988 = vrot.lane.b32.xlu0 %v5026, 64
  %v6989 = vpop.permute.xlu0 %6988
  %6990 = vrot.lane.b32.xlu0 %v5027, 64
  %v6991 = vpop.permute.xlu0 %6990
  %6992 = vrot.lane.b32.xlu0 %v5028, 64
  %v6993 = vpop.permute.xlu0 %6992
  %6994 = vrot.lane.b32.xlu0 %v5029, 64
  %v6995 = vpop.permute.xlu0 %6994
  %6996 = vrot.lane.b32.xlu0 %v5030, 64
  %v6997 = vpop.permute.xlu0 %6996
  %6998 = vrot.lane.b32.xlu0 %v5031, 64
  %v6999 = vpop.permute.xlu0 %6998
  %7000 = vrot.lane.b32.xlu0 %v5032, 64
  %v7001 = vpop.permute.xlu0 %7000
  %7002 = vrot.lane.b32.xlu0 %v5033, 64
  %v7003 = vpop.permute.xlu0 %7002
  %7004 = vrot.lane.b32.xlu0 %v5034, 64
  %v7005 = vpop.permute.xlu0 %7004
  %7006 = vrot.lane.b32.xlu0 %v5035, 64
  %v7007 = vpop.permute.xlu0 %7006
  %7008 = vrot.lane.b32.xlu0 %v5036, 64
  %v7009 = vpop.permute.xlu0 %7008
  %7010 = vrot.lane.b32.xlu0 %v5037, 64
  %v7011 = vpop.permute.xlu0 %7010
  %7012 = vrot.lane.b32.xlu0 %v5038, 64
  %v7013 = vpop.permute.xlu0 %7012
  %7014 = vrot.lane.b32.xlu0 %v5039, 64
  %v7015 = vpop.permute.xlu0 %7014
  %7016 = vrot.lane.b32.xlu0 %v5040, 64
  %v7017 = vpop.permute.xlu0 %7016
  %7018 = vrot.lane.b32.xlu0 %v5041, 64
  %v7019 = vpop.permute.xlu0 %7018
  %7020 = vrot.lane.b32.xlu0 %v5042, 64
  %v7021 = vpop.permute.xlu0 %7020
  %7022 = vrot.lane.b32.xlu0 %v5043, 64
  %v7023 = vpop.permute.xlu0 %7022
  %7024 = vrot.lane.b32.xlu0 %v5044, 64
  %v7025 = vpop.permute.xlu0 %7024
  %7026 = vrot.lane.b32.xlu0 %v5045, 64
  %v7027 = vpop.permute.xlu0 %7026
  %7028 = vrot.lane.b32.xlu0 %v5046, 64
  %v7029 = vpop.permute.xlu0 %7028
  %7030 = vrot.lane.b32.xlu0 %v5047, 64
  %v7031 = vpop.permute.xlu0 %7030
  %v7096 = vsel %vm26, %v4472, %v5113
  %v7097 = vsel %vm26, %v4473, %v5115
  %v7098 = vsel %vm26, %v4474, %v5117
  %v7099 = vsel %vm26, %v4475, %v5119
  %v7100 = vsel %vm26, %v4476, %v5121
  %v7101 = vsel %vm26, %v4477, %v5123
  %v7102 = vsel %vm26, %v4478, %v5125
  %v7103 = vsel %vm26, %v4479, %v5127
  %v7104 = vsel %vm26, %v4480, %v5129
  %v7105 = vsel %vm26, %v4481, %v5131
  %v7106 = vsel %vm26, %v4482, %v5133
  %v7107 = vsel %vm26, %v4483, %v5135
  %v7108 = vsel %vm26, %v4484, %v5137
  %v7109 = vsel %vm26, %v4485, %v5139
  %v7110 = vsel %vm26, %v4486, %v5141
  %v7111 = vsel %vm26, %v4487, %v5143
  %v7112 = vsel %vm26, %v4488, %v5145
  %v7113 = vsel %vm26, %v4489, %v5147
  %v7114 = vsel %vm26, %v4490, %v5149
  %v7115 = vsel %vm26, %v4491, %v5151
  %v7116 = vsel %vm26, %v4492, %v5153
  %v7117 = vsel %vm26, %v4493, %v5155
  %v7118 = vsel %vm26, %v4494, %v5157
  %v7119 = vsel %vm26, %v4495, %v5159
  %v7120 = vsel %vm26, %v4496, %v5161
  %v7121 = vsel %vm26, %v4497, %v5163
  %v7122 = vsel %vm26, %v4498, %v5165
  %v7123 = vsel %vm26, %v4499, %v5167
  %v7124 = vsel %vm26, %v4500, %v5169
  %v7125 = vsel %vm26, %v4501, %v5171
  %v7126 = vsel %vm26, %v4502, %v5173
  %v7127 = vsel %vm26, %v4503, %v5175
  %v7128 = vsel %vm26, %v4504, %v5177
  %v7129 = vsel %vm26, %v4505, %v5179
  %v7130 = vsel %vm26, %v4506, %v5181
  %v7131 = vsel %vm26, %v4507, %v5183
  %v7132 = vsel %vm26, %v4508, %v5185
  %v7133 = vsel %vm26, %v4509, %v5187
  %v7134 = vsel %vm26, %v4510, %v5189
  %v7135 = vsel %vm26, %v4511, %v5191
  %v7136 = vsel %vm26, %v4512, %v5193
  %v7137 = vsel %vm26, %v4513, %v5195
  %v7138 = vsel %vm26, %v4514, %v5197
  %v7139 = vsel %vm26, %v4515, %v5199
  %v7140 = vsel %vm26, %v4516, %v5201
  %v7141 = vsel %vm26, %v4517, %v5203
  %v7142 = vsel %vm26, %v4518, %v5205
  %v7143 = vsel %vm26, %v4519, %v5207
  %v7144 = vsel %vm26, %v4520, %v5209
  %v7145 = vsel %vm26, %v4521, %v5211
  %v7146 = vsel %vm26, %v4522, %v5213
  %v7147 = vsel %vm26, %v4523, %v5215
  %v7148 = vsel %vm26, %v4524, %v5217
  %v7149 = vsel %vm26, %v4525, %v5219
  %v7150 = vsel %vm26, %v4526, %v5221
  %v7151 = vsel %vm26, %v4527, %v5223
  %v7152 = vsel %vm26, %v4528, %v5225
  %v7153 = vsel %vm26, %v4529, %v5227
  %v7154 = vsel %vm26, %v4530, %v5229
  %v7155 = vsel %vm26, %v4531, %v5231
  %v7156 = vsel %vm26, %v4532, %v5233
  %v7157 = vsel %vm26, %v4533, %v5235
  %v7158 = vsel %vm26, %v4534, %v5237
  %v7159 = vsel %vm26, %v4535, %v5239
  %v7160 = vsel %vm3160, %v7096, %v5369
  %v7161 = vsel %vm3160, %v7097, %v5371
  %v7162 = vsel %vm3160, %v7098, %v5373
  %v7163 = vsel %vm3160, %v7099, %v5375
  %v7164 = vsel %vm3160, %v7100, %v5377
  %v7165 = vsel %vm3160, %v7101, %v5379
  %v7166 = vsel %vm3160, %v7102, %v5381
  %v7167 = vsel %vm3160, %v7103, %v5383
  %v7168 = vsel %vm3160, %v7104, %v5385
  %v7169 = vsel %vm3160, %v7105, %v5387
  %v7170 = vsel %vm3160, %v7106, %v5389
  %v7171 = vsel %vm3160, %v7107, %v5391
  %v7172 = vsel %vm3160, %v7108, %v5393
  %v7173 = vsel %vm3160, %v7109, %v5395
  %v7174 = vsel %vm3160, %v7110, %v5397
  %v7175 = vsel %vm3160, %v7111, %v5399
  %v7176 = vsel %vm3160, %v7112, %v5401
  %v7177 = vsel %vm3160, %v7113, %v5403
  %v7178 = vsel %vm3160, %v7114, %v5405
  %v7179 = vsel %vm3160, %v7115, %v5407
  %v7180 = vsel %vm3160, %v7116, %v5409
  %v7181 = vsel %vm3160, %v7117, %v5411
  %v7182 = vsel %vm3160, %v7118, %v5413
  %v7183 = vsel %vm3160, %v7119, %v5415
  %v7184 = vsel %vm3160, %v7120, %v5417
  %v7185 = vsel %vm3160, %v7121, %v5419
  %v7186 = vsel %vm3160, %v7122, %v5421
  %v7187 = vsel %vm3160, %v7123, %v5423
  %v7188 = vsel %vm3160, %v7124, %v5425
  %v7189 = vsel %vm3160, %v7125, %v5427
  %v7190 = vsel %vm3160, %v7126, %v5429
  %v7191 = vsel %vm3160, %v7127, %v5431
  %v7192 = vsel %vm3160, %v7128, %v5433
  %v7193 = vsel %vm3160, %v7129, %v5435
  %v7194 = vsel %vm3160, %v7130, %v5437
  %v7195 = vsel %vm3160, %v7131, %v5439
  %v7196 = vsel %vm3160, %v7132, %v5441
  %v7197 = vsel %vm3160, %v7133, %v5443
  %v7198 = vsel %vm3160, %v7134, %v5445
  %v7199 = vsel %vm3160, %v7135, %v5447
  %v7200 = vsel %vm3160, %v7136, %v5449
  %v7201 = vsel %vm3160, %v7137, %v5451
  %v7202 = vsel %vm3160, %v7138, %v5453
  %v7203 = vsel %vm3160, %v7139, %v5455
  %v7204 = vsel %vm3160, %v7140, %v5457
  %v7205 = vsel %vm3160, %v7141, %v5459
  %v7206 = vsel %vm3160, %v7142, %v5461
  %v7207 = vsel %vm3160, %v7143, %v5463
  %v7208 = vsel %vm3160, %v7144, %v5465
  %v7209 = vsel %vm3160, %v7145, %v5467
  %v7210 = vsel %vm3160, %v7146, %v5469
  %v7211 = vsel %vm3160, %v7147, %v5471
  %v7212 = vsel %vm3160, %v7148, %v5473
  %v7213 = vsel %vm3160, %v7149, %v5475
  %v7214 = vsel %vm3160, %v7150, %v5477
  %v7215 = vsel %vm3160, %v7151, %v5479
  %v7216 = vsel %vm3160, %v7152, %v5481
  %v7217 = vsel %vm3160, %v7153, %v5483
  %v7218 = vsel %vm3160, %v7154, %v5485
  %v7219 = vsel %vm3160, %v7155, %v5487
  %v7220 = vsel %vm3160, %v7156, %v5489
  %v7221 = vsel %vm3160, %v7157, %v5491
  %v7222 = vsel %vm3160, %v7158, %v5493
  %v7223 = vsel %vm3160, %v7159, %v5495
  %v7224 = vsel %vm3225, %v7160, %v5625
  %v7225 = vsel %vm3225, %v7161, %v5627
  %v7226 = vsel %vm3225, %v7162, %v5629
  %v7227 = vsel %vm3225, %v7163, %v5631
  %v7228 = vsel %vm3225, %v7164, %v5633
  %v7229 = vsel %vm3225, %v7165, %v5635
  %v7230 = vsel %vm3225, %v7166, %v5637
  %v7231 = vsel %vm3225, %v7167, %v5639
  %v7232 = vsel %vm3225, %v7168, %v5641
  %v7233 = vsel %vm3225, %v7169, %v5643
  %v7234 = vsel %vm3225, %v7170, %v5645
  %v7235 = vsel %vm3225, %v7171, %v5647
  %v7236 = vsel %vm3225, %v7172, %v5649
  %v7237 = vsel %vm3225, %v7173, %v5651
  %v7238 = vsel %vm3225, %v7174, %v5653
  %v7239 = vsel %vm3225, %v7175, %v5655
  %v7240 = vsel %vm3225, %v7176, %v5657
  %v7241 = vsel %vm3225, %v7177, %v5659
  %v7242 = vsel %vm3225, %v7178, %v5661
  %v7243 = vsel %vm3225, %v7179, %v5663
  %v7244 = vsel %vm3225, %v7180, %v5665
  %v7245 = vsel %vm3225, %v7181, %v5667
  %v7246 = vsel %vm3225, %v7182, %v5669
  %v7247 = vsel %vm3225, %v7183, %v5671
  %v7248 = vsel %vm3225, %v7184, %v5673
  %v7249 = vsel %vm3225, %v7185, %v5675
  %v7250 = vsel %vm3225, %v7186, %v5677
  %v7251 = vsel %vm3225, %v7187, %v5679
  %v7252 = vsel %vm3225, %v7188, %v5681
  %v7253 = vsel %vm3225, %v7189, %v5683
  %v7254 = vsel %vm3225, %v7190, %v5685
  %v7255 = vsel %vm3225, %v7191, %v5687
  %v7256 = vsel %vm3225, %v7192, %v5689
  %v7257 = vsel %vm3225, %v7193, %v5691
  %v7258 = vsel %vm3225, %v7194, %v5693
  %v7259 = vsel %vm3225, %v7195, %v5695
  %v7260 = vsel %vm3225, %v7196, %v5697
  %v7261 = vsel %vm3225, %v7197, %v5699
  %v7262 = vsel %vm3225, %v7198, %v5701
  %v7263 = vsel %vm3225, %v7199, %v5703
  %v7264 = vsel %vm3225, %v7200, %v5705
  %v7265 = vsel %vm3225, %v7201, %v5707
  %v7266 = vsel %vm3225, %v7202, %v5709
  %v7267 = vsel %vm3225, %v7203, %v5711
  %v7268 = vsel %vm3225, %v7204, %v5713
  %v7269 = vsel %vm3225, %v7205, %v5715
  %v7270 = vsel %vm3225, %v7206, %v5717
  %v7271 = vsel %vm3225, %v7207, %v5719
  %v7272 = vsel %vm3225, %v7208, %v5721
  %v7273 = vsel %vm3225, %v7209, %v5723
  %v7274 = vsel %vm3225, %v7210, %v5725
  %v7275 = vsel %vm3225, %v7211, %v5727
  %v7276 = vsel %vm3225, %v7212, %v5729
  %v7277 = vsel %vm3225, %v7213, %v5731
  %v7278 = vsel %vm3225, %v7214, %v5733
  %v7279 = vsel %vm3225, %v7215, %v5735
  %v7280 = vsel %vm3225, %v7216, %v5737
  %v7281 = vsel %vm3225, %v7217, %v5739
  %v7282 = vsel %vm3225, %v7218, %v5741
  %v7283 = vsel %vm3225, %v7219, %v5743
  %v7284 = vsel %vm3225, %v7220, %v5745
  %v7285 = vsel %vm3225, %v7221, %v5747
  %v7286 = vsel %vm3225, %v7222, %v5749
  %v7287 = vsel %vm3225, %v7223, %v5751
  %v7288 = vsel %vm3290, %v7224, %v5881
  %v7289 = vsel %vm3290, %v7225, %v5883
  %v7290 = vsel %vm3290, %v7226, %v5885
  %v7291 = vsel %vm3290, %v7227, %v5887
  %v7292 = vsel %vm3290, %v7228, %v5889
  %v7293 = vsel %vm3290, %v7229, %v5891
  %v7294 = vsel %vm3290, %v7230, %v5893
  %v7295 = vsel %vm3290, %v7231, %v5895
  %v7296 = vsel %vm3290, %v7232, %v5897
  %v7297 = vsel %vm3290, %v7233, %v5899
  %v7298 = vsel %vm3290, %v7234, %v5901
  %v7299 = vsel %vm3290, %v7235, %v5903
  %v7300 = vsel %vm3290, %v7236, %v5905
  %v7301 = vsel %vm3290, %v7237, %v5907
  %v7302 = vsel %vm3290, %v7238, %v5909
  %v7303 = vsel %vm3290, %v7239, %v5911
  %v7304 = vsel %vm3290, %v7240, %v5913
  %v7305 = vsel %vm3290, %v7241, %v5915
  %v7306 = vsel %vm3290, %v7242, %v5917
  %v7307 = vsel %vm3290, %v7243, %v5919
  %v7308 = vsel %vm3290, %v7244, %v5921
  %v7309 = vsel %vm3290, %v7245, %v5923
  %v7310 = vsel %vm3290, %v7246, %v5925
  %v7311 = vsel %vm3290, %v7247, %v5927
  %v7312 = vsel %vm3290, %v7248, %v5929
  %v7313 = vsel %vm3290, %v7249, %v5931
  %v7314 = vsel %vm3290, %v7250, %v5933
  %v7315 = vsel %vm3290, %v7251, %v5935
  %v7316 = vsel %vm3290, %v7252, %v5937
  %v7317 = vsel %vm3290, %v7253, %v5939
  %v7318 = vsel %vm3290, %v7254, %v5941
  %v7319 = vsel %vm3290, %v7255, %v5943
  %v7320 = vsel %vm3290, %v7256, %v5945
  %v7321 = vsel %vm3290, %v7257, %v5947
  %v7322 = vsel %vm3290, %v7258, %v5949
  %v7323 = vsel %vm3290, %v7259, %v5951
  %v7324 = vsel %vm3290, %v7260, %v5953
  %v7325 = vsel %vm3290, %v7261, %v5955
  %v7326 = vsel %vm3290, %v7262, %v5957
  %v7327 = vsel %vm3290, %v7263, %v5959
  %v7328 = vsel %vm3290, %v7264, %v5961
  %v7329 = vsel %vm3290, %v7265, %v5963
  %v7330 = vsel %vm3290, %v7266, %v5965
  %v7331 = vsel %vm3290, %v7267, %v5967
  %v7332 = vsel %vm3290, %v7268, %v5969
  %v7333 = vsel %vm3290, %v7269, %v5971
  %v7334 = vsel %vm3290, %v7270, %v5973
  %v7335 = vsel %vm3290, %v7271, %v5975
  %v7336 = vsel %vm3290, %v7272, %v5977
  %v7337 = vsel %vm3290, %v7273, %v5979
  %v7338 = vsel %vm3290, %v7274, %v5981
  %v7339 = vsel %vm3290, %v7275, %v5983
  %v7340 = vsel %vm3290, %v7276, %v5985
  %v7341 = vsel %vm3290, %v7277, %v5987
  %v7342 = vsel %vm3290, %v7278, %v5989
  %v7343 = vsel %vm3290, %v7279, %v5991
  %v7344 = vsel %vm3290, %v7280, %v5993
  %v7345 = vsel %vm3290, %v7281, %v5995
  %v7346 = vsel %vm3290, %v7282, %v5997
  %v7347 = vsel %vm3290, %v7283, %v5999
  %v7348 = vsel %vm3290, %v7284, %v6001
  %v7349 = vsel %vm3290, %v7285, %v6003
  %v7350 = vsel %vm3290, %v7286, %v6005
  %v7351 = vsel %vm3290, %v7287, %v6007
  %v7352 = vsel %vm3355, %v7288, %v6137
  %v7353 = vsel %vm3355, %v7289, %v6139
  %v7354 = vsel %vm3355, %v7290, %v6141
  %v7355 = vsel %vm3355, %v7291, %v6143
  %v7356 = vsel %vm3355, %v7292, %v6145
  %v7357 = vsel %vm3355, %v7293, %v6147
  %v7358 = vsel %vm3355, %v7294, %v6149
  %v7359 = vsel %vm3355, %v7295, %v6151
  %v7360 = vsel %vm3355, %v7296, %v6153
  %v7361 = vsel %vm3355, %v7297, %v6155
  %v7362 = vsel %vm3355, %v7298, %v6157
  %v7363 = vsel %vm3355, %v7299, %v6159
  %v7364 = vsel %vm3355, %v7300, %v6161
  %v7365 = vsel %vm3355, %v7301, %v6163
  %v7366 = vsel %vm3355, %v7302, %v6165
  %v7367 = vsel %vm3355, %v7303, %v6167
  %v7368 = vsel %vm3355, %v7304, %v6169
  %v7369 = vsel %vm3355, %v7305, %v6171
  %v7370 = vsel %vm3355, %v7306, %v6173
  %v7371 = vsel %vm3355, %v7307, %v6175
  %v7372 = vsel %vm3355, %v7308, %v6177
  %v7373 = vsel %vm3355, %v7309, %v6179
  %v7374 = vsel %vm3355, %v7310, %v6181
  %v7375 = vsel %vm3355, %v7311, %v6183
  %v7376 = vsel %vm3355, %v7312, %v6185
  %v7377 = vsel %vm3355, %v7313, %v6187
  %v7378 = vsel %vm3355, %v7314, %v6189
  %v7379 = vsel %vm3355, %v7315, %v6191
  %v7380 = vsel %vm3355, %v7316, %v6193
  %v7381 = vsel %vm3355, %v7317, %v6195
  %v7382 = vsel %vm3355, %v7318, %v6197
  %v7383 = vsel %vm3355, %v7319, %v6199
  %v7384 = vsel %vm3355, %v7320, %v6201
  %v7385 = vsel %vm3355, %v7321, %v6203
  %v7386 = vsel %vm3355, %v7322, %v6205
  %v7387 = vsel %vm3355, %v7323, %v6207
  %v7388 = vsel %vm3355, %v7324, %v6209
  %v7389 = vsel %vm3355, %v7325, %v6211
  %v7390 = vsel %vm3355, %v7326, %v6213
  %v7391 = vsel %vm3355, %v7327, %v6215
  %v7392 = vsel %vm3355, %v7328, %v6217
  %v7393 = vsel %vm3355, %v7329, %v6219
  %v7394 = vsel %vm3355, %v7330, %v6221
  %v7395 = vsel %vm3355, %v7331, %v6223
  %v7396 = vsel %vm3355, %v7332, %v6225
  %v7397 = vsel %vm3355, %v7333, %v6227
  %v7398 = vsel %vm3355, %v7334, %v6229
  %v7399 = vsel %vm3355, %v7335, %v6231
  %v7400 = vsel %vm3355, %v7336, %v6233
  %v7401 = vsel %vm3355, %v7337, %v6235
  %v7402 = vsel %vm3355, %v7338, %v6237
  %v7403 = vsel %vm3355, %v7339, %v6239
  %v7404 = vsel %vm3355, %v7340, %v6241
  %v7405 = vsel %vm3355, %v7341, %v6243
  %v7406 = vsel %vm3355, %v7342, %v6245
  %v7407 = vsel %vm3355, %v7343, %v6247
  %v7408 = vsel %vm3355, %v7344, %v6249
  %v7409 = vsel %vm3355, %v7345, %v6251
  %v7410 = vsel %vm3355, %v7346, %v6253
  %v7411 = vsel %vm3355, %v7347, %v6255
  %v7412 = vsel %vm3355, %v7348, %v6257
  %v7413 = vsel %vm3355, %v7349, %v6259
  %v7414 = vsel %vm3355, %v7350, %v6261
  %v7415 = vsel %vm3355, %v7351, %v6263
  %v7416 = vsel %vm3420, %v7352, %v6393
  %v7417 = vsel %vm3420, %v7353, %v6395
  %v7418 = vsel %vm3420, %v7354, %v6397
  %v7419 = vsel %vm3420, %v7355, %v6399
  %v7420 = vsel %vm3420, %v7356, %v6401
  %v7421 = vsel %vm3420, %v7357, %v6403
  %v7422 = vsel %vm3420, %v7358, %v6405
  %v7423 = vsel %vm3420, %v7359, %v6407
  %v7424 = vsel %vm3420, %v7360, %v6409
  %v7425 = vsel %vm3420, %v7361, %v6411
  %v7426 = vsel %vm3420, %v7362, %v6413
  %v7427 = vsel %vm3420, %v7363, %v6415
  %v7428 = vsel %vm3420, %v7364, %v6417
  %v7429 = vsel %vm3420, %v7365, %v6419
  %v7430 = vsel %vm3420, %v7366, %v6421
  %v7431 = vsel %vm3420, %v7367, %v6423
  %v7432 = vsel %vm3420, %v7368, %v6425
  %v7433 = vsel %vm3420, %v7369, %v6427
  %v7434 = vsel %vm3420, %v7370, %v6429
  %v7435 = vsel %vm3420, %v7371, %v6431
  %v7436 = vsel %vm3420, %v7372, %v6433
  %v7437 = vsel %vm3420, %v7373, %v6435
  %v7438 = vsel %vm3420, %v7374, %v6437
  %v7439 = vsel %vm3420, %v7375, %v6439
  %v7440 = vsel %vm3420, %v7376, %v6441
  %v7441 = vsel %vm3420, %v7377, %v6443
  %v7442 = vsel %vm3420, %v7378, %v6445
  %v7443 = vsel %vm3420, %v7379, %v6447
  %v7444 = vsel %vm3420, %v7380, %v6449
  %v7445 = vsel %vm3420, %v7381, %v6451
  %v7446 = vsel %vm3420, %v7382, %v6453
  %v7447 = vsel %vm3420, %v7383, %v6455
  %v7448 = vsel %vm3420, %v7384, %v6457
  %v7449 = vsel %vm3420, %v7385, %v6459
  %v7450 = vsel %vm3420, %v7386, %v6461
  %v7451 = vsel %vm3420, %v7387, %v6463
  %v7452 = vsel %vm3420, %v7388, %v6465
  %v7453 = vsel %vm3420, %v7389, %v6467
  %v7454 = vsel %vm3420, %v7390, %v6469
  %v7455 = vsel %vm3420, %v7391, %v6471
  %v7456 = vsel %vm3420, %v7392, %v6473
  %v7457 = vsel %vm3420, %v7393, %v6475
  %v7458 = vsel %vm3420, %v7394, %v6477
  %v7459 = vsel %vm3420, %v7395, %v6479
  %v7460 = vsel %vm3420, %v7396, %v6481
  %v7461 = vsel %vm3420, %v7397, %v6483
  %v7462 = vsel %vm3420, %v7398, %v6485
  %v7463 = vsel %vm3420, %v7399, %v6487
  %v7464 = vsel %vm3420, %v7400, %v6489
  %v7465 = vsel %vm3420, %v7401, %v6491
  %v7466 = vsel %vm3420, %v7402, %v6493
  %v7467 = vsel %vm3420, %v7403, %v6495
  %v7468 = vsel %vm3420, %v7404, %v6497
  %v7469 = vsel %vm3420, %v7405, %v6499
  %v7470 = vsel %vm3420, %v7406, %v6501
  %v7471 = vsel %vm3420, %v7407, %v6503
  %v7472 = vsel %vm3420, %v7408, %v6505
  %v7473 = vsel %vm3420, %v7409, %v6507
  %v7474 = vsel %vm3420, %v7410, %v6509
  %v7475 = vsel %vm3420, %v7411, %v6511
  %v7476 = vsel %vm3420, %v7412, %v6513
  %v7477 = vsel %vm3420, %v7413, %v6515
  %v7478 = vsel %vm3420, %v7414, %v6517
  %v7479 = vsel %vm3420, %v7415, %v6519
  %v7480 = vsel %vm3485, %v7416, %v6649
  %v7481 = vsel %vm3485, %v7417, %v6651
  %v7482 = vsel %vm3485, %v7418, %v6653
  %v7483 = vsel %vm3485, %v7419, %v6655
  %v7484 = vsel %vm3485, %v7420, %v6657
  %v7485 = vsel %vm3485, %v7421, %v6659
  %v7486 = vsel %vm3485, %v7422, %v6661
  %v7487 = vsel %vm3485, %v7423, %v6663
  %v7488 = vsel %vm3485, %v7424, %v6665
  %v7489 = vsel %vm3485, %v7425, %v6667
  %v7490 = vsel %vm3485, %v7426, %v6669
  %v7491 = vsel %vm3485, %v7427, %v6671
  %v7492 = vsel %vm3485, %v7428, %v6673
  %v7493 = vsel %vm3485, %v7429, %v6675
  %v7494 = vsel %vm3485, %v7430, %v6677
  %v7495 = vsel %vm3485, %v7431, %v6679
  %v7496 = vsel %vm3485, %v7432, %v6681
  %v7497 = vsel %vm3485, %v7433, %v6683
  %v7498 = vsel %vm3485, %v7434, %v6685
  %v7499 = vsel %vm3485, %v7435, %v6687
  %v7500 = vsel %vm3485, %v7436, %v6689
  %v7501 = vsel %vm3485, %v7437, %v6691
  %v7502 = vsel %vm3485, %v7438, %v6693
  %v7503 = vsel %vm3485, %v7439, %v6695
  %v7504 = vsel %vm3485, %v7440, %v6697
  %v7505 = vsel %vm3485, %v7441, %v6699
  %v7506 = vsel %vm3485, %v7442, %v6701
  %v7507 = vsel %vm3485, %v7443, %v6703
  %v7508 = vsel %vm3485, %v7444, %v6705
  %v7509 = vsel %vm3485, %v7445, %v6707
  %v7510 = vsel %vm3485, %v7446, %v6709
  %v7511 = vsel %vm3485, %v7447, %v6711
  %v7512 = vsel %vm3485, %v7448, %v6713
  %v7513 = vsel %vm3485, %v7449, %v6715
  %v7514 = vsel %vm3485, %v7450, %v6717
  %v7515 = vsel %vm3485, %v7451, %v6719
  %v7516 = vsel %vm3485, %v7452, %v6721
  %v7517 = vsel %vm3485, %v7453, %v6723
  %v7518 = vsel %vm3485, %v7454, %v6725
  %v7519 = vsel %vm3485, %v7455, %v6727
  %v7520 = vsel %vm3485, %v7456, %v6729
  %v7521 = vsel %vm3485, %v7457, %v6731
  %v7522 = vsel %vm3485, %v7458, %v6733
  %v7523 = vsel %vm3485, %v7459, %v6735
  %v7524 = vsel %vm3485, %v7460, %v6737
  %v7525 = vsel %vm3485, %v7461, %v6739
  %v7526 = vsel %vm3485, %v7462, %v6741
  %v7527 = vsel %vm3485, %v7463, %v6743
  %v7528 = vsel %vm3485, %v7464, %v6745
  %v7529 = vsel %vm3485, %v7465, %v6747
  %v7530 = vsel %vm3485, %v7466, %v6749
  %v7531 = vsel %vm3485, %v7467, %v6751
  %v7532 = vsel %vm3485, %v7468, %v6753
  %v7533 = vsel %vm3485, %v7469, %v6755
  %v7534 = vsel %vm3485, %v7470, %v6757
  %v7535 = vsel %vm3485, %v7471, %v6759
  %v7536 = vsel %vm3485, %v7472, %v6761
  %v7537 = vsel %vm3485, %v7473, %v6763
  %v7538 = vsel %vm3485, %v7474, %v6765
  %v7539 = vsel %vm3485, %v7475, %v6767
  %v7540 = vsel %vm3485, %v7476, %v6769
  %v7541 = vsel %vm3485, %v7477, %v6771
  %v7542 = vsel %vm3485, %v7478, %v6773
  %v7543 = vsel %vm3485, %v7479, %v6775
  %v7544 = vsel %vm3550, %v7480, %v6905
  %v7545 = vsel %vm3550, %v7481, %v6907
  %v7546 = vsel %vm3550, %v7482, %v6909
  %v7547 = vsel %vm3550, %v7483, %v6911
  %v7548 = vsel %vm3550, %v7484, %v6913
  %v7549 = vsel %vm3550, %v7485, %v6915
  %v7550 = vsel %vm3550, %v7486, %v6917
  %v7551 = vsel %vm3550, %v7487, %v6919
  %v7552 = vsel %vm3550, %v7488, %v6921
  %v7553 = vsel %vm3550, %v7489, %v6923
  %v7554 = vsel %vm3550, %v7490, %v6925
  %v7555 = vsel %vm3550, %v7491, %v6927
  %v7556 = vsel %vm3550, %v7492, %v6929
  %v7557 = vsel %vm3550, %v7493, %v6931
  %v7558 = vsel %vm3550, %v7494, %v6933
  %v7559 = vsel %vm3550, %v7495, %v6935
  %v7560 = vsel %vm3550, %v7496, %v6937
  %v7561 = vsel %vm3550, %v7497, %v6939
  %v7562 = vsel %vm3550, %v7498, %v6941
  %v7563 = vsel %vm3550, %v7499, %v6943
  %v7564 = vsel %vm3550, %v7500, %v6945
  %v7565 = vsel %vm3550, %v7501, %v6947
  %v7566 = vsel %vm3550, %v7502, %v6949
  %v7567 = vsel %vm3550, %v7503, %v6951
  %v7568 = vsel %vm3550, %v7504, %v6953
  %v7569 = vsel %vm3550, %v7505, %v6955
  %v7570 = vsel %vm3550, %v7506, %v6957
  %v7571 = vsel %vm3550, %v7507, %v6959
  %v7572 = vsel %vm3550, %v7508, %v6961
  %v7573 = vsel %vm3550, %v7509, %v6963
  %v7574 = vsel %vm3550, %v7510, %v6965
  %v7575 = vsel %vm3550, %v7511, %v6967
  %v7576 = vsel %vm3550, %v7512, %v6969
  %v7577 = vsel %vm3550, %v7513, %v6971
  %v7578 = vsel %vm3550, %v7514, %v6973
  %v7579 = vsel %vm3550, %v7515, %v6975
  %v7580 = vsel %vm3550, %v7516, %v6977
  %v7581 = vsel %vm3550, %v7517, %v6979
  %v7582 = vsel %vm3550, %v7518, %v6981
  %v7583 = vsel %vm3550, %v7519, %v6983
  %v7584 = vsel %vm3550, %v7520, %v6985
  %v7585 = vsel %vm3550, %v7521, %v6987
  %v7586 = vsel %vm3550, %v7522, %v6989
  %v7587 = vsel %vm3550, %v7523, %v6991
  %v7588 = vsel %vm3550, %v7524, %v6993
  %v7589 = vsel %vm3550, %v7525, %v6995
  %v7590 = vsel %vm3550, %v7526, %v6997
  %v7591 = vsel %vm3550, %v7527, %v6999
  %v7592 = vsel %vm3550, %v7528, %v7001
  %v7593 = vsel %vm3550, %v7529, %v7003
  %v7594 = vsel %vm3550, %v7530, %v7005
  %v7595 = vsel %vm3550, %v7531, %v7007
  %v7596 = vsel %vm3550, %v7532, %v7009
  %v7597 = vsel %vm3550, %v7533, %v7011
  %v7598 = vsel %vm3550, %v7534, %v7013
  %v7599 = vsel %vm3550, %v7535, %v7015
  %v7600 = vsel %vm3550, %v7536, %v7017
  %v7601 = vsel %vm3550, %v7537, %v7019
  %v7602 = vsel %vm3550, %v7538, %v7021
  %v7603 = vsel %vm3550, %v7539, %v7023
  %v7604 = vsel %vm3550, %v7540, %v7025
  %v7605 = vsel %vm3550, %v7541, %v7027
  %v7606 = vsel %vm3550, %v7542, %v7029
  %v7607 = vsel %vm3550, %v7543, %v7031
  %v7608 = vld [vmem:[%s6] sm:$0xff]
  %v7609 = vld [vmem:[%s6 + $0x8] sm:$0xff]
  %v7610 = vld [vmem:[%s6 + $0x10] sm:$0xff]
  %v7611 = vld [vmem:[%s6 + $0x18] sm:$0xff]
  %v7612 = vld [vmem:[%s6 + $0x20] sm:$0xff]
  %v7613 = vld [vmem:[%s6 + $0x28] sm:$0xff]
  %v7614 = vld [vmem:[%s6 + $0x30] sm:$0xff]
  %v7615 = vld [vmem:[%s6 + $0x38] sm:$0xff]
  %v7616 = vld [vmem:[%s6 + $0x40] sm:$0xff]
  %v7617 = vld [vmem:[%s0] sm:$0xff]
  %v7618 = vld [vmem:[%s0 + $0x8] sm:$0xff]
  %v7619 = vld [vmem:[%s0 + $0x10] sm:$0xff]
  %v7620 = vld [vmem:[%s0 + $0x18] sm:$0xff]
  %v7621 = vld [vmem:[%s0 + $0x20] sm:$0xff]
  %v7622 = vld [vmem:[%s0 + $0x28] sm:$0xff]
  %v7623 = vld [vmem:[%s0 + $0x30] sm:$0xff]
  %v7624 = vld [vmem:[%s0 + $0x38] sm:$0xff]
  %v7625 = vld [vmem:[%s0 + $0x40] sm:$0xff]
  %v7626 = vld [vmem:[%s0 + $0x48] sm:$0xff]
  %v7627 = vld [vmem:[%s0 + $0x50] sm:$0xff]
  %v7628 = vld [vmem:[%s0 + $0x58] sm:$0xff]
  %v7629 = vld [vmem:[%s0 + $0x60] sm:$0xff]
  %v7630 = vld [vmem:[%s0 + $0x68] sm:$0xff]
  %v7631 = vld [vmem:[%s0 + $0x70] sm:$0xff]
  %v7632 = vld [vmem:[%s0 + $0x78] sm:$0xff]
  %v7633 = vld [vmem:[%s0 + $0x80] sm:$0xff]
  %v7634 = vld [vmem:[%s0 + $0x88] sm:$0xff]
  %v7635 = vld [vmem:[%s0 + $0x90] sm:$0xff]
  %v7636 = vld [vmem:[%s0 + $0x98] sm:$0xff]
  %v7637 = vld [vmem:[%s0 + $0xa0] sm:$0xff]
  %v7638 = vld [vmem:[%s0 + $0xa8] sm:$0xff]
  %v7639 = vld [vmem:[%s0 + $0xb0] sm:$0xff]
  %v7640 = vld [vmem:[%s0 + $0xb8] sm:$0xff]
  %v7641 = vld [vmem:[%s0 + $0xc0] sm:$0xff]
  %v7642 = vld [vmem:[%s0 + $0xc8] sm:$0xff]
  %v7643 = vld [vmem:[%s0 + $0xd0] sm:$0xff]
  %v7644 = vld [vmem:[%s0 + $0xd8] sm:$0xff]
  %v7645 = vld [vmem:[%s0 + $0xe0] sm:$0xff]
  %v7646 = vld [vmem:[%s0 + $0xe8] sm:$0xff]
  %v7647 = vld [vmem:[%s0 + $0xf0] sm:$0xff]
  %v7648 = vld [vmem:[%s0 + $0xf8] sm:$0xff]
  %v7649 = vld [vmem:[%s0 + $0x100] sm:$0xff]
  %v7650 = vld [vmem:[%s0 + $0x108] sm:$0xff]
  %v7651 = vld [vmem:[%s0 + $0x110] sm:$0xff]
  %v7652 = vld [vmem:[%s0 + $0x118] sm:$0xff]
  %v7653 = vld [vmem:[%s0 + $0x120] sm:$0xff]
  %v7654 = vld [vmem:[%s0 + $0x128] sm:$0xff]
  %v7655 = vld [vmem:[%s0 + $0x130] sm:$0xff]
  %v7656 = vld [vmem:[%s0 + $0x138] sm:$0xff]
  %v7657 = vld [vmem:[%s0 + $0x140] sm:$0xff]
  %v7658 = vld [vmem:[%s0 + $0x148] sm:$0xff]
  %v7659 = vld [vmem:[%s0 + $0x150] sm:$0xff]
  %v7660 = vld [vmem:[%s0 + $0x158] sm:$0xff]
  %v7661 = vld [vmem:[%s0 + $0x160] sm:$0xff]
  %v7662 = vld [vmem:[%s0 + $0x168] sm:$0xff]
  %v7663 = vld [vmem:[%s0 + $0x170] sm:$0xff]
  %v7664 = vld [vmem:[%s0 + $0x178] sm:$0xff]
  %v7665 = vld [vmem:[%s0 + $0x180] sm:$0xff]
  %v7666 = vld [vmem:[%s0 + $0x188] sm:$0xff]
  %v7667 = vld [vmem:[%s0 + $0x190] sm:$0xff]
  %v7668 = vld [vmem:[%s0 + $0x198] sm:$0xff]
  %v7669 = vld [vmem:[%s0 + $0x1a0] sm:$0xff]
  %v7670 = vld [vmem:[%s0 + $0x1a8] sm:$0xff]
  %v7671 = vld [vmem:[%s0 + $0x1b0] sm:$0xff]
  %v7672 = vld [vmem:[%s0 + $0x1b8] sm:$0xff]
  %v7673 = vld [vmem:[%s0 + $0x1c0] sm:$0xff]
  %v7674 = vld [vmem:[%s0 + $0x1c8] sm:$0xff]
  %v7675 = vld [vmem:[%s0 + $0x1d0] sm:$0xff]
  %v7676 = vld [vmem:[%s0 + $0x1d8] sm:$0xff]
  %v7677 = vld [vmem:[%s0 + $0x1e0] sm:$0xff]
  %v7678 = vld [vmem:[%s0 + $0x1e8] sm:$0xff]
  %v7679 = vld [vmem:[%s0 + $0x1f0] sm:$0xff]
  %v7680 = vld [vmem:[%s0 + $0x1f8] sm:$0xff]
  %v7682 = vsel %vm3624, %v7544, 0
  %v7685 = vsel %vm3624, %v7545, 0
  %v7688 = vsel %vm3624, %v7546, 0
  %v7691 = vsel %vm3624, %v7547, 0
  %v7694 = vsel %vm3624, %v7548, 0
  %v7697 = vsel %vm3624, %v7549, 0
  %v7700 = vsel %vm3624, %v7550, 0
  %v7703 = vsel %vm3624, %v7551, 0
  %v7706 = vsel %vm3624, %v7552, 0
  %v7709 = vsel %vm3624, %v7553, 0
  %v7712 = vsel %vm3624, %v7554, 0
  %v7715 = vsel %vm3624, %v7555, 0
  %v7718 = vsel %vm3624, %v7556, 0
  %v7721 = vsel %vm3624, %v7557, 0
  %v7724 = vsel %vm3624, %v7558, 0
  %v7727 = vsel %vm3624, %v7559, 0
  %v7730 = vsel %vm3624, %v7560, 0
  %v7733 = vsel %vm3624, %v7561, 0
  %v7736 = vsel %vm3624, %v7562, 0
  %v7739 = vsel %vm3624, %v7563, 0
  %v7742 = vsel %vm3624, %v7564, 0
  %v7745 = vsel %vm3624, %v7565, 0
  %v7748 = vsel %vm3624, %v7566, 0
  %v7751 = vsel %vm3624, %v7567, 0
  %v7754 = vsel %vm3624, %v7568, 0
  %v7757 = vsel %vm3624, %v7569, 0
  %v7760 = vsel %vm3624, %v7570, 0
  %v7763 = vsel %vm3624, %v7571, 0
  %v7766 = vsel %vm3624, %v7572, 0
  %v7769 = vsel %vm3624, %v7573, 0
  %v7772 = vsel %vm3624, %v7574, 0
  %v7775 = vsel %vm3624, %v7575, 0
  %v7778 = vsel %vm3624, %v7576, 0
  %v7781 = vsel %vm3624, %v7577, 0
  %v7784 = vsel %vm3624, %v7578, 0
  %v7787 = vsel %vm3624, %v7579, 0
  %v7790 = vsel %vm3624, %v7580, 0
  %v7793 = vsel %vm3624, %v7581, 0
  %v7796 = vsel %vm3624, %v7582, 0
  %v7799 = vsel %vm3624, %v7583, 0
  %v7802 = vsel %vm3624, %v7584, 0
  %v7805 = vsel %vm3624, %v7585, 0
  %v7808 = vsel %vm3624, %v7586, 0
  %v7811 = vsel %vm3624, %v7587, 0
  %v7814 = vsel %vm3624, %v7588, 0
  %v7817 = vsel %vm3624, %v7589, 0
  %v7820 = vsel %vm3624, %v7590, 0
  %v7823 = vsel %vm3624, %v7591, 0
  %v7826 = vsel %vm3624, %v7592, 0
  %v7829 = vsel %vm3624, %v7593, 0
  %v7832 = vsel %vm3624, %v7594, 0
  %v7835 = vsel %vm3624, %v7595, 0
  %v7838 = vsel %vm3624, %v7596, 0
  %v7841 = vsel %vm3624, %v7597, 0
  %v7844 = vsel %vm3624, %v7598, 0
  %v7847 = vsel %vm3624, %v7599, 0
  %v7850 = vsel %vm3624, %v7600, 0
  %v7853 = vsel %vm3624, %v7601, 0
  %v7856 = vsel %vm3624, %v7602, 0
  %v7859 = vsel %vm3624, %v7603, 0
  %v7862 = vsel %vm3624, %v7604, 0
  %v7865 = vsel %vm3624, %v7605, 0
  %v7868 = vsel %vm3624, %v7606, 0
  %v7871 = vsel %vm3624, %v7607, 0
  %7873 = vmatprep.subr.mxu0 0.0
  %7874 = vmatpush1.msra.mxu0 %v7608
  %7875 = vmatprep.subr.mxu0 0.0
  %7876 = vmatpush1.msra.mxu0 %v7609
  %7877 = vmatprep.subr.mxu0 0.0
  %7878 = vmatpush1.msra.mxu0 %v7610
  %7879 = vmatprep.subr.mxu0 0.0
  %7880 = vmatpush1.msra.mxu0 %v7611
  %7881 = vmatprep.subr.mxu0 0.0
  %7882 = vmatpush1.msra.mxu0 %v7612
  %7883 = vmatprep.subr.mxu0 0.0
  %7884 = vmatpush1.msra.mxu0 %v7613
  %7885 = vmatprep.subr.mxu0 0.0
  %7886 = vmatpush1.msra.mxu0 %v7614
  %7887 = vmatprep.subr.mxu0 0.0
  %7888 = vmatpush1.msra.mxu0 %v7615
  %7889 = vmatprep.subr.mxu0 0.0
  %7890 = vmatpush1.msra.mxu0 %v7616
  %7891 = vmatprep.subr.mxu0 0.0
  %7892 = vmatpush1.msra.mxu0 0.0
  %7893 = vmatprep.subr.mxu0 0.0
  %7894 = vmatpush1.msra.mxu0 0.0
  %7895 = vmatprep.subr.mxu0 0.0
  %7896 = vmatpush1.msra.mxu0 0.0
  %7897 = vmatprep.subr.mxu0 0.0
  %7898 = vmatpush1.msra.mxu0 0.0
  %7899 = vmatprep.subr.mxu0 0.0
  %7900 = vmatpush1.msra.mxu0 0.0
  %7901 = vmatprep.subr.mxu0 0.0
  %7902 = vmatpush1.msra.mxu0 0.0
  %7903 = vmatprep.subr.mxu0 0.0
  %7904 = vmatpush1.msra.mxu0 0.0
  %7905 = vmatprep.subr.mxu0 0.0
  %7906 = vmatpush1.msra.mxu0 0.0
  %7907 = vmatprep.subr.mxu0 0.0
  %7908 = vmatpush1.msra.mxu0 0.0
  %7909 = vmatprep.subr.mxu0 0.0
  %7910 = vmatpush1.msra.mxu0 0.0
  %7911 = vmatprep.subr.mxu0 0.0
  %7912 = vmatpush1.msra.mxu0 0.0
  %7913 = vmatprep.subr.mxu0 0.0
  %7914 = vmatpush1.msra.mxu0 0.0
  %7915 = vmatprep.subr.mxu0 0.0
  %7916 = vmatpush1.msra.mxu0 0.0
  %7917 = vmatprep.subr.mxu0 0.0
  %7918 = vmatpush1.msra.mxu0 0.0
  %7919 = vmatprep.subr.mxu0 0.0
  %7920 = vmatpush1.msra.mxu0 0.0
  %7921 = vmatprep.subr.mxu0 0.0
  %7922 = vmatpush1.msra.mxu0 0.0
  %7923 = vmatprep.subr.mxu0 0.0
  %7924 = vmatpush1.msra.mxu0 0.0
  %7925 = vmatprep.subr.mxu0 0.0
  %7926 = vmatpush1.msra.mxu0 0.0
  %7927 = vmatprep.subr.mxu0 0.0
  %7928 = vmatpush1.msra.mxu0 0.0
  %7929 = vmatprep.subr.mxu0 0.0
  %7930 = vmatpush1.msra.mxu0 0.0
  %7931 = vmatprep.subr.mxu0 0.0
  %7932 = vmatpush1.msra.mxu0 0.0
  %7933 = vmatprep.subr.mxu0 0.0
  %7934 = vmatpush1.msra.mxu0 0.0
  %7935 = vmatprep.subr.mxu0 0.0
  %7936 = vmatpush1.msra.mxu0 0.0
  %7937 = vmatprep.mubr.f32.mxu0 0.0
  %7938 = vmatmul.mubr.f32.gmra.mrb[0].mxu0 %v7682
  %v7939 = vpop.f32.mrb[0].mxu0
  %v7940 = vadd.f32 %v7617, %v7939
  %v7941 = vpop.f32.mrb[0].mxu0
  %7942 = vmatprep.mubr.f32.mxu0 0.0
  %7943 = vmatmul.mubr.f32.gmra.mrb[0].mxu0 %v7685
  %v7944 = vpop.f32.mrb[0].mxu0
  %v7945 = vadd.f32 %v7618, %v7944
  %v7946 = vpop.f32.mrb[0].mxu0
  %7947 = vmatprep.mubr.f32.mxu0 0.0
  %7948 = vmatmul.mubr.f32.gmra.mrb[0].mxu0 %v7688
  %v7949 = vpop.f32.mrb[0].mxu0
  %v7950 = vadd.f32 %v7619, %v7949
  %v7951 = vpop.f32.mrb[0].mxu0
  %7952 = vmatprep.mubr.f32.mxu0 0.0
  %7953 = vmatmul.mubr.f32.gmra.mrb[0].mxu0 %v7691
  %v7954 = vpop.f32.mrb[0].mxu0
  %v7955 = vadd.f32 %v7620, %v7954
  %v7956 = vpop.f32.mrb[0].mxu0
  %7957 = vmatprep.mubr.f32.mxu0 0.0
  %7958 = vmatmul.mubr.f32.gmra.mrb[0].mxu0 %v7694
  %v7959 = vpop.f32.mrb[0].mxu0
  %v7960 = vadd.f32 %v7621, %v7959
  %v7961 = vpop.f32.mrb[0].mxu0
  %7962 = vmatprep.mubr.f32.mxu0 0.0
  %7963 = vmatmul.mubr.f32.gmra.mrb[0].mxu0 %v7697
  %v7964 = vpop.f32.mrb[0].mxu0
  %v7965 = vadd.f32 %v7622, %v7964
  %v7966 = vpop.f32.mrb[0].mxu0
  %7967 = vmatprep.mubr.f32.mxu0 0.0
  %7968 = vmatmul.mubr.f32.gmra.mrb[0].mxu0 %v7700
  %v7969 = vpop.f32.mrb[0].mxu0
  %v7970 = vadd.f32 %v7623, %v7969
  %v7971 = vpop.f32.mrb[0].mxu0
  %7972 = vmatprep.mubr.f32.mxu0 0.0
  %7973 = vmatmul.mubr.f32.gmra.mrb[0].mxu0 %v7703
  %v7974 = vpop.f32.mrb[0].mxu0
  %v7975 = vadd.f32 %v7624, %v7974
  %v7976 = vpop.f32.mrb[0].mxu0
  %7977 = vmatprep.mubr.f32.mxu0 0.0
  %7978 = vmatmul.mubr.f32.gmra.mrb[0].mxu0 %v7706
  %v7979 = vpop.f32.mrb[0].mxu0
  %v7980 = vadd.f32 %v7625, %v7979
  %v7981 = vpop.f32.mrb[0].mxu0
  %7982 = vmatprep.mubr.f32.mxu0 0.0
  %7983 = vmatmul.mubr.f32.gmra.mrb[0].mxu0 %v7709
  %v7984 = vpop.f32.mrb[0].mxu0
  %v7985 = vadd.f32 %v7626, %v7984
  %v7986 = vpop.f32.mrb[0].mxu0
  %7987 = vmatprep.mubr.f32.mxu0 0.0
  %7988 = vmatmul.mubr.f32.gmra.mrb[0].mxu0 %v7712
  %v7989 = vpop.f32.mrb[0].mxu0
  %v7990 = vadd.f32 %v7627, %v7989
  %v7991 = vpop.f32.mrb[0].mxu0
  %7992 = vmatprep.mubr.f32.mxu0 0.0
  %7993 = vmatmul.mubr.f32.gmra.mrb[0].mxu0 %v7715
  %v7994 = vpop.f32.mrb[0].mxu0
  %v7995 = vadd.f32 %v7628, %v7994
  %v7996 = vpop.f32.mrb[0].mxu0
  %7997 = vmatprep.mubr.f32.mxu0 0.0
  %7998 = vmatmul.mubr.f32.gmra.mrb[0].mxu0 %v7718
  %v7999 = vpop.f32.mrb[0].mxu0
  %v8000 = vadd.f32 %v7629, %v7999
  %v8001 = vpop.f32.mrb[0].mxu0
  %8002 = vmatprep.mubr.f32.mxu0 0.0
  %8003 = vmatmul.mubr.f32.gmra.mrb[0].mxu0 %v7721
  %v8004 = vpop.f32.mrb[0].mxu0
  %v8005 = vadd.f32 %v7630, %v8004
  %v8006 = vpop.f32.mrb[0].mxu0
  %8007 = vmatprep.mubr.f32.mxu0 0.0
  %8008 = vmatmul.mubr.f32.gmra.mrb[0].mxu0 %v7724
  %v8009 = vpop.f32.mrb[0].mxu0
  %v8010 = vadd.f32 %v7631, %v8009
  %v8011 = vpop.f32.mrb[0].mxu0
  %8012 = vmatprep.mubr.f32.mxu0 0.0
  %8013 = vmatmul.mubr.f32.gmra.mrb[0].mxu0 %v7727
  %v8014 = vpop.f32.mrb[0].mxu0
  %v8015 = vadd.f32 %v7632, %v8014
  %v8016 = vpop.f32.mrb[0].mxu0
  %8017 = vmatprep.mubr.f32.mxu0 0.0
  %8018 = vmatmul.mubr.f32.gmra.mrb[0].mxu0 %v7730
  %v8019 = vpop.f32.mrb[0].mxu0
  %v8020 = vadd.f32 %v7633, %v8019
  %v8021 = vpop.f32.mrb[0].mxu0
  %8022 = vmatprep.mubr.f32.mxu0 0.0
  %8023 = vmatmul.mubr.f32.gmra.mrb[0].mxu0 %v7733
  %v8024 = vpop.f32.mrb[0].mxu0
  %v8025 = vadd.f32 %v7634, %v8024
  %v8026 = vpop.f32.mrb[0].mxu0
  %8027 = vmatprep.mubr.f32.mxu0 0.0
  %8028 = vmatmul.mubr.f32.gmra.mrb[0].mxu0 %v7736
  %v8029 = vpop.f32.mrb[0].mxu0
  %v8030 = vadd.f32 %v7635, %v8029
  %v8031 = vpop.f32.mrb[0].mxu0
  %8032 = vmatprep.mubr.f32.mxu0 0.0
  %8033 = vmatmul.mubr.f32.gmra.mrb[0].mxu0 %v7739
  %v8034 = vpop.f32.mrb[0].mxu0
  %v8035 = vadd.f32 %v7636, %v8034
  %v8036 = vpop.f32.mrb[0].mxu0
  %8037 = vmatprep.mubr.f32.mxu0 0.0
  %8038 = vmatmul.mubr.f32.gmra.mrb[0].mxu0 %v7742
  %v8039 = vpop.f32.mrb[0].mxu0
  %v8040 = vadd.f32 %v7637, %v8039
  %v8041 = vpop.f32.mrb[0].mxu0
  %8042 = vmatprep.mubr.f32.mxu0 0.0
  %8043 = vmatmul.mubr.f32.gmra.mrb[0].mxu0 %v7745
  %v8044 = vpop.f32.mrb[0].mxu0
  %v8045 = vadd.f32 %v7638, %v8044
  %v8046 = vpop.f32.mrb[0].mxu0
  %8047 = vmatprep.mubr.f32.mxu0 0.0
  %8048 = vmatmul.mubr.f32.gmra.mrb[0].mxu0 %v7748
  %v8049 = vpop.f32.mrb[0].mxu0
  %v8050 = vadd.f32 %v7639, %v8049
  %v8051 = vpop.f32.mrb[0].mxu0
  %8052 = vmatprep.mubr.f32.mxu0 0.0
  %8053 = vmatmul.mubr.f32.gmra.mrb[0].mxu0 %v7751
  %v8054 = vpop.f32.mrb[0].mxu0
  %v8055 = vadd.f32 %v7640, %v8054
  %v8056 = vpop.f32.mrb[0].mxu0
  %8057 = vmatprep.mubr.f32.mxu0 0.0
  %8058 = vmatmul.mubr.f32.gmra.mrb[0].mxu0 %v7754
  %v8059 = vpop.f32.mrb[0].mxu0
  %v8060 = vadd.f32 %v7641, %v8059
  %v8061 = vpop.f32.mrb[0].mxu0
  %8062 = vmatprep.mubr.f32.mxu0 0.0
  %8063 = vmatmul.mubr.f32.gmra.mrb[0].mxu0 %v7757
  %v8064 = vpop.f32.mrb[0].mxu0
  %v8065 = vadd.f32 %v7642, %v8064
  %v8066 = vpop.f32.mrb[0].mxu0
  %8067 = vmatprep.mubr.f32.mxu0 0.0
  %8068 = vmatmul.mubr.f32.gmra.mrb[0].mxu0 %v7760
  %v8069 = vpop.f32.mrb[0].mxu0
  %v8070 = vadd.f32 %v7643, %v8069
  %v8071 = vpop.f32.mrb[0].mxu0
  %8072 = vmatprep.mubr.f32.mxu0 0.0
  %8073 = vmatmul.mubr.f32.gmra.mrb[0].mxu0 %v7763
  %v8074 = vpop.f32.mrb[0].mxu0
  %v8075 = vadd.f32 %v7644, %v8074
  %v8076 = vpop.f32.mrb[0].mxu0
  %8077 = vmatprep.mubr.f32.mxu0 0.0
  %8078 = vmatmul.mubr.f32.gmra.mrb[0].mxu0 %v7766
  %v8079 = vpop.f32.mrb[0].mxu0
  %v8080 = vadd.f32 %v7645, %v8079
  %v8081 = vpop.f32.mrb[0].mxu0
  %8082 = vmatprep.mubr.f32.mxu0 0.0
  %8083 = vmatmul.mubr.f32.gmra.mrb[0].mxu0 %v7769
  %v8084 = vpop.f32.mrb[0].mxu0
  %v8085 = vadd.f32 %v7646, %v8084
  %v8086 = vpop.f32.mrb[0].mxu0
  %8087 = vmatprep.mubr.f32.mxu0 0.0
  %8088 = vmatmul.mubr.f32.gmra.mrb[0].mxu0 %v7772
  %v8089 = vpop.f32.mrb[0].mxu0
  %v8090 = vadd.f32 %v7647, %v8089
  %v8091 = vpop.f32.mrb[0].mxu0
  %8092 = vmatprep.mubr.f32.mxu0 0.0
  %8093 = vmatmul.mubr.f32.gmra.mrb[0].mxu0 %v7775
  %v8094 = vpop.f32.mrb[0].mxu0
  %v8095 = vadd.f32 %v7648, %v8094
  %v8096 = vpop.f32.mrb[0].mxu0
  %8097 = vmatprep.mubr.f32.mxu0 0.0
  %8098 = vmatmul.mubr.f32.gmra.mrb[0].mxu0 %v7778
  %v8099 = vpop.f32.mrb[0].mxu0
  %v8100 = vadd.f32 %v7649, %v8099
  %v8101 = vpop.f32.mrb[0].mxu0
  %8102 = vmatprep.mubr.f32.mxu0 0.0
  %8103 = vmatmul.mubr.f32.gmra.mrb[0].mxu0 %v7781
  %v8104 = vpop.f32.mrb[0].mxu0
  %v8105 = vadd.f32 %v7650, %v8104
  %v8106 = vpop.f32.mrb[0].mxu0
  %8107 = vmatprep.mubr.f32.mxu0 0.0
  %8108 = vmatmul.mubr.f32.gmra.mrb[0].mxu0 %v7784
  %v8109 = vpop.f32.mrb[0].mxu0
  %v8110 = vadd.f32 %v7651, %v8109
  %v8111 = vpop.f32.mrb[0].mxu0
  %8112 = vmatprep.mubr.f32.mxu0 0.0
  %8113 = vmatmul.mubr.f32.gmra.mrb[0].mxu0 %v7787
  %v8114 = vpop.f32.mrb[0].mxu0
  %v8115 = vadd.f32 %v7652, %v8114
  %v8116 = vpop.f32.mrb[0].mxu0
  %8117 = vmatprep.mubr.f32.mxu0 0.0
  %8118 = vmatmul.mubr.f32.gmra.mrb[0].mxu0 %v7790
  %v8119 = vpop.f32.mrb[0].mxu0
  %v8120 = vadd.f32 %v7653, %v8119
  %v8121 = vpop.f32.mrb[0].mxu0
  %8122 = vmatprep.mubr.f32.mxu0 0.0
  %8123 = vmatmul.mubr.f32.gmra.mrb[0].mxu0 %v7793
  %v8124 = vpop.f32.mrb[0].mxu0
  %v8125 = vadd.f32 %v7654, %v8124
  %v8126 = vpop.f32.mrb[0].mxu0
  %8127 = vmatprep.mubr.f32.mxu0 0.0
  %8128 = vmatmul.mubr.f32.gmra.mrb[0].mxu0 %v7796
  %v8129 = vpop.f32.mrb[0].mxu0
  %v8130 = vadd.f32 %v7655, %v8129
  %v8131 = vpop.f32.mrb[0].mxu0
  %8132 = vmatprep.mubr.f32.mxu0 0.0
  %8133 = vmatmul.mubr.f32.gmra.mrb[0].mxu0 %v7799
  %v8134 = vpop.f32.mrb[0].mxu0
  %v8135 = vadd.f32 %v7656, %v8134
  %v8136 = vpop.f32.mrb[0].mxu0
  %8137 = vmatprep.mubr.f32.mxu0 0.0
  %8138 = vmatmul.mubr.f32.gmra.mrb[0].mxu0 %v7802
  %v8139 = vpop.f32.mrb[0].mxu0
  %v8140 = vadd.f32 %v7657, %v8139
  %v8141 = vpop.f32.mrb[0].mxu0
  %8142 = vmatprep.mubr.f32.mxu0 0.0
  %8143 = vmatmul.mubr.f32.gmra.mrb[0].mxu0 %v7805
  %v8144 = vpop.f32.mrb[0].mxu0
  %v8145 = vadd.f32 %v7658, %v8144
  %v8146 = vpop.f32.mrb[0].mxu0
  %8147 = vmatprep.mubr.f32.mxu0 0.0
  %8148 = vmatmul.mubr.f32.gmra.mrb[0].mxu0 %v7808
  %v8149 = vpop.f32.mrb[0].mxu0
  %v8150 = vadd.f32 %v7659, %v8149
  %v8151 = vpop.f32.mrb[0].mxu0
  %8152 = vmatprep.mubr.f32.mxu0 0.0
  %8153 = vmatmul.mubr.f32.gmra.mrb[0].mxu0 %v7811
  %v8154 = vpop.f32.mrb[0].mxu0
  %v8155 = vadd.f32 %v7660, %v8154
  %v8156 = vpop.f32.mrb[0].mxu0
  %8157 = vmatprep.mubr.f32.mxu0 0.0
  %8158 = vmatmul.mubr.f32.gmra.mrb[0].mxu0 %v7814
  %v8159 = vpop.f32.mrb[0].mxu0
  %v8160 = vadd.f32 %v7661, %v8159
  %v8161 = vpop.f32.mrb[0].mxu0
  %8162 = vmatprep.mubr.f32.mxu0 0.0
  %8163 = vmatmul.mubr.f32.gmra.mrb[0].mxu0 %v7817
  %v8164 = vpop.f32.mrb[0].mxu0
  %v8165 = vadd.f32 %v7662, %v8164
  %v8166 = vpop.f32.mrb[0].mxu0
  %8167 = vmatprep.mubr.f32.mxu0 0.0
  %8168 = vmatmul.mubr.f32.gmra.mrb[0].mxu0 %v7820
  %v8169 = vpop.f32.mrb[0].mxu0
  %v8170 = vadd.f32 %v7663, %v8169
  %v8171 = vpop.f32.mrb[0].mxu0
  %8172 = vmatprep.mubr.f32.mxu0 0.0
  %8173 = vmatmul.mubr.f32.gmra.mrb[0].mxu0 %v7823
  %v8174 = vpop.f32.mrb[0].mxu0
  %v8175 = vadd.f32 %v7664, %v8174
  %v8176 = vpop.f32.mrb[0].mxu0
  %8177 = vmatprep.mubr.f32.mxu0 0.0
  %8178 = vmatmul.mubr.f32.gmra.mrb[0].mxu0 %v7826
  %v8179 = vpop.f32.mrb[0].mxu0
  %v8180 = vadd.f32 %v7665, %v8179
  %v8181 = vpop.f32.mrb[0].mxu0
  %8182 = vmatprep.mubr.f32.mxu0 0.0
  %8183 = vmatmul.mubr.f32.gmra.mrb[0].mxu0 %v7829
  %v8184 = vpop.f32.mrb[0].mxu0
  %v8185 = vadd.f32 %v7666, %v8184
  %v8186 = vpop.f32.mrb[0].mxu0
  %8187 = vmatprep.mubr.f32.mxu0 0.0
  %8188 = vmatmul.mubr.f32.gmra.mrb[0].mxu0 %v7832
  %v8189 = vpop.f32.mrb[0].mxu0
  %v8190 = vadd.f32 %v7667, %v8189
  %v8191 = vpop.f32.mrb[0].mxu0
  %8192 = vmatprep.mubr.f32.mxu0 0.0
  %8193 = vmatmul.mubr.f32.gmra.mrb[0].mxu0 %v7835
  %v8194 = vpop.f32.mrb[0].mxu0
  %v8195 = vadd.f32 %v7668, %v8194
  %v8196 = vpop.f32.mrb[0].mxu0
  %8197 = vmatprep.mubr.f32.mxu0 0.0
  %8198 = vmatmul.mubr.f32.gmra.mrb[0].mxu0 %v7838
  %v8199 = vpop.f32.mrb[0].mxu0
  %v8200 = vadd.f32 %v7669, %v8199
  %v8201 = vpop.f32.mrb[0].mxu0
  %8202 = vmatprep.mubr.f32.mxu0 0.0
  %8203 = vmatmul.mubr.f32.gmra.mrb[0].mxu0 %v7841
  %v8204 = vpop.f32.mrb[0].mxu0
  %v8205 = vadd.f32 %v7670, %v8204
  %v8206 = vpop.f32.mrb[0].mxu0
  %8207 = vmatprep.mubr.f32.mxu0 0.0
  %8208 = vmatmul.mubr.f32.gmra.mrb[0].mxu0 %v7844
  %v8209 = vpop.f32.mrb[0].mxu0
  %v8210 = vadd.f32 %v7671, %v8209
  %v8211 = vpop.f32.mrb[0].mxu0
  %8212 = vmatprep.mubr.f32.mxu0 0.0
  %8213 = vmatmul.mubr.f32.gmra.mrb[0].mxu0 %v7847
  %v8214 = vpop.f32.mrb[0].mxu0
  %v8215 = vadd.f32 %v7672, %v8214
  %v8216 = vpop.f32.mrb[0].mxu0
  %8217 = vmatprep.mubr.f32.mxu0 0.0
  %8218 = vmatmul.mubr.f32.gmra.mrb[0].mxu0 %v7850
  %v8219 = vpop.f32.mrb[0].mxu0
  %v8220 = vadd.f32 %v7673, %v8219
  %v8221 = vpop.f32.mrb[0].mxu0
  %8222 = vmatprep.mubr.f32.mxu0 0.0
  %8223 = vmatmul.mubr.f32.gmra.mrb[0].mxu0 %v7853
  %v8224 = vpop.f32.mrb[0].mxu0
  %v8225 = vadd.f32 %v7674, %v8224
  %v8226 = vpop.f32.mrb[0].mxu0
  %8227 = vmatprep.mubr.f32.mxu0 0.0
  %8228 = vmatmul.mubr.f32.gmra.mrb[0].mxu0 %v7856
  %v8229 = vpop.f32.mrb[0].mxu0
  %v8230 = vadd.f32 %v7675, %v8229
  %v8231 = vpop.f32.mrb[0].mxu0
  %8232 = vmatprep.mubr.f32.mxu0 0.0
  %8233 = vmatmul.mubr.f32.gmra.mrb[0].mxu0 %v7859
  %v8234 = vpop.f32.mrb[0].mxu0
  %v8235 = vadd.f32 %v7676, %v8234
  %v8236 = vpop.f32.mrb[0].mxu0
  %8237 = vmatprep.mubr.f32.mxu0 0.0
  %8238 = vmatmul.mubr.f32.gmra.mrb[0].mxu0 %v7862
  %v8239 = vpop.f32.mrb[0].mxu0
  %v8240 = vadd.f32 %v7677, %v8239
  %v8241 = vpop.f32.mrb[0].mxu0
  %8242 = vmatprep.mubr.f32.mxu0 0.0
  %8243 = vmatmul.mubr.f32.gmra.mrb[0].mxu0 %v7865
  %v8244 = vpop.f32.mrb[0].mxu0
  %v8245 = vadd.f32 %v7678, %v8244
  %v8246 = vpop.f32.mrb[0].mxu0
  %8247 = vmatprep.mubr.f32.mxu0 0.0
  %8248 = vmatmul.mubr.f32.gmra.mrb[0].mxu0 %v7868
  %v8249 = vpop.f32.mrb[0].mxu0
  %v8250 = vadd.f32 %v7679, %v8249
  %v8251 = vpop.f32.mrb[0].mxu0
  %8252 = vmatprep.mubr.f32.mxu0 0.0
  %8253 = vmatmul.mubr.f32.gmra.mrb[0].mxu0 %v7871
  %v8254 = vpop.f32.mrb[0].mxu0
  %v8255 = vadd.f32 %v7680, %v8254
  %v8256 = vpop.f32.mrb[0].mxu0
  %8257 = vdwg.mxu0
  %8258 = vst.msk [vmem:[%s7] sm:$0xff] %vm26, %v7940
  %8259 = vst.msk [vmem:[%s7 + $0x8] sm:$0xff] %vm26, %v7945
  %8260 = vst.msk [vmem:[%s7 + $0x10] sm:$0xff] %vm26, %v7950
  %8261 = vst.msk [vmem:[%s7 + $0x18] sm:$0xff] %vm26, %v7955
  %8262 = vst.msk [vmem:[%s7 + $0x20] sm:$0xff] %vm26, %v7960
  %8263 = vst.msk [vmem:[%s7 + $0x28] sm:$0xff] %vm26, %v7965
  %8264 = vst.msk [vmem:[%s7 + $0x30] sm:$0xff] %vm26, %v7970
  %8265 = vst.msk [vmem:[%s7 + $0x38] sm:$0xff] %vm26, %v7975
  %8266 = vst.msk [vmem:[%s7 + $0x40] sm:$0xff] %vm26, %v7980
  %8267 = vst.msk [vmem:[%s7 + $0x48] sm:$0xff] %vm26, %v7985
  %8268 = vst.msk [vmem:[%s7 + $0x50] sm:$0xff] %vm26, %v7990
  %8269 = vst.msk [vmem:[%s7 + $0x58] sm:$0xff] %vm26, %v7995
  %8270 = vst.msk [vmem:[%s7 + $0x60] sm:$0xff] %vm26, %v8000
  %8271 = vst.msk [vmem:[%s7 + $0x68] sm:$0xff] %vm26, %v8005
  %8272 = vst.msk [vmem:[%s7 + $0x70] sm:$0xff] %vm26, %v8010
  %8273 = vst.msk [vmem:[%s7 + $0x78] sm:$0xff] %vm26, %v8015
  %8274 = vst.msk [vmem:[%s7 + $0x80] sm:$0xff] %vm26, %v8020
  %8275 = vst.msk [vmem:[%s7 + $0x88] sm:$0xff] %vm26, %v8025
  %8276 = vst.msk [vmem:[%s7 + $0x90] sm:$0xff] %vm26, %v8030
  %8277 = vst.msk [vmem:[%s7 + $0x98] sm:$0xff] %vm26, %v8035
  %8278 = vst.msk [vmem:[%s7 + $0xa0] sm:$0xff] %vm26, %v8040
  %8279 = vst.msk [vmem:[%s7 + $0xa8] sm:$0xff] %vm26, %v8045
  %8280 = vst.msk [vmem:[%s7 + $0xb0] sm:$0xff] %vm26, %v8050
  %8281 = vst.msk [vmem:[%s7 + $0xb8] sm:$0xff] %vm26, %v8055
  %8282 = vst.msk [vmem:[%s7 + $0xc0] sm:$0xff] %vm26, %v8060
  %8283 = vst.msk [vmem:[%s7 + $0xc8] sm:$0xff] %vm26, %v8065
  %8284 = vst.msk [vmem:[%s7 + $0xd0] sm:$0xff] %vm26, %v8070
  %8285 = vst.msk [vmem:[%s7 + $0xd8] sm:$0xff] %vm26, %v8075
  %8286 = vst.msk [vmem:[%s7 + $0xe0] sm:$0xff] %vm26, %v8080
  %8287 = vst.msk [vmem:[%s7 + $0xe8] sm:$0xff] %vm26, %v8085
  %8288 = vst.msk [vmem:[%s7 + $0xf0] sm:$0xff] %vm26, %v8090
  %8289 = vst.msk [vmem:[%s7 + $0xf8] sm:$0xff] %vm26, %v8095
  %8290 = vst.msk [vmem:[%s7 + $0x100] sm:$0xff] %vm26, %v8100
  %8291 = vst.msk [vmem:[%s7 + $0x108] sm:$0xff] %vm26, %v8105
  %8292 = vst.msk [vmem:[%s7 + $0x110] sm:$0xff] %vm26, %v8110
  %8293 = vst.msk [vmem:[%s7 + $0x118] sm:$0xff] %vm26, %v8115
  %8294 = vst.msk [vmem:[%s7 + $0x120] sm:$0xff] %vm26, %v8120
  %8295 = vst.msk [vmem:[%s7 + $0x128] sm:$0xff] %vm26, %v8125
  %8296 = vst.msk [vmem:[%s7 + $0x130] sm:$0xff] %vm26, %v8130
  %8297 = vst.msk [vmem:[%s7 + $0x138] sm:$0xff] %vm26, %v8135
  %8298 = vst.msk [vmem:[%s7 + $0x140] sm:$0xff] %vm26, %v8140
  %8299 = vst.msk [vmem:[%s7 + $0x148] sm:$0xff] %vm26, %v8145
  %8300 = vst.msk [vmem:[%s7 + $0x150] sm:$0xff] %vm26, %v8150
  %8301 = vst.msk [vmem:[%s7 + $0x158] sm:$0xff] %vm26, %v8155
  %8302 = vst.msk [vmem:[%s7 + $0x160] sm:$0xff] %vm26, %v8160
  %8303 = vst.msk [vmem:[%s7 + $0x168] sm:$0xff] %vm26, %v8165
  %8304 = vst.msk [vmem:[%s7 + $0x170] sm:$0xff] %vm26, %v8170
  %8305 = vst.msk [vmem:[%s7 + $0x178] sm:$0xff] %vm26, %v8175
  %8306 = vst.msk [vmem:[%s7 + $0x180] sm:$0xff] %vm26, %v8180
  %8307 = vst.msk [vmem:[%s7 + $0x188] sm:$0xff] %vm26, %v8185
  %8308 = vst.msk [vmem:[%s7 + $0x190] sm:$0xff] %vm26, %v8190
  %8309 = vst.msk [vmem:[%s7 + $0x198] sm:$0xff] %vm26, %v8195
  %8310 = vst.msk [vmem:[%s7 + $0x1a0] sm:$0xff] %vm26, %v8200
  %8311 = vst.msk [vmem:[%s7 + $0x1a8] sm:$0xff] %vm26, %v8205
  %8312 = vst.msk [vmem:[%s7 + $0x1b0] sm:$0xff] %vm26, %v8210
  %8313 = vst.msk [vmem:[%s7 + $0x1b8] sm:$0xff] %vm26, %v8215
  %8314 = vst.msk [vmem:[%s7 + $0x1c0] sm:$0xff] %vm26, %v8220
  %8315 = vst.msk [vmem:[%s7 + $0x1c8] sm:$0xff] %vm26, %v8225
  %8316 = vst.msk [vmem:[%s7 + $0x1d0] sm:$0xff] %vm26, %v8230
  %8317 = vst.msk [vmem:[%s7 + $0x1d8] sm:$0xff] %vm26, %v8235
  %8318 = vst.msk [vmem:[%s7 + $0x1e0] sm:$0xff] %vm26, %v8240
  %8319 = vst.msk [vmem:[%s7 + $0x1e8] sm:$0xff] %vm26, %v8245
  %8320 = vst.msk [vmem:[%s7 + $0x1f0] sm:$0xff] %vm26, %v8250
  %8321 = vst.msk [vmem:[%s7 + $0x1f8] sm:$0xff] %vm26, %v8255
  // Predicated region
  $region30: #{basic_block_forward.1} parent=0 // pred_check
    _
  $region31: #{basic_block_forward.1} parent=0 // pred_check_branch
    %8323 = sbr.rel (0) target = $region33
  $region32: #{basic_block_forward.1} parent=0 // pred_region
    _
  $region33: #{basic_block_forward.1} parent=0 // pred_fallthru
    _
  // Predicated region
  $region34: #{basic_block_forward.1} parent=0 // pred_check
    _
  $region35: #{basic_block_forward.1} parent=0 // pred_check_branch
    %8325 = sbr.rel (0) target = $region37
  $region36: #{basic_block_forward.1} parent=0 // pred_region
    _
  $region37: #{basic_block_forward.1} parent=0 // pred_fallthru
    _

</llo_original>
